<compile_context>
chip_gen: v6e
topology: v6e:2x2x1
jax: 0.10.0
libtpu: 0.0.40
codegen_flags: <defaults>
</compile_context>

<pallas_src>
import jax
import jax.numpy as jnp
from jax.experimental import pallas as pl
from jax.experimental.pallas import tpu as pltpu

NUM_HEADS = 4
LN_EPS = 1e-5


def _layer_norm(x, gamma, beta):
    # f32 statistics over the feature axis.
    mean = jnp.mean(x, axis=-1, keepdims=True)
    xc = x - mean
    var = jnp.mean(xc * xc, axis=-1, keepdims=True)
    return xc * jax.lax.rsqrt(var + LN_EPS) * gamma + beta


def encoder_layer_kernel(src_ref, wqkv_ref, wo_ref, w1_ref, w2_ref,
                         bqkv_ref, dvec_ref, bf1_ref, out_ref):
    Bt, S, D = src_ref.shape
    M = Bt * S
    H = NUM_HEADS
    hd = D // H
    cdt = wqkv_ref.dtype                       # MXU compute dtype (f32 or bf16)
    scale = 1.0 / (hd ** 0.5)

    # Packed per-feature vectors: rows = [bo, g1, be1, bf2, g2, be2]
    bo = dvec_ref[0:1, :]
    g1 = dvec_ref[1:2, :]
    be1 = dvec_ref[2:3, :]
    bf2 = dvec_ref[3:4, :]
    g2 = dvec_ref[4:5, :]
    be2 = dvec_ref[5:6, :]

    # Flatten (Bt, S) -> rows so every matmul sees M = Bt*S rows.
    x = src_ref[...].reshape(M, D).astype(jnp.float32)

    # Fused QKV projection: one MXU matmul with N = 3D, f32 accumulation.
    qkv = jnp.dot(x.astype(cdt), wqkv_ref[...],
                  preferred_element_type=jnp.float32) + bqkv_ref[...]
    q = qkv[:, :D] * scale                     # fold 1/sqrt(hd) into q once
    k = qkv[:, D:2 * D]
    v = qkv[:, 2 * D:]

    q3 = q.reshape(Bt, S, D)
    k3 = k.reshape(Bt, S, D)
    v3 = v.reshape(Bt, S, D)

    # Multi-head attention.  Short static loop over heads; the batch tile stays
    # a leading einsum dim so the score/softmax/value work is batched over Bt.
    # Head outputs are folded straight into the output projection
    # (concat(heads) @ Wo == sum_h head_h @ Wo[h*hd:(h+1)*hd, :]), which
    # removes the lane-interleaving concatenate entirely.
    attn = jnp.zeros((M, D), jnp.float32)
    for h in range(H):
        lo = h * hd
        qs = q3[:, :, lo:lo + hd].astype(cdt)                  # (Bt, S, hd)
        ks = k3[:, :, lo:lo + hd].astype(cdt)
        vs = v3[:, :, lo:lo + hd].astype(cdt)
        s = jnp.einsum('bqc,bkc->bqk', qs, ks,
                       preferred_element_type=jnp.float32)     # (Bt, S, S)
        s = s - jnp.max(s, axis=-1, keepdims=True)
        p = jnp.exp(s)
        p = p * pl.reciprocal(jnp.sum(p, axis=-1, keepdims=True), approx=True)
        o = jnp.einsum('bqk,bkc->bqc', p.astype(cdt), vs,
                       preferred_element_type=jnp.float32)     # (Bt, S, hd)
        attn = attn + jnp.dot(o.reshape(M, hd).astype(cdt),
                              wo_ref[lo:lo + hd, :],
                              preferred_element_type=jnp.float32)
    attn = attn + bo

    # Residual + LayerNorm 1 (f32).
    out1 = _layer_norm(x + attn, g1, be1)

    # Feed-forward: Linear -> ReLU -> Linear.
    h1 = jnp.dot(out1.astype(cdt), w1_ref[...],
                 preferred_element_type=jnp.float32) + bf1_ref[...]
    h1 = jnp.maximum(h1, 0.0)
    ffn = jnp.dot(h1.astype(cdt), w2_ref[...],
                  preferred_element_type=jnp.float32) + bf2

    # Residual + LayerNorm 2.
    out2 = _layer_norm(out1 + ffn, g2, be2)
    out_ref[...] = out2.reshape(Bt, S, D).astype(out_ref.dtype)


def transformer_encoder_layer_1d(src, params, *, block_batch=None,
                                 compute_dtype=jnp.float32):
    B, S, D = src.shape
    F = params['w1'].shape[1]

    if block_batch is None:
        # Aim for >=128 rows per grid step (real MXU M dimension) while keeping
        # multiple grid steps for pipelining / megacore sharding.
        block_batch = max(1, min(B, max(1, 128 // S)))
    while B % block_batch:
        block_batch -= 1
    Bt = block_batch
    cdt = compute_dtype

    # Fused / packed parameters: QKV weights as one (D, 3D) matmul operand and
    # all (1, D) vectors in a single (6, D) block -> 8 pallas inputs, not 17.
    wqkv = jnp.concatenate([params['wq'], params['wk'], params['wv']],
                           axis=1).astype(cdt)
    bqkv = jnp.concatenate([params['bq'], params['bk'], params['bv']],
                           axis=1).astype(jnp.float32)
    dvecs = jnp.concatenate([params['bo'], params['g1'], params['be1'],
                             params['bf2'], params['g2'], params['be2']],
                            axis=0).astype(jnp.float32)          # (6, D)
    wo = params['wo'].astype(cdt)
    w1 = params['w1'].astype(cdt)
    w2 = params['w2'].astype(cdt)
    bf1 = params['bf1'].astype(jnp.float32)

    def const2d(shape):
        return pl.BlockSpec(shape, lambda b: (0, 0))

    in_specs = [
        pl.BlockSpec((Bt, S, D), lambda b: (b, 0, 0)),   # src tile
        const2d((D, 3 * D)),                             # fused Wqkv
        const2d((D, D)),                                 # Wo
        const2d((D, F)),                                 # FFN W1
        const2d((F, D)),                                 # FFN W2
        const2d((1, 3 * D)),                             # fused bqkv
        const2d((6, D)),                                 # [bo, g1, be1, bf2, g2, be2]
        const2d((1, F)),                                 # bf1
    ]
    out_spec = pl.BlockSpec((Bt, S, D), lambda b: (b, 0, 0))

    return pl.pallas_call(
        encoder_layer_kernel,
        out_shape=jax.ShapeDtypeStruct((B, S, D), src.dtype),
        grid_spec=pltpu.PrefetchScalarGridSpec(
            num_scalar_prefetch=0,
            grid=(B // Bt,),
            in_specs=in_specs,
            out_specs=out_spec,
        ),
        compiler_params=pltpu.CompilerParams(
            dimension_semantics=("parallel",),
            vmem_limit_bytes=32 * 1024 * 1024,
        ),
    )(src, wqkv, wo, w1, w2, bqkv, dvecs, bf1)


def ref_forward(src, p, num_heads=NUM_HEADS):
    # Pure-JAX f32 reference for correctness checking.
    B, S, D = src.shape
    hd = D // num_heads

    def ln(x, g, b):
        m = jnp.mean(x, -1, keepdims=True)
        v = jnp.mean((x - m) ** 2, -1, keepdims=True)
        return (x - m) * jax.lax.rsqrt(v + LN_EPS) * g + b

    q = src @ p['wq'] + p['bq']
    k = src @ p['wk'] + p['bk']
    v = src @ p['wv'] + p['bv']
    qh = q.reshape(B, S, num_heads, hd).transpose(0, 2, 1, 3)
    kh = k.reshape(B, S, num_heads, hd).transpose(0, 2, 1, 3)
    vh = v.reshape(B, S, num_heads, hd).transpose(0, 2, 1, 3)
    s = jnp.einsum('bhqd,bhkd->bhqk', qh, kh) / jnp.sqrt(float(hd))
    a = jax.nn.softmax(s, axis=-1)
    o = jnp.einsum('bhqk,bhkd->bhqd', a, vh).transpose(0, 2, 1, 3).reshape(B, S, D)
    attn = o @ p['wo'] + p['bo']
    out1 = ln(src + attn, p['g1'], p['be1'])
    ffn = jnp.maximum(out1 @ p['w1'] + p['bf1'], 0.0) @ p['w2'] + p['bf2']
    return ln(out1 + ffn, p['g2'], p['be2'])


def init_params(key, d_model, d_ffn):
    keys = jax.random.split(key, 10)
    n = lambda k, shp: (0.02 * jax.random.normal(k, shp)).astype(jnp.float32)
    return {
        'wq': n(keys[0], (d_model, d_model)), 'bq': n(keys[1], (1, d_model)),
        'wk': n(keys[2], (d_model, d_model)), 'bk': n(keys[3], (1, d_model)),
        'wv': n(keys[4], (d_model, d_model)), 'bv': n(keys[5], (1, d_model)),
        'wo': n(keys[6], (d_model, d_model)), 'bo': n(keys[7], (1, d_model)),
        'g1': jnp.ones((1, d_model), jnp.float32),
        'be1': jnp.zeros((1, d_model), jnp.float32),
        'w1': n(keys[8], (d_model, d_ffn)), 'bf1': jnp.zeros((1, d_ffn), jnp.float32),
        'w2': n(keys[9], (d_ffn, d_model)), 'bf2': jnp.zeros((1, d_model), jnp.float32),
        'g2': jnp.ones((1, d_model), jnp.float32),
        'be2': jnp.zeros((1, d_model), jnp.float32),
    }


if __name__ == "__main__":
    # batch, seq, d_model (multiple of 128 -> lane-dense), ffn hidden
    B, S, D, F = 32, 16, 128, 256
    key = jax.random.PRNGKey(0)
    k_src, k_par = jax.random.split(key)
    src = jax.random.normal(k_src, (B, S, D), dtype=jnp.float32)
    params = init_params(k_par, D, F)

    ref = ref_forward(src, params)

    # f32 MXU path
    out_f32 = jax.block_until_ready(
        transformer_encoder_layer_1d(src, params, compute_dtype=jnp.float32))
    assert out_f32.shape == (B, S, D)
    assert jnp.all(jnp.isfinite(out_f32))
    err32 = jnp.max(jnp.abs(out_f32 - ref))
    assert jnp.allclose(out_f32, ref, rtol=1e-3, atol=1e-3), \
        f"f32 max abs diff {err32}"

    # bf16 MXU path (f32 accumulation / softmax / LayerNorm stats)
    out_bf16 = jax.block_until_ready(
        transformer_encoder_layer_1d(src, params, compute_dtype=jnp.bfloat16))
    assert jnp.all(jnp.isfinite(out_bf16))
    errbf = jnp.max(jnp.abs(out_bf16 - ref))
    assert jnp.allclose(out_bf16, ref, rtol=3e-2, atol=3e-2), \
        f"bf16 max abs diff {errbf}"

    print("KERNEL_OK")
</pallas_src>

<mosaic_0001>
module attributes {stable_mosaic.version = 11 : i64} {
  func.func @encoder_layer_kernel(%arg0: i32, %arg1: memref<8x16x128xf32, #tpu.memory_space<vmem>>, %arg2: memref<128x384xf32, #tpu.memory_space<vmem>>, %arg3: memref<128x128xf32, #tpu.memory_space<vmem>>, %arg4: memref<128x256xf32, #tpu.memory_space<vmem>>, %arg5: memref<256x128xf32, #tpu.memory_space<vmem>>, %arg6: memref<1x384xf32, #tpu.memory_space<vmem>>, %arg7: memref<6x128xf32, #tpu.memory_space<vmem>>, %arg8: memref<1x256xf32, #tpu.memory_space<vmem>>, %arg9: memref<8x16x128xf32, #tpu.memory_space<vmem>>) attributes {dimension_semantics = [#tpu.dimension_semantics<parallel>], iteration_bounds = array<i64: 4>, scalar_prefetch = 0 : i64, scratch_operands = 0 : i64, tpu.core_type = #tpu.core_type<tc>, window_params = [{transform_indices = @transform_0, window_bounds = array<i64: 8, 16, 128>}, {pipeline_mode = #tpu.pipeline_mode<synchronous>, transform_indices = @transform_1, window_bounds = array<i64: 128, 384>}, {pipeline_mode = #tpu.pipeline_mode<synchronous>, transform_indices = @transform_2, window_bounds = array<i64: 128, 128>}, {pipeline_mode = #tpu.pipeline_mode<synchronous>, transform_indices = @transform_3, window_bounds = array<i64: 128, 256>}, {pipeline_mode = #tpu.pipeline_mode<synchronous>, transform_indices = @transform_4, window_bounds = array<i64: 256, 128>}, {pipeline_mode = #tpu.pipeline_mode<synchronous>, transform_indices = @transform_5, window_bounds = array<i64: 1, 384>}, {pipeline_mode = #tpu.pipeline_mode<synchronous>, transform_indices = @transform_6, window_bounds = array<i64: 6, 128>}, {pipeline_mode = #tpu.pipeline_mode<synchronous>, transform_indices = @transform_7, window_bounds = array<i64: 1, 256>}, {transform_indices = @transform_8, window_bounds = array<i64: 8, 16, 128>}]} {
    %c0 = arith.constant 0 : index
    %c0_0 = arith.constant 0 : index
    %0 = vector.load %arg7[%c0, %c0_0] : memref<6x128xf32, #tpu.memory_space<vmem>>, vector<1x128xf32>
    %c1 = arith.constant 1 : index
    %c0_1 = arith.constant 0 : index
    %1 = vector.load %arg7[%c1, %c0_1] : memref<6x128xf32, #tpu.memory_space<vmem>>, vector<1x128xf32>
    %c2 = arith.constant 2 : index
    %c0_2 = arith.constant 0 : index
    %2 = vector.load %arg7[%c2, %c0_2] : memref<6x128xf32, #tpu.memory_space<vmem>>, vector<1x128xf32>
    %c3 = arith.constant 3 : index
    %c0_3 = arith.constant 0 : index
    %3 = vector.load %arg7[%c3, %c0_3] : memref<6x128xf32, #tpu.memory_space<vmem>>, vector<1x128xf32>
    %c4 = arith.constant 4 : index
    %c0_4 = arith.constant 0 : index
    %4 = vector.load %arg7[%c4, %c0_4] : memref<6x128xf32, #tpu.memory_space<vmem>>, vector<1x128xf32>
    %c5 = arith.constant 5 : index
    %c0_5 = arith.constant 0 : index
    %5 = vector.load %arg7[%c5, %c0_5] : memref<6x128xf32, #tpu.memory_space<vmem>>, vector<1x128xf32>
    %c0_6 = arith.constant 0 : index
    %c0_7 = arith.constant 0 : index
    %c0_8 = arith.constant 0 : index
    %6 = vector.load %arg1[%c0_6, %c0_7, %c0_8] : memref<8x16x128xf32, #tpu.memory_space<vmem>>, vector<8x16x128xf32>
    %7 = vector.shape_cast %6 : vector<8x16x128xf32> to vector<128x128xf32>
    %c0_9 = arith.constant 0 : index
    %c0_10 = arith.constant 0 : index
    %8 = vector.load %arg2[%c0_9, %c0_10] : memref<128x384xf32, #tpu.memory_space<vmem>>, vector<128x384xf32>
    %cst = arith.constant dense<0.000000e+00> : vector<128x384xf32>
    %9 = tpu.matmul %7, %8, %cst {dimension_numbers = #tpu.dot_dimension_numbers<[1], [0], [0], [1], [0, 0, 1, 1], [], []>} : vector<128x128xf32>, vector<128x384xf32>, vector<128x384xf32> -> vector<128x384xf32>
    %c0_11 = arith.constant 0 : index
    %c0_12 = arith.constant 0 : index
    %10 = vector.load %arg6[%c0_11, %c0_12] : memref<1x384xf32, #tpu.memory_space<vmem>>, vector<1x384xf32>
    %11 = vector.broadcast %10 : vector<1x384xf32> to vector<128x384xf32>
    %12 = arith.addf %9, %11 : vector<128x384xf32>
    %13 = vector.extract_strided_slice %12 {offsets = [0, 0], sizes = [128, 128], strides = [1, 1]} : vector<128x384xf32> to vector<128x128xf32>
    %cst_13 = arith.constant 0.176776692 : f32
    %14 = vector.broadcast %cst_13 : f32 to vector<128x128xf32>
    %15 = arith.mulf %13, %14 : vector<128x128xf32>
    %16 = vector.extract_strided_slice %12 {offsets = [0, 128], sizes = [128, 128], strides = [1, 1]} : vector<128x384xf32> to vector<128x128xf32>
    %17 = vector.extract_strided_slice %12 {offsets = [0, 256], sizes = [128, 128], strides = [1, 1]} : vector<128x384xf32> to vector<128x128xf32>
    %18 = vector.shape_cast %15 : vector<128x128xf32> to vector<8x16x128xf32>
    %19 = vector.shape_cast %16 : vector<128x128xf32> to vector<8x16x128xf32>
    %20 = vector.shape_cast %17 : vector<128x128xf32> to vector<8x16x128xf32>
    %cst_14 = arith.constant 0.000000e+00 : f32
    %21 = vector.broadcast %cst_14 : f32 to vector<128x128xf32>
    %22 = vector.extract_strided_slice %18 {offsets = [0, 0, 0], sizes = [8, 16, 32], strides = [1, 1, 1]} : vector<8x16x128xf32> to vector<8x16x32xf32>
    %23 = vector.extract_strided_slice %19 {offsets = [0, 0, 0], sizes = [8, 16, 32], strides = [1, 1, 1]} : vector<8x16x128xf32> to vector<8x16x32xf32>
    %24 = vector.extract_strided_slice %20 {offsets = [0, 0, 0], sizes = [8, 16, 32], strides = [1, 1, 1]} : vector<8x16x128xf32> to vector<8x16x32xf32>
    "tpu.trace_start"() <{level = 10 : i32, message = "bqc,bkc->bqk"}> : () -> ()
    %cst_15 = arith.constant dense<0.000000e+00> : vector<8x16x16xf32>
    %25 = tpu.matmul %22, %23, %cst_15 {dimension_numbers = #tpu.dot_dimension_numbers<[2], [2], [1], [1], [0, 0, 0, 1, 1, 1], [0], [0]>} : vector<8x16x32xf32>, vector<8x16x32xf32>, vector<8x16x16xf32> -> vector<8x16x16xf32>
    "tpu.trace_stop"() : () -> ()
    %cst_16 = arith.constant dense<0xFF800000> : vector<8x16xf32>
    %26 = vector.multi_reduction <maximumf>, %25, %cst_16 [2] : vector<8x16x16xf32> to vector<8x16xf32>
    %27 = vector.shape_cast %26 : vector<8x16xf32> to vector<8x16x1xf32>
    %28 = vector.broadcast %27 : vector<8x16x1xf32> to vector<8x16x16xf32>
    %29 = arith.subf %25, %28 : vector<8x16x16xf32>
    %30 = math.exp %29 : vector<8x16x16xf32>
    %cst_17 = arith.constant dense<0.000000e+00> : vector<8x16xf32>
    %31 = vector.multi_reduction <add>, %30, %cst_17 [2] : vector<8x16x16xf32> to vector<8x16xf32>
    %32 = vector.shape_cast %31 : vector<8x16xf32> to vector<8x16x1xf32>
    %33 = tpu.reciprocal %32 {approx = true} : vector<8x16x1xf32> -> vector<8x16x1xf32>
    %34 = vector.broadcast %33 : vector<8x16x1xf32> to vector<8x16x16xf32>
    %35 = arith.mulf %30, %34 : vector<8x16x16xf32>
    "tpu.trace_start"() <{level = 10 : i32, message = "bqk,bkc->bqc"}> : () -> ()
    %cst_18 = arith.constant dense<0.000000e+00> : vector<8x16x32xf32>
    %36 = tpu.matmul %35, %24, %cst_18 {dimension_numbers = #tpu.dot_dimension_numbers<[2], [1], [1], [2], [0, 0, 0, 1, 1, 2], [0], [0]>} : vector<8x16x16xf32>, vector<8x16x32xf32>, vector<8x16x32xf32> -> vector<8x16x32xf32>
    "tpu.trace_stop"() : () -> ()
    %37 = vector.shape_cast %36 : vector<8x16x32xf32> to vector<128x32xf32>
    %c0_19 = arith.constant 0 : index
    %c0_20 = arith.constant 0 : index
    %38 = vector.load %arg3[%c0_19, %c0_20] : memref<128x128xf32, #tpu.memory_space<vmem>>, vector<32x128xf32>
    %cst_21 = arith.constant dense<0.000000e+00> : vector<128x128xf32>
    %39 = tpu.matmul %37, %38, %cst_21 {dimension_numbers = #tpu.dot_dimension_numbers<[1], [0], [0], [1], [0, 0, 1, 1], [], []>} : vector<128x32xf32>, vector<32x128xf32>, vector<128x128xf32> -> vector<128x128xf32>
    %40 = arith.addf %21, %39 : vector<128x128xf32>
    %41 = vector.extract_strided_slice %18 {offsets = [0, 0, 32], sizes = [8, 16, 32], strides = [1, 1, 1]} : vector<8x16x128xf32> to vector<8x16x32xf32>
    %42 = vector.extract_strided_slice %19 {offsets = [0, 0, 32], sizes = [8, 16, 32], strides = [1, 1, 1]} : vector<8x16x128xf32> to vector<8x16x32xf32>
    %43 = vector.extract_strided_slice %20 {offsets = [0, 0, 32], sizes = [8, 16, 32], strides = [1, 1, 1]} : vector<8x16x128xf32> to vector<8x16x32xf32>
    "tpu.trace_start"() <{level = 10 : i32, message = "bqc,bkc->bqk"}> : () -> ()
    %cst_22 = arith.constant dense<0.000000e+00> : vector<8x16x16xf32>
    %44 = tpu.matmul %41, %42, %cst_22 {dimension_numbers = #tpu.dot_dimension_numbers<[2], [2], [1], [1], [0, 0, 0, 1, 1, 1], [0], [0]>} : vector<8x16x32xf32>, vector<8x16x32xf32>, vector<8x16x16xf32> -> vector<8x16x16xf32>
    "tpu.trace_stop"() : () -> ()
    %cst_23 = arith.constant dense<0xFF800000> : vector<8x16xf32>
    %45 = vector.multi_reduction <maximumf>, %44, %cst_23 [2] : vector<8x16x16xf32> to vector<8x16xf32>
    %46 = vector.shape_cast %45 : vector<8x16xf32> to vector<8x16x1xf32>
    %47 = vector.broadcast %46 : vector<8x16x1xf32> to vector<8x16x16xf32>
    %48 = arith.subf %44, %47 : vector<8x16x16xf32>
    %49 = math.exp %48 : vector<8x16x16xf32>
    %cst_24 = arith.constant dense<0.000000e+00> : vector<8x16xf32>
    %50 = vector.multi_reduction <add>, %49, %cst_24 [2] : vector<8x16x16xf32> to vector<8x16xf32>
    %51 = vector.shape_cast %50 : vector<8x16xf32> to vector<8x16x1xf32>
    %52 = tpu.reciprocal %51 {approx = true} : vector<8x16x1xf32> -> vector<8x16x1xf32>
    %53 = vector.broadcast %52 : vector<8x16x1xf32> to vector<8x16x16xf32>
    %54 = arith.mulf %49, %53 : vector<8x16x16xf32>
    "tpu.trace_start"() <{level = 10 : i32, message = "bqk,bkc->bqc"}> : () -> ()
    %cst_25 = arith.constant dense<0.000000e+00> : vector<8x16x32xf32>
    %55 = tpu.matmul %54, %43, %cst_25 {dimension_numbers = #tpu.dot_dimension_numbers<[2], [1], [1], [2], [0, 0, 0, 1, 1, 2], [0], [0]>} : vector<8x16x16xf32>, vector<8x16x32xf32>, vector<8x16x32xf32> -> vector<8x16x32xf32>
    "tpu.trace_stop"() : () -> ()
    %56 = vector.shape_cast %55 : vector<8x16x32xf32> to vector<128x32xf32>
    %c32 = arith.constant 32 : index
    %c0_26 = arith.constant 0 : index
    %57 = vector.load %arg3[%c32, %c0_26] : memref<128x128xf32, #tpu.memory_space<vmem>>, vector<32x128xf32>
    %cst_27 = arith.constant dense<0.000000e+00> : vector<128x128xf32>
    %58 = tpu.matmul %56, %57, %cst_27 {dimension_numbers = #tpu.dot_dimension_numbers<[1], [0], [0], [1], [0, 0, 1, 1], [], []>} : vector<128x32xf32>, vector<32x128xf32>, vector<128x128xf32> -> vector<128x128xf32>
    %59 = arith.addf %40, %58 : vector<128x128xf32>
    %60 = vector.extract_strided_slice %18 {offsets = [0, 0, 64], sizes = [8, 16, 32], strides = [1, 1, 1]} : vector<8x16x128xf32> to vector<8x16x32xf32>
    %61 = vector.extract_strided_slice %19 {offsets = [0, 0, 64], sizes = [8, 16, 32], strides = [1, 1, 1]} : vector<8x16x128xf32> to vector<8x16x32xf32>
    %62 = vector.extract_strided_slice %20 {offsets = [0, 0, 64], sizes = [8, 16, 32], strides = [1, 1, 1]} : vector<8x16x128xf32> to vector<8x16x32xf32>
    "tpu.trace_start"() <{level = 10 : i32, message = "bqc,bkc->bqk"}> : () -> ()
    %cst_28 = arith.constant dense<0.000000e+00> : vector<8x16x16xf32>
    %63 = tpu.matmul %60, %61, %cst_28 {dimension_numbers = #tpu.dot_dimension_numbers<[2], [2], [1], [1], [0, 0, 0, 1, 1, 1], [0], [0]>} : vector<8x16x32xf32>, vector<8x16x32xf32>, vector<8x16x16xf32> -> vector<8x16x16xf32>
    "tpu.trace_stop"() : () -> ()
    %cst_29 = arith.constant dense<0xFF800000> : vector<8x16xf32>
    %64 = vector.multi_reduction <maximumf>, %63, %cst_29 [2] : vector<8x16x16xf32> to vector<8x16xf32>
    %65 = vector.shape_cast %64 : vector<8x16xf32> to vector<8x16x1xf32>
    %66 = vector.broadcast %65 : vector<8x16x1xf32> to vector<8x16x16xf32>
    %67 = arith.subf %63, %66 : vector<8x16x16xf32>
    %68 = math.exp %67 : vector<8x16x16xf32>
    %cst_30 = arith.constant dense<0.000000e+00> : vector<8x16xf32>
    %69 = vector.multi_reduction <add>, %68, %cst_30 [2] : vector<8x16x16xf32> to vector<8x16xf32>
    %70 = vector.shape_cast %69 : vector<8x16xf32> to vector<8x16x1xf32>
    %71 = tpu.reciprocal %70 {approx = true} : vector<8x16x1xf32> -> vector<8x16x1xf32>
    %72 = vector.broadcast %71 : vector<8x16x1xf32> to vector<8x16x16xf32>
    %73 = arith.mulf %68, %72 : vector<8x16x16xf32>
    "tpu.trace_start"() <{level = 10 : i32, message = "bqk,bkc->bqc"}> : () -> ()
    %cst_31 = arith.constant dense<0.000000e+00> : vector<8x16x32xf32>
    %74 = tpu.matmul %73, %62, %cst_31 {dimension_numbers = #tpu.dot_dimension_numbers<[2], [1], [1], [2], [0, 0, 0, 1, 1, 2], [0], [0]>} : vector<8x16x16xf32>, vector<8x16x32xf32>, vector<8x16x32xf32> -> vector<8x16x32xf32>
    "tpu.trace_stop"() : () -> ()
    %75 = vector.shape_cast %74 : vector<8x16x32xf32> to vector<128x32xf32>
    %c64 = arith.constant 64 : index
    %c0_32 = arith.constant 0 : index
    %76 = vector.load %arg3[%c64, %c0_32] : memref<128x128xf32, #tpu.memory_space<vmem>>, vector<32x128xf32>
    %cst_33 = arith.constant dense<0.000000e+00> : vector<128x128xf32>
    %77 = tpu.matmul %75, %76, %cst_33 {dimension_numbers = #tpu.dot_dimension_numbers<[1], [0], [0], [1], [0, 0, 1, 1], [], []>} : vector<128x32xf32>, vector<32x128xf32>, vector<128x128xf32> -> vector<128x128xf32>
    %78 = arith.addf %59, %77 : vector<128x128xf32>
    %79 = vector.extract_strided_slice %18 {offsets = [0, 0, 96], sizes = [8, 16, 32], strides = [1, 1, 1]} : vector<8x16x128xf32> to vector<8x16x32xf32>
    %80 = vector.extract_strided_slice %19 {offsets = [0, 0, 96], sizes = [8, 16, 32], strides = [1, 1, 1]} : vector<8x16x128xf32> to vector<8x16x32xf32>
    %81 = vector.extract_strided_slice %20 {offsets = [0, 0, 96], sizes = [8, 16, 32], strides = [1, 1, 1]} : vector<8x16x128xf32> to vector<8x16x32xf32>
    "tpu.trace_start"() <{level = 10 : i32, message = "bqc,bkc->bqk"}> : () -> ()
    %cst_34 = arith.constant dense<0.000000e+00> : vector<8x16x16xf32>
    %82 = tpu.matmul %79, %80, %cst_34 {dimension_numbers = #tpu.dot_dimension_numbers<[2], [2], [1], [1], [0, 0, 0, 1, 1, 1], [0], [0]>} : vector<8x16x32xf32>, vector<8x16x32xf32>, vector<8x16x16xf32> -> vector<8x16x16xf32>
    "tpu.trace_stop"() : () -> ()
    %cst_35 = arith.constant dense<0xFF800000> : vector<8x16xf32>
    %83 = vector.multi_reduction <maximumf>, %82, %cst_35 [2] : vector<8x16x16xf32> to vector<8x16xf32>
    %84 = vector.shape_cast %83 : vector<8x16xf32> to vector<8x16x1xf32>
    %85 = vector.broadcast %84 : vector<8x16x1xf32> to vector<8x16x16xf32>
    %86 = arith.subf %82, %85 : vector<8x16x16xf32>
    %87 = math.exp %86 : vector<8x16x16xf32>
    %cst_36 = arith.constant dense<0.000000e+00> : vector<8x16xf32>
    %88 = vector.multi_reduction <add>, %87, %cst_36 [2] : vector<8x16x16xf32> to vector<8x16xf32>
    %89 = vector.shape_cast %88 : vector<8x16xf32> to vector<8x16x1xf32>
    %90 = tpu.reciprocal %89 {approx = true} : vector<8x16x1xf32> -> vector<8x16x1xf32>
    %91 = vector.broadcast %90 : vector<8x16x1xf32> to vector<8x16x16xf32>
    %92 = arith.mulf %87, %91 : vector<8x16x16xf32>
    "tpu.trace_start"() <{level = 10 : i32, message = "bqk,bkc->bqc"}> : () -> ()
    %cst_37 = arith.constant dense<0.000000e+00> : vector<8x16x32xf32>
    %93 = tpu.matmul %92, %81, %cst_37 {dimension_numbers = #tpu.dot_dimension_numbers<[2], [1], [1], [2], [0, 0, 0, 1, 1, 2], [0], [0]>} : vector<8x16x16xf32>, vector<8x16x32xf32>, vector<8x16x32xf32> -> vector<8x16x32xf32>
    "tpu.trace_stop"() : () -> ()
    %94 = vector.shape_cast %93 : vector<8x16x32xf32> to vector<128x32xf32>
    %c96 = arith.constant 96 : index
    %c0_38 = arith.constant 0 : index
    %95 = vector.load %arg3[%c96, %c0_38] : memref<128x128xf32, #tpu.memory_space<vmem>>, vector<32x128xf32>
    %cst_39 = arith.constant dense<0.000000e+00> : vector<128x128xf32>
    %96 = tpu.matmul %94, %95, %cst_39 {dimension_numbers = #tpu.dot_dimension_numbers<[1], [0], [0], [1], [0, 0, 1, 1], [], []>} : vector<128x32xf32>, vector<32x128xf32>, vector<128x128xf32> -> vector<128x128xf32>
    %97 = arith.addf %78, %96 : vector<128x128xf32>
    %98 = vector.broadcast %0 : vector<1x128xf32> to vector<128x128xf32>
    %99 = arith.addf %97, %98 : vector<128x128xf32>
    %100 = arith.addf %7, %99 : vector<128x128xf32>
    %cst_40 = arith.constant dense<0.000000e+00> : vector<128xf32>
    %101 = vector.multi_reduction <add>, %100, %cst_40 [1] : vector<128x128xf32> to vector<128xf32>
    %102 = vector.shape_cast %101 : vector<128xf32> to vector<128x1xf32>
    %cst_41 = arith.constant 1.280000e+02 : f32
    %103 = vector.broadcast %cst_41 : f32 to vector<128x1xf32>
    %104 = arith.divf %102, %103 : vector<128x1xf32>
    %105 = vector.broadcast %104 : vector<128x1xf32> to vector<128x128xf32>
    %106 = arith.subf %100, %105 : vector<128x128xf32>
    %107 = arith.mulf %106, %106 : vector<128x128xf32>
    %cst_42 = arith.constant dense<0.000000e+00> : vector<128xf32>
    %108 = vector.multi_reduction <add>, %107, %cst_42 [1] : vector<128x128xf32> to vector<128xf32>
    %109 = vector.shape_cast %108 : vector<128xf32> to vector<128x1xf32>
    %cst_43 = arith.constant 1.280000e+02 : f32
    %110 = vector.broadcast %cst_43 : f32 to vector<128x1xf32>
    %111 = arith.divf %109, %110 : vector<128x1xf32>
    %cst_44 = arith.constant 9.99999974E-6 : f32
    %112 = vector.broadcast %cst_44 : f32 to vector<128x1xf32>
    %113 = arith.addf %111, %112 : vector<128x1xf32>
    %114 = math.rsqrt %113 : vector<128x1xf32>
    %115 = vector.broadcast %114 : vector<128x1xf32> to vector<128x128xf32>
    %116 = arith.mulf %106, %115 : vector<128x128xf32>
    %117 = vector.broadcast %1 : vector<1x128xf32> to vector<128x128xf32>
    %118 = arith.mulf %116, %117 : vector<128x128xf32>
    %119 = vector.broadcast %2 : vector<1x128xf32> to vector<128x128xf32>
    %120 = arith.addf %118, %119 : vector<128x128xf32>
    %c0_45 = arith.constant 0 : index
    %c0_46 = arith.constant 0 : index
    %121 = vector.load %arg4[%c0_45, %c0_46] : memref<128x256xf32, #tpu.memory_space<vmem>>, vector<128x256xf32>
    %cst_47 = arith.constant dense<0.000000e+00> : vector<128x256xf32>
    %122 = tpu.matmul %120, %121, %cst_47 {dimension_numbers = #tpu.dot_dimension_numbers<[1], [0], [0], [1], [0, 0, 1, 1], [], []>} : vector<128x128xf32>, vector<128x256xf32>, vector<128x256xf32> -> vector<128x256xf32>
    %c0_48 = arith.constant 0 : index
    %c0_49 = arith.constant 0 : index
    %123 = vector.load %arg8[%c0_48, %c0_49] : memref<1x256xf32, #tpu.memory_space<vmem>>, vector<1x256xf32>
    %124 = vector.broadcast %123 : vector<1x256xf32> to vector<128x256xf32>
    %125 = arith.addf %122, %124 : vector<128x256xf32>
    %cst_50 = arith.constant 0.000000e+00 : f32
    %126 = vector.broadcast %cst_50 : f32 to vector<128x256xf32>
    %127 = arith.maximumf %125, %126 : vector<128x256xf32>
    %c0_51 = arith.constant 0 : index
    %c0_52 = arith.constant 0 : index
    %128 = vector.load %arg5[%c0_51, %c0_52] : memref<256x128xf32, #tpu.memory_space<vmem>>, vector<256x128xf32>
    %cst_53 = arith.constant dense<0.000000e+00> : vector<128x128xf32>
    %129 = tpu.matmul %127, %128, %cst_53 {dimension_numbers = #tpu.dot_dimension_numbers<[1], [0], [0], [1], [0, 0, 1, 1], [], []>} : vector<128x256xf32>, vector<256x128xf32>, vector<128x128xf32> -> vector<128x128xf32>
    %130 = vector.broadcast %3 : vector<1x128xf32> to vector<128x128xf32>
    %131 = arith.addf %129, %130 : vector<128x128xf32>
    %132 = arith.addf %120, %131 : vector<128x128xf32>
    %cst_54 = arith.constant dense<0.000000e+00> : vector<128xf32>
    %133 = vector.multi_reduction <add>, %132, %cst_54 [1] : vector<128x128xf32> to vector<128xf32>
    %134 = vector.shape_cast %133 : vector<128xf32> to vector<128x1xf32>
    %cst_55 = arith.constant 1.280000e+02 : f32
    %135 = vector.broadcast %cst_55 : f32 to vector<128x1xf32>
    %136 = arith.divf %134, %135 : vector<128x1xf32>
    %137 = vector.broadcast %136 : vector<128x1xf32> to vector<128x128xf32>
    %138 = arith.subf %132, %137 : vector<128x128xf32>
    %139 = arith.mulf %138, %138 : vector<128x128xf32>
    %cst_56 = arith.constant dense<0.000000e+00> : vector<128xf32>
    %140 = vector.multi_reduction <add>, %139, %cst_56 [1] : vector<128x128xf32> to vector<128xf32>
    %141 = vector.shape_cast %140 : vector<128xf32> to vector<128x1xf32>
    %cst_57 = arith.constant 1.280000e+02 : f32
    %142 = vector.broadcast %cst_57 : f32 to vector<128x1xf32>
    %143 = arith.divf %141, %142 : vector<128x1xf32>
    %cst_58 = arith.constant 9.99999974E-6 : f32
    %144 = vector.broadcast %cst_58 : f32 to vector<128x1xf32>
    %145 = arith.addf %143, %144 : vector<128x1xf32>
    %146 = math.rsqrt %145 : vector<128x1xf32>
    %147 = vector.broadcast %146 : vector<128x1xf32> to vector<128x128xf32>
    %148 = arith.mulf %138, %147 : vector<128x128xf32>
    %149 = vector.broadcast %4 : vector<1x128xf32> to vector<128x128xf32>
    %150 = arith.mulf %148, %149 : vector<128x128xf32>
    %151 = vector.broadcast %5 : vector<1x128xf32> to vector<128x128xf32>
    %152 = arith.addf %150, %151 : vector<128x128xf32>
    %153 = vector.shape_cast %152 : vector<128x128xf32> to vector<8x16x128xf32>
    %c0_59 = arith.constant 0 : index
    %c0_60 = arith.constant 0 : index
    %c0_61 = arith.constant 0 : index
    %154 = vector.load %arg9[%c0_59, %c0_60, %c0_61] : memref<8x16x128xf32, #tpu.memory_space<vmem>>, vector<8x16x128xf32>
    tpu.vector_store %arg9[%c0_59, %c0_60, %c0_61], %153 {strides = array<i32>} : memref<8x16x128xf32, #tpu.memory_space<vmem>>, vector<8x16x128xf32>,
    return
  }
  func.func @transform_0(%arg0: i32) -> (i32, i32, i32) {
    %c0_i32 = arith.constant 0 : i32
    %c0_i32_0 = arith.constant 0 : i32
    %c0_i32_1 = arith.constant 0 : i32
    return %arg0, %c0_i32, %c0_i32_0 : i32, i32, i32
  }
  func.func @transform_1(%arg0: i32) -> (i32, i32) {
    %c0_i32 = arith.constant 0 : i32
    %c0_i32_0 = arith.constant 0 : i32
    %c0_i32_1 = arith.constant 0 : i32
    return %c0_i32, %c0_i32_0 : i32, i32
  }
  func.func @transform_2(%arg0: i32) -> (i32, i32) {
    %c0_i32 = arith.constant 0 : i32
    %c0_i32_0 = arith.constant 0 : i32
    %c0_i32_1 = arith.constant 0 : i32
    return %c0_i32, %c0_i32_0 : i32, i32
  }
  func.func @transform_3(%arg0: i32) -> (i32, i32) {
    %c0_i32 = arith.constant 0 : i32
    %c0_i32_0 = arith.constant 0 : i32
    %c0_i32_1 = arith.constant 0 : i32
    return %c0_i32, %c0_i32_0 : i32, i32
  }
  func.func @transform_4(%arg0: i32) -> (i32, i32) {
    %c0_i32 = arith.constant 0 : i32
    %c0_i32_0 = arith.constant 0 : i32
    %c0_i32_1 = arith.constant 0 : i32
    return %c0_i32, %c0_i32_0 : i32, i32
  }
  func.func @transform_5(%arg0: i32) -> (i32, i32) {
    %c0_i32 = arith.constant 0 : i32
    %c0_i32_0 = arith.constant 0 : i32
    %c0_i32_1 = arith.constant 0 : i32
    return %c0_i32, %c0_i32_0 : i32, i32
  }
  func.func @transform_6(%arg0: i32) -> (i32, i32) {
    %c0_i32 = arith.constant 0 : i32
    %c0_i32_0 = arith.constant 0 : i32
    %c0_i32_1 = arith.constant 0 : i32
    return %c0_i32, %c0_i32_0 : i32, i32
  }
  func.func @transform_7(%arg0: i32) -> (i32, i32) {
    %c0_i32 = arith.constant 0 : i32
    %c0_i32_0 = arith.constant 0 : i32
    %c0_i32_1 = arith.constant 0 : i32
    return %c0_i32, %c0_i32_0 : i32, i32
  }
  func.func @transform_8(%arg0: i32) -> (i32, i32, i32) {
    %c0_i32 = arith.constant 0 : i32
    %c0_i32_0 = arith.constant 0 : i32
    %c0_i32_1 = arith.constant 0 : i32
    return %arg0, %c0_i32, %c0_i32_0 : i32, i32, i32
  }
}

</mosaic_0001>

<llo_original>
// kernel: tpu_custom_call.1
$region0: #{tpu_custom_call.1}
  #allocation0 [shape = 'u32[]', space=smem, size = 0x4, offset = 0x4, fixed_abs, tag = 'smem constant byte address 0x4 - core index']
  #allocation1 [shape = 'u32[144,128]{1,0:T(1,128)}', space=vmem, size = 0x12000, scoped, tag = 'internal scratch']
  %s0 = inlined_call_operand.hbm [shape: f32[32,16,128], index: 0, kind: input, shape index: {}]
  %s1 = inlined_call_operand.hbm [shape: f32[128,384], index: 1, kind: input, shape index: {}]
  %s2 = inlined_call_operand.hbm [shape: f32[128,128], index: 2, kind: input, shape index: {}]
  %s3 = inlined_call_operand.hbm [shape: f32[128,256], index: 3, kind: input, shape index: {}]
  %s4 = inlined_call_operand.hbm [shape: f32[256,128], index: 4, kind: input, shape index: {}]
  %s5 = inlined_call_operand.hbm [shape: f32[1,384], index: 5, kind: input, shape index: {}]
  %s6 = inlined_call_operand.vmem [shape: f32[6,128], index: 6, kind: input, shape index: {}]
  %s7 = inlined_call_operand.vmem [shape: f32[1,256], index: 7, kind: input, shape index: {}]
  %s8 = inlined_call_operand.hbm [shape: f32[32,16,128], index: 8, kind: output, shape index: {}]
  %s9 = sld [smem:[#allocation0]]
  $region89: #{tpu_custom_call.1} parent=0
    _
  %s11 = ssub.s32 1, %s9
  %s12 = scalar_select 0, %s11, %s9
  $region1: #{tpu_custom_call.1} parent=0
    #allocation2 [shape = 'u8[131072]{0}', space=vmem, size = 0x20000, scoped, tag = 'input window, operand 0']
    #allocation3 [shape = 's32[2]{0}', space=sflag, size = 0x8, scoped, tag = 'scoped memory for tpu_custom_call.1']
    #allocation4 [shape = 's32[2]{0}', space=sflag, size = 0x8, scoped, tag = 'scoped memory for tpu_custom_call.1']
    #allocation5 [shape = 'u8[196608]{0}', space=vmem, size = 0x30000, scoped, tag = 'input window, operand 1, single buffered']
    #allocation6 [shape = 's32[1]{0}', space=sflag, size = 0x4, scoped, tag = 'scoped memory for tpu_custom_call.1']
    #allocation7 [shape = 'u8[65536]{0}', space=vmem, size = 0x10000, scoped, tag = 'input window, operand 2, single buffered']
    #allocation8 [shape = 'u8[131072]{0}', space=vmem, size = 0x20000, scoped, tag = 'input window, operand 3, single buffered']
    #allocation9 [shape = 's32[1]{0}', space=sflag, size = 0x4, scoped, tag = 'scoped memory for tpu_custom_call.1']
    #allocation10 [shape = 'u8[131072]{0}', space=vmem, size = 0x20000, scoped, tag = 'input window, operand 4, single buffered']
    #allocation11 [shape = 'u8[1536]{0}', space=vmem, size = 0x800, scoped, tag = 'input window, operand 5, single buffered']
    #allocation12 [shape = 's32[1]{0}', space=sflag, size = 0x4, scoped, tag = 'scoped memory for tpu_custom_call.1']
    #allocation13 [shape = 'u8[131072]{0}', space=vmem, size = 0x20000, scoped, tag = 'output window, operand 0']
    %13 = vsyncpa [#allocation3], 0
    %s14 = scalar_lea.sflag [#allocation3], 1
    %15 = vsyncpa %s14, 0
    %16 = vsyncpa [#allocation6], 0
    %17 = vsyncpa [#allocation9], 0
    %18 = vsyncpa [#allocation12], 0
    %19 = vsyncpa [#allocation4], 0
    %s20 = scalar_lea.sflag [#allocation4], 1
    %21 = vsyncpa %s20, 0
    loop: start=0, step=1, limit=6
    $region2: #{tpu_custom_call.1} parent=1 // loop_pre_header
      _
    $region3: #{tpu_custom_call.1} parent=1 // loop_header
      %s23 = sphi 0, %s27
      %p24 = scmp.ge.s32.totalorder %s23, 6
      %s33 = sphi 0, %s35
      %s36 = sphi 0, %s33
      %s37 = sphi 0, %s36
      %s53 = sphi 0, %s37
      %s57 = sphi 0, %s57
      %s59 = sphi 0, %s57
      %s60 = sphi 0, %s59
      %s74 = sphi 0, %s60
      %s78 = sphi 0, %s78
      %s80 = sphi 0, %s78
      %s81 = sphi 0, %s80
      %s95 = sphi 0, %s81
      %s99 = sphi 0, %s99
      %s101 = sphi 0, %s99
      %s102 = sphi 0, %s101
      %s116 = sphi 0, %s102
      %s120 = sphi 0, %s120
      %s122 = sphi 0, %s120
      %s123 = sphi 0, %s122
      %s137 = sphi 0, %s123
      %s141 = sphi 0, %s141
      %s143 = sphi 0, %s141
      %s144 = sphi 0, %s143
      %s158 = sphi 0, %s144
      %s162 = sphi 0, %s162
      %s164 = sphi 0, %s162
      %s165 = sphi 0, %s164
      %s179 = sphi 0, %s165
      %s183 = sphi 0, %s183
      %s185 = sphi 0, %s183
      %s186 = sphi 0, %s185
      %s200 = sphi 0, %s186
      %s206 = sphi 0, %s208
      %s209 = sphi 0, %s206
      %s210 = sphi 0, %s209
      %s226 = sphi 0, %s210
    $region4: #{tpu_custom_call.1} parent=1 // loop_header_branch
      %26 = sbr.rel (%p24) target = $region8
    $region5: #{tpu_custom_call.1} parent=1 // loop_body
      %s28 = ssub.s32 %s23, 1
      %s29 = ssub.s32 %s23, 2
      %s30 = sadd.s32 %s23, 1
      %s31 = ssub.s32 %s23, %s30
      %p32 = scmp.eq.s32.totalorder %s31, 0
      %s34 = sadd.s32 %s33, 1
      %s35 = scalar_select %p32, %s33, %s34
      %p38 = pneg %p32
      %p39 = scmp.eq.s32.totalorder %s23, 3
      %p40 = por %p38, %p39
      %p41 = scmp.ne.s32.totalorder %s33, %s36
      %p42 = scmp.eq.s32.totalorder %s23, 0
      %p43 = por %p41, %p42
      %p44 = scmp.ne.s32.totalorder %s33, %s36
      %p45 = scmp.eq.s32.totalorder %s28, 3
      %p46 = por %p44, %p45
      %p47 = scmp.ne.s32.totalorder %s36, %s37
      %p48 = scmp.eq.s32.totalorder %s28, 0
      %p49 = por %p47, %p48
      %p50 = scmp.ne.s32.totalorder %s36, %s37
      %p51 = scmp.eq.s32.totalorder %s29, 3
      %p52 = por %p50, %p51
      %p54 = scmp.ne.s32.totalorder %s37, %s53
      %p55 = scmp.eq.s32.totalorder %s29, 0
      %p56 = por %p54, %p55
      %s58 = sadd.s32 %s57, 1
      %p61 = scmp.eq.s32.totalorder %s23, 3
      %p62 = scmp.ne.s32.totalorder %s57, %s59
      %p63 = scmp.eq.s32.totalorder %s23, 0
      %p64 = por %p62, %p63
      %p65 = scmp.ne.s32.totalorder %s57, %s59
      %p66 = scmp.eq.s32.totalorder %s28, 3
      %p67 = por %p65, %p66
      %p68 = scmp.ne.s32.totalorder %s59, %s60
      %p69 = scmp.eq.s32.totalorder %s28, 0
      %p70 = por %p68, %p69
      %p71 = scmp.ne.s32.totalorder %s59, %s60
      %p72 = scmp.eq.s32.totalorder %s29, 3
      %p73 = por %p71, %p72
      %p75 = scmp.ne.s32.totalorder %s60, %s74
      %p76 = scmp.eq.s32.totalorder %s29, 0
      %p77 = por %p75, %p76
      %s79 = sadd.s32 %s78, 1
      %p82 = scmp.eq.s32.totalorder %s23, 3
      %p83 = scmp.ne.s32.totalorder %s78, %s80
      %p84 = scmp.eq.s32.totalorder %s23, 0
      %p85 = por %p83, %p84
      %p86 = scmp.ne.s32.totalorder %s78, %s80
      %p87 = scmp.eq.s32.totalorder %s28, 3
      %p88 = por %p86, %p87
      %p89 = scmp.ne.s32.totalorder %s80, %s81
      %p90 = scmp.eq.s32.totalorder %s28, 0
      %p91 = por %p89, %p90
      %p92 = scmp.ne.s32.totalorder %s80, %s81
      %p93 = scmp.eq.s32.totalorder %s29, 3
      %p94 = por %p92, %p93
      %p96 = scmp.ne.s32.totalorder %s81, %s95
      %p97 = scmp.eq.s32.totalorder %s29, 0
      %p98 = por %p96, %p97
      %s100 = sadd.s32 %s99, 1
      %p103 = scmp.eq.s32.totalorder %s23, 3
      %p104 = scmp.ne.s32.totalorder %s99, %s101
      %p105 = scmp.eq.s32.totalorder %s23, 0
      %p106 = por %p104, %p105
      %p107 = scmp.ne.s32.totalorder %s99, %s101
      %p108 = scmp.eq.s32.totalorder %s28, 3
      %p109 = por %p107, %p108
      %p110 = scmp.ne.s32.totalorder %s101, %s102
      %p111 = scmp.eq.s32.totalorder %s28, 0
      %p112 = por %p110, %p111
      %p113 = scmp.ne.s32.totalorder %s101, %s102
      %p114 = scmp.eq.s32.totalorder %s29, 3
      %p115 = por %p113, %p114
      %p117 = scmp.ne.s32.totalorder %s102, %s116
      %p118 = scmp.eq.s32.totalorder %s29, 0
      %p119 = por %p117, %p118
      %s121 = sadd.s32 %s120, 1
      %p124 = scmp.eq.s32.totalorder %s23, 3
      %p125 = scmp.ne.s32.totalorder %s120, %s122
      %p126 = scmp.eq.s32.totalorder %s23, 0
      %p127 = por %p125, %p126
      %p128 = scmp.ne.s32.totalorder %s120, %s122
      %p129 = scmp.eq.s32.totalorder %s28, 3
      %p130 = por %p128, %p129
      %p131 = scmp.ne.s32.totalorder %s122, %s123
      %p132 = scmp.eq.s32.totalorder %s28, 0
      %p133 = por %p131, %p132
      %p134 = scmp.ne.s32.totalorder %s122, %s123
      %p135 = scmp.eq.s32.totalorder %s29, 3
      %p136 = por %p134, %p135
      %p138 = scmp.ne.s32.totalorder %s123, %s137
      %p139 = scmp.eq.s32.totalorder %s29, 0
      %p140 = por %p138, %p139
      %s142 = sadd.s32 %s141, 1
      %p145 = scmp.eq.s32.totalorder %s23, 3
      %p146 = scmp.ne.s32.totalorder %s141, %s143
      %p147 = scmp.eq.s32.totalorder %s23, 0
      %p148 = por %p146, %p147
      %p149 = scmp.ne.s32.totalorder %s141, %s143
      %p150 = scmp.eq.s32.totalorder %s28, 3
      %p151 = por %p149, %p150
      %p152 = scmp.ne.s32.totalorder %s143, %s144
      %p153 = scmp.eq.s32.totalorder %s28, 0
      %p154 = por %p152, %p153
      %p155 = scmp.ne.s32.totalorder %s143, %s144
      %p156 = scmp.eq.s32.totalorder %s29, 3
      %p157 = por %p155, %p156
      %p159 = scmp.ne.s32.totalorder %s144, %s158
      %p160 = scmp.eq.s32.totalorder %s29, 0
      %p161 = por %p159, %p160
      %s163 = sadd.s32 %s162, 1
      %p166 = scmp.eq.s32.totalorder %s23, 3
      %p167 = scmp.ne.s32.totalorder %s162, %s164
      %p168 = scmp.eq.s32.totalorder %s23, 0
      %p169 = por %p167, %p168
      %p170 = scmp.ne.s32.totalorder %s162, %s164
      %p171 = scmp.eq.s32.totalorder %s28, 3
      %p172 = por %p170, %p171
      %p173 = scmp.ne.s32.totalorder %s164, %s165
      %p174 = scmp.eq.s32.totalorder %s28, 0
      %p175 = por %p173, %p174
      %p176 = scmp.ne.s32.totalorder %s164, %s165
      %p177 = scmp.eq.s32.totalorder %s29, 3
      %p178 = por %p176, %p177
      %p180 = scmp.ne.s32.totalorder %s165, %s179
      %p181 = scmp.eq.s32.totalorder %s29, 0
      %p182 = por %p180, %p181
      %s184 = sadd.s32 %s183, 1
      %p187 = scmp.eq.s32.totalorder %s23, 3
      %p188 = scmp.ne.s32.totalorder %s183, %s185
      %p189 = scmp.eq.s32.totalorder %s23, 0
      %p190 = por %p188, %p189
      %p191 = scmp.ne.s32.totalorder %s183, %s185
      %p192 = scmp.eq.s32.totalorder %s28, 3
      %p193 = por %p191, %p192
      %p194 = scmp.ne.s32.totalorder %s185, %s186
      %p195 = scmp.eq.s32.totalorder %s28, 0
      %p196 = por %p194, %p195
      %p197 = scmp.ne.s32.totalorder %s185, %s186
      %p198 = scmp.eq.s32.totalorder %s29, 3
      %p199 = por %p197, %p198
      %p201 = scmp.ne.s32.totalorder %s186, %s200
      %p202 = scmp.eq.s32.totalorder %s29, 0
      %p203 = por %p201, %p202
      %s204 = ssub.s32 %s23, %s30
      %p205 = scmp.eq.s32.totalorder %s204, 0
      %s207 = sadd.s32 %s206, 1
      %s208 = scalar_select %p205, %s206, %s207
      %p211 = pneg %p205
      %p212 = scmp.eq.s32.totalorder %s23, 3
      %p213 = por %p211, %p212
      %p214 = scmp.ne.s32.totalorder %s206, %s209
      %p215 = scmp.eq.s32.totalorder %s23, 0
      %p216 = por %p214, %p215
      %p217 = scmp.ne.s32.totalorder %s206, %s209
      %p218 = scmp.eq.s32.totalorder %s28, 3
      %p219 = por %p217, %p218
      %p220 = scmp.ne.s32.totalorder %s209, %s210
      %p221 = scmp.eq.s32.totalorder %s28, 0
      %p222 = por %p220, %p221
      %p223 = scmp.ne.s32.totalorder %s209, %s210
      %p224 = scmp.eq.s32.totalorder %s29, 3
      %p225 = por %p223, %p224
      %p227 = scmp.ne.s32.totalorder %s210, %s226
      %p228 = scmp.eq.s32.totalorder %s29, 0
      %p229 = por %p227, %p228
      %p230 = scmp.le.s32.totalorder 1, %s23
      %p231 = scmp.lt.s32.totalorder %s23, 5
      %p232 = pnand %p230, %p231
      %p233 = pneg %p232
      // Predicated region
      $region9: #{tpu_custom_call.1} parent=5 // pred_check
        _
      $region10: #{tpu_custom_call.1} parent=5 // pred_check_branch
        %235 = sbr.rel (%p232) target = $region12
      $region11: #{tpu_custom_call.1} parent=5 // pred_region
        %s236 = ssub.s32 %s23, 1
        // Predicated region
        $region13: #{tpu_custom_call.1} parent=11 // pred_check
          %p237 = pneg %p70
        $region14: #{tpu_custom_call.1} parent=11 // pred_check_branch
          %239 = sbr.rel (%p237) target = $region16
        $region15: #{tpu_custom_call.1} parent=11 // pred_region
          %s241 = ssub.s32 6144, 6144
          %242 = vsyncadd [#allocation6], %s241
          %s243 = sshll.u32 [#allocation5], 4
          %s244 = int_to_ptr.vmem [resolvable:$true] %s243
          %249 = dma.hbm_to_vmem [thread:$0]  %s1, 6144, %s244, [#allocation6], 384, 384, 24
        $region16: #{tpu_custom_call.1} parent=11 // pred_fallthru
          _
        // Predicated region
        $region17: #{tpu_custom_call.1} parent=11 // pred_check
          %p250 = pneg %p91
        $region18: #{tpu_custom_call.1} parent=11 // pred_check_branch
          %252 = sbr.rel (%p250) target = $region20
        $region19: #{tpu_custom_call.1} parent=11 // pred_region
          %s254 = ssub.s32 2048, 2048
          %255 = vsyncadd [#allocation6], %s254
          %s256 = sshll.u32 [#allocation7], 4
          %s257 = int_to_ptr.vmem [resolvable:$true] %s256
          %262 = dma.hbm_to_vmem [thread:$0]  %s2, 2048, %s257, [#allocation6], 128, 128, 8
        $region20: #{tpu_custom_call.1} parent=11 // pred_fallthru
          _
        // Predicated region
        $region21: #{tpu_custom_call.1} parent=11 // pred_check
          %p263 = pneg %p112
        $region22: #{tpu_custom_call.1} parent=11 // pred_check_branch
          %265 = sbr.rel (%p263) target = $region24
        $region23: #{tpu_custom_call.1} parent=11 // pred_region
          %s267 = ssub.s32 4096, 4096
          %268 = vsyncadd [#allocation9], %s267
          %s269 = sshll.u32 [#allocation8], 4
          %s270 = int_to_ptr.vmem [resolvable:$true] %s269
          %275 = dma.hbm_to_vmem [thread:$0]  %s3, 4096, %s270, [#allocation9], 256, 256, 16
        $region24: #{tpu_custom_call.1} parent=11 // pred_fallthru
          _
        // Predicated region
        $region25: #{tpu_custom_call.1} parent=11 // pred_check
          %p276 = pneg %p133
        $region26: #{tpu_custom_call.1} parent=11 // pred_check_branch
          %278 = sbr.rel (%p276) target = $region28
        $region27: #{tpu_custom_call.1} parent=11 // pred_region
          %s280 = ssub.s32 4096, 4096
          %281 = vsyncadd [#allocation9], %s280
          %s282 = sshll.u32 [#allocation10], 4
          %s283 = int_to_ptr.vmem [resolvable:$true] %s282
          %288 = dma.hbm_to_vmem [thread:$0]  %s4, 4096, %s283, [#allocation9], 128, 128, 8
        $region28: #{tpu_custom_call.1} parent=11 // pred_fallthru
          _
        // Predicated region
        $region29: #{tpu_custom_call.1} parent=11 // pred_check
          %p289 = pneg %p154
        $region30: #{tpu_custom_call.1} parent=11 // pred_check_branch
          %291 = sbr.rel (%p289) target = $region32
        $region31: #{tpu_custom_call.1} parent=11 // pred_region
          %s293 = ssub.s32 48, 48
          %294 = vsyncadd [#allocation12], %s293
          %s296 = sshll.u32 [#allocation11], 4
          %s297 = int_to_ptr.vmem [resolvable:$true] %s296
          %299 = dma.hbm_to_vmem [thread:$0]  %s5, 48, %s297, [#allocation12]
        $region32: #{tpu_custom_call.1} parent=11 // pred_fallthru
          _
        // Predicated region
        $region33: #{tpu_custom_call.1} parent=11 // pred_check
          %p300 = pneg %p175
        $region34: #{tpu_custom_call.1} parent=11 // pred_check_branch
          %302 = sbr.rel (%p300) target = $region36
        $region35: #{tpu_custom_call.1} parent=11 // pred_region
          _
        $region36: #{tpu_custom_call.1} parent=11 // pred_fallthru
          _
        // Predicated region
        $region37: #{tpu_custom_call.1} parent=11 // pred_check
          %p303 = pneg %p196
        $region38: #{tpu_custom_call.1} parent=11 // pred_check_branch
          %305 = sbr.rel (%p303) target = $region40
        $region39: #{tpu_custom_call.1} parent=11 // pred_region
          _
        $region40: #{tpu_custom_call.1} parent=11 // pred_fallthru
          _
      $region12: #{tpu_custom_call.1} parent=5 // pred_fallthru
        _
      %p306 = scmp.lt.s32.totalorder %s23, 4
      // Predicated region
      $region41: #{tpu_custom_call.1} parent=5 // pred_check
        %p307 = pneg %p306
      $region42: #{tpu_custom_call.1} parent=5 // pred_check_branch
        %309 = sbr.rel (%p307) target = $region44
      $region43: #{tpu_custom_call.1} parent=5 // pred_region
        // Predicated region
        $region45: #{tpu_custom_call.1} parent=43 // pred_check
          %p310 = pneg %p43
        $region46: #{tpu_custom_call.1} parent=43 // pred_check_branch
          %312 = sbr.rel (%p310) target = $region48
        $region47: #{tpu_custom_call.1} parent=43 // pred_region
          %s313 = sand.u32 %s33, 1
          %s314 = scalar_lea.sflag [#allocation3], %s313
          %s315 = sand.u32 %s33, 1
          %s316 = smul.addr %s315, 128
          %s317 = scalar_lea.vmem [#allocation2], %s316
          %s318 = smul.u32 8, %s23
          %s320 = ssub.s32 2048, 2048
          %321 = vsyncadd %s314, %s320
          %s322 = smul.addr %s318, 2
          %s323 = smul.addr %s322, 128
          %s324 = scalar_lea.hbm %s0, %s323
          %s325 = sshll.u32 %s317, 4
          %s326 = int_to_ptr.vmem [resolvable:$true] %s325
          %331 = dma.hbm_to_vmem [thread:$0]  %s324, 2048, %s326, %s314, 128, 128, 8
        $region48: #{tpu_custom_call.1} parent=43 // pred_fallthru
          _
      $region44: #{tpu_custom_call.1} parent=5 // pred_fallthru
        _
      %p332 = scmp.le.s32.totalorder 1, %s23
      %p333 = scmp.lt.s32.totalorder %s23, 5
      %p334 = pnand %p332, %p333
      %p335 = pneg %p334
      // Predicated region
      $region49: #{tpu_custom_call.1} parent=5 // pred_check
        _
      $region50: #{tpu_custom_call.1} parent=5 // pred_check_branch
        %337 = sbr.rel (%p334) target = $region52
      $region51: #{tpu_custom_call.1} parent=5 // pred_region
        %s338 = ssub.s32 %s23, 1
        %s339 = sand.u32 %s36, 1
        %s340 = scalar_lea.sflag [#allocation3], %s339
        %s341 = sand.u32 %s36, 1
        %s342 = smul.addr %s341, 128
        %s343 = scalar_lea.vmem [#allocation2], %s342
        // Predicated region
        $region53: #{tpu_custom_call.1} parent=51 // pred_check
          %p344 = pneg %p49
        $region54: #{tpu_custom_call.1} parent=51 // pred_check_branch
          %346 = sbr.rel (%p344) target = $region56
        $region55: #{tpu_custom_call.1} parent=51 // pred_region
          %347 = dma.done %s340, 2048
        $region56: #{tpu_custom_call.1} parent=51 // pred_fallthru
          _
        // Predicated region
        $region57: #{tpu_custom_call.1} parent=51 // pred_check
          %p348 = pneg %p70
        $region58: #{tpu_custom_call.1} parent=51 // pred_check_branch
          %350 = sbr.rel (%p348) target = $region60
        $region59: #{tpu_custom_call.1} parent=51 // pred_region
          %351 = dma.done [#allocation6], 6144
        $region60: #{tpu_custom_call.1} parent=51 // pred_fallthru
          _
        // Predicated region
        $region61: #{tpu_custom_call.1} parent=51 // pred_check
          %p352 = pneg %p91
        $region62: #{tpu_custom_call.1} parent=51 // pred_check_branch
          %354 = sbr.rel (%p352) target = $region64
        $region63: #{tpu_custom_call.1} parent=51 // pred_region
          %355 = dma.done [#allocation6], 2048
        $region64: #{tpu_custom_call.1} parent=51 // pred_fallthru
          _
        // Predicated region
        $region65: #{tpu_custom_call.1} parent=51 // pred_check
          %p356 = pneg %p112
        $region66: #{tpu_custom_call.1} parent=51 // pred_check_branch
          %358 = sbr.rel (%p356) target = $region68
        $region67: #{tpu_custom_call.1} parent=51 // pred_region
          %359 = dma.done [#allocation9], 4096
        $region68: #{tpu_custom_call.1} parent=51 // pred_fallthru
          _
        // Predicated region
        $region69: #{tpu_custom_call.1} parent=51 // pred_check
          %p360 = pneg %p133
        $region70: #{tpu_custom_call.1} parent=51 // pred_check_branch
          %362 = sbr.rel (%p360) target = $region72
        $region71: #{tpu_custom_call.1} parent=51 // pred_region
          %363 = dma.done [#allocation9], 4096
        $region72: #{tpu_custom_call.1} parent=51 // pred_fallthru
          _
        // Predicated region
        $region73: #{tpu_custom_call.1} parent=51 // pred_check
          %p364 = pneg %p154
        $region74: #{tpu_custom_call.1} parent=51 // pred_check_branch
          %366 = sbr.rel (%p364) target = $region76
        $region75: #{tpu_custom_call.1} parent=51 // pred_region
          %367 = dma.done [#allocation12], 48
        $region76: #{tpu_custom_call.1} parent=51 // pred_fallthru
          _
        %s368 = sand.u32 %s36, 1
        %s369 = scalar_lea.sflag [#allocation3], %s368
        %s370 = sand.u32 %s36, 1
        %s371 = smul.addr %s370, 128
        %s372 = scalar_lea.vmem [#allocation2], %s371
        %p373 = pneg %p49
        %p374 = pneg %p46
        %p375 = pneg %p70
        %p376 = pneg %p67
        %p377 = pneg %p91
        %p378 = pneg %p88
        %p379 = pneg %p112
        %p380 = pneg %p109
        %p381 = pneg %p133
        %p382 = pneg %p130
        %p383 = pneg %p154
        %p384 = pneg %p151
        %p385 = pneg %p175
        %p386 = pneg %p172
        %p387 = pneg %p196
        %p388 = pneg %p193
        %p389 = pneg %p222
        %p390 = pneg %p219
        %s391 = sand.u32 %s209, 1
        %s392 = scalar_lea.sflag [#allocation4], %s391
        %s393 = sand.u32 %s209, 1
        %s394 = smul.addr %s393, 128
        %s395 = scalar_lea.vmem [#allocation13], %s394
        %s396 = smul.u32 8, %s28
        %s397 = smul.u32 8, %s28
        %v398 = vld [vmem:[%s6] sm:$0x1]
        %v399 = vld [vmem:[%s6 + $0x1] sm:$0x1]
        %v400 = vld [vmem:[%s6 + $0x2] sm:$0x1]
        %v401 = vld [vmem:[%s6 + $0x3] sm:$0x1]
        %v402 = vld [vmem:[%s6 + $0x4] sm:$0x1]
        %v403 = vld [vmem:[%s6 + $0x5] sm:$0x1]
        %v404 = vld [vmem:[%s343] sm:$0xff]
        %v405 = vld [vmem:[%s343 + $0x8] sm:$0xff]
        %v406 = vld [vmem:[%s343 + $0x10] sm:$0xff]
        %v407 = vld [vmem:[%s343 + $0x18] sm:$0xff]
        %v408 = vld [vmem:[%s343 + $0x20] sm:$0xff]
        %v409 = vld [vmem:[%s343 + $0x28] sm:$0xff]
        %v410 = vld [vmem:[%s343 + $0x30] sm:$0xff]
        %v411 = vld [vmem:[%s343 + $0x38] sm:$0xff]
        %v412 = vld [vmem:[%s343 + $0x40] sm:$0xff]
        %v413 = vld [vmem:[%s343 + $0x48] sm:$0xff]
        %v414 = vld [vmem:[%s343 + $0x50] sm:$0xff]
        %v415 = vld [vmem:[%s343 + $0x58] sm:$0xff]
        %v416 = vld [vmem:[%s343 + $0x60] sm:$0xff]
        %v417 = vld [vmem:[%s343 + $0x68] sm:$0xff]
        %v418 = vld [vmem:[%s343 + $0x70] sm:$0xff]
        %v419 = vld [vmem:[%s343 + $0x78] sm:$0xff]
        %v420 = vld [vmem:[#allocation5] sm:$0xff]
        %v421 = vld [vmem:[#allocation5 + $0x8] sm:$0xff]
        %v422 = vld [vmem:[#allocation5 + $0x10] sm:$0xff]
        %v423 = vld [vmem:[#allocation5 + $0x18] sm:$0xff]
        %v424 = vld [vmem:[#allocation5 + $0x20] sm:$0xff]
        %v425 = vld [vmem:[#allocation5 + $0x28] sm:$0xff]
        %v426 = vld [vmem:[#allocation5 + $0x30] sm:$0xff]
        %v427 = vld [vmem:[#allocation5 + $0x38] sm:$0xff]
        %v428 = vld [vmem:[#allocation5 + $0x40] sm:$0xff]
        %v429 = vld [vmem:[#allocation5 + $0x48] sm:$0xff]
        %v430 = vld [vmem:[#allocation5 + $0x50] sm:$0xff]
        %v431 = vld [vmem:[#allocation5 + $0x58] sm:$0xff]
        %v432 = vld [vmem:[#allocation5 + $0x60] sm:$0xff]
        %v433 = vld [vmem:[#allocation5 + $0x68] sm:$0xff]
        %v434 = vld [vmem:[#allocation5 + $0x70] sm:$0xff]
        %v435 = vld [vmem:[#allocation5 + $0x78] sm:$0xff]
        %v436 = vld [vmem:[#allocation5 + $0x80] sm:$0xff]
        %v437 = vld [vmem:[#allocation5 + $0x88] sm:$0xff]
        %v438 = vld [vmem:[#allocation5 + $0x90] sm:$0xff]
        %v439 = vld [vmem:[#allocation5 + $0x98] sm:$0xff]
        %v440 = vld [vmem:[#allocation5 + $0xa0] sm:$0xff]
        %v441 = vld [vmem:[#allocation5 + $0xa8] sm:$0xff]
        %v442 = vld [vmem:[#allocation5 + $0xb0] sm:$0xff]
        %v443 = vld [vmem:[#allocation5 + $0xb8] sm:$0xff]
        %v444 = vld [vmem:[#allocation5 + $0xc0] sm:$0xff]
        %v445 = vld [vmem:[#allocation5 + $0xc8] sm:$0xff]
        %v446 = vld [vmem:[#allocation5 + $0xd0] sm:$0xff]
        %v447 = vld [vmem:[#allocation5 + $0xd8] sm:$0xff]
        %v448 = vld [vmem:[#allocation5 + $0xe0] sm:$0xff]
        %v449 = vld [vmem:[#allocation5 + $0xe8] sm:$0xff]
        %v450 = vld [vmem:[#allocation5 + $0xf0] sm:$0xff]
        %v451 = vld [vmem:[#allocation5 + $0xf8] sm:$0xff]
        %v452 = vld [vmem:[#allocation5 + $0x100] sm:$0xff]
        %v453 = vld [vmem:[#allocation5 + $0x108] sm:$0xff]
        %v454 = vld [vmem:[#allocation5 + $0x110] sm:$0xff]
        %v455 = vld [vmem:[#allocation5 + $0x118] sm:$0xff]
        %v456 = vld [vmem:[#allocation5 + $0x120] sm:$0xff]
        %v457 = vld [vmem:[#allocation5 + $0x128] sm:$0xff]
        %v458 = vld [vmem:[#allocation5 + $0x130] sm:$0xff]
        %v459 = vld [vmem:[#allocation5 + $0x138] sm:$0xff]
        %v460 = vld [vmem:[#allocation5 + $0x140] sm:$0xff]
        %v461 = vld [vmem:[#allocation5 + $0x148] sm:$0xff]
        %v462 = vld [vmem:[#allocation5 + $0x150] sm:$0xff]
        %v463 = vld [vmem:[#allocation5 + $0x158] sm:$0xff]
        %v464 = vld [vmem:[#allocation5 + $0x160] sm:$0xff]
        %v465 = vld [vmem:[#allocation5 + $0x168] sm:$0xff]
        %v466 = vld [vmem:[#allocation5 + $0x170] sm:$0xff]
        %v467 = vld [vmem:[#allocation5 + $0x178] sm:$0xff]
        %v468 = vld [vmem:[#allocation11] sm:$0x7]
        %v470 = vlaneseq
        %v471 = vshrl.u32 %v470, 7
        %v472 = vsub.s32 0, %v471
        %v473 = vrot.slane %v468, %v472
        %v474 = vlaneseq
        %v475 = vshrl.u32 %v474, 7
        %v476 = vsub.s32 1, %v475
        %v477 = vrot.slane %v468, %v476
        %v478 = vlaneseq
        %v479 = vshrl.u32 %v478, 7
        %v480 = vsub.s32 2, %v479
        %v481 = vrot.slane %v468, %v480
        %485 = vmatprep.subr.mxu0 %v466
        %486 = vmatpush1.msra.mxu0 %v465
        %487 = vmatprep.subr.mxu0 %v463
        %488 = vmatpush1.msra.mxu0 %v462
        %489 = vmatprep.subr.mxu0 %v460
        %490 = vmatpush1.msra.mxu0 %v459
        %491 = vmatprep.subr.mxu0 %v457
        %492 = vmatpush1.msra.mxu0 %v456
        %493 = vmatprep.subr.mxu0 %v454
        %494 = vmatpush1.msra.mxu0 %v453
        %495 = vmatprep.subr.mxu0 %v451
        %496 = vmatpush1.msra.mxu0 %v450
        %497 = vmatprep.subr.mxu0 %v448
        %498 = vmatpush1.msra.mxu0 %v447
        %499 = vmatprep.subr.mxu0 %v445
        %500 = vmatpush1.msra.mxu0 %v444
        %501 = vmatprep.subr.mxu0 %v442
        %502 = vmatpush1.msra.mxu0 %v441
        %503 = vmatprep.subr.mxu0 %v439
        %504 = vmatpush1.msra.mxu0 %v438
        %505 = vmatprep.subr.mxu0 %v436
        %506 = vmatpush1.msra.mxu0 %v435
        %507 = vmatprep.subr.mxu0 %v433
        %508 = vmatpush1.msra.mxu0 %v432
        %509 = vmatprep.subr.mxu0 %v430
        %510 = vmatpush1.msra.mxu0 %v429
        %511 = vmatprep.subr.mxu0 %v427
        %512 = vmatpush1.msra.mxu0 %v426
        %513 = vmatprep.subr.mxu0 %v424
        %514 = vmatpush1.msra.mxu0 %v423
        %515 = vmatprep.subr.mxu0 %v421
        %516 = vmatpush1.msra.mxu0 %v420
        %517 = vmatprep.subr.mxu0 0.0
        %518 = vmatpush2.msra.mxu0 0.0
        %519 = vmatprep.subr.mxu0 0.0
        %520 = vmatpush2.msra.mxu0 0.0
        %521 = vmatprep.subr.mxu0 0.0
        %522 = vmatpush2.msra.mxu0 0.0
        %523 = vmatprep.subr.mxu0 0.0
        %524 = vmatpush2.msra.mxu0 0.0
        %525 = vmatprep.subr.mxu0 0.0
        %526 = vmatpush2.msra.mxu0 0.0
        %527 = vmatprep.subr.mxu0 0.0
        %528 = vmatpush2.msra.mxu0 0.0
        %529 = vmatprep.subr.mxu0 0.0
        %530 = vmatpush2.msra.mxu0 0.0
        %531 = vmatprep.subr.mxu0 0.0
        %532 = vmatpush2.msra.mxu0 0.0
        %533 = vmatprep.subr.mxu0 0.0
        %534 = vmatpush2.msra.mxu0 0.0
        %535 = vmatprep.subr.mxu0 0.0
        %536 = vmatpush2.msra.mxu0 0.0
        %537 = vmatprep.subr.mxu0 0.0
        %538 = vmatpush2.msra.mxu0 0.0
        %539 = vmatprep.subr.mxu0 0.0
        %540 = vmatpush2.msra.mxu0 0.0
        %541 = vmatprep.subr.mxu0 0.0
        %542 = vmatpush2.msra.mxu0 0.0
        %543 = vmatprep.subr.mxu0 0.0
        %544 = vmatpush2.msra.mxu0 0.0
        %545 = vmatprep.subr.mxu0 0.0
        %546 = vmatpush2.msra.mxu0 0.0
        %547 = vmatprep.subr.mxu0 0.0
        %548 = vmatpush2.msra.mxu0 0.0
        %549 = vmatprep.mubr.f32.mxu0 0.0
        %550 = vmatmul.mubr.f32.gmra.mxu0 %v404
        %v551 = vpop.f32.mrf.mxu0
        %v552 = vadd.f32 %v473, %v551
        %v553 = vpop.f32.mrf.mxu0
        %v554 = vadd.f32 %v477, %v553
        %555 = vmatprep.mubr.f32.mxu0 0.0
        %556 = vmatmul.mubr.f32.gmra.mxu0 %v405
        %v557 = vpop.f32.mrf.mxu0
        %v558 = vadd.f32 %v473, %v557
        %v559 = vpop.f32.mrf.mxu0
        %v560 = vadd.f32 %v477, %v559
        %561 = vmatprep.mubr.f32.mxu0 0.0
        %562 = vmatmul.mubr.f32.gmra.mxu0 %v406
        %v563 = vpop.f32.mrf.mxu0
        %v564 = vadd.f32 %v473, %v563
        %v565 = vpop.f32.mrf.mxu0
        %v566 = vadd.f32 %v477, %v565
        %567 = vmatprep.mubr.f32.mxu0 0.0
        %568 = vmatmul.mubr.f32.gmra.mxu0 %v407
        %v569 = vpop.f32.mrf.mxu0
        %v570 = vadd.f32 %v473, %v569
        %v571 = vpop.f32.mrf.mxu0
        %v572 = vadd.f32 %v477, %v571
        %573 = vmatprep.mubr.f32.mxu0 0.0
        %574 = vmatmul.mubr.f32.gmra.mxu0 %v408
        %v575 = vpop.f32.mrf.mxu0
        %v576 = vadd.f32 %v473, %v575
        %v577 = vpop.f32.mrf.mxu0
        %v578 = vadd.f32 %v477, %v577
        %579 = vmatprep.mubr.f32.mxu0 0.0
        %580 = vmatmul.mubr.f32.gmra.mxu0 %v409
        %v581 = vpop.f32.mrf.mxu0
        %v582 = vadd.f32 %v473, %v581
        %v583 = vpop.f32.mrf.mxu0
        %v584 = vadd.f32 %v477, %v583
        %585 = vmatprep.mubr.f32.mxu0 0.0
        %586 = vmatmul.mubr.f32.gmra.mxu0 %v410
        %v587 = vpop.f32.mrf.mxu0
        %v588 = vadd.f32 %v473, %v587
        %v589 = vpop.f32.mrf.mxu0
        %v590 = vadd.f32 %v477, %v589
        %591 = vmatprep.mubr.f32.mxu0 0.0
        %592 = vmatmul.mubr.f32.gmra.mxu0 %v411
        %v593 = vpop.f32.mrf.mxu0
        %v594 = vadd.f32 %v473, %v593
        %v595 = vpop.f32.mrf.mxu0
        %v596 = vadd.f32 %v477, %v595
        %597 = vmatprep.mubr.f32.mxu0 0.0
        %598 = vmatmul.mubr.f32.gmra.mxu0 %v412
        %v599 = vpop.f32.mrf.mxu0
        %v600 = vadd.f32 %v473, %v599
        %v601 = vpop.f32.mrf.mxu0
        %v602 = vadd.f32 %v477, %v601
        %603 = vmatprep.mubr.f32.mxu0 0.0
        %604 = vmatmul.mubr.f32.gmra.mxu0 %v413
        %v605 = vpop.f32.mrf.mxu0
        %v606 = vadd.f32 %v473, %v605
        %v607 = vpop.f32.mrf.mxu0
        %v608 = vadd.f32 %v477, %v607
        %609 = vmatprep.mubr.f32.mxu0 0.0
        %610 = vmatmul.mubr.f32.gmra.mxu0 %v414
        %v611 = vpop.f32.mrf.mxu0
        %v612 = vadd.f32 %v473, %v611
        %v613 = vpop.f32.mrf.mxu0
        %v614 = vadd.f32 %v477, %v613
        %615 = vmatprep.mubr.f32.mxu0 0.0
        %616 = vmatmul.mubr.f32.gmra.mxu0 %v415
        %v617 = vpop.f32.mrf.mxu0
        %v618 = vadd.f32 %v473, %v617
        %v619 = vpop.f32.mrf.mxu0
        %v620 = vadd.f32 %v477, %v619
        %621 = vmatprep.mubr.f32.mxu0 0.0
        %622 = vmatmul.mubr.f32.gmra.mxu0 %v416
        %v623 = vpop.f32.mrf.mxu0
        %v624 = vadd.f32 %v473, %v623
        %v625 = vpop.f32.mrf.mxu0
        %v626 = vadd.f32 %v477, %v625
        %627 = vmatprep.mubr.f32.mxu0 0.0
        %628 = vmatmul.mubr.f32.gmra.mxu0 %v417
        %v629 = vpop.f32.mrf.mxu0
        %v630 = vadd.f32 %v473, %v629
        %v631 = vpop.f32.mrf.mxu0
        %v632 = vadd.f32 %v477, %v631
        %633 = vmatprep.mubr.f32.mxu0 0.0
        %634 = vmatmul.mubr.f32.gmra.mxu0 %v418
        %v635 = vpop.f32.mrf.mxu0
        %v636 = vadd.f32 %v473, %v635
        %v637 = vpop.f32.mrf.mxu0
        %v638 = vadd.f32 %v477, %v637
        %639 = vmatprep.mubr.f32.mxu0 0.0
        %640 = vmatmul.mubr.f32.gmra.mxu0 %v419
        %v641 = vpop.f32.mrf.mxu0
        %v642 = vadd.f32 %v473, %v641
        %v643 = vpop.f32.mrf.mxu0
        %v644 = vadd.f32 %v477, %v643
        %645 = vdwg.mxu0
        %646 = vmatprep.subr.mxu0 0.0
        %647 = vmatpush1.msra.mxu0 %v467
        %648 = vmatprep.subr.mxu0 0.0
        %649 = vmatpush1.msra.mxu0 %v464
        %650 = vmatprep.subr.mxu0 0.0
        %651 = vmatpush1.msra.mxu0 %v461
        %652 = vmatprep.subr.mxu0 0.0
        %653 = vmatpush1.msra.mxu0 %v458
        %654 = vmatprep.subr.mxu0 0.0
        %655 = vmatpush1.msra.mxu0 %v455
        %656 = vmatprep.subr.mxu0 0.0
        %657 = vmatpush1.msra.mxu0 %v452
        %658 = vmatprep.subr.mxu0 0.0
        %659 = vmatpush1.msra.mxu0 %v449
        %660 = vmatprep.subr.mxu0 0.0
        %661 = vmatpush1.msra.mxu0 %v446
        %662 = vmatprep.subr.mxu0 0.0
        %663 = vmatpush1.msra.mxu0 %v443
        %664 = vmatprep.subr.mxu0 0.0
        %665 = vmatpush1.msra.mxu0 %v440
        %666 = vmatprep.subr.mxu0 0.0
        %667 = vmatpush1.msra.mxu0 %v437
        %668 = vmatprep.subr.mxu0 0.0
        %669 = vmatpush1.msra.mxu0 %v434
        %670 = vmatprep.subr.mxu0 0.0
        %671 = vmatpush1.msra.mxu0 %v431
        %672 = vmatprep.subr.mxu0 0.0
        %673 = vmatpush1.msra.mxu0 %v428
        %674 = vmatprep.subr.mxu0 0.0
        %675 = vmatpush1.msra.mxu0 %v425
        %676 = vmatprep.subr.mxu0 0.0
        %677 = vmatpush1.msra.mxu0 %v422
        %678 = vmatprep.subr.mxu0 0.0
        %679 = vmatpush2.msra.mxu0 0.0
        %680 = vmatprep.subr.mxu0 0.0
        %681 = vmatpush2.msra.mxu0 0.0
        %682 = vmatprep.subr.mxu0 0.0
        %683 = vmatpush2.msra.mxu0 0.0
        %684 = vmatprep.subr.mxu0 0.0
        %685 = vmatpush2.msra.mxu0 0.0
        %686 = vmatprep.subr.mxu0 0.0
        %687 = vmatpush2.msra.mxu0 0.0
        %688 = vmatprep.subr.mxu0 0.0
        %689 = vmatpush2.msra.mxu0 0.0
        %690 = vmatprep.subr.mxu0 0.0
        %691 = vmatpush2.msra.mxu0 0.0
        %692 = vmatprep.subr.mxu0 0.0
        %693 = vmatpush2.msra.mxu0 0.0
        %694 = vmatprep.subr.mxu0 0.0
        %695 = vmatpush2.msra.mxu0 0.0
        %696 = vmatprep.subr.mxu0 0.0
        %697 = vmatpush2.msra.mxu0 0.0
        %698 = vmatprep.subr.mxu0 0.0
        %699 = vmatpush2.msra.mxu0 0.0
        %700 = vmatprep.subr.mxu0 0.0
        %701 = vmatpush2.msra.mxu0 0.0
        %702 = vmatprep.subr.mxu0 0.0
        %703 = vmatpush2.msra.mxu0 0.0
        %704 = vmatprep.subr.mxu0 0.0
        %705 = vmatpush2.msra.mxu0 0.0
        %706 = vmatprep.subr.mxu0 0.0
        %707 = vmatpush2.msra.mxu0 0.0
        %708 = vmatprep.subr.mxu0 0.0
        %709 = vmatpush2.msra.mxu0 0.0
        %710 = vmatprep.mubr.f32.mxu0 0.0
        %711 = vmatmul.mubr.f32.gmra.mxu0 %v404
        %v712 = vpop.f32.mrf.mxu0
        %v713 = vadd.f32 %v481, %v712
        %v714 = vpop.f32.mrf.mxu0
        %715 = vmatprep.mubr.f32.mxu0 0.0
        %716 = vmatmul.mubr.f32.gmra.mxu0 %v405
        %v717 = vpop.f32.mrf.mxu0
        %v718 = vadd.f32 %v481, %v717
        %v719 = vpop.f32.mrf.mxu0
        %720 = vmatprep.mubr.f32.mxu0 0.0
        %721 = vmatmul.mubr.f32.gmra.mxu0 %v406
        %v722 = vpop.f32.mrf.mxu0
        %v723 = vadd.f32 %v481, %v722
        %v724 = vpop.f32.mrf.mxu0
        %725 = vmatprep.mubr.f32.mxu0 0.0
        %726 = vmatmul.mubr.f32.gmra.mxu0 %v407
        %v727 = vpop.f32.mrf.mxu0
        %v728 = vadd.f32 %v481, %v727
        %v729 = vpop.f32.mrf.mxu0
        %730 = vmatprep.mubr.f32.mxu0 0.0
        %731 = vmatmul.mubr.f32.gmra.mxu0 %v408
        %v732 = vpop.f32.mrf.mxu0
        %v733 = vadd.f32 %v481, %v732
        %v734 = vpop.f32.mrf.mxu0
        %735 = vmatprep.mubr.f32.mxu0 0.0
        %736 = vmatmul.mubr.f32.gmra.mxu0 %v409
        %v737 = vpop.f32.mrf.mxu0
        %v738 = vadd.f32 %v481, %v737
        %v739 = vpop.f32.mrf.mxu0
        %740 = vmatprep.mubr.f32.mxu0 0.0
        %741 = vmatmul.mubr.f32.gmra.mxu0 %v410
        %v742 = vpop.f32.mrf.mxu0
        %v743 = vadd.f32 %v481, %v742
        %v744 = vpop.f32.mrf.mxu0
        %745 = vmatprep.mubr.f32.mxu0 0.0
        %746 = vmatmul.mubr.f32.gmra.mxu0 %v411
        %v747 = vpop.f32.mrf.mxu0
        %v748 = vadd.f32 %v481, %v747
        %v749 = vpop.f32.mrf.mxu0
        %750 = vmatprep.mubr.f32.mxu0 0.0
        %751 = vmatmul.mubr.f32.gmra.mxu0 %v412
        %v752 = vpop.f32.mrf.mxu0
        %v753 = vadd.f32 %v481, %v752
        %v754 = vpop.f32.mrf.mxu0
        %755 = vmatprep.mubr.f32.mxu0 0.0
        %756 = vmatmul.mubr.f32.gmra.mxu0 %v413
        %v757 = vpop.f32.mrf.mxu0
        %v758 = vadd.f32 %v481, %v757
        %v759 = vpop.f32.mrf.mxu0
        %760 = vmatprep.mubr.f32.mxu0 0.0
        %761 = vmatmul.mubr.f32.gmra.mxu0 %v414
        %v762 = vpop.f32.mrf.mxu0
        %v763 = vadd.f32 %v481, %v762
        %v764 = vpop.f32.mrf.mxu0
        %765 = vmatprep.mubr.f32.mxu0 0.0
        %766 = vmatmul.mubr.f32.gmra.mxu0 %v415
        %v767 = vpop.f32.mrf.mxu0
        %v768 = vadd.f32 %v481, %v767
        %v769 = vpop.f32.mrf.mxu0
        %770 = vmatprep.mubr.f32.mxu0 0.0
        %771 = vmatmul.mubr.f32.gmra.mxu0 %v416
        %v772 = vpop.f32.mrf.mxu0
        %v773 = vadd.f32 %v481, %v772
        %v774 = vpop.f32.mrf.mxu0
        %775 = vmatprep.mubr.f32.mxu0 0.0
        %776 = vmatmul.mubr.f32.gmra.mxu0 %v417
        %v777 = vpop.f32.mrf.mxu0
        %v778 = vadd.f32 %v481, %v777
        %v779 = vpop.f32.mrf.mxu0
        %780 = vmatprep.mubr.f32.mxu0 0.0
        %781 = vmatmul.mubr.f32.gmra.mxu0 %v418
        %v782 = vpop.f32.mrf.mxu0
        %v783 = vadd.f32 %v481, %v782
        %v784 = vpop.f32.mrf.mxu0
        %785 = vmatprep.mubr.f32.mxu0 0.0
        %786 = vmatmul.mubr.f32.gmra.mxu0 %v419
        %v787 = vpop.f32.mrf.mxu0
        %v788 = vadd.f32 %v481, %v787
        %v789 = vpop.f32.mrf.mxu0
        %790 = vdwg.mxu0
        %v791 = vmul.f32 %v552, 0.17677669
        %v792 = vmul.f32 %v558, 0.17677669
        %v793 = vmul.f32 %v564, 0.17677669
        %v794 = vmul.f32 %v570, 0.17677669
        %v795 = vmul.f32 %v576, 0.17677669
        %v796 = vmul.f32 %v582, 0.17677669
        %v797 = vmul.f32 %v588, 0.17677669
        %v798 = vmul.f32 %v594, 0.17677669
        %v799 = vmul.f32 %v600, 0.17677669
        %v800 = vmul.f32 %v606, 0.17677669
        %v801 = vmul.f32 %v612, 0.17677669
        %v802 = vmul.f32 %v618, 0.17677669
        %v803 = vmul.f32 %v624, 0.17677669
        %v804 = vmul.f32 %v630, 0.17677669
        %v805 = vmul.f32 %v636, 0.17677669
        %v806 = vmul.f32 %v642, 0.17677669
        %vm807 = vcmask 261120
        %v809 = vsel %vm807, %v791, 0
        %v812 = vsel %vm807, %v792, 0
        %v815 = vsel %vm807, %v554, 0
        %v818 = vsel %vm807, %v560, 0
        %820 = vmatprep.subr.mxu0 0.0
        %821 = vmatpush1.xpose.msra.mxu0 0.0
        %822 = vmatprep.subr.mxu0 0.0
        %823 = vmatpush1.xpose.msra.mxu0 0.0
        %824 = vmatprep.subr.mxu0 0.0
        %825 = vmatpush1.xpose.msra.mxu0 0.0
        %826 = vmatprep.subr.mxu0 0.0
        %827 = vmatpush1.xpose.msra.mxu0 0.0
        %828 = vmatprep.subr.mxu0 0.0
        %829 = vmatpush1.xpose.msra.mxu0 0.0
        %830 = vmatprep.subr.mxu0 0.0
        %831 = vmatpush1.xpose.msra.mxu0 0.0
        %832 = vmatprep.subr.mxu0 0.0
        %833 = vmatpush1.xpose.msra.mxu0 0.0
        %834 = vmatprep.subr.mxu0 0.0
        %835 = vmatpush1.xpose.msra.mxu0 0.0
        %836 = vmatprep.subr.mxu0 0.0
        %837 = vmatpush1.xpose.msra.mxu0 0.0
        %838 = vmatprep.subr.mxu0 0.0
        %839 = vmatpush1.xpose.msra.mxu0 0.0
        %840 = vmatprep.subr.mxu0 0.0
        %841 = vmatpush1.xpose.msra.mxu0 0.0
        %842 = vmatprep.subr.mxu0 0.0
        %843 = vmatpush1.xpose.msra.mxu0 0.0
        %844 = vmatprep.subr.mxu0 0.0
        %845 = vmatpush1.xpose.msra.mxu0 0.0
        %846 = vmatprep.subr.mxu0 0.0
        %847 = vmatpush1.xpose.msra.mxu0 0.0
        %848 = vmatprep.subr.mxu0 0.0
        %849 = vmatpush1.xpose.msra.mxu0 %v818
        %850 = vmatprep.subr.mxu0 0.0
        %851 = vmatpush1.xpose.msra.mxu0 %v815
        %852 = vmatprep.subr.mxu0 0.0
        %853 = vmatpush2.xpose.msra.mxu0 0.0
        %854 = vmatprep.subr.mxu0 0.0
        %855 = vmatpush2.xpose.msra.mxu0 0.0
        %856 = vmatprep.subr.mxu0 0.0
        %857 = vmatpush2.xpose.msra.mxu0 0.0
        %858 = vmatprep.subr.mxu0 0.0
        %859 = vmatpush2.xpose.msra.mxu0 0.0
        %860 = vmatprep.subr.mxu0 0.0
        %861 = vmatpush2.xpose.msra.mxu0 0.0
        %862 = vmatprep.subr.mxu0 0.0
        %863 = vmatpush2.xpose.msra.mxu0 0.0
        %864 = vmatprep.subr.mxu0 0.0
        %865 = vmatpush2.xpose.msra.mxu0 0.0
        %866 = vmatprep.subr.mxu0 0.0
        %867 = vmatpush2.xpose.msra.mxu0 0.0
        %868 = vmatprep.subr.mxu0 0.0
        %869 = vmatpush2.xpose.msra.mxu0 0.0
        %870 = vmatprep.subr.mxu0 0.0
        %871 = vmatpush2.xpose.msra.mxu0 0.0
        %872 = vmatprep.subr.mxu0 0.0
        %873 = vmatpush2.xpose.msra.mxu0 0.0
        %874 = vmatprep.subr.mxu0 0.0
        %875 = vmatpush2.xpose.msra.mxu0 0.0
        %876 = vmatprep.subr.mxu0 0.0
        %877 = vmatpush2.xpose.msra.mxu0 0.0
        %878 = vmatprep.subr.mxu0 0.0
        %879 = vmatpush2.xpose.msra.mxu0 0.0
        %880 = vmatprep.subr.mxu0 0.0
        %881 = vmatpush2.xpose.msra.mxu0 0.0
        %882 = vmatprep.subr.mxu0 0.0
        %883 = vmatpush2.xpose.msra.mxu0 0.0
        %884 = vmatprep.mubr.f32.mxu0 0.0
        %885 = vmatmul.mubr.f32.gmra.mxu0 %v809
        %v886 = vpop.f32.mrf.mxu0
        %v887 = vadd.f32 0.0, %v886
        %v888 = vpop.f32.mrf.mxu0
        %889 = vmatprep.mubr.f32.mxu0 0.0
        %890 = vmatmul.mubr.f32.gmra.mxu0 %v812
        %v891 = vpop.f32.mrf.mxu0
        %v892 = vadd.f32 0.0, %v891
        %v893 = vpop.f32.mrf.mxu0
        %894 = vdwg.mxu0
        %v896 = vsel %vm807, %v793, 0
        %v899 = vsel %vm807, %v794, 0
        %v902 = vsel %vm807, %v566, 0
        %v905 = vsel %vm807, %v572, 0
        %907 = vmatprep.subr.mxu0 0.0
        %908 = vmatpush1.xpose.msra.mxu0 0.0
        %909 = vmatprep.subr.mxu0 0.0
        %910 = vmatpush1.xpose.msra.mxu0 0.0
        %911 = vmatprep.subr.mxu0 0.0
        %912 = vmatpush1.xpose.msra.mxu0 0.0
        %913 = vmatprep.subr.mxu0 0.0
        %914 = vmatpush1.xpose.msra.mxu0 0.0
        %915 = vmatprep.subr.mxu0 0.0
        %916 = vmatpush1.xpose.msra.mxu0 0.0
        %917 = vmatprep.subr.mxu0 0.0
        %918 = vmatpush1.xpose.msra.mxu0 0.0
        %919 = vmatprep.subr.mxu0 0.0
        %920 = vmatpush1.xpose.msra.mxu0 0.0
        %921 = vmatprep.subr.mxu0 0.0
        %922 = vmatpush1.xpose.msra.mxu0 0.0
        %923 = vmatprep.subr.mxu0 0.0
        %924 = vmatpush1.xpose.msra.mxu0 0.0
        %925 = vmatprep.subr.mxu0 0.0
        %926 = vmatpush1.xpose.msra.mxu0 0.0
        %927 = vmatprep.subr.mxu0 0.0
        %928 = vmatpush1.xpose.msra.mxu0 0.0
        %929 = vmatprep.subr.mxu0 0.0
        %930 = vmatpush1.xpose.msra.mxu0 0.0
        %931 = vmatprep.subr.mxu0 0.0
        %932 = vmatpush1.xpose.msra.mxu0 0.0
        %933 = vmatprep.subr.mxu0 0.0
        %934 = vmatpush1.xpose.msra.mxu0 0.0
        %935 = vmatprep.subr.mxu0 0.0
        %936 = vmatpush1.xpose.msra.mxu0 %v905
        %937 = vmatprep.subr.mxu0 0.0
        %938 = vmatpush1.xpose.msra.mxu0 %v902
        %939 = vmatprep.subr.mxu0 0.0
        %940 = vmatpush2.xpose.msra.mxu0 0.0
        %941 = vmatprep.subr.mxu0 0.0
        %942 = vmatpush2.xpose.msra.mxu0 0.0
        %943 = vmatprep.subr.mxu0 0.0
        %944 = vmatpush2.xpose.msra.mxu0 0.0
        %945 = vmatprep.subr.mxu0 0.0
        %946 = vmatpush2.xpose.msra.mxu0 0.0
        %947 = vmatprep.subr.mxu0 0.0
        %948 = vmatpush2.xpose.msra.mxu0 0.0
        %949 = vmatprep.subr.mxu0 0.0
        %950 = vmatpush2.xpose.msra.mxu0 0.0
        %951 = vmatprep.subr.mxu0 0.0
        %952 = vmatpush2.xpose.msra.mxu0 0.0
        %953 = vmatprep.subr.mxu0 0.0
        %954 = vmatpush2.xpose.msra.mxu0 0.0
        %955 = vmatprep.subr.mxu0 0.0
        %956 = vmatpush2.xpose.msra.mxu0 0.0
        %957 = vmatprep.subr.mxu0 0.0
        %958 = vmatpush2.xpose.msra.mxu0 0.0
        %959 = vmatprep.subr.mxu0 0.0
        %960 = vmatpush2.xpose.msra.mxu0 0.0
        %961 = vmatprep.subr.mxu0 0.0
        %962 = vmatpush2.xpose.msra.mxu0 0.0
        %963 = vmatprep.subr.mxu0 0.0
        %964 = vmatpush2.xpose.msra.mxu0 0.0
        %965 = vmatprep.subr.mxu0 0.0
        %966 = vmatpush2.xpose.msra.mxu0 0.0
        %967 = vmatprep.subr.mxu0 0.0
        %968 = vmatpush2.xpose.msra.mxu0 0.0
        %969 = vmatprep.subr.mxu0 0.0
        %970 = vmatpush2.xpose.msra.mxu0 0.0
        %971 = vmatprep.mubr.f32.mxu0 0.0
        %972 = vmatmul.mubr.f32.gmra.mxu0 %v896
        %v973 = vpop.f32.mrf.mxu0
        %v974 = vadd.f32 0.0, %v973
        %v975 = vpop.f32.mrf.mxu0
        %976 = vmatprep.mubr.f32.mxu0 0.0
        %977 = vmatmul.mubr.f32.gmra.mxu0 %v899
        %v978 = vpop.f32.mrf.mxu0
        %v979 = vadd.f32 0.0, %v978
        %v980 = vpop.f32.mrf.mxu0
        %981 = vdwg.mxu0
        %v983 = vsel %vm807, %v795, 0
        %v986 = vsel %vm807, %v796, 0
        %v989 = vsel %vm807, %v578, 0
        %v992 = vsel %vm807, %v584, 0
        %994 = vmatprep.subr.mxu0 0.0
        %995 = vmatpush1.xpose.msra.mxu0 0.0
        %996 = vmatprep.subr.mxu0 0.0
        %997 = vmatpush1.xpose.msra.mxu0 0.0
        %998 = vmatprep.subr.mxu0 0.0
        %999 = vmatpush1.xpose.msra.mxu0 0.0
        %1000 = vmatprep.subr.mxu0 0.0
        %1001 = vmatpush1.xpose.msra.mxu0 0.0
        %1002 = vmatprep.subr.mxu0 0.0
        %1003 = vmatpush1.xpose.msra.mxu0 0.0
        %1004 = vmatprep.subr.mxu0 0.0
        %1005 = vmatpush1.xpose.msra.mxu0 0.0
        %1006 = vmatprep.subr.mxu0 0.0
        %1007 = vmatpush1.xpose.msra.mxu0 0.0
        %1008 = vmatprep.subr.mxu0 0.0
        %1009 = vmatpush1.xpose.msra.mxu0 0.0
        %1010 = vmatprep.subr.mxu0 0.0
        %1011 = vmatpush1.xpose.msra.mxu0 0.0
        %1012 = vmatprep.subr.mxu0 0.0
        %1013 = vmatpush1.xpose.msra.mxu0 0.0
        %1014 = vmatprep.subr.mxu0 0.0
        %1015 = vmatpush1.xpose.msra.mxu0 0.0
        %1016 = vmatprep.subr.mxu0 0.0
        %1017 = vmatpush1.xpose.msra.mxu0 0.0
        %1018 = vmatprep.subr.mxu0 0.0
        %1019 = vmatpush1.xpose.msra.mxu0 0.0
        %1020 = vmatprep.subr.mxu0 0.0
        %1021 = vmatpush1.xpose.msra.mxu0 0.0
        %1022 = vmatprep.subr.mxu0 0.0
        %1023 = vmatpush1.xpose.msra.mxu0 %v992
        %1024 = vmatprep.subr.mxu0 0.0
        %1025 = vmatpush1.xpose.msra.mxu0 %v989
        %1026 = vmatprep.subr.mxu0 0.0
        %1027 = vmatpush2.xpose.msra.mxu0 0.0
        %1028 = vmatprep.subr.mxu0 0.0
        %1029 = vmatpush2.xpose.msra.mxu0 0.0
        %1030 = vmatprep.subr.mxu0 0.0
        %1031 = vmatpush2.xpose.msra.mxu0 0.0
        %1032 = vmatprep.subr.mxu0 0.0
        %1033 = vmatpush2.xpose.msra.mxu0 0.0
        %1034 = vmatprep.subr.mxu0 0.0
        %1035 = vmatpush2.xpose.msra.mxu0 0.0
        %1036 = vmatprep.subr.mxu0 0.0
        %1037 = vmatpush2.xpose.msra.mxu0 0.0
        %1038 = vmatprep.subr.mxu0 0.0
        %1039 = vmatpush2.xpose.msra.mxu0 0.0
        %1040 = vmatprep.subr.mxu0 0.0
        %1041 = vmatpush2.xpose.msra.mxu0 0.0
        %1042 = vmatprep.subr.mxu0 0.0
        %1043 = vmatpush2.xpose.msra.mxu0 0.0
        %1044 = vmatprep.subr.mxu0 0.0
        %1045 = vmatpush2.xpose.msra.mxu0 0.0
        %1046 = vmatprep.subr.mxu0 0.0
        %1047 = vmatpush2.xpose.msra.mxu0 0.0
        %1048 = vmatprep.subr.mxu0 0.0
        %1049 = vmatpush2.xpose.msra.mxu0 0.0
        %1050 = vmatprep.subr.mxu0 0.0
        %1051 = vmatpush2.xpose.msra.mxu0 0.0
        %1052 = vmatprep.subr.mxu0 0.0
        %1053 = vmatpush2.xpose.msra.mxu0 0.0
        %1054 = vmatprep.subr.mxu0 0.0
        %1055 = vmatpush2.xpose.msra.mxu0 0.0
        %1056 = vmatprep.subr.mxu0 0.0
        %1057 = vmatpush2.xpose.msra.mxu0 0.0
        %1058 = vmatprep.mubr.f32.mxu0 0.0
        %1059 = vmatmul.mubr.f32.gmra.mxu0 %v983
        %v1060 = vpop.f32.mrf.mxu0
        %v1061 = vadd.f32 0.0, %v1060
        %v1062 = vpop.f32.mrf.mxu0
        %1063 = vmatprep.mubr.f32.mxu0 0.0
        %1064 = vmatmul.mubr.f32.gmra.mxu0 %v986
        %v1065 = vpop.f32.mrf.mxu0
        %v1066 = vadd.f32 0.0, %v1065
        %v1067 = vpop.f32.mrf.mxu0
        %1068 = vdwg.mxu0
        %v1070 = vsel %vm807, %v797, 0
        %v1073 = vsel %vm807, %v798, 0
        %v1076 = vsel %vm807, %v590, 0
        %v1079 = vsel %vm807, %v596, 0
        %1081 = vmatprep.subr.mxu0 0.0
        %1082 = vmatpush1.xpose.msra.mxu0 0.0
        %1083 = vmatprep.subr.mxu0 0.0
        %1084 = vmatpush1.xpose.msra.mxu0 0.0
        %1085 = vmatprep.subr.mxu0 0.0
        %1086 = vmatpush1.xpose.msra.mxu0 0.0
        %1087 = vmatprep.subr.mxu0 0.0
        %1088 = vmatpush1.xpose.msra.mxu0 0.0
        %1089 = vmatprep.subr.mxu0 0.0
        %1090 = vmatpush1.xpose.msra.mxu0 0.0
        %1091 = vmatprep.subr.mxu0 0.0
        %1092 = vmatpush1.xpose.msra.mxu0 0.0
        %1093 = vmatprep.subr.mxu0 0.0
        %1094 = vmatpush1.xpose.msra.mxu0 0.0
        %1095 = vmatprep.subr.mxu0 0.0
        %1096 = vmatpush1.xpose.msra.mxu0 0.0
        %1097 = vmatprep.subr.mxu0 0.0
        %1098 = vmatpush1.xpose.msra.mxu0 0.0
        %1099 = vmatprep.subr.mxu0 0.0
        %1100 = vmatpush1.xpose.msra.mxu0 0.0
        %1101 = vmatprep.subr.mxu0 0.0
        %1102 = vmatpush1.xpose.msra.mxu0 0.0
        %1103 = vmatprep.subr.mxu0 0.0
        %1104 = vmatpush1.xpose.msra.mxu0 0.0
        %1105 = vmatprep.subr.mxu0 0.0
        %1106 = vmatpush1.xpose.msra.mxu0 0.0
        %1107 = vmatprep.subr.mxu0 0.0
        %1108 = vmatpush1.xpose.msra.mxu0 0.0
        %1109 = vmatprep.subr.mxu0 0.0
        %1110 = vmatpush1.xpose.msra.mxu0 %v1079
        %1111 = vmatprep.subr.mxu0 0.0
        %1112 = vmatpush1.xpose.msra.mxu0 %v1076
        %1113 = vmatprep.subr.mxu0 0.0
        %1114 = vmatpush2.xpose.msra.mxu0 0.0
        %1115 = vmatprep.subr.mxu0 0.0
        %1116 = vmatpush2.xpose.msra.mxu0 0.0
        %1117 = vmatprep.subr.mxu0 0.0
        %1118 = vmatpush2.xpose.msra.mxu0 0.0
        %1119 = vmatprep.subr.mxu0 0.0
        %1120 = vmatpush2.xpose.msra.mxu0 0.0
        %1121 = vmatprep.subr.mxu0 0.0
        %1122 = vmatpush2.xpose.msra.mxu0 0.0
        %1123 = vmatprep.subr.mxu0 0.0
        %1124 = vmatpush2.xpose.msra.mxu0 0.0
        %1125 = vmatprep.subr.mxu0 0.0
        %1126 = vmatpush2.xpose.msra.mxu0 0.0
        %1127 = vmatprep.subr.mxu0 0.0
        %1128 = vmatpush2.xpose.msra.mxu0 0.0
        %1129 = vmatprep.subr.mxu0 0.0
        %1130 = vmatpush2.xpose.msra.mxu0 0.0
        %1131 = vmatprep.subr.mxu0 0.0
        %1132 = vmatpush2.xpose.msra.mxu0 0.0
        %1133 = vmatprep.subr.mxu0 0.0
        %1134 = vmatpush2.xpose.msra.mxu0 0.0
        %1135 = vmatprep.subr.mxu0 0.0
        %1136 = vmatpush2.xpose.msra.mxu0 0.0
        %1137 = vmatprep.subr.mxu0 0.0
        %1138 = vmatpush2.xpose.msra.mxu0 0.0
        %1139 = vmatprep.subr.mxu0 0.0
        %1140 = vmatpush2.xpose.msra.mxu0 0.0
        %1141 = vmatprep.subr.mxu0 0.0
        %1142 = vmatpush2.xpose.msra.mxu0 0.0
        %1143 = vmatprep.subr.mxu0 0.0
        %1144 = vmatpush2.xpose.msra.mxu0 0.0
        %1145 = vmatprep.mubr.f32.mxu0 0.0
        %1146 = vmatmul.mubr.f32.gmra.mxu0 %v1070
        %v1147 = vpop.f32.mrf.mxu0
        %v1148 = vadd.f32 0.0, %v1147
        %v1149 = vpop.f32.mrf.mxu0
        %1150 = vmatprep.mubr.f32.mxu0 0.0
        %1151 = vmatmul.mubr.f32.gmra.mxu0 %v1073
        %v1152 = vpop.f32.mrf.mxu0
        %v1153 = vadd.f32 0.0, %v1152
        %v1154 = vpop.f32.mrf.mxu0
        %1155 = vdwg.mxu0
        %v1157 = vsel %vm807, %v799, 0
        %v1160 = vsel %vm807, %v800, 0
        %v1163 = vsel %vm807, %v602, 0
        %v1166 = vsel %vm807, %v608, 0
        %1168 = vmatprep.subr.mxu0 0.0
        %1169 = vmatpush1.xpose.msra.mxu0 0.0
        %1170 = vmatprep.subr.mxu0 0.0
        %1171 = vmatpush1.xpose.msra.mxu0 0.0
        %1172 = vmatprep.subr.mxu0 0.0
        %1173 = vmatpush1.xpose.msra.mxu0 0.0
        %1174 = vmatprep.subr.mxu0 0.0
        %1175 = vmatpush1.xpose.msra.mxu0 0.0
        %1176 = vmatprep.subr.mxu0 0.0
        %1177 = vmatpush1.xpose.msra.mxu0 0.0
        %1178 = vmatprep.subr.mxu0 0.0
        %1179 = vmatpush1.xpose.msra.mxu0 0.0
        %1180 = vmatprep.subr.mxu0 0.0
        %1181 = vmatpush1.xpose.msra.mxu0 0.0
        %1182 = vmatprep.subr.mxu0 0.0
        %1183 = vmatpush1.xpose.msra.mxu0 0.0
        %1184 = vmatprep.subr.mxu0 0.0
        %1185 = vmatpush1.xpose.msra.mxu0 0.0
        %1186 = vmatprep.subr.mxu0 0.0
        %1187 = vmatpush1.xpose.msra.mxu0 0.0
        %1188 = vmatprep.subr.mxu0 0.0
        %1189 = vmatpush1.xpose.msra.mxu0 0.0
        %1190 = vmatprep.subr.mxu0 0.0
        %1191 = vmatpush1.xpose.msra.mxu0 0.0
        %1192 = vmatprep.subr.mxu0 0.0
        %1193 = vmatpush1.xpose.msra.mxu0 0.0
        %1194 = vmatprep.subr.mxu0 0.0
        %1195 = vmatpush1.xpose.msra.mxu0 0.0
        %1196 = vmatprep.subr.mxu0 0.0
        %1197 = vmatpush1.xpose.msra.mxu0 %v1166
        %1198 = vmatprep.subr.mxu0 0.0
        %1199 = vmatpush1.xpose.msra.mxu0 %v1163
        %1200 = vmatprep.subr.mxu0 0.0
        %1201 = vmatpush2.xpose.msra.mxu0 0.0
        %1202 = vmatprep.subr.mxu0 0.0
        %1203 = vmatpush2.xpose.msra.mxu0 0.0
        %1204 = vmatprep.subr.mxu0 0.0
        %1205 = vmatpush2.xpose.msra.mxu0 0.0
        %1206 = vmatprep.subr.mxu0 0.0
        %1207 = vmatpush2.xpose.msra.mxu0 0.0
        %1208 = vmatprep.subr.mxu0 0.0
        %1209 = vmatpush2.xpose.msra.mxu0 0.0
        %1210 = vmatprep.subr.mxu0 0.0
        %1211 = vmatpush2.xpose.msra.mxu0 0.0
        %1212 = vmatprep.subr.mxu0 0.0
        %1213 = vmatpush2.xpose.msra.mxu0 0.0
        %1214 = vmatprep.subr.mxu0 0.0
        %1215 = vmatpush2.xpose.msra.mxu0 0.0
        %1216 = vmatprep.subr.mxu0 0.0
        %1217 = vmatpush2.xpose.msra.mxu0 0.0
        %1218 = vmatprep.subr.mxu0 0.0
        %1219 = vmatpush2.xpose.msra.mxu0 0.0
        %1220 = vmatprep.subr.mxu0 0.0
        %1221 = vmatpush2.xpose.msra.mxu0 0.0
        %1222 = vmatprep.subr.mxu0 0.0
        %1223 = vmatpush2.xpose.msra.mxu0 0.0
        %1224 = vmatprep.subr.mxu0 0.0
        %1225 = vmatpush2.xpose.msra.mxu0 0.0
        %1226 = vmatprep.subr.mxu0 0.0
        %1227 = vmatpush2.xpose.msra.mxu0 0.0
        %1228 = vmatprep.subr.mxu0 0.0
        %1229 = vmatpush2.xpose.msra.mxu0 0.0
        %1230 = vmatprep.subr.mxu0 0.0
        %1231 = vmatpush2.xpose.msra.mxu0 0.0
        %1232 = vmatprep.mubr.f32.mxu0 0.0
        %1233 = vmatmul.mubr.f32.gmra.mxu0 %v1157
        %v1234 = vpop.f32.mrf.mxu0
        %v1235 = vadd.f32 0.0, %v1234
        %v1236 = vpop.f32.mrf.mxu0
        %1237 = vmatprep.mubr.f32.mxu0 0.0
        %1238 = vmatmul.mubr.f32.gmra.mxu0 %v1160
        %v1239 = vpop.f32.mrf.mxu0
        %v1240 = vadd.f32 0.0, %v1239
        %v1241 = vpop.f32.mrf.mxu0
        %1242 = vdwg.mxu0
        %v1244 = vsel %vm807, %v801, 0
        %v1247 = vsel %vm807, %v802, 0
        %v1250 = vsel %vm807, %v614, 0
        %v1253 = vsel %vm807, %v620, 0
        %1255 = vmatprep.subr.mxu0 0.0
        %1256 = vmatpush1.xpose.msra.mxu0 0.0
        %1257 = vmatprep.subr.mxu0 0.0
        %1258 = vmatpush1.xpose.msra.mxu0 0.0
        %1259 = vmatprep.subr.mxu0 0.0
        %1260 = vmatpush1.xpose.msra.mxu0 0.0
        %1261 = vmatprep.subr.mxu0 0.0
        %1262 = vmatpush1.xpose.msra.mxu0 0.0
        %1263 = vmatprep.subr.mxu0 0.0
        %1264 = vmatpush1.xpose.msra.mxu0 0.0
        %1265 = vmatprep.subr.mxu0 0.0
        %1266 = vmatpush1.xpose.msra.mxu0 0.0
        %1267 = vmatprep.subr.mxu0 0.0
        %1268 = vmatpush1.xpose.msra.mxu0 0.0
        %1269 = vmatprep.subr.mxu0 0.0
        %1270 = vmatpush1.xpose.msra.mxu0 0.0
        %1271 = vmatprep.subr.mxu0 0.0
        %1272 = vmatpush1.xpose.msra.mxu0 0.0
        %1273 = vmatprep.subr.mxu0 0.0
        %1274 = vmatpush1.xpose.msra.mxu0 0.0
        %1275 = vmatprep.subr.mxu0 0.0
        %1276 = vmatpush1.xpose.msra.mxu0 0.0
        %1277 = vmatprep.subr.mxu0 0.0
        %1278 = vmatpush1.xpose.msra.mxu0 0.0
        %1279 = vmatprep.subr.mxu0 0.0
        %1280 = vmatpush1.xpose.msra.mxu0 0.0
        %1281 = vmatprep.subr.mxu0 0.0
        %1282 = vmatpush1.xpose.msra.mxu0 0.0
        %1283 = vmatprep.subr.mxu0 0.0
        %1284 = vmatpush1.xpose.msra.mxu0 %v1253
        %1285 = vmatprep.subr.mxu0 0.0
        %1286 = vmatpush1.xpose.msra.mxu0 %v1250
        %1287 = vmatprep.subr.mxu0 0.0
        %1288 = vmatpush2.xpose.msra.mxu0 0.0
        %1289 = vmatprep.subr.mxu0 0.0
        %1290 = vmatpush2.xpose.msra.mxu0 0.0
        %1291 = vmatprep.subr.mxu0 0.0
        %1292 = vmatpush2.xpose.msra.mxu0 0.0
        %1293 = vmatprep.subr.mxu0 0.0
        %1294 = vmatpush2.xpose.msra.mxu0 0.0
        %1295 = vmatprep.subr.mxu0 0.0
        %1296 = vmatpush2.xpose.msra.mxu0 0.0
        %1297 = vmatprep.subr.mxu0 0.0
        %1298 = vmatpush2.xpose.msra.mxu0 0.0
        %1299 = vmatprep.subr.mxu0 0.0
        %1300 = vmatpush2.xpose.msra.mxu0 0.0
        %1301 = vmatprep.subr.mxu0 0.0
        %1302 = vmatpush2.xpose.msra.mxu0 0.0
        %1303 = vmatprep.subr.mxu0 0.0
        %1304 = vmatpush2.xpose.msra.mxu0 0.0
        %1305 = vmatprep.subr.mxu0 0.0
        %1306 = vmatpush2.xpose.msra.mxu0 0.0
        %1307 = vmatprep.subr.mxu0 0.0
        %1308 = vmatpush2.xpose.msra.mxu0 0.0
        %1309 = vmatprep.subr.mxu0 0.0
        %1310 = vmatpush2.xpose.msra.mxu0 0.0
        %1311 = vmatprep.subr.mxu0 0.0
        %1312 = vmatpush2.xpose.msra.mxu0 0.0
        %1313 = vmatprep.subr.mxu0 0.0
        %1314 = vmatpush2.xpose.msra.mxu0 0.0
        %1315 = vmatprep.subr.mxu0 0.0
        %1316 = vmatpush2.xpose.msra.mxu0 0.0
        %1317 = vmatprep.subr.mxu0 0.0
        %1318 = vmatpush2.xpose.msra.mxu0 0.0
        %1319 = vmatprep.mubr.f32.mxu0 0.0
        %1320 = vmatmul.mubr.f32.gmra.mxu0 %v1244
        %v1321 = vpop.f32.mrf.mxu0
        %v1322 = vadd.f32 0.0, %v1321
        %v1323 = vpop.f32.mrf.mxu0
        %1324 = vmatprep.mubr.f32.mxu0 0.0
        %1325 = vmatmul.mubr.f32.gmra.mxu0 %v1247
        %v1326 = vpop.f32.mrf.mxu0
        %v1327 = vadd.f32 0.0, %v1326
        %v1328 = vpop.f32.mrf.mxu0
        %1329 = vdwg.mxu0
        %v1331 = vsel %vm807, %v803, 0
        %v1334 = vsel %vm807, %v804, 0
        %v1337 = vsel %vm807, %v626, 0
        %v1340 = vsel %vm807, %v632, 0
        %1342 = vmatprep.subr.mxu0 0.0
        %1343 = vmatpush1.xpose.msra.mxu0 0.0
        %1344 = vmatprep.subr.mxu0 0.0
        %1345 = vmatpush1.xpose.msra.mxu0 0.0
        %1346 = vmatprep.subr.mxu0 0.0
        %1347 = vmatpush1.xpose.msra.mxu0 0.0
        %1348 = vmatprep.subr.mxu0 0.0
        %1349 = vmatpush1.xpose.msra.mxu0 0.0
        %1350 = vmatprep.subr.mxu0 0.0
        %1351 = vmatpush1.xpose.msra.mxu0 0.0
        %1352 = vmatprep.subr.mxu0 0.0
        %1353 = vmatpush1.xpose.msra.mxu0 0.0
        %1354 = vmatprep.subr.mxu0 0.0
        %1355 = vmatpush1.xpose.msra.mxu0 0.0
        %1356 = vmatprep.subr.mxu0 0.0
        %1357 = vmatpush1.xpose.msra.mxu0 0.0
        %1358 = vmatprep.subr.mxu0 0.0
        %1359 = vmatpush1.xpose.msra.mxu0 0.0
        %1360 = vmatprep.subr.mxu0 0.0
        %1361 = vmatpush1.xpose.msra.mxu0 0.0
        %1362 = vmatprep.subr.mxu0 0.0
        %1363 = vmatpush1.xpose.msra.mxu0 0.0
        %1364 = vmatprep.subr.mxu0 0.0
        %1365 = vmatpush1.xpose.msra.mxu0 0.0
        %1366 = vmatprep.subr.mxu0 0.0
        %1367 = vmatpush1.xpose.msra.mxu0 0.0
        %1368 = vmatprep.subr.mxu0 0.0
        %1369 = vmatpush1.xpose.msra.mxu0 0.0
        %1370 = vmatprep.subr.mxu0 0.0
        %1371 = vmatpush1.xpose.msra.mxu0 %v1340
        %1372 = vmatprep.subr.mxu0 0.0
        %1373 = vmatpush1.xpose.msra.mxu0 %v1337
        %1374 = vmatprep.subr.mxu0 0.0
        %1375 = vmatpush2.xpose.msra.mxu0 0.0
        %1376 = vmatprep.subr.mxu0 0.0
        %1377 = vmatpush2.xpose.msra.mxu0 0.0
        %1378 = vmatprep.subr.mxu0 0.0
        %1379 = vmatpush2.xpose.msra.mxu0 0.0
        %1380 = vmatprep.subr.mxu0 0.0
        %1381 = vmatpush2.xpose.msra.mxu0 0.0
        %1382 = vmatprep.subr.mxu0 0.0
        %1383 = vmatpush2.xpose.msra.mxu0 0.0
        %1384 = vmatprep.subr.mxu0 0.0
        %1385 = vmatpush2.xpose.msra.mxu0 0.0
        %1386 = vmatprep.subr.mxu0 0.0
        %1387 = vmatpush2.xpose.msra.mxu0 0.0
        %1388 = vmatprep.subr.mxu0 0.0
        %1389 = vmatpush2.xpose.msra.mxu0 0.0
        %1390 = vmatprep.subr.mxu0 0.0
        %1391 = vmatpush2.xpose.msra.mxu0 0.0
        %1392 = vmatprep.subr.mxu0 0.0
        %1393 = vmatpush2.xpose.msra.mxu0 0.0
        %1394 = vmatprep.subr.mxu0 0.0
        %1395 = vmatpush2.xpose.msra.mxu0 0.0
        %1396 = vmatprep.subr.mxu0 0.0
        %1397 = vmatpush2.xpose.msra.mxu0 0.0
        %1398 = vmatprep.subr.mxu0 0.0
        %1399 = vmatpush2.xpose.msra.mxu0 0.0
        %1400 = vmatprep.subr.mxu0 0.0
        %1401 = vmatpush2.xpose.msra.mxu0 0.0
        %1402 = vmatprep.subr.mxu0 0.0
        %1403 = vmatpush2.xpose.msra.mxu0 0.0
        %1404 = vmatprep.subr.mxu0 0.0
        %1405 = vmatpush2.xpose.msra.mxu0 0.0
        %1406 = vmatprep.mubr.f32.mxu0 0.0
        %1407 = vmatmul.mubr.f32.gmra.mxu0 %v1331
        %v1408 = vpop.f32.mrf.mxu0
        %v1409 = vadd.f32 0.0, %v1408
        %v1410 = vpop.f32.mrf.mxu0
        %1411 = vmatprep.mubr.f32.mxu0 0.0
        %1412 = vmatmul.mubr.f32.gmra.mxu0 %v1334
        %v1413 = vpop.f32.mrf.mxu0
        %v1414 = vadd.f32 0.0, %v1413
        %v1415 = vpop.f32.mrf.mxu0
        %1416 = vdwg.mxu0
        %v1418 = vsel %vm807, %v805, 0
        %v1421 = vsel %vm807, %v806, 0
        %v1424 = vsel %vm807, %v638, 0
        %v1427 = vsel %vm807, %v644, 0
        %1429 = vmatprep.subr.mxu0 0.0
        %1430 = vmatpush1.xpose.msra.mxu0 0.0
        %1431 = vmatprep.subr.mxu0 0.0
        %1432 = vmatpush1.xpose.msra.mxu0 0.0
        %1433 = vmatprep.subr.mxu0 0.0
        %1434 = vmatpush1.xpose.msra.mxu0 0.0
        %1435 = vmatprep.subr.mxu0 0.0
        %1436 = vmatpush1.xpose.msra.mxu0 0.0
        %1437 = vmatprep.subr.mxu0 0.0
        %1438 = vmatpush1.xpose.msra.mxu0 0.0
        %1439 = vmatprep.subr.mxu0 0.0
        %1440 = vmatpush1.xpose.msra.mxu0 0.0
        %1441 = vmatprep.subr.mxu0 0.0
        %1442 = vmatpush1.xpose.msra.mxu0 0.0
        %1443 = vmatprep.subr.mxu0 0.0
        %1444 = vmatpush1.xpose.msra.mxu0 0.0
        %1445 = vmatprep.subr.mxu0 0.0
        %1446 = vmatpush1.xpose.msra.mxu0 0.0
        %1447 = vmatprep.subr.mxu0 0.0
        %1448 = vmatpush1.xpose.msra.mxu0 0.0
        %1449 = vmatprep.subr.mxu0 0.0
        %1450 = vmatpush1.xpose.msra.mxu0 0.0
        %1451 = vmatprep.subr.mxu0 0.0
        %1452 = vmatpush1.xpose.msra.mxu0 0.0
        %1453 = vmatprep.subr.mxu0 0.0
        %1454 = vmatpush1.xpose.msra.mxu0 0.0
        %1455 = vmatprep.subr.mxu0 0.0
        %1456 = vmatpush1.xpose.msra.mxu0 0.0
        %1457 = vmatprep.subr.mxu0 0.0
        %1458 = vmatpush1.xpose.msra.mxu0 %v1427
        %1459 = vmatprep.subr.mxu0 0.0
        %1460 = vmatpush1.xpose.msra.mxu0 %v1424
        %1461 = vmatprep.subr.mxu0 0.0
        %1462 = vmatpush2.xpose.msra.mxu0 0.0
        %1463 = vmatprep.subr.mxu0 0.0
        %1464 = vmatpush2.xpose.msra.mxu0 0.0
        %1465 = vmatprep.subr.mxu0 0.0
        %1466 = vmatpush2.xpose.msra.mxu0 0.0
        %1467 = vmatprep.subr.mxu0 0.0
        %1468 = vmatpush2.xpose.msra.mxu0 0.0
        %1469 = vmatprep.subr.mxu0 0.0
        %1470 = vmatpush2.xpose.msra.mxu0 0.0
        %1471 = vmatprep.subr.mxu0 0.0
        %1472 = vmatpush2.xpose.msra.mxu0 0.0
        %1473 = vmatprep.subr.mxu0 0.0
        %1474 = vmatpush2.xpose.msra.mxu0 0.0
        %1475 = vmatprep.subr.mxu0 0.0
        %1476 = vmatpush2.xpose.msra.mxu0 0.0
        %1477 = vmatprep.subr.mxu0 0.0
        %1478 = vmatpush2.xpose.msra.mxu0 0.0
        %1479 = vmatprep.subr.mxu0 0.0
        %1480 = vmatpush2.xpose.msra.mxu0 0.0
        %1481 = vmatprep.subr.mxu0 0.0
        %1482 = vmatpush2.xpose.msra.mxu0 0.0
        %1483 = vmatprep.subr.mxu0 0.0
        %1484 = vmatpush2.xpose.msra.mxu0 0.0
        %1485 = vmatprep.subr.mxu0 0.0
        %1486 = vmatpush2.xpose.msra.mxu0 0.0
        %1487 = vmatprep.subr.mxu0 0.0
        %1488 = vmatpush2.xpose.msra.mxu0 0.0
        %1489 = vmatprep.subr.mxu0 0.0
        %1490 = vmatpush2.xpose.msra.mxu0 0.0
        %1491 = vmatprep.subr.mxu0 0.0
        %1492 = vmatpush2.xpose.msra.mxu0 0.0
        %1493 = vmatprep.mubr.f32.mxu0 0.0
        %1494 = vmatmul.mubr.f32.gmra.mxu0 %v1418
        %v1495 = vpop.f32.mrf.mxu0
        %v1496 = vadd.f32 0.0, %v1495
        %v1497 = vpop.f32.mrf.mxu0
        %1498 = vmatprep.mubr.f32.mxu0 0.0
        %1499 = vmatmul.mubr.f32.gmra.mxu0 %v1421
        %v1500 = vpop.f32.mrf.mxu0
        %v1501 = vadd.f32 0.0, %v1500
        %v1502 = vpop.f32.mrf.mxu0
        %1503 = vdwg.mxu0
        %vm1504 = vcmask 130048
        %v1505 = vsel %vm1504, %v887, -inf
        %1506 = vmax.xlane.f32.xlu0 %v1505
        %v1507 = vpop.xlane.xlu0 %1506
        %v1508 = vsel %vm1504, %v892, -inf
        %1509 = vmax.xlane.f32.xlu0 %v1508
        %v1510 = vpop.xlane.xlu0 %1509
        %v1511 = vsel %vm1504, %v974, -inf
        %1512 = vmax.xlane.f32.xlu0 %v1511
        %v1513 = vpop.xlane.xlu0 %1512
        %v1514 = vsel %vm1504, %v979, -inf
        %1515 = vmax.xlane.f32.xlu0 %v1514
        %v1516 = vpop.xlane.xlu0 %1515
        %v1517 = vsel %vm1504, %v1061, -inf
        %1518 = vmax.xlane.f32.xlu0 %v1517
        %v1519 = vpop.xlane.xlu0 %1518
        %v1520 = vsel %vm1504, %v1066, -inf
        %1521 = vmax.xlane.f32.xlu0 %v1520
        %v1522 = vpop.xlane.xlu0 %1521
        %v1523 = vsel %vm1504, %v1148, -inf
        %1524 = vmax.xlane.f32.xlu0 %v1523
        %v1525 = vpop.xlane.xlu0 %1524
        %v1526 = vsel %vm1504, %v1153, -inf
        %1527 = vmax.xlane.f32.xlu0 %v1526
        %v1528 = vpop.xlane.xlu0 %1527
        %v1529 = vsel %vm1504, %v1235, -inf
        %1530 = vmax.xlane.f32.xlu0 %v1529
        %v1531 = vpop.xlane.xlu0 %1530
        %v1532 = vsel %vm1504, %v1240, -inf
        %1533 = vmax.xlane.f32.xlu0 %v1532
        %v1534 = vpop.xlane.xlu0 %1533
        %v1535 = vsel %vm1504, %v1322, -inf
        %1536 = vmax.xlane.f32.xlu0 %v1535
        %v1537 = vpop.xlane.xlu0 %1536
        %v1538 = vsel %vm1504, %v1327, -inf
        %1539 = vmax.xlane.f32.xlu0 %v1538
        %v1540 = vpop.xlane.xlu0 %1539
        %v1541 = vsel %vm1504, %v1409, -inf
        %1542 = vmax.xlane.f32.xlu0 %v1541
        %v1543 = vpop.xlane.xlu0 %1542
        %v1544 = vsel %vm1504, %v1414, -inf
        %1545 = vmax.xlane.f32.xlu0 %v1544
        %v1546 = vpop.xlane.xlu0 %1545
        %v1547 = vsel %vm1504, %v1496, -inf
        %1548 = vmax.xlane.f32.xlu0 %v1547
        %v1549 = vpop.xlane.xlu0 %1548
        %v1550 = vsel %vm1504, %v1501, -inf
        %1551 = vmax.xlane.f32.xlu0 %v1550
        %v1552 = vpop.xlane.xlu0 %1551
        %v1553 = vsub.f32 %v887, %v1507
        %v1554 = vsub.f32 %v892, %v1510
        %v1555 = vsub.f32 %v974, %v1513
        %v1556 = vsub.f32 %v979, %v1516
        %v1557 = vsub.f32 %v1061, %v1519
        %v1558 = vsub.f32 %v1066, %v1522
        %v1559 = vsub.f32 %v1148, %v1525
        %v1560 = vsub.f32 %v1153, %v1528
        %v1561 = vsub.f32 %v1235, %v1531
        %v1562 = vsub.f32 %v1240, %v1534
        %v1563 = vsub.f32 %v1322, %v1537
        %v1564 = vsub.f32 %v1327, %v1540
        %v1565 = vsub.f32 %v1409, %v1543
        %v1566 = vsub.f32 %v1414, %v1546
        %v1567 = vsub.f32 %v1496, %v1549
        %v1568 = vsub.f32 %v1501, %v1552
        %v1569 = vmul.f32 %v1553, 1.442695
        %v1570 = vpow.pop %v1569
        %v1571 = vmul.f32 %v1554, 1.442695
        %v1572 = vpow.pop %v1571
        %v1573 = vmul.f32 %v1555, 1.442695
        %v1574 = vpow.pop %v1573
        %v1575 = vmul.f32 %v1556, 1.442695
        %v1576 = vpow.pop %v1575
        %v1577 = vmul.f32 %v1557, 1.442695
        %v1578 = vpow.pop %v1577
        %v1579 = vmul.f32 %v1558, 1.442695
        %v1580 = vpow.pop %v1579
        %v1581 = vmul.f32 %v1559, 1.442695
        %v1582 = vpow.pop %v1581
        %v1583 = vmul.f32 %v1560, 1.442695
        %v1584 = vpow.pop %v1583
        %v1585 = vmul.f32 %v1561, 1.442695
        %v1586 = vpow.pop %v1585
        %v1587 = vmul.f32 %v1562, 1.442695
        %v1588 = vpow.pop %v1587
        %v1589 = vmul.f32 %v1563, 1.442695
        %v1590 = vpow.pop %v1589
        %v1591 = vmul.f32 %v1564, 1.442695
        %v1592 = vpow.pop %v1591
        %v1593 = vmul.f32 %v1565, 1.442695
        %v1594 = vpow.pop %v1593
        %v1595 = vmul.f32 %v1566, 1.442695
        %v1596 = vpow.pop %v1595
        %v1597 = vmul.f32 %v1567, 1.442695
        %v1598 = vpow.pop %v1597
        %v1599 = vmul.f32 %v1568, 1.442695
        %v1600 = vpow.pop %v1599
        %v1601 = vsel %vm1504, %v1570, 0.0
        %1602 = vadd.xlane.f32.xlu0 %v1601
        %v1603 = vpop.xlane.xlu0 %1602
        %v1604 = vsel %vm1504, %v1572, 0.0
        %1605 = vadd.xlane.f32.xlu0 %v1604
        %v1606 = vpop.xlane.xlu0 %1605
        %v1607 = vsel %vm1504, %v1574, 0.0
        %1608 = vadd.xlane.f32.xlu0 %v1607
        %v1609 = vpop.xlane.xlu0 %1608
        %v1610 = vsel %vm1504, %v1576, 0.0
        %1611 = vadd.xlane.f32.xlu0 %v1610
        %v1612 = vpop.xlane.xlu0 %1611
        %v1613 = vsel %vm1504, %v1578, 0.0
        %1614 = vadd.xlane.f32.xlu0 %v1613
        %v1615 = vpop.xlane.xlu0 %1614
        %v1616 = vsel %vm1504, %v1580, 0.0
        %1617 = vadd.xlane.f32.xlu0 %v1616
        %v1618 = vpop.xlane.xlu0 %1617
        %v1619 = vsel %vm1504, %v1582, 0.0
        %1620 = vadd.xlane.f32.xlu0 %v1619
        %v1621 = vpop.xlane.xlu0 %1620
        %v1622 = vsel %vm1504, %v1584, 0.0
        %1623 = vadd.xlane.f32.xlu0 %v1622
        %v1624 = vpop.xlane.xlu0 %1623
        %v1625 = vsel %vm1504, %v1586, 0.0
        %1626 = vadd.xlane.f32.xlu0 %v1625
        %v1627 = vpop.xlane.xlu0 %1626
        %v1628 = vsel %vm1504, %v1588, 0.0
        %1629 = vadd.xlane.f32.xlu0 %v1628
        %v1630 = vpop.xlane.xlu0 %1629
        %v1631 = vsel %vm1504, %v1590, 0.0
        %1632 = vadd.xlane.f32.xlu0 %v1631
        %v1633 = vpop.xlane.xlu0 %1632
        %v1634 = vsel %vm1504, %v1592, 0.0
        %1635 = vadd.xlane.f32.xlu0 %v1634
        %v1636 = vpop.xlane.xlu0 %1635
        %v1637 = vsel %vm1504, %v1594, 0.0
        %1638 = vadd.xlane.f32.xlu0 %v1637
        %v1639 = vpop.xlane.xlu0 %1638
        %v1640 = vsel %vm1504, %v1596, 0.0
        %1641 = vadd.xlane.f32.xlu0 %v1640
        %v1642 = vpop.xlane.xlu0 %1641
        %v1643 = vsel %vm1504, %v1598, 0.0
        %1644 = vadd.xlane.f32.xlu0 %v1643
        %v1645 = vpop.xlane.xlu0 %1644
        %v1646 = vsel %vm1504, %v1600, 0.0
        %1647 = vadd.xlane.f32.xlu0 %v1646
        %v1648 = vpop.xlane.xlu0 %1647
        %v1649 = vrcp.pop %v1603
        %v1650 = vrcp.pop %v1606
        %v1651 = vrcp.pop %v1609
        %v1652 = vrcp.pop %v1612
        %v1653 = vrcp.pop %v1615
        %v1654 = vrcp.pop %v1618
        %v1655 = vrcp.pop %v1621
        %v1656 = vrcp.pop %v1624
        %v1657 = vrcp.pop %v1627
        %v1658 = vrcp.pop %v1630
        %v1659 = vrcp.pop %v1633
        %v1660 = vrcp.pop %v1636
        %v1661 = vrcp.pop %v1639
        %v1662 = vrcp.pop %v1642
        %v1663 = vrcp.pop %v1645
        %v1664 = vrcp.pop %v1648
        %v1665 = vmul.f32 %v1570, %v1649
        %v1666 = vmul.f32 %v1572, %v1650
        %v1667 = vmul.f32 %v1574, %v1651
        %v1668 = vmul.f32 %v1576, %v1652
        %v1669 = vmul.f32 %v1578, %v1653
        %v1670 = vmul.f32 %v1580, %v1654
        %v1671 = vmul.f32 %v1582, %v1655
        %v1672 = vmul.f32 %v1584, %v1656
        %v1673 = vmul.f32 %v1586, %v1657
        %v1674 = vmul.f32 %v1588, %v1658
        %v1675 = vmul.f32 %v1590, %v1659
        %v1676 = vmul.f32 %v1592, %v1660
        %v1677 = vmul.f32 %v1594, %v1661
        %v1678 = vmul.f32 %v1596, %v1662
        %v1679 = vmul.f32 %v1598, %v1663
        %v1680 = vmul.f32 %v1600, %v1664
        %v1682 = vsel %vm1504, %v1665, 0
        %v1685 = vsel %vm1504, %v1666, 0
        %1687 = vmatprep.subr.mxu0 0.0
        %1688 = vmatpush1.msra.mxu0 0.0
        %1689 = vmatprep.subr.mxu0 0.0
        %1690 = vmatpush1.msra.mxu0 0.0
        %1691 = vmatprep.subr.mxu0 0.0
        %1692 = vmatpush1.msra.mxu0 0.0
        %1693 = vmatprep.subr.mxu0 0.0
        %1694 = vmatpush1.msra.mxu0 0.0
        %1695 = vmatprep.subr.mxu0 0.0
        %1696 = vmatpush1.msra.mxu0 0.0
        %1697 = vmatprep.subr.mxu0 0.0
        %1698 = vmatpush1.msra.mxu0 0.0
        %1699 = vmatprep.subr.mxu0 0.0
        %1700 = vmatpush1.msra.mxu0 0.0
        %1701 = vmatprep.subr.mxu0 0.0
        %1702 = vmatpush1.msra.mxu0 0.0
        %1703 = vmatprep.subr.mxu0 0.0
        %1704 = vmatpush1.msra.mxu0 0.0
        %1705 = vmatprep.subr.mxu0 0.0
        %1706 = vmatpush1.msra.mxu0 0.0
        %1707 = vmatprep.subr.mxu0 0.0
        %1708 = vmatpush1.msra.mxu0 0.0
        %1709 = vmatprep.subr.mxu0 0.0
        %1710 = vmatpush1.msra.mxu0 0.0
        %1711 = vmatprep.subr.mxu0 0.0
        %1712 = vmatpush1.msra.mxu0 0.0
        %1713 = vmatprep.subr.mxu0 0.0
        %1714 = vmatpush1.msra.mxu0 0.0
        %1715 = vmatprep.subr.mxu0 0.0
        %1716 = vmatpush1.msra.mxu0 %v718
        %1717 = vmatprep.subr.mxu0 0.0
        %1718 = vmatpush1.msra.mxu0 %v713
        %1719 = vmatprep.subr.mxu0 0.0
        %1720 = vmatpush2.msra.mxu0 0.0
        %1721 = vmatprep.subr.mxu0 0.0
        %1722 = vmatpush2.msra.mxu0 0.0
        %1723 = vmatprep.subr.mxu0 0.0
        %1724 = vmatpush2.msra.mxu0 0.0
        %1725 = vmatprep.subr.mxu0 0.0
        %1726 = vmatpush2.msra.mxu0 0.0
        %1727 = vmatprep.subr.mxu0 0.0
        %1728 = vmatpush2.msra.mxu0 0.0
        %1729 = vmatprep.subr.mxu0 0.0
        %1730 = vmatpush2.msra.mxu0 0.0
        %1731 = vmatprep.subr.mxu0 0.0
        %1732 = vmatpush2.msra.mxu0 0.0
        %1733 = vmatprep.subr.mxu0 0.0
        %1734 = vmatpush2.msra.mxu0 0.0
        %1735 = vmatprep.subr.mxu0 0.0
        %1736 = vmatpush2.msra.mxu0 0.0
        %1737 = vmatprep.subr.mxu0 0.0
        %1738 = vmatpush2.msra.mxu0 0.0
        %1739 = vmatprep.subr.mxu0 0.0
        %1740 = vmatpush2.msra.mxu0 0.0
        %1741 = vmatprep.subr.mxu0 0.0
        %1742 = vmatpush2.msra.mxu0 0.0
        %1743 = vmatprep.subr.mxu0 0.0
        %1744 = vmatpush2.msra.mxu0 0.0
        %1745 = vmatprep.subr.mxu0 0.0
        %1746 = vmatpush2.msra.mxu0 0.0
        %1747 = vmatprep.subr.mxu0 0.0
        %1748 = vmatpush2.msra.mxu0 0.0
        %1749 = vmatprep.subr.mxu0 0.0
        %1750 = vmatpush2.msra.mxu0 0.0
        %1751 = vmatprep.mubr.f32.mxu0 0.0
        %1752 = vmatmul.mubr.f32.gmra.mxu0 %v1682
        %v1753 = vpop.f32.mrf.mxu0
        %v1754 = vadd.f32 0.0, %v1753
        %v1755 = vpop.f32.mrf.mxu0
        %1756 = vmatprep.mubr.f32.mxu0 0.0
        %1757 = vmatmul.mubr.f32.gmra.mxu0 %v1685
        %v1758 = vpop.f32.mrf.mxu0
        %v1759 = vadd.f32 0.0, %v1758
        %v1760 = vpop.f32.mrf.mxu0
        %1761 = vdwg.mxu0
        %v1763 = vsel %vm1504, %v1667, 0
        %v1766 = vsel %vm1504, %v1668, 0
        %1768 = vmatprep.subr.mxu0 0.0
        %1769 = vmatpush1.msra.mxu0 0.0
        %1770 = vmatprep.subr.mxu0 0.0
        %1771 = vmatpush1.msra.mxu0 0.0
        %1772 = vmatprep.subr.mxu0 0.0
        %1773 = vmatpush1.msra.mxu0 0.0
        %1774 = vmatprep.subr.mxu0 0.0
        %1775 = vmatpush1.msra.mxu0 0.0
        %1776 = vmatprep.subr.mxu0 0.0
        %1777 = vmatpush1.msra.mxu0 0.0
        %1778 = vmatprep.subr.mxu0 0.0
        %1779 = vmatpush1.msra.mxu0 0.0
        %1780 = vmatprep.subr.mxu0 0.0
        %1781 = vmatpush1.msra.mxu0 0.0
        %1782 = vmatprep.subr.mxu0 0.0
        %1783 = vmatpush1.msra.mxu0 0.0
        %1784 = vmatprep.subr.mxu0 0.0
        %1785 = vmatpush1.msra.mxu0 0.0
        %1786 = vmatprep.subr.mxu0 0.0
        %1787 = vmatpush1.msra.mxu0 0.0
        %1788 = vmatprep.subr.mxu0 0.0
        %1789 = vmatpush1.msra.mxu0 0.0
        %1790 = vmatprep.subr.mxu0 0.0
        %1791 = vmatpush1.msra.mxu0 0.0
        %1792 = vmatprep.subr.mxu0 0.0
        %1793 = vmatpush1.msra.mxu0 0.0
        %1794 = vmatprep.subr.mxu0 0.0
        %1795 = vmatpush1.msra.mxu0 0.0
        %1796 = vmatprep.subr.mxu0 0.0
        %1797 = vmatpush1.msra.mxu0 %v728
        %1798 = vmatprep.subr.mxu0 0.0
        %1799 = vmatpush1.msra.mxu0 %v723
        %1800 = vmatprep.subr.mxu0 0.0
        %1801 = vmatpush2.msra.mxu0 0.0
        %1802 = vmatprep.subr.mxu0 0.0
        %1803 = vmatpush2.msra.mxu0 0.0
        %1804 = vmatprep.subr.mxu0 0.0
        %1805 = vmatpush2.msra.mxu0 0.0
        %1806 = vmatprep.subr.mxu0 0.0
        %1807 = vmatpush2.msra.mxu0 0.0
        %1808 = vmatprep.subr.mxu0 0.0
        %1809 = vmatpush2.msra.mxu0 0.0
        %1810 = vmatprep.subr.mxu0 0.0
        %1811 = vmatpush2.msra.mxu0 0.0
        %1812 = vmatprep.subr.mxu0 0.0
        %1813 = vmatpush2.msra.mxu0 0.0
        %1814 = vmatprep.subr.mxu0 0.0
        %1815 = vmatpush2.msra.mxu0 0.0
        %1816 = vmatprep.subr.mxu0 0.0
        %1817 = vmatpush2.msra.mxu0 0.0
        %1818 = vmatprep.subr.mxu0 0.0
        %1819 = vmatpush2.msra.mxu0 0.0
        %1820 = vmatprep.subr.mxu0 0.0
        %1821 = vmatpush2.msra.mxu0 0.0
        %1822 = vmatprep.subr.mxu0 0.0
        %1823 = vmatpush2.msra.mxu0 0.0
        %1824 = vmatprep.subr.mxu0 0.0
        %1825 = vmatpush2.msra.mxu0 0.0
        %1826 = vmatprep.subr.mxu0 0.0
        %1827 = vmatpush2.msra.mxu0 0.0
        %1828 = vmatprep.subr.mxu0 0.0
        %1829 = vmatpush2.msra.mxu0 0.0
        %1830 = vmatprep.subr.mxu0 0.0
        %1831 = vmatpush2.msra.mxu0 0.0
        %1832 = vmatprep.mubr.f32.mxu0 0.0
        %1833 = vmatmul.mubr.f32.gmra.mxu0 %v1763
        %v1834 = vpop.f32.mrf.mxu0
        %v1835 = vadd.f32 0.0, %v1834
        %v1836 = vpop.f32.mrf.mxu0
        %1837 = vmatprep.mubr.f32.mxu0 0.0
        %1838 = vmatmul.mubr.f32.gmra.mxu0 %v1766
        %v1839 = vpop.f32.mrf.mxu0
        %v1840 = vadd.f32 0.0, %v1839
        %v1841 = vpop.f32.mrf.mxu0
        %1842 = vdwg.mxu0
        %v1844 = vsel %vm1504, %v1669, 0
        %v1847 = vsel %vm1504, %v1670, 0
        %1849 = vmatprep.subr.mxu0 0.0
        %1850 = vmatpush1.msra.mxu0 0.0
        %1851 = vmatprep.subr.mxu0 0.0
        %1852 = vmatpush1.msra.mxu0 0.0
        %1853 = vmatprep.subr.mxu0 0.0
        %1854 = vmatpush1.msra.mxu0 0.0
        %1855 = vmatprep.subr.mxu0 0.0
        %1856 = vmatpush1.msra.mxu0 0.0
        %1857 = vmatprep.subr.mxu0 0.0
        %1858 = vmatpush1.msra.mxu0 0.0
        %1859 = vmatprep.subr.mxu0 0.0
        %1860 = vmatpush1.msra.mxu0 0.0
        %1861 = vmatprep.subr.mxu0 0.0
        %1862 = vmatpush1.msra.mxu0 0.0
        %1863 = vmatprep.subr.mxu0 0.0
        %1864 = vmatpush1.msra.mxu0 0.0
        %1865 = vmatprep.subr.mxu0 0.0
        %1866 = vmatpush1.msra.mxu0 0.0
        %1867 = vmatprep.subr.mxu0 0.0
        %1868 = vmatpush1.msra.mxu0 0.0
        %1869 = vmatprep.subr.mxu0 0.0
        %1870 = vmatpush1.msra.mxu0 0.0
        %1871 = vmatprep.subr.mxu0 0.0
        %1872 = vmatpush1.msra.mxu0 0.0
        %1873 = vmatprep.subr.mxu0 0.0
        %1874 = vmatpush1.msra.mxu0 0.0
        %1875 = vmatprep.subr.mxu0 0.0
        %1876 = vmatpush1.msra.mxu0 0.0
        %1877 = vmatprep.subr.mxu0 0.0
        %1878 = vmatpush1.msra.mxu0 %v738
        %1879 = vmatprep.subr.mxu0 0.0
        %1880 = vmatpush1.msra.mxu0 %v733
        %1881 = vmatprep.subr.mxu0 0.0
        %1882 = vmatpush2.msra.mxu0 0.0
        %1883 = vmatprep.subr.mxu0 0.0
        %1884 = vmatpush2.msra.mxu0 0.0
        %1885 = vmatprep.subr.mxu0 0.0
        %1886 = vmatpush2.msra.mxu0 0.0
        %1887 = vmatprep.subr.mxu0 0.0
        %1888 = vmatpush2.msra.mxu0 0.0
        %1889 = vmatprep.subr.mxu0 0.0
        %1890 = vmatpush2.msra.mxu0 0.0
        %1891 = vmatprep.subr.mxu0 0.0
        %1892 = vmatpush2.msra.mxu0 0.0
        %1893 = vmatprep.subr.mxu0 0.0
        %1894 = vmatpush2.msra.mxu0 0.0
        %1895 = vmatprep.subr.mxu0 0.0
        %1896 = vmatpush2.msra.mxu0 0.0
        %1897 = vmatprep.subr.mxu0 0.0
        %1898 = vmatpush2.msra.mxu0 0.0
        %1899 = vmatprep.subr.mxu0 0.0
        %1900 = vmatpush2.msra.mxu0 0.0
        %1901 = vmatprep.subr.mxu0 0.0
        %1902 = vmatpush2.msra.mxu0 0.0
        %1903 = vmatprep.subr.mxu0 0.0
        %1904 = vmatpush2.msra.mxu0 0.0
        %1905 = vmatprep.subr.mxu0 0.0
        %1906 = vmatpush2.msra.mxu0 0.0
        %1907 = vmatprep.subr.mxu0 0.0
        %1908 = vmatpush2.msra.mxu0 0.0
        %1909 = vmatprep.subr.mxu0 0.0
        %1910 = vmatpush2.msra.mxu0 0.0
        %1911 = vmatprep.subr.mxu0 0.0
        %1912 = vmatpush2.msra.mxu0 0.0
        %1913 = vmatprep.mubr.f32.mxu0 0.0
        %1914 = vmatmul.mubr.f32.gmra.mxu0 %v1844
        %v1915 = vpop.f32.mrf.mxu0
        %v1916 = vadd.f32 0.0, %v1915
        %v1917 = vpop.f32.mrf.mxu0
        %1918 = vmatprep.mubr.f32.mxu0 0.0
        %1919 = vmatmul.mubr.f32.gmra.mxu0 %v1847
        %v1920 = vpop.f32.mrf.mxu0
        %v1921 = vadd.f32 0.0, %v1920
        %v1922 = vpop.f32.mrf.mxu0
        %1923 = vdwg.mxu0
        %v1925 = vsel %vm1504, %v1671, 0
        %v1928 = vsel %vm1504, %v1672, 0
        %1930 = vmatprep.subr.mxu0 0.0
        %1931 = vmatpush1.msra.mxu0 0.0
        %1932 = vmatprep.subr.mxu0 0.0
        %1933 = vmatpush1.msra.mxu0 0.0
        %1934 = vmatprep.subr.mxu0 0.0
        %1935 = vmatpush1.msra.mxu0 0.0
        %1936 = vmatprep.subr.mxu0 0.0
        %1937 = vmatpush1.msra.mxu0 0.0
        %1938 = vmatprep.subr.mxu0 0.0
        %1939 = vmatpush1.msra.mxu0 0.0
        %1940 = vmatprep.subr.mxu0 0.0
        %1941 = vmatpush1.msra.mxu0 0.0
        %1942 = vmatprep.subr.mxu0 0.0
        %1943 = vmatpush1.msra.mxu0 0.0
        %1944 = vmatprep.subr.mxu0 0.0
        %1945 = vmatpush1.msra.mxu0 0.0
        %1946 = vmatprep.subr.mxu0 0.0
        %1947 = vmatpush1.msra.mxu0 0.0
        %1948 = vmatprep.subr.mxu0 0.0
        %1949 = vmatpush1.msra.mxu0 0.0
        %1950 = vmatprep.subr.mxu0 0.0
        %1951 = vmatpush1.msra.mxu0 0.0
        %1952 = vmatprep.subr.mxu0 0.0
        %1953 = vmatpush1.msra.mxu0 0.0
        %1954 = vmatprep.subr.mxu0 0.0
        %1955 = vmatpush1.msra.mxu0 0.0
        %1956 = vmatprep.subr.mxu0 0.0
        %1957 = vmatpush1.msra.mxu0 0.0
        %1958 = vmatprep.subr.mxu0 0.0
        %1959 = vmatpush1.msra.mxu0 %v748
        %1960 = vmatprep.subr.mxu0 0.0
        %1961 = vmatpush1.msra.mxu0 %v743
        %1962 = vmatprep.subr.mxu0 0.0
        %1963 = vmatpush2.msra.mxu0 0.0
        %1964 = vmatprep.subr.mxu0 0.0
        %1965 = vmatpush2.msra.mxu0 0.0
        %1966 = vmatprep.subr.mxu0 0.0
        %1967 = vmatpush2.msra.mxu0 0.0
        %1968 = vmatprep.subr.mxu0 0.0
        %1969 = vmatpush2.msra.mxu0 0.0
        %1970 = vmatprep.subr.mxu0 0.0
        %1971 = vmatpush2.msra.mxu0 0.0
        %1972 = vmatprep.subr.mxu0 0.0
        %1973 = vmatpush2.msra.mxu0 0.0
        %1974 = vmatprep.subr.mxu0 0.0
        %1975 = vmatpush2.msra.mxu0 0.0
        %1976 = vmatprep.subr.mxu0 0.0
        %1977 = vmatpush2.msra.mxu0 0.0
        %1978 = vmatprep.subr.mxu0 0.0
        %1979 = vmatpush2.msra.mxu0 0.0
        %1980 = vmatprep.subr.mxu0 0.0
        %1981 = vmatpush2.msra.mxu0 0.0
        %1982 = vmatprep.subr.mxu0 0.0
        %1983 = vmatpush2.msra.mxu0 0.0
        %1984 = vmatprep.subr.mxu0 0.0
        %1985 = vmatpush2.msra.mxu0 0.0
        %1986 = vmatprep.subr.mxu0 0.0
        %1987 = vmatpush2.msra.mxu0 0.0
        %1988 = vmatprep.subr.mxu0 0.0
        %1989 = vmatpush2.msra.mxu0 0.0
        %1990 = vmatprep.subr.mxu0 0.0
        %1991 = vmatpush2.msra.mxu0 0.0
        %1992 = vmatprep.subr.mxu0 0.0
        %1993 = vmatpush2.msra.mxu0 0.0
        %1994 = vmatprep.mubr.f32.mxu0 0.0
        %1995 = vmatmul.mubr.f32.gmra.mxu0 %v1925
        %v1996 = vpop.f32.mrf.mxu0
        %v1997 = vadd.f32 0.0, %v1996
        %v1998 = vpop.f32.mrf.mxu0
        %1999 = vmatprep.mubr.f32.mxu0 0.0
        %2000 = vmatmul.mubr.f32.gmra.mxu0 %v1928
        %v2001 = vpop.f32.mrf.mxu0
        %v2002 = vadd.f32 0.0, %v2001
        %v2003 = vpop.f32.mrf.mxu0
        %2004 = vdwg.mxu0
        %v2006 = vsel %vm1504, %v1673, 0
        %v2009 = vsel %vm1504, %v1674, 0
        %2011 = vmatprep.subr.mxu0 0.0
        %2012 = vmatpush1.msra.mxu0 0.0
        %2013 = vmatprep.subr.mxu0 0.0
        %2014 = vmatpush1.msra.mxu0 0.0
        %2015 = vmatprep.subr.mxu0 0.0
        %2016 = vmatpush1.msra.mxu0 0.0
        %2017 = vmatprep.subr.mxu0 0.0
        %2018 = vmatpush1.msra.mxu0 0.0
        %2019 = vmatprep.subr.mxu0 0.0
        %2020 = vmatpush1.msra.mxu0 0.0
        %2021 = vmatprep.subr.mxu0 0.0
        %2022 = vmatpush1.msra.mxu0 0.0
        %2023 = vmatprep.subr.mxu0 0.0
        %2024 = vmatpush1.msra.mxu0 0.0
        %2025 = vmatprep.subr.mxu0 0.0
        %2026 = vmatpush1.msra.mxu0 0.0
        %2027 = vmatprep.subr.mxu0 0.0
        %2028 = vmatpush1.msra.mxu0 0.0
        %2029 = vmatprep.subr.mxu0 0.0
        %2030 = vmatpush1.msra.mxu0 0.0
        %2031 = vmatprep.subr.mxu0 0.0
        %2032 = vmatpush1.msra.mxu0 0.0
        %2033 = vmatprep.subr.mxu0 0.0
        %2034 = vmatpush1.msra.mxu0 0.0
        %2035 = vmatprep.subr.mxu0 0.0
        %2036 = vmatpush1.msra.mxu0 0.0
        %2037 = vmatprep.subr.mxu0 0.0
        %2038 = vmatpush1.msra.mxu0 0.0
        %2039 = vmatprep.subr.mxu0 0.0
        %2040 = vmatpush1.msra.mxu0 %v758
        %2041 = vmatprep.subr.mxu0 0.0
        %2042 = vmatpush1.msra.mxu0 %v753
        %2043 = vmatprep.subr.mxu0 0.0
        %2044 = vmatpush2.msra.mxu0 0.0
        %2045 = vmatprep.subr.mxu0 0.0
        %2046 = vmatpush2.msra.mxu0 0.0
        %2047 = vmatprep.subr.mxu0 0.0
        %2048 = vmatpush2.msra.mxu0 0.0
        %2049 = vmatprep.subr.mxu0 0.0
        %2050 = vmatpush2.msra.mxu0 0.0
        %2051 = vmatprep.subr.mxu0 0.0
        %2052 = vmatpush2.msra.mxu0 0.0
        %2053 = vmatprep.subr.mxu0 0.0
        %2054 = vmatpush2.msra.mxu0 0.0
        %2055 = vmatprep.subr.mxu0 0.0
        %2056 = vmatpush2.msra.mxu0 0.0
        %2057 = vmatprep.subr.mxu0 0.0
        %2058 = vmatpush2.msra.mxu0 0.0
        %2059 = vmatprep.subr.mxu0 0.0
        %2060 = vmatpush2.msra.mxu0 0.0
        %2061 = vmatprep.subr.mxu0 0.0
        %2062 = vmatpush2.msra.mxu0 0.0
        %2063 = vmatprep.subr.mxu0 0.0
        %2064 = vmatpush2.msra.mxu0 0.0
        %2065 = vmatprep.subr.mxu0 0.0
        %2066 = vmatpush2.msra.mxu0 0.0
        %2067 = vmatprep.subr.mxu0 0.0
        %2068 = vmatpush2.msra.mxu0 0.0
        %2069 = vmatprep.subr.mxu0 0.0
        %2070 = vmatpush2.msra.mxu0 0.0
        %2071 = vmatprep.subr.mxu0 0.0
        %2072 = vmatpush2.msra.mxu0 0.0
        %2073 = vmatprep.subr.mxu0 0.0
        %2074 = vmatpush2.msra.mxu0 0.0
        %2075 = vmatprep.mubr.f32.mxu0 0.0
        %2076 = vmatmul.mubr.f32.gmra.mxu0 %v2006
        %v2077 = vpop.f32.mrf.mxu0
        %v2078 = vadd.f32 0.0, %v2077
        %v2079 = vpop.f32.mrf.mxu0
        %2080 = vmatprep.mubr.f32.mxu0 0.0
        %2081 = vmatmul.mubr.f32.gmra.mxu0 %v2009
        %v2082 = vpop.f32.mrf.mxu0
        %v2083 = vadd.f32 0.0, %v2082
        %v2084 = vpop.f32.mrf.mxu0
        %2085 = vdwg.mxu0
        %v2087 = vsel %vm1504, %v1675, 0
        %v2090 = vsel %vm1504, %v1676, 0
        %2092 = vmatprep.subr.mxu0 0.0
        %2093 = vmatpush1.msra.mxu0 0.0
        %2094 = vmatprep.subr.mxu0 0.0
        %2095 = vmatpush1.msra.mxu0 0.0
        %2096 = vmatprep.subr.mxu0 0.0
        %2097 = vmatpush1.msra.mxu0 0.0
        %2098 = vmatprep.subr.mxu0 0.0
        %2099 = vmatpush1.msra.mxu0 0.0
        %2100 = vmatprep.subr.mxu0 0.0
        %2101 = vmatpush1.msra.mxu0 0.0
        %2102 = vmatprep.subr.mxu0 0.0
        %2103 = vmatpush1.msra.mxu0 0.0
        %2104 = vmatprep.subr.mxu0 0.0
        %2105 = vmatpush1.msra.mxu0 0.0
        %2106 = vmatprep.subr.mxu0 0.0
        %2107 = vmatpush1.msra.mxu0 0.0
        %2108 = vmatprep.subr.mxu0 0.0
        %2109 = vmatpush1.msra.mxu0 0.0
        %2110 = vmatprep.subr.mxu0 0.0
        %2111 = vmatpush1.msra.mxu0 0.0
        %2112 = vmatprep.subr.mxu0 0.0
        %2113 = vmatpush1.msra.mxu0 0.0
        %2114 = vmatprep.subr.mxu0 0.0
        %2115 = vmatpush1.msra.mxu0 0.0
        %2116 = vmatprep.subr.mxu0 0.0
        %2117 = vmatpush1.msra.mxu0 0.0
        %2118 = vmatprep.subr.mxu0 0.0
        %2119 = vmatpush1.msra.mxu0 0.0
        %2120 = vmatprep.subr.mxu0 0.0
        %2121 = vmatpush1.msra.mxu0 %v768
        %2122 = vmatprep.subr.mxu0 0.0
        %2123 = vmatpush1.msra.mxu0 %v763
        %2124 = vmatprep.subr.mxu0 0.0
        %2125 = vmatpush2.msra.mxu0 0.0
        %2126 = vmatprep.subr.mxu0 0.0
        %2127 = vmatpush2.msra.mxu0 0.0
        %2128 = vmatprep.subr.mxu0 0.0
        %2129 = vmatpush2.msra.mxu0 0.0
        %2130 = vmatprep.subr.mxu0 0.0
        %2131 = vmatpush2.msra.mxu0 0.0
        %2132 = vmatprep.subr.mxu0 0.0
        %2133 = vmatpush2.msra.mxu0 0.0
        %2134 = vmatprep.subr.mxu0 0.0
        %2135 = vmatpush2.msra.mxu0 0.0
        %2136 = vmatprep.subr.mxu0 0.0
        %2137 = vmatpush2.msra.mxu0 0.0
        %2138 = vmatprep.subr.mxu0 0.0
        %2139 = vmatpush2.msra.mxu0 0.0
        %2140 = vmatprep.subr.mxu0 0.0
        %2141 = vmatpush2.msra.mxu0 0.0
        %2142 = vmatprep.subr.mxu0 0.0
        %2143 = vmatpush2.msra.mxu0 0.0
        %2144 = vmatprep.subr.mxu0 0.0
        %2145 = vmatpush2.msra.mxu0 0.0
        %2146 = vmatprep.subr.mxu0 0.0
        %2147 = vmatpush2.msra.mxu0 0.0
        %2148 = vmatprep.subr.mxu0 0.0
        %2149 = vmatpush2.msra.mxu0 0.0
        %2150 = vmatprep.subr.mxu0 0.0
        %2151 = vmatpush2.msra.mxu0 0.0
        %2152 = vmatprep.subr.mxu0 0.0
        %2153 = vmatpush2.msra.mxu0 0.0
        %2154 = vmatprep.subr.mxu0 0.0
        %2155 = vmatpush2.msra.mxu0 0.0
        %2156 = vmatprep.mubr.f32.mxu0 0.0
        %2157 = vmatmul.mubr.f32.gmra.mxu0 %v2087
        %v2158 = vpop.f32.mrf.mxu0
        %v2159 = vadd.f32 0.0, %v2158
        %v2160 = vpop.f32.mrf.mxu0
        %2161 = vmatprep.mubr.f32.mxu0 0.0
        %2162 = vmatmul.mubr.f32.gmra.mxu0 %v2090
        %v2163 = vpop.f32.mrf.mxu0
        %v2164 = vadd.f32 0.0, %v2163
        %v2165 = vpop.f32.mrf.mxu0
        %2166 = vdwg.mxu0
        %v2168 = vsel %vm1504, %v1677, 0
        %v2171 = vsel %vm1504, %v1678, 0
        %2173 = vmatprep.subr.mxu0 0.0
        %2174 = vmatpush1.msra.mxu0 0.0
        %2175 = vmatprep.subr.mxu0 0.0
        %2176 = vmatpush1.msra.mxu0 0.0
        %2177 = vmatprep.subr.mxu0 0.0
        %2178 = vmatpush1.msra.mxu0 0.0
        %2179 = vmatprep.subr.mxu0 0.0
        %2180 = vmatpush1.msra.mxu0 0.0
        %2181 = vmatprep.subr.mxu0 0.0
        %2182 = vmatpush1.msra.mxu0 0.0
        %2183 = vmatprep.subr.mxu0 0.0
        %2184 = vmatpush1.msra.mxu0 0.0
        %2185 = vmatprep.subr.mxu0 0.0
        %2186 = vmatpush1.msra.mxu0 0.0
        %2187 = vmatprep.subr.mxu0 0.0
        %2188 = vmatpush1.msra.mxu0 0.0
        %2189 = vmatprep.subr.mxu0 0.0
        %2190 = vmatpush1.msra.mxu0 0.0
        %2191 = vmatprep.subr.mxu0 0.0
        %2192 = vmatpush1.msra.mxu0 0.0
        %2193 = vmatprep.subr.mxu0 0.0
        %2194 = vmatpush1.msra.mxu0 0.0
        %2195 = vmatprep.subr.mxu0 0.0
        %2196 = vmatpush1.msra.mxu0 0.0
        %2197 = vmatprep.subr.mxu0 0.0
        %2198 = vmatpush1.msra.mxu0 0.0
        %2199 = vmatprep.subr.mxu0 0.0
        %2200 = vmatpush1.msra.mxu0 0.0
        %2201 = vmatprep.subr.mxu0 0.0
        %2202 = vmatpush1.msra.mxu0 %v778
        %2203 = vmatprep.subr.mxu0 0.0
        %2204 = vmatpush1.msra.mxu0 %v773
        %2205 = vmatprep.subr.mxu0 0.0
        %2206 = vmatpush2.msra.mxu0 0.0
        %2207 = vmatprep.subr.mxu0 0.0
        %2208 = vmatpush2.msra.mxu0 0.0
        %2209 = vmatprep.subr.mxu0 0.0
        %2210 = vmatpush2.msra.mxu0 0.0
        %2211 = vmatprep.subr.mxu0 0.0
        %2212 = vmatpush2.msra.mxu0 0.0
        %2213 = vmatprep.subr.mxu0 0.0
        %2214 = vmatpush2.msra.mxu0 0.0
        %2215 = vmatprep.subr.mxu0 0.0
        %2216 = vmatpush2.msra.mxu0 0.0
        %2217 = vmatprep.subr.mxu0 0.0
        %2218 = vmatpush2.msra.mxu0 0.0
        %2219 = vmatprep.subr.mxu0 0.0
        %2220 = vmatpush2.msra.mxu0 0.0
        %2221 = vmatprep.subr.mxu0 0.0
        %2222 = vmatpush2.msra.mxu0 0.0
        %2223 = vmatprep.subr.mxu0 0.0
        %2224 = vmatpush2.msra.mxu0 0.0
        %2225 = vmatprep.subr.mxu0 0.0
        %2226 = vmatpush2.msra.mxu0 0.0
        %2227 = vmatprep.subr.mxu0 0.0
        %2228 = vmatpush2.msra.mxu0 0.0
        %2229 = vmatprep.subr.mxu0 0.0
        %2230 = vmatpush2.msra.mxu0 0.0
        %2231 = vmatprep.subr.mxu0 0.0
        %2232 = vmatpush2.msra.mxu0 0.0
        %2233 = vmatprep.subr.mxu0 0.0
        %2234 = vmatpush2.msra.mxu0 0.0
        %2235 = vmatprep.subr.mxu0 0.0
        %2236 = vmatpush2.msra.mxu0 0.0
        %2237 = vmatprep.mubr.f32.mxu0 0.0
        %2238 = vmatmul.mubr.f32.gmra.mxu0 %v2168
        %v2239 = vpop.f32.mrf.mxu0
        %v2240 = vadd.f32 0.0, %v2239
        %v2241 = vpop.f32.mrf.mxu0
        %2242 = vmatprep.mubr.f32.mxu0 0.0
        %2243 = vmatmul.mubr.f32.gmra.mxu0 %v2171
        %v2244 = vpop.f32.mrf.mxu0
        %v2245 = vadd.f32 0.0, %v2244
        %v2246 = vpop.f32.mrf.mxu0
        %2247 = vdwg.mxu0
        %v2249 = vsel %vm1504, %v1679, 0
        %v2252 = vsel %vm1504, %v1680, 0
        %2254 = vmatprep.subr.mxu0 0.0
        %2255 = vmatpush1.msra.mxu0 0.0
        %2256 = vmatprep.subr.mxu0 0.0
        %2257 = vmatpush1.msra.mxu0 0.0
        %2258 = vmatprep.subr.mxu0 0.0
        %2259 = vmatpush1.msra.mxu0 0.0
        %2260 = vmatprep.subr.mxu0 0.0
        %2261 = vmatpush1.msra.mxu0 0.0
        %2262 = vmatprep.subr.mxu0 0.0
        %2263 = vmatpush1.msra.mxu0 0.0
        %2264 = vmatprep.subr.mxu0 0.0
        %2265 = vmatpush1.msra.mxu0 0.0
        %2266 = vmatprep.subr.mxu0 0.0
        %2267 = vmatpush1.msra.mxu0 0.0
        %2268 = vmatprep.subr.mxu0 0.0
        %2269 = vmatpush1.msra.mxu0 0.0
        %2270 = vmatprep.subr.mxu0 0.0
        %2271 = vmatpush1.msra.mxu0 0.0
        %2272 = vmatprep.subr.mxu0 0.0
        %2273 = vmatpush1.msra.mxu0 0.0
        %2274 = vmatprep.subr.mxu0 0.0
        %2275 = vmatpush1.msra.mxu0 0.0
        %2276 = vmatprep.subr.mxu0 0.0
        %2277 = vmatpush1.msra.mxu0 0.0
        %2278 = vmatprep.subr.mxu0 0.0
        %2279 = vmatpush1.msra.mxu0 0.0
        %2280 = vmatprep.subr.mxu0 0.0
        %2281 = vmatpush1.msra.mxu0 0.0
        %2282 = vmatprep.subr.mxu0 0.0
        %2283 = vmatpush1.msra.mxu0 %v788
        %2284 = vmatprep.subr.mxu0 0.0
        %2285 = vmatpush1.msra.mxu0 %v783
        %2286 = vmatprep.subr.mxu0 0.0
        %2287 = vmatpush2.msra.mxu0 0.0
        %2288 = vmatprep.subr.mxu0 0.0
        %2289 = vmatpush2.msra.mxu0 0.0
        %2290 = vmatprep.subr.mxu0 0.0
        %2291 = vmatpush2.msra.mxu0 0.0
        %2292 = vmatprep.subr.mxu0 0.0
        %2293 = vmatpush2.msra.mxu0 0.0
        %2294 = vmatprep.subr.mxu0 0.0
        %2295 = vmatpush2.msra.mxu0 0.0
        %2296 = vmatprep.subr.mxu0 0.0
        %2297 = vmatpush2.msra.mxu0 0.0
        %2298 = vmatprep.subr.mxu0 0.0
        %2299 = vmatpush2.msra.mxu0 0.0
        %2300 = vmatprep.subr.mxu0 0.0
        %2301 = vmatpush2.msra.mxu0 0.0
        %2302 = vmatprep.subr.mxu0 0.0
        %2303 = vmatpush2.msra.mxu0 0.0
        %2304 = vmatprep.subr.mxu0 0.0
        %2305 = vmatpush2.msra.mxu0 0.0
        %2306 = vmatprep.subr.mxu0 0.0
        %2307 = vmatpush2.msra.mxu0 0.0
        %2308 = vmatprep.subr.mxu0 0.0
        %2309 = vmatpush2.msra.mxu0 0.0
        %2310 = vmatprep.subr.mxu0 0.0
        %2311 = vmatpush2.msra.mxu0 0.0
        %2312 = vmatprep.subr.mxu0 0.0
        %2313 = vmatpush2.msra.mxu0 0.0
        %2314 = vmatprep.subr.mxu0 0.0
        %2315 = vmatpush2.msra.mxu0 0.0
        %2316 = vmatprep.subr.mxu0 0.0
        %2317 = vmatpush2.msra.mxu0 0.0
        %2318 = vmatprep.mubr.f32.mxu0 0.0
        %2319 = vmatmul.mubr.f32.gmra.mxu0 %v2249
        %v2320 = vpop.f32.mrf.mxu0
        %v2321 = vadd.f32 0.0, %v2320
        %v2322 = vpop.f32.mrf.mxu0
        %2323 = vmatprep.mubr.f32.mxu0 0.0
        %2324 = vmatmul.mubr.f32.gmra.mxu0 %v2252
        %v2325 = vpop.f32.mrf.mxu0
        %v2326 = vadd.f32 0.0, %v2325
        %v2327 = vpop.f32.mrf.mxu0
        %2328 = vdwg.mxu0
        %v2329 = vld [vmem:[#allocation7] sm:$0xff]
        %v2330 = vld [vmem:[#allocation7 + $0x8] sm:$0xff]
        %v2331 = vld [vmem:[#allocation7 + $0x10] sm:$0xff]
        %v2332 = vld [vmem:[#allocation7 + $0x18] sm:$0xff]
        %2333 = vrot.lane.b32.xlu0 %v791, 96
        %v2334 = vpop.permute.xlu0 %2333
        %2335 = vrot.lane.b32.xlu0 %v792, 96
        %v2336 = vpop.permute.xlu0 %2335
        %2337 = vrot.lane.b32.xlu0 %v554, 96
        %v2338 = vpop.permute.xlu0 %2337
        %2339 = vrot.lane.b32.xlu0 %v560, 96
        %v2340 = vpop.permute.xlu0 %2339
        %v2341 = vsel %vm807, %v2334, 0
        %v2343 = vsel %vm807, %v2336, 0
        %v2345 = vsel %vm807, %v2338, 0
        %v2347 = vsel %vm807, %v2340, 0
        %2349 = vmatprep.subr.mxu0 0.0
        %2350 = vmatpush1.xpose.msra.mxu0 0.0
        %2351 = vmatprep.subr.mxu0 0.0
        %2352 = vmatpush1.xpose.msra.mxu0 0.0
        %2353 = vmatprep.subr.mxu0 0.0
        %2354 = vmatpush1.xpose.msra.mxu0 0.0
        %2355 = vmatprep.subr.mxu0 0.0
        %2356 = vmatpush1.xpose.msra.mxu0 0.0
        %2357 = vmatprep.subr.mxu0 0.0
        %2358 = vmatpush1.xpose.msra.mxu0 0.0
        %2359 = vmatprep.subr.mxu0 0.0
        %2360 = vmatpush1.xpose.msra.mxu0 0.0
        %2361 = vmatprep.subr.mxu0 0.0
        %2362 = vmatpush1.xpose.msra.mxu0 0.0
        %2363 = vmatprep.subr.mxu0 0.0
        %2364 = vmatpush1.xpose.msra.mxu0 0.0
        %2365 = vmatprep.subr.mxu0 0.0
        %2366 = vmatpush1.xpose.msra.mxu0 0.0
        %2367 = vmatprep.subr.mxu0 0.0
        %2368 = vmatpush1.xpose.msra.mxu0 0.0
        %2369 = vmatprep.subr.mxu0 0.0
        %2370 = vmatpush1.xpose.msra.mxu0 0.0
        %2371 = vmatprep.subr.mxu0 0.0
        %2372 = vmatpush1.xpose.msra.mxu0 0.0
        %2373 = vmatprep.subr.mxu0 0.0
        %2374 = vmatpush1.xpose.msra.mxu0 0.0
        %2375 = vmatprep.subr.mxu0 0.0
        %2376 = vmatpush1.xpose.msra.mxu0 0.0
        %2377 = vmatprep.subr.mxu0 0.0
        %2378 = vmatpush1.xpose.msra.mxu0 %v2347
        %2379 = vmatprep.subr.mxu0 0.0
        %2380 = vmatpush1.xpose.msra.mxu0 %v2345
        %2381 = vmatprep.subr.mxu0 0.0
        %2382 = vmatpush2.xpose.msra.mxu0 0.0
        %2383 = vmatprep.subr.mxu0 0.0
        %2384 = vmatpush2.xpose.msra.mxu0 0.0
        %2385 = vmatprep.subr.mxu0 0.0
        %2386 = vmatpush2.xpose.msra.mxu0 0.0
        %2387 = vmatprep.subr.mxu0 0.0
        %2388 = vmatpush2.xpose.msra.mxu0 0.0
        %2389 = vmatprep.subr.mxu0 0.0
        %2390 = vmatpush2.xpose.msra.mxu0 0.0
        %2391 = vmatprep.subr.mxu0 0.0
        %2392 = vmatpush2.xpose.msra.mxu0 0.0
        %2393 = vmatprep.subr.mxu0 0.0
        %2394 = vmatpush2.xpose.msra.mxu0 0.0
        %2395 = vmatprep.subr.mxu0 0.0
        %2396 = vmatpush2.xpose.msra.mxu0 0.0
        %2397 = vmatprep.subr.mxu0 0.0
        %2398 = vmatpush2.xpose.msra.mxu0 0.0
        %2399 = vmatprep.subr.mxu0 0.0
        %2400 = vmatpush2.xpose.msra.mxu0 0.0
        %2401 = vmatprep.subr.mxu0 0.0
        %2402 = vmatpush2.xpose.msra.mxu0 0.0
        %2403 = vmatprep.subr.mxu0 0.0
        %2404 = vmatpush2.xpose.msra.mxu0 0.0
        %2405 = vmatprep.subr.mxu0 0.0
        %2406 = vmatpush2.xpose.msra.mxu0 0.0
        %2407 = vmatprep.subr.mxu0 0.0
        %2408 = vmatpush2.xpose.msra.mxu0 0.0
        %2409 = vmatprep.subr.mxu0 0.0
        %2410 = vmatpush2.xpose.msra.mxu0 0.0
        %2411 = vmatprep.subr.mxu0 0.0
        %2412 = vmatpush2.xpose.msra.mxu0 0.0
        %2413 = vmatprep.mubr.f32.mxu0 0.0
        %2414 = vmatmul.mubr.f32.gmra.mxu0 %v2341
        %v2415 = vpop.f32.mrf.mxu0
        %v2416 = vadd.f32 0.0, %v2415
        %v2417 = vpop.f32.mrf.mxu0
        %2418 = vmatprep.mubr.f32.mxu0 0.0
        %2419 = vmatmul.mubr.f32.gmra.mxu0 %v2343
        %v2420 = vpop.f32.mrf.mxu0
        %v2421 = vadd.f32 0.0, %v2420
        %v2422 = vpop.f32.mrf.mxu0
        %2423 = vdwg.mxu0
        %2424 = vrot.lane.b32.xlu0 %v793, 96
        %v2425 = vpop.permute.xlu0 %2424
        %2426 = vrot.lane.b32.xlu0 %v794, 96
        %v2427 = vpop.permute.xlu0 %2426
        %2428 = vrot.lane.b32.xlu0 %v566, 96
        %v2429 = vpop.permute.xlu0 %2428
        %2430 = vrot.lane.b32.xlu0 %v572, 96
        %v2431 = vpop.permute.xlu0 %2430
        %v2432 = vsel %vm807, %v2425, 0
        %v2434 = vsel %vm807, %v2427, 0
        %v2436 = vsel %vm807, %v2429, 0
        %v2438 = vsel %vm807, %v2431, 0
        %2440 = vmatprep.subr.mxu0 0.0
        %2441 = vmatpush1.xpose.msra.mxu0 0.0
        %2442 = vmatprep.subr.mxu0 0.0
        %2443 = vmatpush1.xpose.msra.mxu0 0.0
        %2444 = vmatprep.subr.mxu0 0.0
        %2445 = vmatpush1.xpose.msra.mxu0 0.0
        %2446 = vmatprep.subr.mxu0 0.0
        %2447 = vmatpush1.xpose.msra.mxu0 0.0
        %2448 = vmatprep.subr.mxu0 0.0
        %2449 = vmatpush1.xpose.msra.mxu0 0.0
        %2450 = vmatprep.subr.mxu0 0.0
        %2451 = vmatpush1.xpose.msra.mxu0 0.0
        %2452 = vmatprep.subr.mxu0 0.0
        %2453 = vmatpush1.xpose.msra.mxu0 0.0
        %2454 = vmatprep.subr.mxu0 0.0
        %2455 = vmatpush1.xpose.msra.mxu0 0.0
        %2456 = vmatprep.subr.mxu0 0.0
        %2457 = vmatpush1.xpose.msra.mxu0 0.0
        %2458 = vmatprep.subr.mxu0 0.0
        %2459 = vmatpush1.xpose.msra.mxu0 0.0
        %2460 = vmatprep.subr.mxu0 0.0
        %2461 = vmatpush1.xpose.msra.mxu0 0.0
        %2462 = vmatprep.subr.mxu0 0.0
        %2463 = vmatpush1.xpose.msra.mxu0 0.0
        %2464 = vmatprep.subr.mxu0 0.0
        %2465 = vmatpush1.xpose.msra.mxu0 0.0
        %2466 = vmatprep.subr.mxu0 0.0
        %2467 = vmatpush1.xpose.msra.mxu0 0.0
        %2468 = vmatprep.subr.mxu0 0.0
        %2469 = vmatpush1.xpose.msra.mxu0 %v2438
        %2470 = vmatprep.subr.mxu0 0.0
        %2471 = vmatpush1.xpose.msra.mxu0 %v2436
        %2472 = vmatprep.subr.mxu0 0.0
        %2473 = vmatpush2.xpose.msra.mxu0 0.0
        %2474 = vmatprep.subr.mxu0 0.0
        %2475 = vmatpush2.xpose.msra.mxu0 0.0
        %2476 = vmatprep.subr.mxu0 0.0
        %2477 = vmatpush2.xpose.msra.mxu0 0.0
        %2478 = vmatprep.subr.mxu0 0.0
        %2479 = vmatpush2.xpose.msra.mxu0 0.0
        %2480 = vmatprep.subr.mxu0 0.0
        %2481 = vmatpush2.xpose.msra.mxu0 0.0
        %2482 = vmatprep.subr.mxu0 0.0
        %2483 = vmatpush2.xpose.msra.mxu0 0.0
        %2484 = vmatprep.subr.mxu0 0.0
        %2485 = vmatpush2.xpose.msra.mxu0 0.0
        %2486 = vmatprep.subr.mxu0 0.0
        %2487 = vmatpush2.xpose.msra.mxu0 0.0
        %2488 = vmatprep.subr.mxu0 0.0
        %2489 = vmatpush2.xpose.msra.mxu0 0.0
        %2490 = vmatprep.subr.mxu0 0.0
        %2491 = vmatpush2.xpose.msra.mxu0 0.0
        %2492 = vmatprep.subr.mxu0 0.0
        %2493 = vmatpush2.xpose.msra.mxu0 0.0
        %2494 = vmatprep.subr.mxu0 0.0
        %2495 = vmatpush2.xpose.msra.mxu0 0.0
        %2496 = vmatprep.subr.mxu0 0.0
        %2497 = vmatpush2.xpose.msra.mxu0 0.0
        %2498 = vmatprep.subr.mxu0 0.0
        %2499 = vmatpush2.xpose.msra.mxu0 0.0
        %2500 = vmatprep.subr.mxu0 0.0
        %2501 = vmatpush2.xpose.msra.mxu0 0.0
        %2502 = vmatprep.subr.mxu0 0.0
        %2503 = vmatpush2.xpose.msra.mxu0 0.0
        %2504 = vmatprep.mubr.f32.mxu0 0.0
        %2505 = vmatmul.mubr.f32.gmra.mxu0 %v2432
        %v2506 = vpop.f32.mrf.mxu0
        %v2507 = vadd.f32 0.0, %v2506
        %v2508 = vpop.f32.mrf.mxu0
        %2509 = vmatprep.mubr.f32.mxu0 0.0
        %2510 = vmatmul.mubr.f32.gmra.mxu0 %v2434
        %v2511 = vpop.f32.mrf.mxu0
        %v2512 = vadd.f32 0.0, %v2511
        %v2513 = vpop.f32.mrf.mxu0
        %2514 = vdwg.mxu0
        %2515 = vrot.lane.b32.xlu0 %v795, 96
        %v2516 = vpop.permute.xlu0 %2515
        %2517 = vrot.lane.b32.xlu0 %v796, 96
        %v2518 = vpop.permute.xlu0 %2517
        %2519 = vrot.lane.b32.xlu0 %v578, 96
        %v2520 = vpop.permute.xlu0 %2519
        %2521 = vrot.lane.b32.xlu0 %v584, 96
        %v2522 = vpop.permute.xlu0 %2521
        %v2523 = vsel %vm807, %v2516, 0
        %v2525 = vsel %vm807, %v2518, 0
        %v2527 = vsel %vm807, %v2520, 0
        %v2529 = vsel %vm807, %v2522, 0
        %2531 = vmatprep.subr.mxu0 0.0
        %2532 = vmatpush1.xpose.msra.mxu0 0.0
        %2533 = vmatprep.subr.mxu0 0.0
        %2534 = vmatpush1.xpose.msra.mxu0 0.0
        %2535 = vmatprep.subr.mxu0 0.0
        %2536 = vmatpush1.xpose.msra.mxu0 0.0
        %2537 = vmatprep.subr.mxu0 0.0
        %2538 = vmatpush1.xpose.msra.mxu0 0.0
        %2539 = vmatprep.subr.mxu0 0.0
        %2540 = vmatpush1.xpose.msra.mxu0 0.0
        %2541 = vmatprep.subr.mxu0 0.0
        %2542 = vmatpush1.xpose.msra.mxu0 0.0
        %2543 = vmatprep.subr.mxu0 0.0
        %2544 = vmatpush1.xpose.msra.mxu0 0.0
        %2545 = vmatprep.subr.mxu0 0.0
        %2546 = vmatpush1.xpose.msra.mxu0 0.0
        %2547 = vmatprep.subr.mxu0 0.0
        %2548 = vmatpush1.xpose.msra.mxu0 0.0
        %2549 = vmatprep.subr.mxu0 0.0
        %2550 = vmatpush1.xpose.msra.mxu0 0.0
        %2551 = vmatprep.subr.mxu0 0.0
        %2552 = vmatpush1.xpose.msra.mxu0 0.0
        %2553 = vmatprep.subr.mxu0 0.0
        %2554 = vmatpush1.xpose.msra.mxu0 0.0
        %2555 = vmatprep.subr.mxu0 0.0
        %2556 = vmatpush1.xpose.msra.mxu0 0.0
        %2557 = vmatprep.subr.mxu0 0.0
        %2558 = vmatpush1.xpose.msra.mxu0 0.0
        %2559 = vmatprep.subr.mxu0 0.0
        %2560 = vmatpush1.xpose.msra.mxu0 %v2529
        %2561 = vmatprep.subr.mxu0 0.0
        %2562 = vmatpush1.xpose.msra.mxu0 %v2527
        %2563 = vmatprep.subr.mxu0 0.0
        %2564 = vmatpush2.xpose.msra.mxu0 0.0
        %2565 = vmatprep.subr.mxu0 0.0
        %2566 = vmatpush2.xpose.msra.mxu0 0.0
        %2567 = vmatprep.subr.mxu0 0.0
        %2568 = vmatpush2.xpose.msra.mxu0 0.0
        %2569 = vmatprep.subr.mxu0 0.0
        %2570 = vmatpush2.xpose.msra.mxu0 0.0
        %2571 = vmatprep.subr.mxu0 0.0
        %2572 = vmatpush2.xpose.msra.mxu0 0.0
        %2573 = vmatprep.subr.mxu0 0.0
        %2574 = vmatpush2.xpose.msra.mxu0 0.0
        %2575 = vmatprep.subr.mxu0 0.0
        %2576 = vmatpush2.xpose.msra.mxu0 0.0
        %2577 = vmatprep.subr.mxu0 0.0
        %2578 = vmatpush2.xpose.msra.mxu0 0.0
        %2579 = vmatprep.subr.mxu0 0.0
        %2580 = vmatpush2.xpose.msra.mxu0 0.0
        %2581 = vmatprep.subr.mxu0 0.0
        %2582 = vmatpush2.xpose.msra.mxu0 0.0
        %2583 = vmatprep.subr.mxu0 0.0
        %2584 = vmatpush2.xpose.msra.mxu0 0.0
        %2585 = vmatprep.subr.mxu0 0.0
        %2586 = vmatpush2.xpose.msra.mxu0 0.0
        %2587 = vmatprep.subr.mxu0 0.0
        %2588 = vmatpush2.xpose.msra.mxu0 0.0
        %2589 = vmatprep.subr.mxu0 0.0
        %2590 = vmatpush2.xpose.msra.mxu0 0.0
        %2591 = vmatprep.subr.mxu0 0.0
        %2592 = vmatpush2.xpose.msra.mxu0 0.0
        %2593 = vmatprep.subr.mxu0 0.0
        %2594 = vmatpush2.xpose.msra.mxu0 0.0
        %2595 = vmatprep.mubr.f32.mxu0 0.0
        %2596 = vmatmul.mubr.f32.gmra.mxu0 %v2523
        %v2597 = vpop.f32.mrf.mxu0
        %v2598 = vadd.f32 0.0, %v2597
        %v2599 = vpop.f32.mrf.mxu0
        %2600 = vmatprep.mubr.f32.mxu0 0.0
        %2601 = vmatmul.mubr.f32.gmra.mxu0 %v2525
        %v2602 = vpop.f32.mrf.mxu0
        %v2603 = vadd.f32 0.0, %v2602
        %v2604 = vpop.f32.mrf.mxu0
        %2605 = vdwg.mxu0
        %2606 = vrot.lane.b32.xlu0 %v797, 96
        %v2607 = vpop.permute.xlu0 %2606
        %2608 = vrot.lane.b32.xlu0 %v798, 96
        %v2609 = vpop.permute.xlu0 %2608
        %2610 = vrot.lane.b32.xlu0 %v590, 96
        %v2611 = vpop.permute.xlu0 %2610
        %2612 = vrot.lane.b32.xlu0 %v596, 96
        %v2613 = vpop.permute.xlu0 %2612
        %v2614 = vsel %vm807, %v2607, 0
        %v2616 = vsel %vm807, %v2609, 0
        %v2618 = vsel %vm807, %v2611, 0
        %v2620 = vsel %vm807, %v2613, 0
        %2622 = vmatprep.subr.mxu0 0.0
        %2623 = vmatpush1.xpose.msra.mxu0 0.0
        %2624 = vmatprep.subr.mxu0 0.0
        %2625 = vmatpush1.xpose.msra.mxu0 0.0
        %2626 = vmatprep.subr.mxu0 0.0
        %2627 = vmatpush1.xpose.msra.mxu0 0.0
        %2628 = vmatprep.subr.mxu0 0.0
        %2629 = vmatpush1.xpose.msra.mxu0 0.0
        %2630 = vmatprep.subr.mxu0 0.0
        %2631 = vmatpush1.xpose.msra.mxu0 0.0
        %2632 = vmatprep.subr.mxu0 0.0
        %2633 = vmatpush1.xpose.msra.mxu0 0.0
        %2634 = vmatprep.subr.mxu0 0.0
        %2635 = vmatpush1.xpose.msra.mxu0 0.0
        %2636 = vmatprep.subr.mxu0 0.0
        %2637 = vmatpush1.xpose.msra.mxu0 0.0
        %2638 = vmatprep.subr.mxu0 0.0
        %2639 = vmatpush1.xpose.msra.mxu0 0.0
        %2640 = vmatprep.subr.mxu0 0.0
        %2641 = vmatpush1.xpose.msra.mxu0 0.0
        %2642 = vmatprep.subr.mxu0 0.0
        %2643 = vmatpush1.xpose.msra.mxu0 0.0
        %2644 = vmatprep.subr.mxu0 0.0
        %2645 = vmatpush1.xpose.msra.mxu0 0.0
        %2646 = vmatprep.subr.mxu0 0.0
        %2647 = vmatpush1.xpose.msra.mxu0 0.0
        %2648 = vmatprep.subr.mxu0 0.0
        %2649 = vmatpush1.xpose.msra.mxu0 0.0
        %2650 = vmatprep.subr.mxu0 0.0
        %2651 = vmatpush1.xpose.msra.mxu0 %v2620
        %2652 = vmatprep.subr.mxu0 0.0
        %2653 = vmatpush1.xpose.msra.mxu0 %v2618
        %2654 = vmatprep.subr.mxu0 0.0
        %2655 = vmatpush2.xpose.msra.mxu0 0.0
        %2656 = vmatprep.subr.mxu0 0.0
        %2657 = vmatpush2.xpose.msra.mxu0 0.0
        %2658 = vmatprep.subr.mxu0 0.0
        %2659 = vmatpush2.xpose.msra.mxu0 0.0
        %2660 = vmatprep.subr.mxu0 0.0
        %2661 = vmatpush2.xpose.msra.mxu0 0.0
        %2662 = vmatprep.subr.mxu0 0.0
        %2663 = vmatpush2.xpose.msra.mxu0 0.0
        %2664 = vmatprep.subr.mxu0 0.0
        %2665 = vmatpush2.xpose.msra.mxu0 0.0
        %2666 = vmatprep.subr.mxu0 0.0
        %2667 = vmatpush2.xpose.msra.mxu0 0.0
        %2668 = vmatprep.subr.mxu0 0.0
        %2669 = vmatpush2.xpose.msra.mxu0 0.0
        %2670 = vmatprep.subr.mxu0 0.0
        %2671 = vmatpush2.xpose.msra.mxu0 0.0
        %2672 = vmatprep.subr.mxu0 0.0
        %2673 = vmatpush2.xpose.msra.mxu0 0.0
        %2674 = vmatprep.subr.mxu0 0.0
        %2675 = vmatpush2.xpose.msra.mxu0 0.0
        %2676 = vmatprep.subr.mxu0 0.0
        %2677 = vmatpush2.xpose.msra.mxu0 0.0
        %2678 = vmatprep.subr.mxu0 0.0
        %2679 = vmatpush2.xpose.msra.mxu0 0.0
        %2680 = vmatprep.subr.mxu0 0.0
        %2681 = vmatpush2.xpose.msra.mxu0 0.0
        %2682 = vmatprep.subr.mxu0 0.0
        %2683 = vmatpush2.xpose.msra.mxu0 0.0
        %2684 = vmatprep.subr.mxu0 0.0
        %2685 = vmatpush2.xpose.msra.mxu0 0.0
        %2686 = vmatprep.mubr.f32.mxu0 0.0
        %2687 = vmatmul.mubr.f32.gmra.mxu0 %v2614
        %v2688 = vpop.f32.mrf.mxu0
        %v2689 = vadd.f32 0.0, %v2688
        %v2690 = vpop.f32.mrf.mxu0
        %2691 = vmatprep.mubr.f32.mxu0 0.0
        %2692 = vmatmul.mubr.f32.gmra.mxu0 %v2616
        %v2693 = vpop.f32.mrf.mxu0
        %v2694 = vadd.f32 0.0, %v2693
        %v2695 = vpop.f32.mrf.mxu0
        %2696 = vdwg.mxu0
        %2697 = vrot.lane.b32.xlu0 %v799, 96
        %v2698 = vpop.permute.xlu0 %2697
        %2699 = vrot.lane.b32.xlu0 %v800, 96
        %v2700 = vpop.permute.xlu0 %2699
        %2701 = vrot.lane.b32.xlu0 %v602, 96
        %v2702 = vpop.permute.xlu0 %2701
        %2703 = vrot.lane.b32.xlu0 %v608, 96
        %v2704 = vpop.permute.xlu0 %2703
        %v2705 = vsel %vm807, %v2698, 0
        %v2707 = vsel %vm807, %v2700, 0
        %v2709 = vsel %vm807, %v2702, 0
        %v2711 = vsel %vm807, %v2704, 0
        %2713 = vmatprep.subr.mxu0 0.0
        %2714 = vmatpush1.xpose.msra.mxu0 0.0
        %2715 = vmatprep.subr.mxu0 0.0
        %2716 = vmatpush1.xpose.msra.mxu0 0.0
        %2717 = vmatprep.subr.mxu0 0.0
        %2718 = vmatpush1.xpose.msra.mxu0 0.0
        %2719 = vmatprep.subr.mxu0 0.0
        %2720 = vmatpush1.xpose.msra.mxu0 0.0
        %2721 = vmatprep.subr.mxu0 0.0
        %2722 = vmatpush1.xpose.msra.mxu0 0.0
        %2723 = vmatprep.subr.mxu0 0.0
        %2724 = vmatpush1.xpose.msra.mxu0 0.0
        %2725 = vmatprep.subr.mxu0 0.0
        %2726 = vmatpush1.xpose.msra.mxu0 0.0
        %2727 = vmatprep.subr.mxu0 0.0
        %2728 = vmatpush1.xpose.msra.mxu0 0.0
        %2729 = vmatprep.subr.mxu0 0.0
        %2730 = vmatpush1.xpose.msra.mxu0 0.0
        %2731 = vmatprep.subr.mxu0 0.0
        %2732 = vmatpush1.xpose.msra.mxu0 0.0
        %2733 = vmatprep.subr.mxu0 0.0
        %2734 = vmatpush1.xpose.msra.mxu0 0.0
        %2735 = vmatprep.subr.mxu0 0.0
        %2736 = vmatpush1.xpose.msra.mxu0 0.0
        %2737 = vmatprep.subr.mxu0 0.0
        %2738 = vmatpush1.xpose.msra.mxu0 0.0
        %2739 = vmatprep.subr.mxu0 0.0
        %2740 = vmatpush1.xpose.msra.mxu0 0.0
        %2741 = vmatprep.subr.mxu0 0.0
        %2742 = vmatpush1.xpose.msra.mxu0 %v2711
        %2743 = vmatprep.subr.mxu0 0.0
        %2744 = vmatpush1.xpose.msra.mxu0 %v2709
        %2745 = vmatprep.subr.mxu0 0.0
        %2746 = vmatpush2.xpose.msra.mxu0 0.0
        %2747 = vmatprep.subr.mxu0 0.0
        %2748 = vmatpush2.xpose.msra.mxu0 0.0
        %2749 = vmatprep.subr.mxu0 0.0
        %2750 = vmatpush2.xpose.msra.mxu0 0.0
        %2751 = vmatprep.subr.mxu0 0.0
        %2752 = vmatpush2.xpose.msra.mxu0 0.0
        %2753 = vmatprep.subr.mxu0 0.0
        %2754 = vmatpush2.xpose.msra.mxu0 0.0
        %2755 = vmatprep.subr.mxu0 0.0
        %2756 = vmatpush2.xpose.msra.mxu0 0.0
        %2757 = vmatprep.subr.mxu0 0.0
        %2758 = vmatpush2.xpose.msra.mxu0 0.0
        %2759 = vmatprep.subr.mxu0 0.0
        %2760 = vmatpush2.xpose.msra.mxu0 0.0
        %2761 = vmatprep.subr.mxu0 0.0
        %2762 = vmatpush2.xpose.msra.mxu0 0.0
        %2763 = vmatprep.subr.mxu0 0.0
        %2764 = vmatpush2.xpose.msra.mxu0 0.0
        %2765 = vmatprep.subr.mxu0 0.0
        %2766 = vmatpush2.xpose.msra.mxu0 0.0
        %2767 = vmatprep.subr.mxu0 0.0
        %2768 = vmatpush2.xpose.msra.mxu0 0.0
        %2769 = vmatprep.subr.mxu0 0.0
        %2770 = vmatpush2.xpose.msra.mxu0 0.0
        %2771 = vmatprep.subr.mxu0 0.0
        %2772 = vmatpush2.xpose.msra.mxu0 0.0
        %2773 = vmatprep.subr.mxu0 0.0
        %2774 = vmatpush2.xpose.msra.mxu0 0.0
        %2775 = vmatprep.subr.mxu0 0.0
        %2776 = vmatpush2.xpose.msra.mxu0 0.0
        %2777 = vmatprep.mubr.f32.mxu0 0.0
        %2778 = vmatmul.mubr.f32.gmra.mxu0 %v2705
        %v2779 = vpop.f32.mrf.mxu0
        %v2780 = vadd.f32 0.0, %v2779
        %v2781 = vpop.f32.mrf.mxu0
        %2782 = vmatprep.mubr.f32.mxu0 0.0
        %2783 = vmatmul.mubr.f32.gmra.mxu0 %v2707
        %v2784 = vpop.f32.mrf.mxu0
        %v2785 = vadd.f32 0.0, %v2784
        %v2786 = vpop.f32.mrf.mxu0
        %2787 = vdwg.mxu0
        %2788 = vrot.lane.b32.xlu0 %v801, 96
        %v2789 = vpop.permute.xlu0 %2788
        %2790 = vrot.lane.b32.xlu0 %v802, 96
        %v2791 = vpop.permute.xlu0 %2790
        %2792 = vrot.lane.b32.xlu0 %v614, 96
        %v2793 = vpop.permute.xlu0 %2792
        %2794 = vrot.lane.b32.xlu0 %v620, 96
        %v2795 = vpop.permute.xlu0 %2794
        %v2796 = vsel %vm807, %v2789, 0
        %v2798 = vsel %vm807, %v2791, 0
        %v2800 = vsel %vm807, %v2793, 0
        %v2802 = vsel %vm807, %v2795, 0
        %2804 = vmatprep.subr.mxu0 0.0
        %2805 = vmatpush1.xpose.msra.mxu0 0.0
        %2806 = vmatprep.subr.mxu0 0.0
        %2807 = vmatpush1.xpose.msra.mxu0 0.0
        %2808 = vmatprep.subr.mxu0 0.0
        %2809 = vmatpush1.xpose.msra.mxu0 0.0
        %2810 = vmatprep.subr.mxu0 0.0
        %2811 = vmatpush1.xpose.msra.mxu0 0.0
        %2812 = vmatprep.subr.mxu0 0.0
        %2813 = vmatpush1.xpose.msra.mxu0 0.0
        %2814 = vmatprep.subr.mxu0 0.0
        %2815 = vmatpush1.xpose.msra.mxu0 0.0
        %2816 = vmatprep.subr.mxu0 0.0
        %2817 = vmatpush1.xpose.msra.mxu0 0.0
        %2818 = vmatprep.subr.mxu0 0.0
        %2819 = vmatpush1.xpose.msra.mxu0 0.0
        %2820 = vmatprep.subr.mxu0 0.0
        %2821 = vmatpush1.xpose.msra.mxu0 0.0
        %2822 = vmatprep.subr.mxu0 0.0
        %2823 = vmatpush1.xpose.msra.mxu0 0.0
        %2824 = vmatprep.subr.mxu0 0.0
        %2825 = vmatpush1.xpose.msra.mxu0 0.0
        %2826 = vmatprep.subr.mxu0 0.0
        %2827 = vmatpush1.xpose.msra.mxu0 0.0
        %2828 = vmatprep.subr.mxu0 0.0
        %2829 = vmatpush1.xpose.msra.mxu0 0.0
        %2830 = vmatprep.subr.mxu0 0.0
        %2831 = vmatpush1.xpose.msra.mxu0 0.0
        %2832 = vmatprep.subr.mxu0 0.0
        %2833 = vmatpush1.xpose.msra.mxu0 %v2802
        %2834 = vmatprep.subr.mxu0 0.0
        %2835 = vmatpush1.xpose.msra.mxu0 %v2800
        %2836 = vmatprep.subr.mxu0 0.0
        %2837 = vmatpush2.xpose.msra.mxu0 0.0
        %2838 = vmatprep.subr.mxu0 0.0
        %2839 = vmatpush2.xpose.msra.mxu0 0.0
        %2840 = vmatprep.subr.mxu0 0.0
        %2841 = vmatpush2.xpose.msra.mxu0 0.0
        %2842 = vmatprep.subr.mxu0 0.0
        %2843 = vmatpush2.xpose.msra.mxu0 0.0
        %2844 = vmatprep.subr.mxu0 0.0
        %2845 = vmatpush2.xpose.msra.mxu0 0.0
        %2846 = vmatprep.subr.mxu0 0.0
        %2847 = vmatpush2.xpose.msra.mxu0 0.0
        %2848 = vmatprep.subr.mxu0 0.0
        %2849 = vmatpush2.xpose.msra.mxu0 0.0
        %2850 = vmatprep.subr.mxu0 0.0
        %2851 = vmatpush2.xpose.msra.mxu0 0.0
        %2852 = vmatprep.subr.mxu0 0.0
        %2853 = vmatpush2.xpose.msra.mxu0 0.0
        %2854 = vmatprep.subr.mxu0 0.0
        %2855 = vmatpush2.xpose.msra.mxu0 0.0
        %2856 = vmatprep.subr.mxu0 0.0
        %2857 = vmatpush2.xpose.msra.mxu0 0.0
        %2858 = vmatprep.subr.mxu0 0.0
        %2859 = vmatpush2.xpose.msra.mxu0 0.0
        %2860 = vmatprep.subr.mxu0 0.0
        %2861 = vmatpush2.xpose.msra.mxu0 0.0
        %2862 = vmatprep.subr.mxu0 0.0
        %2863 = vmatpush2.xpose.msra.mxu0 0.0
        %2864 = vmatprep.subr.mxu0 0.0
        %2865 = vmatpush2.xpose.msra.mxu0 0.0
        %2866 = vmatprep.subr.mxu0 0.0
        %2867 = vmatpush2.xpose.msra.mxu0 0.0
        %2868 = vmatprep.mubr.f32.mxu0 0.0
        %2869 = vmatmul.mubr.f32.gmra.mxu0 %v2796
        %v2870 = vpop.f32.mrf.mxu0
        %v2871 = vadd.f32 0.0, %v2870
        %v2872 = vpop.f32.mrf.mxu0
        %2873 = vmatprep.mubr.f32.mxu0 0.0
        %2874 = vmatmul.mubr.f32.gmra.mxu0 %v2798
        %v2875 = vpop.f32.mrf.mxu0
        %v2876 = vadd.f32 0.0, %v2875
        %v2877 = vpop.f32.mrf.mxu0
        %2878 = vdwg.mxu0
        %2879 = vrot.lane.b32.xlu0 %v803, 96
        %v2880 = vpop.permute.xlu0 %2879
        %2881 = vrot.lane.b32.xlu0 %v804, 96
        %v2882 = vpop.permute.xlu0 %2881
        %2883 = vrot.lane.b32.xlu0 %v626, 96
        %v2884 = vpop.permute.xlu0 %2883
        %2885 = vrot.lane.b32.xlu0 %v632, 96
        %v2886 = vpop.permute.xlu0 %2885
        %v2887 = vsel %vm807, %v2880, 0
        %v2889 = vsel %vm807, %v2882, 0
        %v2891 = vsel %vm807, %v2884, 0
        %v2893 = vsel %vm807, %v2886, 0
        %2895 = vmatprep.subr.mxu0 0.0
        %2896 = vmatpush1.xpose.msra.mxu0 0.0
        %2897 = vmatprep.subr.mxu0 0.0
        %2898 = vmatpush1.xpose.msra.mxu0 0.0
        %2899 = vmatprep.subr.mxu0 0.0
        %2900 = vmatpush1.xpose.msra.mxu0 0.0
        %2901 = vmatprep.subr.mxu0 0.0
        %2902 = vmatpush1.xpose.msra.mxu0 0.0
        %2903 = vmatprep.subr.mxu0 0.0
        %2904 = vmatpush1.xpose.msra.mxu0 0.0
        %2905 = vmatprep.subr.mxu0 0.0
        %2906 = vmatpush1.xpose.msra.mxu0 0.0
        %2907 = vmatprep.subr.mxu0 0.0
        %2908 = vmatpush1.xpose.msra.mxu0 0.0
        %2909 = vmatprep.subr.mxu0 0.0
        %2910 = vmatpush1.xpose.msra.mxu0 0.0
        %2911 = vmatprep.subr.mxu0 0.0
        %2912 = vmatpush1.xpose.msra.mxu0 0.0
        %2913 = vmatprep.subr.mxu0 0.0
        %2914 = vmatpush1.xpose.msra.mxu0 0.0
        %2915 = vmatprep.subr.mxu0 0.0
        %2916 = vmatpush1.xpose.msra.mxu0 0.0
        %2917 = vmatprep.subr.mxu0 0.0
        %2918 = vmatpush1.xpose.msra.mxu0 0.0
        %2919 = vmatprep.subr.mxu0 0.0
        %2920 = vmatpush1.xpose.msra.mxu0 0.0
        %2921 = vmatprep.subr.mxu0 0.0
        %2922 = vmatpush1.xpose.msra.mxu0 0.0
        %2923 = vmatprep.subr.mxu0 0.0
        %2924 = vmatpush1.xpose.msra.mxu0 %v2893
        %2925 = vmatprep.subr.mxu0 0.0
        %2926 = vmatpush1.xpose.msra.mxu0 %v2891
        %2927 = vmatprep.subr.mxu0 0.0
        %2928 = vmatpush2.xpose.msra.mxu0 0.0
        %2929 = vmatprep.subr.mxu0 0.0
        %2930 = vmatpush2.xpose.msra.mxu0 0.0
        %2931 = vmatprep.subr.mxu0 0.0
        %2932 = vmatpush2.xpose.msra.mxu0 0.0
        %2933 = vmatprep.subr.mxu0 0.0
        %2934 = vmatpush2.xpose.msra.mxu0 0.0
        %2935 = vmatprep.subr.mxu0 0.0
        %2936 = vmatpush2.xpose.msra.mxu0 0.0
        %2937 = vmatprep.subr.mxu0 0.0
        %2938 = vmatpush2.xpose.msra.mxu0 0.0
        %2939 = vmatprep.subr.mxu0 0.0
        %2940 = vmatpush2.xpose.msra.mxu0 0.0
        %2941 = vmatprep.subr.mxu0 0.0
        %2942 = vmatpush2.xpose.msra.mxu0 0.0
        %2943 = vmatprep.subr.mxu0 0.0
        %2944 = vmatpush2.xpose.msra.mxu0 0.0
        %2945 = vmatprep.subr.mxu0 0.0
        %2946 = vmatpush2.xpose.msra.mxu0 0.0
        %2947 = vmatprep.subr.mxu0 0.0
        %2948 = vmatpush2.xpose.msra.mxu0 0.0
        %2949 = vmatprep.subr.mxu0 0.0
        %2950 = vmatpush2.xpose.msra.mxu0 0.0
        %2951 = vmatprep.subr.mxu0 0.0
        %2952 = vmatpush2.xpose.msra.mxu0 0.0
        %2953 = vmatprep.subr.mxu0 0.0
        %2954 = vmatpush2.xpose.msra.mxu0 0.0
        %2955 = vmatprep.subr.mxu0 0.0
        %2956 = vmatpush2.xpose.msra.mxu0 0.0
        %2957 = vmatprep.subr.mxu0 0.0
        %2958 = vmatpush2.xpose.msra.mxu0 0.0
        %2959 = vmatprep.mubr.f32.mxu0 0.0
        %2960 = vmatmul.mubr.f32.gmra.mxu0 %v2887
        %v2961 = vpop.f32.mrf.mxu0
        %v2962 = vadd.f32 0.0, %v2961
        %v2963 = vpop.f32.mrf.mxu0
        %2964 = vmatprep.mubr.f32.mxu0 0.0
        %2965 = vmatmul.mubr.f32.gmra.mxu0 %v2889
        %v2966 = vpop.f32.mrf.mxu0
        %v2967 = vadd.f32 0.0, %v2966
        %v2968 = vpop.f32.mrf.mxu0
        %2969 = vdwg.mxu0
        %2970 = vrot.lane.b32.xlu0 %v805, 96
        %v2971 = vpop.permute.xlu0 %2970
        %2972 = vrot.lane.b32.xlu0 %v806, 96
        %v2973 = vpop.permute.xlu0 %2972
        %2974 = vrot.lane.b32.xlu0 %v638, 96
        %v2975 = vpop.permute.xlu0 %2974
        %2976 = vrot.lane.b32.xlu0 %v644, 96
        %v2977 = vpop.permute.xlu0 %2976
        %v2978 = vsel %vm807, %v2971, 0
        %v2980 = vsel %vm807, %v2973, 0
        %v2982 = vsel %vm807, %v2975, 0
        %v2984 = vsel %vm807, %v2977, 0
        %2986 = vmatprep.subr.mxu0 0.0
        %2987 = vmatpush1.xpose.msra.mxu0 0.0
        %2988 = vmatprep.subr.mxu0 0.0
        %2989 = vmatpush1.xpose.msra.mxu0 0.0
        %2990 = vmatprep.subr.mxu0 0.0
        %2991 = vmatpush1.xpose.msra.mxu0 0.0
        %2992 = vmatprep.subr.mxu0 0.0
        %2993 = vmatpush1.xpose.msra.mxu0 0.0
        %2994 = vmatprep.subr.mxu0 0.0
        %2995 = vmatpush1.xpose.msra.mxu0 0.0
        %2996 = vmatprep.subr.mxu0 0.0
        %2997 = vmatpush1.xpose.msra.mxu0 0.0
        %2998 = vmatprep.subr.mxu0 0.0
        %2999 = vmatpush1.xpose.msra.mxu0 0.0
        %3000 = vmatprep.subr.mxu0 0.0
        %3001 = vmatpush1.xpose.msra.mxu0 0.0
        %3002 = vmatprep.subr.mxu0 0.0
        %3003 = vmatpush1.xpose.msra.mxu0 0.0
        %3004 = vmatprep.subr.mxu0 0.0
        %3005 = vmatpush1.xpose.msra.mxu0 0.0
        %3006 = vmatprep.subr.mxu0 0.0
        %3007 = vmatpush1.xpose.msra.mxu0 0.0
        %3008 = vmatprep.subr.mxu0 0.0
        %3009 = vmatpush1.xpose.msra.mxu0 0.0
        %3010 = vmatprep.subr.mxu0 0.0
        %3011 = vmatpush1.xpose.msra.mxu0 0.0
        %3012 = vmatprep.subr.mxu0 0.0
        %3013 = vmatpush1.xpose.msra.mxu0 0.0
        %3014 = vmatprep.subr.mxu0 0.0
        %3015 = vmatpush1.xpose.msra.mxu0 %v2984
        %3016 = vmatprep.subr.mxu0 0.0
        %3017 = vmatpush1.xpose.msra.mxu0 %v2982
        %3018 = vmatprep.subr.mxu0 0.0
        %3019 = vmatpush2.xpose.msra.mxu0 0.0
        %3020 = vmatprep.subr.mxu0 0.0
        %3021 = vmatpush2.xpose.msra.mxu0 0.0
        %3022 = vmatprep.subr.mxu0 0.0
        %3023 = vmatpush2.xpose.msra.mxu0 0.0
        %3024 = vmatprep.subr.mxu0 0.0
        %3025 = vmatpush2.xpose.msra.mxu0 0.0
        %3026 = vmatprep.subr.mxu0 0.0
        %3027 = vmatpush2.xpose.msra.mxu0 0.0
        %3028 = vmatprep.subr.mxu0 0.0
        %3029 = vmatpush2.xpose.msra.mxu0 0.0
        %3030 = vmatprep.subr.mxu0 0.0
        %3031 = vmatpush2.xpose.msra.mxu0 0.0
        %3032 = vmatprep.subr.mxu0 0.0
        %3033 = vmatpush2.xpose.msra.mxu0 0.0
        %3034 = vmatprep.subr.mxu0 0.0
        %3035 = vmatpush2.xpose.msra.mxu0 0.0
        %3036 = vmatprep.subr.mxu0 0.0
        %3037 = vmatpush2.xpose.msra.mxu0 0.0
        %3038 = vmatprep.subr.mxu0 0.0
        %3039 = vmatpush2.xpose.msra.mxu0 0.0
        %3040 = vmatprep.subr.mxu0 0.0
        %3041 = vmatpush2.xpose.msra.mxu0 0.0
        %3042 = vmatprep.subr.mxu0 0.0
        %3043 = vmatpush2.xpose.msra.mxu0 0.0
        %3044 = vmatprep.subr.mxu0 0.0
        %3045 = vmatpush2.xpose.msra.mxu0 0.0
        %3046 = vmatprep.subr.mxu0 0.0
        %3047 = vmatpush2.xpose.msra.mxu0 0.0
        %3048 = vmatprep.subr.mxu0 0.0
        %3049 = vmatpush2.xpose.msra.mxu0 0.0
        %3050 = vmatprep.mubr.f32.mxu0 0.0
        %3051 = vmatmul.mubr.f32.gmra.mxu0 %v2978
        %v3052 = vpop.f32.mrf.mxu0
        %v3053 = vadd.f32 0.0, %v3052
        %v3054 = vpop.f32.mrf.mxu0
        %3055 = vmatprep.mubr.f32.mxu0 0.0
        %3056 = vmatmul.mubr.f32.gmra.mxu0 %v2980
        %v3057 = vpop.f32.mrf.mxu0
        %v3058 = vadd.f32 0.0, %v3057
        %v3059 = vpop.f32.mrf.mxu0
        %3060 = vdwg.mxu0
        %v3061 = vsel %vm1504, %v2416, -inf
        %3062 = vmax.xlane.f32.xlu0 %v3061
        %v3063 = vpop.xlane.xlu0 %3062
        %v3064 = vsel %vm1504, %v2421, -inf
        %3065 = vmax.xlane.f32.xlu0 %v3064
        %v3066 = vpop.xlane.xlu0 %3065
        %v3067 = vsel %vm1504, %v2507, -inf
        %3068 = vmax.xlane.f32.xlu0 %v3067
        %v3069 = vpop.xlane.xlu0 %3068
        %v3070 = vsel %vm1504, %v2512, -inf
        %3071 = vmax.xlane.f32.xlu0 %v3070
        %v3072 = vpop.xlane.xlu0 %3071
        %v3073 = vsel %vm1504, %v2598, -inf
        %3074 = vmax.xlane.f32.xlu0 %v3073
        %v3075 = vpop.xlane.xlu0 %3074
        %v3076 = vsel %vm1504, %v2603, -inf
        %3077 = vmax.xlane.f32.xlu0 %v3076
        %v3078 = vpop.xlane.xlu0 %3077
        %v3079 = vsel %vm1504, %v2689, -inf
        %3080 = vmax.xlane.f32.xlu0 %v3079
        %v3081 = vpop.xlane.xlu0 %3080
        %v3082 = vsel %vm1504, %v2694, -inf
        %3083 = vmax.xlane.f32.xlu0 %v3082
        %v3084 = vpop.xlane.xlu0 %3083
        %v3085 = vsel %vm1504, %v2780, -inf
        %3086 = vmax.xlane.f32.xlu0 %v3085
        %v3087 = vpop.xlane.xlu0 %3086
        %v3088 = vsel %vm1504, %v2785, -inf
        %3089 = vmax.xlane.f32.xlu0 %v3088
        %v3090 = vpop.xlane.xlu0 %3089
        %v3091 = vsel %vm1504, %v2871, -inf
        %3092 = vmax.xlane.f32.xlu0 %v3091
        %v3093 = vpop.xlane.xlu0 %3092
        %v3094 = vsel %vm1504, %v2876, -inf
        %3095 = vmax.xlane.f32.xlu0 %v3094
        %v3096 = vpop.xlane.xlu0 %3095
        %v3097 = vsel %vm1504, %v2962, -inf
        %3098 = vmax.xlane.f32.xlu0 %v3097
        %v3099 = vpop.xlane.xlu0 %3098
        %v3100 = vsel %vm1504, %v2967, -inf
        %3101 = vmax.xlane.f32.xlu0 %v3100
        %v3102 = vpop.xlane.xlu0 %3101
        %v3103 = vsel %vm1504, %v3053, -inf
        %3104 = vmax.xlane.f32.xlu0 %v3103
        %v3105 = vpop.xlane.xlu0 %3104
        %v3106 = vsel %vm1504, %v3058, -inf
        %3107 = vmax.xlane.f32.xlu0 %v3106
        %v3108 = vpop.xlane.xlu0 %3107
        %v3109 = vsub.f32 %v2416, %v3063
        %v3110 = vsub.f32 %v2421, %v3066
        %v3111 = vsub.f32 %v2507, %v3069
        %v3112 = vsub.f32 %v2512, %v3072
        %v3113 = vsub.f32 %v2598, %v3075
        %v3114 = vsub.f32 %v2603, %v3078
        %v3115 = vsub.f32 %v2689, %v3081
        %v3116 = vsub.f32 %v2694, %v3084
        %v3117 = vsub.f32 %v2780, %v3087
        %v3118 = vsub.f32 %v2785, %v3090
        %v3119 = vsub.f32 %v2871, %v3093
        %v3120 = vsub.f32 %v2876, %v3096
        %v3121 = vsub.f32 %v2962, %v3099
        %v3122 = vsub.f32 %v2967, %v3102
        %v3123 = vsub.f32 %v3053, %v3105
        %v3124 = vsub.f32 %v3058, %v3108
        %v3125 = vmul.f32 %v3109, 1.442695
        %v3126 = vpow.pop %v3125
        %v3127 = vmul.f32 %v3110, 1.442695
        %v3128 = vpow.pop %v3127
        %v3129 = vmul.f32 %v3111, 1.442695
        %v3130 = vpow.pop %v3129
        %v3131 = vmul.f32 %v3112, 1.442695
        %v3132 = vpow.pop %v3131
        %v3133 = vmul.f32 %v3113, 1.442695
        %v3134 = vpow.pop %v3133
        %v3135 = vmul.f32 %v3114, 1.442695
        %v3136 = vpow.pop %v3135
        %v3137 = vmul.f32 %v3115, 1.442695
        %v3138 = vpow.pop %v3137
        %v3139 = vmul.f32 %v3116, 1.442695
        %v3140 = vpow.pop %v3139
        %v3141 = vmul.f32 %v3117, 1.442695
        %v3142 = vpow.pop %v3141
        %v3143 = vmul.f32 %v3118, 1.442695
        %v3144 = vpow.pop %v3143
        %v3145 = vmul.f32 %v3119, 1.442695
        %v3146 = vpow.pop %v3145
        %v3147 = vmul.f32 %v3120, 1.442695
        %v3148 = vpow.pop %v3147
        %v3149 = vmul.f32 %v3121, 1.442695
        %v3150 = vpow.pop %v3149
        %v3151 = vmul.f32 %v3122, 1.442695
        %v3152 = vpow.pop %v3151
        %v3153 = vmul.f32 %v3123, 1.442695
        %v3154 = vpow.pop %v3153
        %v3155 = vmul.f32 %v3124, 1.442695
        %v3156 = vpow.pop %v3155
        %v3157 = vsel %vm1504, %v3126, 0.0
        %3158 = vadd.xlane.f32.xlu0 %v3157
        %v3159 = vpop.xlane.xlu0 %3158
        %v3160 = vsel %vm1504, %v3128, 0.0
        %3161 = vadd.xlane.f32.xlu0 %v3160
        %v3162 = vpop.xlane.xlu0 %3161
        %v3163 = vsel %vm1504, %v3130, 0.0
        %3164 = vadd.xlane.f32.xlu0 %v3163
        %v3165 = vpop.xlane.xlu0 %3164
        %v3166 = vsel %vm1504, %v3132, 0.0
        %3167 = vadd.xlane.f32.xlu0 %v3166
        %v3168 = vpop.xlane.xlu0 %3167
        %v3169 = vsel %vm1504, %v3134, 0.0
        %3170 = vadd.xlane.f32.xlu0 %v3169
        %v3171 = vpop.xlane.xlu0 %3170
        %v3172 = vsel %vm1504, %v3136, 0.0
        %3173 = vadd.xlane.f32.xlu0 %v3172
        %v3174 = vpop.xlane.xlu0 %3173
        %v3175 = vsel %vm1504, %v3138, 0.0
        %3176 = vadd.xlane.f32.xlu0 %v3175
        %v3177 = vpop.xlane.xlu0 %3176
        %v3178 = vsel %vm1504, %v3140, 0.0
        %3179 = vadd.xlane.f32.xlu0 %v3178
        %v3180 = vpop.xlane.xlu0 %3179
        %v3181 = vsel %vm1504, %v3142, 0.0
        %3182 = vadd.xlane.f32.xlu0 %v3181
        %v3183 = vpop.xlane.xlu0 %3182
        %v3184 = vsel %vm1504, %v3144, 0.0
        %3185 = vadd.xlane.f32.xlu0 %v3184
        %v3186 = vpop.xlane.xlu0 %3185
        %v3187 = vsel %vm1504, %v3146, 0.0
        %3188 = vadd.xlane.f32.xlu0 %v3187
        %v3189 = vpop.xlane.xlu0 %3188
        %v3190 = vsel %vm1504, %v3148, 0.0
        %3191 = vadd.xlane.f32.xlu0 %v3190
        %v3192 = vpop.xlane.xlu0 %3191
        %v3193 = vsel %vm1504, %v3150, 0.0
        %3194 = vadd.xlane.f32.xlu0 %v3193
        %v3195 = vpop.xlane.xlu0 %3194
        %v3196 = vsel %vm1504, %v3152, 0.0
        %3197 = vadd.xlane.f32.xlu0 %v3196
        %v3198 = vpop.xlane.xlu0 %3197
        %v3199 = vsel %vm1504, %v3154, 0.0
        %3200 = vadd.xlane.f32.xlu0 %v3199
        %v3201 = vpop.xlane.xlu0 %3200
        %v3202 = vsel %vm1504, %v3156, 0.0
        %3203 = vadd.xlane.f32.xlu0 %v3202
        %v3204 = vpop.xlane.xlu0 %3203
        %v3205 = vrcp.pop %v3159
        %v3206 = vrcp.pop %v3162
        %v3207 = vrcp.pop %v3165
        %v3208 = vrcp.pop %v3168
        %v3209 = vrcp.pop %v3171
        %v3210 = vrcp.pop %v3174
        %v3211 = vrcp.pop %v3177
        %v3212 = vrcp.pop %v3180
        %v3213 = vrcp.pop %v3183
        %v3214 = vrcp.pop %v3186
        %v3215 = vrcp.pop %v3189
        %v3216 = vrcp.pop %v3192
        %v3217 = vrcp.pop %v3195
        %v3218 = vrcp.pop %v3198
        %v3219 = vrcp.pop %v3201
        %v3220 = vrcp.pop %v3204
        %v3221 = vmul.f32 %v3126, %v3205
        %v3222 = vmul.f32 %v3128, %v3206
        %v3223 = vmul.f32 %v3130, %v3207
        %v3224 = vmul.f32 %v3132, %v3208
        %v3225 = vmul.f32 %v3134, %v3209
        %v3226 = vmul.f32 %v3136, %v3210
        %v3227 = vmul.f32 %v3138, %v3211
        %v3228 = vmul.f32 %v3140, %v3212
        %v3229 = vmul.f32 %v3142, %v3213
        %v3230 = vmul.f32 %v3144, %v3214
        %v3231 = vmul.f32 %v3146, %v3215
        %v3232 = vmul.f32 %v3148, %v3216
        %v3233 = vmul.f32 %v3150, %v3217
        %v3234 = vmul.f32 %v3152, %v3218
        %v3235 = vmul.f32 %v3154, %v3219
        %v3236 = vmul.f32 %v3156, %v3220
        %3239 = vrot.lane.b32.xlu0 %v713, 96
        %v3240 = vpop.permute.xlu0 %3239
        %3241 = vrot.lane.b32.xlu0 %v718, 96
        %v3242 = vpop.permute.xlu0 %3241
        %v3246 = vsel %vm1504, %v3221, 0
        %v3249 = vsel %vm1504, %v3222, 0
        %3251 = vmatprep.subr.mxu0 0.0
        %3252 = vmatpush1.msra.mxu0 0.0
        %3253 = vmatprep.subr.mxu0 0.0
        %3254 = vmatpush1.msra.mxu0 0.0
        %3255 = vmatprep.subr.mxu0 0.0
        %3256 = vmatpush1.msra.mxu0 0.0
        %3257 = vmatprep.subr.mxu0 0.0
        %3258 = vmatpush1.msra.mxu0 0.0
        %3259 = vmatprep.subr.mxu0 0.0
        %3260 = vmatpush1.msra.mxu0 0.0
        %3261 = vmatprep.subr.mxu0 0.0
        %3262 = vmatpush1.msra.mxu0 0.0
        %3263 = vmatprep.subr.mxu0 0.0
        %3264 = vmatpush1.msra.mxu0 0.0
        %3265 = vmatprep.subr.mxu0 0.0
        %3266 = vmatpush1.msra.mxu0 0.0
        %3267 = vmatprep.subr.mxu0 0.0
        %3268 = vmatpush1.msra.mxu0 0.0
        %3269 = vmatprep.subr.mxu0 0.0
        %3270 = vmatpush1.msra.mxu0 0.0
        %3271 = vmatprep.subr.mxu0 0.0
        %3272 = vmatpush1.msra.mxu0 0.0
        %3273 = vmatprep.subr.mxu0 0.0
        %3274 = vmatpush1.msra.mxu0 0.0
        %3275 = vmatprep.subr.mxu0 0.0
        %3276 = vmatpush1.msra.mxu0 0.0
        %3277 = vmatprep.subr.mxu0 0.0
        %3278 = vmatpush1.msra.mxu0 0.0
        %3279 = vmatprep.subr.mxu0 0.0
        %3280 = vmatpush1.msra.mxu0 %v3242
        %3281 = vmatprep.subr.mxu0 0.0
        %3282 = vmatpush1.msra.mxu0 %v3240
        %3283 = vmatprep.subr.mxu0 0.0
        %3284 = vmatpush2.msra.mxu0 0.0
        %3285 = vmatprep.subr.mxu0 0.0
        %3286 = vmatpush2.msra.mxu0 0.0
        %3287 = vmatprep.subr.mxu0 0.0
        %3288 = vmatpush2.msra.mxu0 0.0
        %3289 = vmatprep.subr.mxu0 0.0
        %3290 = vmatpush2.msra.mxu0 0.0
        %3291 = vmatprep.subr.mxu0 0.0
        %3292 = vmatpush2.msra.mxu0 0.0
        %3293 = vmatprep.subr.mxu0 0.0
        %3294 = vmatpush2.msra.mxu0 0.0
        %3295 = vmatprep.subr.mxu0 0.0
        %3296 = vmatpush2.msra.mxu0 0.0
        %3297 = vmatprep.subr.mxu0 0.0
        %3298 = vmatpush2.msra.mxu0 0.0
        %3299 = vmatprep.subr.mxu0 0.0
        %3300 = vmatpush2.msra.mxu0 0.0
        %3301 = vmatprep.subr.mxu0 0.0
        %3302 = vmatpush2.msra.mxu0 0.0
        %3303 = vmatprep.subr.mxu0 0.0
        %3304 = vmatpush2.msra.mxu0 0.0
        %3305 = vmatprep.subr.mxu0 0.0
        %3306 = vmatpush2.msra.mxu0 0.0
        %3307 = vmatprep.subr.mxu0 0.0
        %3308 = vmatpush2.msra.mxu0 0.0
        %3309 = vmatprep.subr.mxu0 0.0
        %3310 = vmatpush2.msra.mxu0 0.0
        %3311 = vmatprep.subr.mxu0 0.0
        %3312 = vmatpush2.msra.mxu0 0.0
        %3313 = vmatprep.subr.mxu0 0.0
        %3314 = vmatpush2.msra.mxu0 0.0
        %3315 = vmatprep.mubr.f32.mxu0 0.0
        %3316 = vmatmul.mubr.f32.gmra.mxu0 %v3246
        %v3317 = vpop.f32.mrf.mxu0
        %v3318 = vadd.f32 0.0, %v3317
        %v3319 = vpop.f32.mrf.mxu0
        %3320 = vmatprep.mubr.f32.mxu0 0.0
        %3321 = vmatmul.mubr.f32.gmra.mxu0 %v3249
        %v3322 = vpop.f32.mrf.mxu0
        %v3323 = vadd.f32 0.0, %v3322
        %v3324 = vpop.f32.mrf.mxu0
        %3325 = vdwg.mxu0
        %3328 = vrot.lane.b32.xlu0 %v723, 96
        %v3329 = vpop.permute.xlu0 %3328
        %3330 = vrot.lane.b32.xlu0 %v728, 96
        %v3331 = vpop.permute.xlu0 %3330
        %v3335 = vsel %vm1504, %v3223, 0
        %v3338 = vsel %vm1504, %v3224, 0
        %3340 = vmatprep.subr.mxu0 0.0
        %3341 = vmatpush1.msra.mxu0 0.0
        %3342 = vmatprep.subr.mxu0 0.0
        %3343 = vmatpush1.msra.mxu0 0.0
        %3344 = vmatprep.subr.mxu0 0.0
        %3345 = vmatpush1.msra.mxu0 0.0
        %3346 = vmatprep.subr.mxu0 0.0
        %3347 = vmatpush1.msra.mxu0 0.0
        %3348 = vmatprep.subr.mxu0 0.0
        %3349 = vmatpush1.msra.mxu0 0.0
        %3350 = vmatprep.subr.mxu0 0.0
        %3351 = vmatpush1.msra.mxu0 0.0
        %3352 = vmatprep.subr.mxu0 0.0
        %3353 = vmatpush1.msra.mxu0 0.0
        %3354 = vmatprep.subr.mxu0 0.0
        %3355 = vmatpush1.msra.mxu0 0.0
        %3356 = vmatprep.subr.mxu0 0.0
        %3357 = vmatpush1.msra.mxu0 0.0
        %3358 = vmatprep.subr.mxu0 0.0
        %3359 = vmatpush1.msra.mxu0 0.0
        %3360 = vmatprep.subr.mxu0 0.0
        %3361 = vmatpush1.msra.mxu0 0.0
        %3362 = vmatprep.subr.mxu0 0.0
        %3363 = vmatpush1.msra.mxu0 0.0
        %3364 = vmatprep.subr.mxu0 0.0
        %3365 = vmatpush1.msra.mxu0 0.0
        %3366 = vmatprep.subr.mxu0 0.0
        %3367 = vmatpush1.msra.mxu0 0.0
        %3368 = vmatprep.subr.mxu0 0.0
        %3369 = vmatpush1.msra.mxu0 %v3331
        %3370 = vmatprep.subr.mxu0 0.0
        %3371 = vmatpush1.msra.mxu0 %v3329
        %3372 = vmatprep.subr.mxu0 0.0
        %3373 = vmatpush2.msra.mxu0 0.0
        %3374 = vmatprep.subr.mxu0 0.0
        %3375 = vmatpush2.msra.mxu0 0.0
        %3376 = vmatprep.subr.mxu0 0.0
        %3377 = vmatpush2.msra.mxu0 0.0
        %3378 = vmatprep.subr.mxu0 0.0
        %3379 = vmatpush2.msra.mxu0 0.0
        %3380 = vmatprep.subr.mxu0 0.0
        %3381 = vmatpush2.msra.mxu0 0.0
        %3382 = vmatprep.subr.mxu0 0.0
        %3383 = vmatpush2.msra.mxu0 0.0
        %3384 = vmatprep.subr.mxu0 0.0
        %3385 = vmatpush2.msra.mxu0 0.0
        %3386 = vmatprep.subr.mxu0 0.0
        %3387 = vmatpush2.msra.mxu0 0.0
        %3388 = vmatprep.subr.mxu0 0.0
        %3389 = vmatpush2.msra.mxu0 0.0
        %3390 = vmatprep.subr.mxu0 0.0
        %3391 = vmatpush2.msra.mxu0 0.0
        %3392 = vmatprep.subr.mxu0 0.0
        %3393 = vmatpush2.msra.mxu0 0.0
        %3394 = vmatprep.subr.mxu0 0.0
        %3395 = vmatpush2.msra.mxu0 0.0
        %3396 = vmatprep.subr.mxu0 0.0
        %3397 = vmatpush2.msra.mxu0 0.0
        %3398 = vmatprep.subr.mxu0 0.0
        %3399 = vmatpush2.msra.mxu0 0.0
        %3400 = vmatprep.subr.mxu0 0.0
        %3401 = vmatpush2.msra.mxu0 0.0
        %3402 = vmatprep.subr.mxu0 0.0
        %3403 = vmatpush2.msra.mxu0 0.0
        %3404 = vmatprep.mubr.f32.mxu0 0.0
        %3405 = vmatmul.mubr.f32.gmra.mxu0 %v3335
        %v3406 = vpop.f32.mrf.mxu0
        %v3407 = vadd.f32 0.0, %v3406
        %v3408 = vpop.f32.mrf.mxu0
        %3409 = vmatprep.mubr.f32.mxu0 0.0
        %3410 = vmatmul.mubr.f32.gmra.mxu0 %v3338
        %v3411 = vpop.f32.mrf.mxu0
        %v3412 = vadd.f32 0.0, %v3411
        %v3413 = vpop.f32.mrf.mxu0
        %3414 = vdwg.mxu0
        %3417 = vrot.lane.b32.xlu0 %v733, 96
        %v3418 = vpop.permute.xlu0 %3417
        %3419 = vrot.lane.b32.xlu0 %v738, 96
        %v3420 = vpop.permute.xlu0 %3419
        %v3424 = vsel %vm1504, %v3225, 0
        %v3427 = vsel %vm1504, %v3226, 0
        %3429 = vmatprep.subr.mxu0 0.0
        %3430 = vmatpush1.msra.mxu0 0.0
        %3431 = vmatprep.subr.mxu0 0.0
        %3432 = vmatpush1.msra.mxu0 0.0
        %3433 = vmatprep.subr.mxu0 0.0
        %3434 = vmatpush1.msra.mxu0 0.0
        %3435 = vmatprep.subr.mxu0 0.0
        %3436 = vmatpush1.msra.mxu0 0.0
        %3437 = vmatprep.subr.mxu0 0.0
        %3438 = vmatpush1.msra.mxu0 0.0
        %3439 = vmatprep.subr.mxu0 0.0
        %3440 = vmatpush1.msra.mxu0 0.0
        %3441 = vmatprep.subr.mxu0 0.0
        %3442 = vmatpush1.msra.mxu0 0.0
        %3443 = vmatprep.subr.mxu0 0.0
        %3444 = vmatpush1.msra.mxu0 0.0
        %3445 = vmatprep.subr.mxu0 0.0
        %3446 = vmatpush1.msra.mxu0 0.0
        %3447 = vmatprep.subr.mxu0 0.0
        %3448 = vmatpush1.msra.mxu0 0.0
        %3449 = vmatprep.subr.mxu0 0.0
        %3450 = vmatpush1.msra.mxu0 0.0
        %3451 = vmatprep.subr.mxu0 0.0
        %3452 = vmatpush1.msra.mxu0 0.0
        %3453 = vmatprep.subr.mxu0 0.0
        %3454 = vmatpush1.msra.mxu0 0.0
        %3455 = vmatprep.subr.mxu0 0.0
        %3456 = vmatpush1.msra.mxu0 0.0
        %3457 = vmatprep.subr.mxu0 0.0
        %3458 = vmatpush1.msra.mxu0 %v3420
        %3459 = vmatprep.subr.mxu0 0.0
        %3460 = vmatpush1.msra.mxu0 %v3418
        %3461 = vmatprep.subr.mxu0 0.0
        %3462 = vmatpush2.msra.mxu0 0.0
        %3463 = vmatprep.subr.mxu0 0.0
        %3464 = vmatpush2.msra.mxu0 0.0
        %3465 = vmatprep.subr.mxu0 0.0
        %3466 = vmatpush2.msra.mxu0 0.0
        %3467 = vmatprep.subr.mxu0 0.0
        %3468 = vmatpush2.msra.mxu0 0.0
        %3469 = vmatprep.subr.mxu0 0.0
        %3470 = vmatpush2.msra.mxu0 0.0
        %3471 = vmatprep.subr.mxu0 0.0
        %3472 = vmatpush2.msra.mxu0 0.0
        %3473 = vmatprep.subr.mxu0 0.0
        %3474 = vmatpush2.msra.mxu0 0.0
        %3475 = vmatprep.subr.mxu0 0.0
        %3476 = vmatpush2.msra.mxu0 0.0
        %3477 = vmatprep.subr.mxu0 0.0
        %3478 = vmatpush2.msra.mxu0 0.0
        %3479 = vmatprep.subr.mxu0 0.0
        %3480 = vmatpush2.msra.mxu0 0.0
        %3481 = vmatprep.subr.mxu0 0.0
        %3482 = vmatpush2.msra.mxu0 0.0
        %3483 = vmatprep.subr.mxu0 0.0
        %3484 = vmatpush2.msra.mxu0 0.0
        %3485 = vmatprep.subr.mxu0 0.0
        %3486 = vmatpush2.msra.mxu0 0.0
        %3487 = vmatprep.subr.mxu0 0.0
        %3488 = vmatpush2.msra.mxu0 0.0
        %3489 = vmatprep.subr.mxu0 0.0
        %3490 = vmatpush2.msra.mxu0 0.0
        %3491 = vmatprep.subr.mxu0 0.0
        %3492 = vmatpush2.msra.mxu0 0.0
        %3493 = vmatprep.mubr.f32.mxu0 0.0
        %3494 = vmatmul.mubr.f32.gmra.mxu0 %v3424
        %v3495 = vpop.f32.mrf.mxu0
        %v3496 = vadd.f32 0.0, %v3495
        %v3497 = vpop.f32.mrf.mxu0
        %3498 = vmatprep.mubr.f32.mxu0 0.0
        %3499 = vmatmul.mubr.f32.gmra.mxu0 %v3427
        %v3500 = vpop.f32.mrf.mxu0
        %v3501 = vadd.f32 0.0, %v3500
        %v3502 = vpop.f32.mrf.mxu0
        %3503 = vdwg.mxu0
        %3506 = vrot.lane.b32.xlu0 %v743, 96
        %v3507 = vpop.permute.xlu0 %3506
        %3508 = vrot.lane.b32.xlu0 %v748, 96
        %v3509 = vpop.permute.xlu0 %3508
        %v3513 = vsel %vm1504, %v3227, 0
        %v3516 = vsel %vm1504, %v3228, 0
        %3518 = vmatprep.subr.mxu0 0.0
        %3519 = vmatpush1.msra.mxu0 0.0
        %3520 = vmatprep.subr.mxu0 0.0
        %3521 = vmatpush1.msra.mxu0 0.0
        %3522 = vmatprep.subr.mxu0 0.0
        %3523 = vmatpush1.msra.mxu0 0.0
        %3524 = vmatprep.subr.mxu0 0.0
        %3525 = vmatpush1.msra.mxu0 0.0
        %3526 = vmatprep.subr.mxu0 0.0
        %3527 = vmatpush1.msra.mxu0 0.0
        %3528 = vmatprep.subr.mxu0 0.0
        %3529 = vmatpush1.msra.mxu0 0.0
        %3530 = vmatprep.subr.mxu0 0.0
        %3531 = vmatpush1.msra.mxu0 0.0
        %3532 = vmatprep.subr.mxu0 0.0
        %3533 = vmatpush1.msra.mxu0 0.0
        %3534 = vmatprep.subr.mxu0 0.0
        %3535 = vmatpush1.msra.mxu0 0.0
        %3536 = vmatprep.subr.mxu0 0.0
        %3537 = vmatpush1.msra.mxu0 0.0
        %3538 = vmatprep.subr.mxu0 0.0
        %3539 = vmatpush1.msra.mxu0 0.0
        %3540 = vmatprep.subr.mxu0 0.0
        %3541 = vmatpush1.msra.mxu0 0.0
        %3542 = vmatprep.subr.mxu0 0.0
        %3543 = vmatpush1.msra.mxu0 0.0
        %3544 = vmatprep.subr.mxu0 0.0
        %3545 = vmatpush1.msra.mxu0 0.0
        %3546 = vmatprep.subr.mxu0 0.0
        %3547 = vmatpush1.msra.mxu0 %v3509
        %3548 = vmatprep.subr.mxu0 0.0
        %3549 = vmatpush1.msra.mxu0 %v3507
        %3550 = vmatprep.subr.mxu0 0.0
        %3551 = vmatpush2.msra.mxu0 0.0
        %3552 = vmatprep.subr.mxu0 0.0
        %3553 = vmatpush2.msra.mxu0 0.0
        %3554 = vmatprep.subr.mxu0 0.0
        %3555 = vmatpush2.msra.mxu0 0.0
        %3556 = vmatprep.subr.mxu0 0.0
        %3557 = vmatpush2.msra.mxu0 0.0
        %3558 = vmatprep.subr.mxu0 0.0
        %3559 = vmatpush2.msra.mxu0 0.0
        %3560 = vmatprep.subr.mxu0 0.0
        %3561 = vmatpush2.msra.mxu0 0.0
        %3562 = vmatprep.subr.mxu0 0.0
        %3563 = vmatpush2.msra.mxu0 0.0
        %3564 = vmatprep.subr.mxu0 0.0
        %3565 = vmatpush2.msra.mxu0 0.0
        %3566 = vmatprep.subr.mxu0 0.0
        %3567 = vmatpush2.msra.mxu0 0.0
        %3568 = vmatprep.subr.mxu0 0.0
        %3569 = vmatpush2.msra.mxu0 0.0
        %3570 = vmatprep.subr.mxu0 0.0
        %3571 = vmatpush2.msra.mxu0 0.0
        %3572 = vmatprep.subr.mxu0 0.0
        %3573 = vmatpush2.msra.mxu0 0.0
        %3574 = vmatprep.subr.mxu0 0.0
        %3575 = vmatpush2.msra.mxu0 0.0
        %3576 = vmatprep.subr.mxu0 0.0
        %3577 = vmatpush2.msra.mxu0 0.0
        %3578 = vmatprep.subr.mxu0 0.0
        %3579 = vmatpush2.msra.mxu0 0.0
        %3580 = vmatprep.subr.mxu0 0.0
        %3581 = vmatpush2.msra.mxu0 0.0
        %3582 = vmatprep.mubr.f32.mxu0 0.0
        %3583 = vmatmul.mubr.f32.gmra.mxu0 %v3513
        %v3584 = vpop.f32.mrf.mxu0
        %v3585 = vadd.f32 0.0, %v3584
        %v3586 = vpop.f32.mrf.mxu0
        %3587 = vmatprep.mubr.f32.mxu0 0.0
        %3588 = vmatmul.mubr.f32.gmra.mxu0 %v3516
        %v3589 = vpop.f32.mrf.mxu0
        %v3590 = vadd.f32 0.0, %v3589
        %v3591 = vpop.f32.mrf.mxu0
        %3592 = vdwg.mxu0
        %3595 = vrot.lane.b32.xlu0 %v753, 96
        %v3596 = vpop.permute.xlu0 %3595
        %3597 = vrot.lane.b32.xlu0 %v758, 96
        %v3598 = vpop.permute.xlu0 %3597
        %v3602 = vsel %vm1504, %v3229, 0
        %v3605 = vsel %vm1504, %v3230, 0
        %3607 = vmatprep.subr.mxu0 0.0
        %3608 = vmatpush1.msra.mxu0 0.0
        %3609 = vmatprep.subr.mxu0 0.0
        %3610 = vmatpush1.msra.mxu0 0.0
        %3611 = vmatprep.subr.mxu0 0.0
        %3612 = vmatpush1.msra.mxu0 0.0
        %3613 = vmatprep.subr.mxu0 0.0
        %3614 = vmatpush1.msra.mxu0 0.0
        %3615 = vmatprep.subr.mxu0 0.0
        %3616 = vmatpush1.msra.mxu0 0.0
        %3617 = vmatprep.subr.mxu0 0.0
        %3618 = vmatpush1.msra.mxu0 0.0
        %3619 = vmatprep.subr.mxu0 0.0
        %3620 = vmatpush1.msra.mxu0 0.0
        %3621 = vmatprep.subr.mxu0 0.0
        %3622 = vmatpush1.msra.mxu0 0.0
        %3623 = vmatprep.subr.mxu0 0.0
        %3624 = vmatpush1.msra.mxu0 0.0
        %3625 = vmatprep.subr.mxu0 0.0
        %3626 = vmatpush1.msra.mxu0 0.0
        %3627 = vmatprep.subr.mxu0 0.0
        %3628 = vmatpush1.msra.mxu0 0.0
        %3629 = vmatprep.subr.mxu0 0.0
        %3630 = vmatpush1.msra.mxu0 0.0
        %3631 = vmatprep.subr.mxu0 0.0
        %3632 = vmatpush1.msra.mxu0 0.0
        %3633 = vmatprep.subr.mxu0 0.0
        %3634 = vmatpush1.msra.mxu0 0.0
        %3635 = vmatprep.subr.mxu0 0.0
        %3636 = vmatpush1.msra.mxu0 %v3598
        %3637 = vmatprep.subr.mxu0 0.0
        %3638 = vmatpush1.msra.mxu0 %v3596
        %3639 = vmatprep.subr.mxu0 0.0
        %3640 = vmatpush2.msra.mxu0 0.0
        %3641 = vmatprep.subr.mxu0 0.0
        %3642 = vmatpush2.msra.mxu0 0.0
        %3643 = vmatprep.subr.mxu0 0.0
        %3644 = vmatpush2.msra.mxu0 0.0
        %3645 = vmatprep.subr.mxu0 0.0
        %3646 = vmatpush2.msra.mxu0 0.0
        %3647 = vmatprep.subr.mxu0 0.0
        %3648 = vmatpush2.msra.mxu0 0.0
        %3649 = vmatprep.subr.mxu0 0.0
        %3650 = vmatpush2.msra.mxu0 0.0
        %3651 = vmatprep.subr.mxu0 0.0
        %3652 = vmatpush2.msra.mxu0 0.0
        %3653 = vmatprep.subr.mxu0 0.0
        %3654 = vmatpush2.msra.mxu0 0.0
        %3655 = vmatprep.subr.mxu0 0.0
        %3656 = vmatpush2.msra.mxu0 0.0
        %3657 = vmatprep.subr.mxu0 0.0
        %3658 = vmatpush2.msra.mxu0 0.0
        %3659 = vmatprep.subr.mxu0 0.0
        %3660 = vmatpush2.msra.mxu0 0.0
        %3661 = vmatprep.subr.mxu0 0.0
        %3662 = vmatpush2.msra.mxu0 0.0
        %3663 = vmatprep.subr.mxu0 0.0
        %3664 = vmatpush2.msra.mxu0 0.0
        %3665 = vmatprep.subr.mxu0 0.0
        %3666 = vmatpush2.msra.mxu0 0.0
        %3667 = vmatprep.subr.mxu0 0.0
        %3668 = vmatpush2.msra.mxu0 0.0
        %3669 = vmatprep.subr.mxu0 0.0
        %3670 = vmatpush2.msra.mxu0 0.0
        %3671 = vmatprep.mubr.f32.mxu0 0.0
        %3672 = vmatmul.mubr.f32.gmra.mxu0 %v3602
        %v3673 = vpop.f32.mrf.mxu0
        %v3674 = vadd.f32 0.0, %v3673
        %v3675 = vpop.f32.mrf.mxu0
        %3676 = vmatprep.mubr.f32.mxu0 0.0
        %3677 = vmatmul.mubr.f32.gmra.mxu0 %v3605
        %v3678 = vpop.f32.mrf.mxu0
        %v3679 = vadd.f32 0.0, %v3678
        %v3680 = vpop.f32.mrf.mxu0
        %3681 = vdwg.mxu0
        %3684 = vrot.lane.b32.xlu0 %v763, 96
        %v3685 = vpop.permute.xlu0 %3684
        %3686 = vrot.lane.b32.xlu0 %v768, 96
        %v3687 = vpop.permute.xlu0 %3686
        %v3691 = vsel %vm1504, %v3231, 0
        %v3694 = vsel %vm1504, %v3232, 0
        %3696 = vmatprep.subr.mxu0 0.0
        %3697 = vmatpush1.msra.mxu0 0.0
        %3698 = vmatprep.subr.mxu0 0.0
        %3699 = vmatpush1.msra.mxu0 0.0
        %3700 = vmatprep.subr.mxu0 0.0
        %3701 = vmatpush1.msra.mxu0 0.0
        %3702 = vmatprep.subr.mxu0 0.0
        %3703 = vmatpush1.msra.mxu0 0.0
        %3704 = vmatprep.subr.mxu0 0.0
        %3705 = vmatpush1.msra.mxu0 0.0
        %3706 = vmatprep.subr.mxu0 0.0
        %3707 = vmatpush1.msra.mxu0 0.0
        %3708 = vmatprep.subr.mxu0 0.0
        %3709 = vmatpush1.msra.mxu0 0.0
        %3710 = vmatprep.subr.mxu0 0.0
        %3711 = vmatpush1.msra.mxu0 0.0
        %3712 = vmatprep.subr.mxu0 0.0
        %3713 = vmatpush1.msra.mxu0 0.0
        %3714 = vmatprep.subr.mxu0 0.0
        %3715 = vmatpush1.msra.mxu0 0.0
        %3716 = vmatprep.subr.mxu0 0.0
        %3717 = vmatpush1.msra.mxu0 0.0
        %3718 = vmatprep.subr.mxu0 0.0
        %3719 = vmatpush1.msra.mxu0 0.0
        %3720 = vmatprep.subr.mxu0 0.0
        %3721 = vmatpush1.msra.mxu0 0.0
        %3722 = vmatprep.subr.mxu0 0.0
        %3723 = vmatpush1.msra.mxu0 0.0
        %3724 = vmatprep.subr.mxu0 0.0
        %3725 = vmatpush1.msra.mxu0 %v3687
        %3726 = vmatprep.subr.mxu0 0.0
        %3727 = vmatpush1.msra.mxu0 %v3685
        %3728 = vmatprep.subr.mxu0 0.0
        %3729 = vmatpush2.msra.mxu0 0.0
        %3730 = vmatprep.subr.mxu0 0.0
        %3731 = vmatpush2.msra.mxu0 0.0
        %3732 = vmatprep.subr.mxu0 0.0
        %3733 = vmatpush2.msra.mxu0 0.0
        %3734 = vmatprep.subr.mxu0 0.0
        %3735 = vmatpush2.msra.mxu0 0.0
        %3736 = vmatprep.subr.mxu0 0.0
        %3737 = vmatpush2.msra.mxu0 0.0
        %3738 = vmatprep.subr.mxu0 0.0
        %3739 = vmatpush2.msra.mxu0 0.0
        %3740 = vmatprep.subr.mxu0 0.0
        %3741 = vmatpush2.msra.mxu0 0.0
        %3742 = vmatprep.subr.mxu0 0.0
        %3743 = vmatpush2.msra.mxu0 0.0
        %3744 = vmatprep.subr.mxu0 0.0
        %3745 = vmatpush2.msra.mxu0 0.0
        %3746 = vmatprep.subr.mxu0 0.0
        %3747 = vmatpush2.msra.mxu0 0.0
        %3748 = vmatprep.subr.mxu0 0.0
        %3749 = vmatpush2.msra.mxu0 0.0
        %3750 = vmatprep.subr.mxu0 0.0
        %3751 = vmatpush2.msra.mxu0 0.0
        %3752 = vmatprep.subr.mxu0 0.0
        %3753 = vmatpush2.msra.mxu0 0.0
        %3754 = vmatprep.subr.mxu0 0.0
        %3755 = vmatpush2.msra.mxu0 0.0
        %3756 = vmatprep.subr.mxu0 0.0
        %3757 = vmatpush2.msra.mxu0 0.0
        %3758 = vmatprep.subr.mxu0 0.0
        %3759 = vmatpush2.msra.mxu0 0.0
        %3760 = vmatprep.mubr.f32.mxu0 0.0
        %3761 = vmatmul.mubr.f32.gmra.mxu0 %v3691
        %v3762 = vpop.f32.mrf.mxu0
        %v3763 = vadd.f32 0.0, %v3762
        %v3764 = vpop.f32.mrf.mxu0
        %3765 = vmatprep.mubr.f32.mxu0 0.0
        %3766 = vmatmul.mubr.f32.gmra.mxu0 %v3694
        %v3767 = vpop.f32.mrf.mxu0
        %v3768 = vadd.f32 0.0, %v3767
        %v3769 = vpop.f32.mrf.mxu0
        %3770 = vdwg.mxu0
        %3773 = vrot.lane.b32.xlu0 %v773, 96
        %v3774 = vpop.permute.xlu0 %3773
        %3775 = vrot.lane.b32.xlu0 %v778, 96
        %v3776 = vpop.permute.xlu0 %3775
        %v3780 = vsel %vm1504, %v3233, 0
        %v3783 = vsel %vm1504, %v3234, 0
        %3785 = vmatprep.subr.mxu0 0.0
        %3786 = vmatpush1.msra.mxu0 0.0
        %3787 = vmatprep.subr.mxu0 0.0
        %3788 = vmatpush1.msra.mxu0 0.0
        %3789 = vmatprep.subr.mxu0 0.0
        %3790 = vmatpush1.msra.mxu0 0.0
        %3791 = vmatprep.subr.mxu0 0.0
        %3792 = vmatpush1.msra.mxu0 0.0
        %3793 = vmatprep.subr.mxu0 0.0
        %3794 = vmatpush1.msra.mxu0 0.0
        %3795 = vmatprep.subr.mxu0 0.0
        %3796 = vmatpush1.msra.mxu0 0.0
        %3797 = vmatprep.subr.mxu0 0.0
        %3798 = vmatpush1.msra.mxu0 0.0
        %3799 = vmatprep.subr.mxu0 0.0
        %3800 = vmatpush1.msra.mxu0 0.0
        %3801 = vmatprep.subr.mxu0 0.0
        %3802 = vmatpush1.msra.mxu0 0.0
        %3803 = vmatprep.subr.mxu0 0.0
        %3804 = vmatpush1.msra.mxu0 0.0
        %3805 = vmatprep.subr.mxu0 0.0
        %3806 = vmatpush1.msra.mxu0 0.0
        %3807 = vmatprep.subr.mxu0 0.0
        %3808 = vmatpush1.msra.mxu0 0.0
        %3809 = vmatprep.subr.mxu0 0.0
        %3810 = vmatpush1.msra.mxu0 0.0
        %3811 = vmatprep.subr.mxu0 0.0
        %3812 = vmatpush1.msra.mxu0 0.0
        %3813 = vmatprep.subr.mxu0 0.0
        %3814 = vmatpush1.msra.mxu0 %v3776
        %3815 = vmatprep.subr.mxu0 0.0
        %3816 = vmatpush1.msra.mxu0 %v3774
        %3817 = vmatprep.subr.mxu0 0.0
        %3818 = vmatpush2.msra.mxu0 0.0
        %3819 = vmatprep.subr.mxu0 0.0
        %3820 = vmatpush2.msra.mxu0 0.0
        %3821 = vmatprep.subr.mxu0 0.0
        %3822 = vmatpush2.msra.mxu0 0.0
        %3823 = vmatprep.subr.mxu0 0.0
        %3824 = vmatpush2.msra.mxu0 0.0
        %3825 = vmatprep.subr.mxu0 0.0
        %3826 = vmatpush2.msra.mxu0 0.0
        %3827 = vmatprep.subr.mxu0 0.0
        %3828 = vmatpush2.msra.mxu0 0.0
        %3829 = vmatprep.subr.mxu0 0.0
        %3830 = vmatpush2.msra.mxu0 0.0
        %3831 = vmatprep.subr.mxu0 0.0
        %3832 = vmatpush2.msra.mxu0 0.0
        %3833 = vmatprep.subr.mxu0 0.0
        %3834 = vmatpush2.msra.mxu0 0.0
        %3835 = vmatprep.subr.mxu0 0.0
        %3836 = vmatpush2.msra.mxu0 0.0
        %3837 = vmatprep.subr.mxu0 0.0
        %3838 = vmatpush2.msra.mxu0 0.0
        %3839 = vmatprep.subr.mxu0 0.0
        %3840 = vmatpush2.msra.mxu0 0.0
        %3841 = vmatprep.subr.mxu0 0.0
        %3842 = vmatpush2.msra.mxu0 0.0
        %3843 = vmatprep.subr.mxu0 0.0
        %3844 = vmatpush2.msra.mxu0 0.0
        %3845 = vmatprep.subr.mxu0 0.0
        %3846 = vmatpush2.msra.mxu0 0.0
        %3847 = vmatprep.subr.mxu0 0.0
        %3848 = vmatpush2.msra.mxu0 0.0
        %3849 = vmatprep.mubr.f32.mxu0 0.0
        %3850 = vmatmul.mubr.f32.gmra.mxu0 %v3780
        %v3851 = vpop.f32.mrf.mxu0
        %v3852 = vadd.f32 0.0, %v3851
        %v3853 = vpop.f32.mrf.mxu0
        %3854 = vmatprep.mubr.f32.mxu0 0.0
        %3855 = vmatmul.mubr.f32.gmra.mxu0 %v3783
        %v3856 = vpop.f32.mrf.mxu0
        %v3857 = vadd.f32 0.0, %v3856
        %v3858 = vpop.f32.mrf.mxu0
        %3859 = vdwg.mxu0
        %3862 = vrot.lane.b32.xlu0 %v783, 96
        %v3863 = vpop.permute.xlu0 %3862
        %3864 = vrot.lane.b32.xlu0 %v788, 96
        %v3865 = vpop.permute.xlu0 %3864
        %v3869 = vsel %vm1504, %v3235, 0
        %v3872 = vsel %vm1504, %v3236, 0
        %3874 = vmatprep.subr.mxu0 0.0
        %3875 = vmatpush1.msra.mxu0 0.0
        %3876 = vmatprep.subr.mxu0 0.0
        %3877 = vmatpush1.msra.mxu0 0.0
        %3878 = vmatprep.subr.mxu0 0.0
        %3879 = vmatpush1.msra.mxu0 0.0
        %3880 = vmatprep.subr.mxu0 0.0
        %3881 = vmatpush1.msra.mxu0 0.0
        %3882 = vmatprep.subr.mxu0 0.0
        %3883 = vmatpush1.msra.mxu0 0.0
        %3884 = vmatprep.subr.mxu0 0.0
        %3885 = vmatpush1.msra.mxu0 0.0
        %3886 = vmatprep.subr.mxu0 0.0
        %3887 = vmatpush1.msra.mxu0 0.0
        %3888 = vmatprep.subr.mxu0 0.0
        %3889 = vmatpush1.msra.mxu0 0.0
        %3890 = vmatprep.subr.mxu0 0.0
        %3891 = vmatpush1.msra.mxu0 0.0
        %3892 = vmatprep.subr.mxu0 0.0
        %3893 = vmatpush1.msra.mxu0 0.0
        %3894 = vmatprep.subr.mxu0 0.0
        %3895 = vmatpush1.msra.mxu0 0.0
        %3896 = vmatprep.subr.mxu0 0.0
        %3897 = vmatpush1.msra.mxu0 0.0
        %3898 = vmatprep.subr.mxu0 0.0
        %3899 = vmatpush1.msra.mxu0 0.0
        %3900 = vmatprep.subr.mxu0 0.0
        %3901 = vmatpush1.msra.mxu0 0.0
        %3902 = vmatprep.subr.mxu0 0.0
        %3903 = vmatpush1.msra.mxu0 %v3865
        %3904 = vmatprep.subr.mxu0 0.0
        %3905 = vmatpush1.msra.mxu0 %v3863
        %3906 = vmatprep.subr.mxu0 0.0
        %3907 = vmatpush2.msra.mxu0 0.0
        %3908 = vmatprep.subr.mxu0 0.0
        %3909 = vmatpush2.msra.mxu0 0.0
        %3910 = vmatprep.subr.mxu0 0.0
        %3911 = vmatpush2.msra.mxu0 0.0
        %3912 = vmatprep.subr.mxu0 0.0
        %3913 = vmatpush2.msra.mxu0 0.0
        %3914 = vmatprep.subr.mxu0 0.0
        %3915 = vmatpush2.msra.mxu0 0.0
        %3916 = vmatprep.subr.mxu0 0.0
        %3917 = vmatpush2.msra.mxu0 0.0
        %3918 = vmatprep.subr.mxu0 0.0
        %3919 = vmatpush2.msra.mxu0 0.0
        %3920 = vmatprep.subr.mxu0 0.0
        %3921 = vmatpush2.msra.mxu0 0.0
        %3922 = vmatprep.subr.mxu0 0.0
        %3923 = vmatpush2.msra.mxu0 0.0
        %3924 = vmatprep.subr.mxu0 0.0
        %3925 = vmatpush2.msra.mxu0 0.0
        %3926 = vmatprep.subr.mxu0 0.0
        %3927 = vmatpush2.msra.mxu0 0.0
        %3928 = vmatprep.subr.mxu0 0.0
        %3929 = vmatpush2.msra.mxu0 0.0
        %3930 = vmatprep.subr.mxu0 0.0
        %3931 = vmatpush2.msra.mxu0 0.0
        %3932 = vmatprep.subr.mxu0 0.0
        %3933 = vmatpush2.msra.mxu0 0.0
        %3934 = vmatprep.subr.mxu0 0.0
        %3935 = vmatpush2.msra.mxu0 0.0
        %3936 = vmatprep.subr.mxu0 0.0
        %3937 = vmatpush2.msra.mxu0 0.0
        %3938 = vmatprep.mubr.f32.mxu0 0.0
        %3939 = vmatmul.mubr.f32.gmra.mxu0 %v3869
        %v3940 = vpop.f32.mrf.mxu0
        %v3941 = vadd.f32 0.0, %v3940
        %v3942 = vpop.f32.mrf.mxu0
        %3943 = vmatprep.mubr.f32.mxu0 0.0
        %3944 = vmatmul.mubr.f32.gmra.mxu0 %v3872
        %v3945 = vpop.f32.mrf.mxu0
        %v3946 = vadd.f32 0.0, %v3945
        %v3947 = vpop.f32.mrf.mxu0
        %3948 = vdwg.mxu0
        %v3949 = vld [vmem:[#allocation7 + $0x20] sm:$0xff]
        %v3950 = vld [vmem:[#allocation7 + $0x28] sm:$0xff]
        %v3951 = vld [vmem:[#allocation7 + $0x30] sm:$0xff]
        %v3952 = vld [vmem:[#allocation7 + $0x38] sm:$0xff]
        %v3954 = vsel %vm807, %v3318, 0
        %v3957 = vsel %vm807, %v3323, 0
        %v3960 = vsel %vm807, %v3407, 0
        %v3963 = vsel %vm807, %v3412, 0
        %v3966 = vsel %vm807, %v3496, 0
        %v3969 = vsel %vm807, %v3501, 0
        %v3972 = vsel %vm807, %v3585, 0
        %v3975 = vsel %vm807, %v3590, 0
        %v3978 = vsel %vm807, %v3674, 0
        %v3981 = vsel %vm807, %v3679, 0
        %v3984 = vsel %vm807, %v3763, 0
        %v3987 = vsel %vm807, %v3768, 0
        %v3990 = vsel %vm807, %v3852, 0
        %v3993 = vsel %vm807, %v3857, 0
        %v3996 = vsel %vm807, %v3941, 0
        %v3999 = vsel %vm807, %v3946, 0
        %4001 = vmatprep.subr.mxu0 0.0
        %4002 = vmatpush1.msra.mxu0 0.0
        %4003 = vmatprep.subr.mxu0 0.0
        %4004 = vmatpush1.msra.mxu0 0.0
        %4005 = vmatprep.subr.mxu0 0.0
        %4006 = vmatpush1.msra.mxu0 0.0
        %4007 = vmatprep.subr.mxu0 0.0
        %4008 = vmatpush1.msra.mxu0 0.0
        %4009 = vmatprep.subr.mxu0 0.0
        %4010 = vmatpush1.msra.mxu0 0.0
        %4011 = vmatprep.subr.mxu0 0.0
        %4012 = vmatpush1.msra.mxu0 0.0
        %4013 = vmatprep.subr.mxu0 0.0
        %4014 = vmatpush1.msra.mxu0 0.0
        %4015 = vmatprep.subr.mxu0 0.0
        %4016 = vmatpush1.msra.mxu0 0.0
        %4017 = vmatprep.subr.mxu0 0.0
        %4018 = vmatpush1.msra.mxu0 0.0
        %4019 = vmatprep.subr.mxu0 0.0
        %4020 = vmatpush1.msra.mxu0 0.0
        %4021 = vmatprep.subr.mxu0 0.0
        %4022 = vmatpush1.msra.mxu0 0.0
        %4023 = vmatprep.subr.mxu0 0.0
        %4024 = vmatpush1.msra.mxu0 0.0
        %4025 = vmatprep.subr.mxu0 0.0
        %4026 = vmatpush1.msra.mxu0 %v3952
        %4027 = vmatprep.subr.mxu0 0.0
        %4028 = vmatpush1.msra.mxu0 %v3951
        %4029 = vmatprep.subr.mxu0 0.0
        %4030 = vmatpush1.msra.mxu0 %v3950
        %4031 = vmatprep.subr.mxu0 0.0
        %4032 = vmatpush1.msra.mxu0 %v3949
        %4033 = vmatprep.subr.mxu0 0.0
        %4034 = vmatpush2.msra.mxu0 0.0
        %4035 = vmatprep.subr.mxu0 0.0
        %4036 = vmatpush2.msra.mxu0 0.0
        %4037 = vmatprep.subr.mxu0 0.0
        %4038 = vmatpush2.msra.mxu0 0.0
        %4039 = vmatprep.subr.mxu0 0.0
        %4040 = vmatpush2.msra.mxu0 0.0
        %4041 = vmatprep.subr.mxu0 0.0
        %4042 = vmatpush2.msra.mxu0 0.0
        %4043 = vmatprep.subr.mxu0 0.0
        %4044 = vmatpush2.msra.mxu0 0.0
        %4045 = vmatprep.subr.mxu0 0.0
        %4046 = vmatpush2.msra.mxu0 0.0
        %4047 = vmatprep.subr.mxu0 0.0
        %4048 = vmatpush2.msra.mxu0 0.0
        %4049 = vmatprep.subr.mxu0 0.0
        %4050 = vmatpush2.msra.mxu0 0.0
        %4051 = vmatprep.subr.mxu0 0.0
        %4052 = vmatpush2.msra.mxu0 0.0
        %4053 = vmatprep.subr.mxu0 0.0
        %4054 = vmatpush2.msra.mxu0 0.0
        %4055 = vmatprep.subr.mxu0 0.0
        %4056 = vmatpush2.msra.mxu0 0.0
        %4057 = vmatprep.subr.mxu0 0.0
        %4058 = vmatpush2.msra.mxu0 0.0
        %4059 = vmatprep.subr.mxu0 0.0
        %4060 = vmatpush2.msra.mxu0 0.0
        %4061 = vmatprep.subr.mxu0 0.0
        %4062 = vmatpush2.msra.mxu0 0.0
        %4063 = vmatprep.subr.mxu0 0.0
        %4064 = vmatpush2.msra.mxu0 0.0
        %4065 = vmatprep.mubr.f32.mxu0 0.0
        %4066 = vmatmul.mubr.f32.gmra.mxu0 %v3954
        %v4067 = vpop.f32.mrf.mxu0
        %v4068 = vadd.f32 0.0, %v4067
        %v4069 = vpop.f32.mrf.mxu0
        %4070 = vmatprep.mubr.f32.mxu0 0.0
        %4071 = vmatmul.mubr.f32.gmra.mxu0 %v3957
        %v4072 = vpop.f32.mrf.mxu0
        %v4073 = vadd.f32 0.0, %v4072
        %v4074 = vpop.f32.mrf.mxu0
        %4075 = vmatprep.mubr.f32.mxu0 0.0
        %4076 = vmatmul.mubr.f32.gmra.mxu0 %v3960
        %v4077 = vpop.f32.mrf.mxu0
        %v4078 = vadd.f32 0.0, %v4077
        %v4079 = vpop.f32.mrf.mxu0
        %4080 = vmatprep.mubr.f32.mxu0 0.0
        %4081 = vmatmul.mubr.f32.gmra.mxu0 %v3963
        %v4082 = vpop.f32.mrf.mxu0
        %v4083 = vadd.f32 0.0, %v4082
        %v4084 = vpop.f32.mrf.mxu0
        %4085 = vmatprep.mubr.f32.mxu0 0.0
        %4086 = vmatmul.mubr.f32.gmra.mxu0 %v3966
        %v4087 = vpop.f32.mrf.mxu0
        %v4088 = vadd.f32 0.0, %v4087
        %v4089 = vpop.f32.mrf.mxu0
        %4090 = vmatprep.mubr.f32.mxu0 0.0
        %4091 = vmatmul.mubr.f32.gmra.mxu0 %v3969
        %v4092 = vpop.f32.mrf.mxu0
        %v4093 = vadd.f32 0.0, %v4092
        %v4094 = vpop.f32.mrf.mxu0
        %4095 = vmatprep.mubr.f32.mxu0 0.0
        %4096 = vmatmul.mubr.f32.gmra.mxu0 %v3972
        %v4097 = vpop.f32.mrf.mxu0
        %v4098 = vadd.f32 0.0, %v4097
        %v4099 = vpop.f32.mrf.mxu0
        %4100 = vmatprep.mubr.f32.mxu0 0.0
        %4101 = vmatmul.mubr.f32.gmra.mxu0 %v3975
        %v4102 = vpop.f32.mrf.mxu0
        %v4103 = vadd.f32 0.0, %v4102
        %v4104 = vpop.f32.mrf.mxu0
        %4105 = vmatprep.mubr.f32.mxu0 0.0
        %4106 = vmatmul.mubr.f32.gmra.mxu0 %v3978
        %v4107 = vpop.f32.mrf.mxu0
        %v4108 = vadd.f32 0.0, %v4107
        %v4109 = vpop.f32.mrf.mxu0
        %4110 = vmatprep.mubr.f32.mxu0 0.0
        %4111 = vmatmul.mubr.f32.gmra.mxu0 %v3981
        %v4112 = vpop.f32.mrf.mxu0
        %v4113 = vadd.f32 0.0, %v4112
        %v4114 = vpop.f32.mrf.mxu0
        %4115 = vmatprep.mubr.f32.mxu0 0.0
        %4116 = vmatmul.mubr.f32.gmra.mxu0 %v3984
        %v4117 = vpop.f32.mrf.mxu0
        %v4118 = vadd.f32 0.0, %v4117
        %v4119 = vpop.f32.mrf.mxu0
        %4120 = vmatprep.mubr.f32.mxu0 0.0
        %4121 = vmatmul.mubr.f32.gmra.mxu0 %v3987
        %v4122 = vpop.f32.mrf.mxu0
        %v4123 = vadd.f32 0.0, %v4122
        %v4124 = vpop.f32.mrf.mxu0
        %4125 = vmatprep.mubr.f32.mxu0 0.0
        %4126 = vmatmul.mubr.f32.gmra.mxu0 %v3990
        %v4127 = vpop.f32.mrf.mxu0
        %v4128 = vadd.f32 0.0, %v4127
        %v4129 = vpop.f32.mrf.mxu0
        %4130 = vmatprep.mubr.f32.mxu0 0.0
        %4131 = vmatmul.mubr.f32.gmra.mxu0 %v3993
        %v4132 = vpop.f32.mrf.mxu0
        %v4133 = vadd.f32 0.0, %v4132
        %v4134 = vpop.f32.mrf.mxu0
        %4135 = vmatprep.mubr.f32.mxu0 0.0
        %4136 = vmatmul.mubr.f32.gmra.mxu0 %v3996
        %v4137 = vpop.f32.mrf.mxu0
        %v4138 = vadd.f32 0.0, %v4137
        %v4139 = vpop.f32.mrf.mxu0
        %4140 = vmatprep.mubr.f32.mxu0 0.0
        %4141 = vmatmul.mubr.f32.gmra.mxu0 %v3999
        %v4142 = vpop.f32.mrf.mxu0
        %v4143 = vadd.f32 0.0, %v4142
        %v4144 = vpop.f32.mrf.mxu0
        %4145 = vdwg.mxu0
        %v4147 = vsel %vm807, %v1754, 0
        %v4150 = vsel %vm807, %v1759, 0
        %v4153 = vsel %vm807, %v1835, 0
        %v4156 = vsel %vm807, %v1840, 0
        %v4159 = vsel %vm807, %v1916, 0
        %v4162 = vsel %vm807, %v1921, 0
        %v4165 = vsel %vm807, %v1997, 0
        %v4168 = vsel %vm807, %v2002, 0
        %v4171 = vsel %vm807, %v2078, 0
        %v4174 = vsel %vm807, %v2083, 0
        %v4177 = vsel %vm807, %v2159, 0
        %v4180 = vsel %vm807, %v2164, 0
        %v4183 = vsel %vm807, %v2240, 0
        %v4186 = vsel %vm807, %v2245, 0
        %v4189 = vsel %vm807, %v2321, 0
        %v4192 = vsel %vm807, %v2326, 0
        %4194 = vmatprep.subr.mxu0 0.0
        %4195 = vmatpush1.msra.mxu0 0.0
        %4196 = vmatprep.subr.mxu0 0.0
        %4197 = vmatpush1.msra.mxu0 0.0
        %4198 = vmatprep.subr.mxu0 0.0
        %4199 = vmatpush1.msra.mxu0 0.0
        %4200 = vmatprep.subr.mxu0 0.0
        %4201 = vmatpush1.msra.mxu0 0.0
        %4202 = vmatprep.subr.mxu0 0.0
        %4203 = vmatpush1.msra.mxu0 0.0
        %4204 = vmatprep.subr.mxu0 0.0
        %4205 = vmatpush1.msra.mxu0 0.0
        %4206 = vmatprep.subr.mxu0 0.0
        %4207 = vmatpush1.msra.mxu0 0.0
        %4208 = vmatprep.subr.mxu0 0.0
        %4209 = vmatpush1.msra.mxu0 0.0
        %4210 = vmatprep.subr.mxu0 0.0
        %4211 = vmatpush1.msra.mxu0 0.0
        %4212 = vmatprep.subr.mxu0 0.0
        %4213 = vmatpush1.msra.mxu0 0.0
        %4214 = vmatprep.subr.mxu0 0.0
        %4215 = vmatpush1.msra.mxu0 0.0
        %4216 = vmatprep.subr.mxu0 0.0
        %4217 = vmatpush1.msra.mxu0 0.0
        %4218 = vmatprep.subr.mxu0 0.0
        %4219 = vmatpush1.msra.mxu0 %v2332
        %4220 = vmatprep.subr.mxu0 0.0
        %4221 = vmatpush1.msra.mxu0 %v2331
        %4222 = vmatprep.subr.mxu0 0.0
        %4223 = vmatpush1.msra.mxu0 %v2330
        %4224 = vmatprep.subr.mxu0 0.0
        %4225 = vmatpush1.msra.mxu0 %v2329
        %4226 = vmatprep.subr.mxu0 0.0
        %4227 = vmatpush2.msra.mxu0 0.0
        %4228 = vmatprep.subr.mxu0 0.0
        %4229 = vmatpush2.msra.mxu0 0.0
        %4230 = vmatprep.subr.mxu0 0.0
        %4231 = vmatpush2.msra.mxu0 0.0
        %4232 = vmatprep.subr.mxu0 0.0
        %4233 = vmatpush2.msra.mxu0 0.0
        %4234 = vmatprep.subr.mxu0 0.0
        %4235 = vmatpush2.msra.mxu0 0.0
        %4236 = vmatprep.subr.mxu0 0.0
        %4237 = vmatpush2.msra.mxu0 0.0
        %4238 = vmatprep.subr.mxu0 0.0
        %4239 = vmatpush2.msra.mxu0 0.0
        %4240 = vmatprep.subr.mxu0 0.0
        %4241 = vmatpush2.msra.mxu0 0.0
        %4242 = vmatprep.subr.mxu0 0.0
        %4243 = vmatpush2.msra.mxu0 0.0
        %4244 = vmatprep.subr.mxu0 0.0
        %4245 = vmatpush2.msra.mxu0 0.0
        %4246 = vmatprep.subr.mxu0 0.0
        %4247 = vmatpush2.msra.mxu0 0.0
        %4248 = vmatprep.subr.mxu0 0.0
        %4249 = vmatpush2.msra.mxu0 0.0
        %4250 = vmatprep.subr.mxu0 0.0
        %4251 = vmatpush2.msra.mxu0 0.0
        %4252 = vmatprep.subr.mxu0 0.0
        %4253 = vmatpush2.msra.mxu0 0.0
        %4254 = vmatprep.subr.mxu0 0.0
        %4255 = vmatpush2.msra.mxu0 0.0
        %4256 = vmatprep.subr.mxu0 0.0
        %4257 = vmatpush2.msra.mxu0 0.0
        %4258 = vmatprep.mubr.f32.mxu0 0.0
        %4259 = vmatmul.mubr.f32.gmra.mxu0 %v4147
        %v4260 = vpop.f32.mrf.mxu0
        %v4261 = vadd.f32 %v4068, %v4260
        %v4262 = vpop.f32.mrf.mxu0
        %4263 = vmatprep.mubr.f32.mxu0 0.0
        %4264 = vmatmul.mubr.f32.gmra.mxu0 %v4150
        %v4265 = vpop.f32.mrf.mxu0
        %v4266 = vadd.f32 %v4073, %v4265
        %v4267 = vpop.f32.mrf.mxu0
        %4268 = vmatprep.mubr.f32.mxu0 0.0
        %4269 = vmatmul.mubr.f32.gmra.mxu0 %v4153
        %v4270 = vpop.f32.mrf.mxu0
        %v4271 = vadd.f32 %v4078, %v4270
        %v4272 = vpop.f32.mrf.mxu0
        %4273 = vmatprep.mubr.f32.mxu0 0.0
        %4274 = vmatmul.mubr.f32.gmra.mxu0 %v4156
        %v4275 = vpop.f32.mrf.mxu0
        %v4276 = vadd.f32 %v4083, %v4275
        %v4277 = vpop.f32.mrf.mxu0
        %4278 = vmatprep.mubr.f32.mxu0 0.0
        %4279 = vmatmul.mubr.f32.gmra.mxu0 %v4159
        %v4280 = vpop.f32.mrf.mxu0
        %v4281 = vadd.f32 %v4088, %v4280
        %v4282 = vpop.f32.mrf.mxu0
        %4283 = vmatprep.mubr.f32.mxu0 0.0
        %4284 = vmatmul.mubr.f32.gmra.mxu0 %v4162
        %v4285 = vpop.f32.mrf.mxu0
        %v4286 = vadd.f32 %v4093, %v4285
        %v4287 = vpop.f32.mrf.mxu0
        %4288 = vmatprep.mubr.f32.mxu0 0.0
        %4289 = vmatmul.mubr.f32.gmra.mxu0 %v4165
        %v4290 = vpop.f32.mrf.mxu0
        %v4291 = vadd.f32 %v4098, %v4290
        %v4292 = vpop.f32.mrf.mxu0
        %4293 = vmatprep.mubr.f32.mxu0 0.0
        %4294 = vmatmul.mubr.f32.gmra.mxu0 %v4168
        %v4295 = vpop.f32.mrf.mxu0
        %v4296 = vadd.f32 %v4103, %v4295
        %v4297 = vpop.f32.mrf.mxu0
        %4298 = vmatprep.mubr.f32.mxu0 0.0
        %4299 = vmatmul.mubr.f32.gmra.mxu0 %v4171
        %v4300 = vpop.f32.mrf.mxu0
        %v4301 = vadd.f32 %v4108, %v4300
        %v4302 = vpop.f32.mrf.mxu0
        %4303 = vmatprep.mubr.f32.mxu0 0.0
        %4304 = vmatmul.mubr.f32.gmra.mxu0 %v4174
        %v4305 = vpop.f32.mrf.mxu0
        %v4306 = vadd.f32 %v4113, %v4305
        %v4307 = vpop.f32.mrf.mxu0
        %4308 = vmatprep.mubr.f32.mxu0 0.0
        %4309 = vmatmul.mubr.f32.gmra.mxu0 %v4177
        %v4310 = vpop.f32.mrf.mxu0
        %v4311 = vadd.f32 %v4118, %v4310
        %v4312 = vpop.f32.mrf.mxu0
        %4313 = vmatprep.mubr.f32.mxu0 0.0
        %4314 = vmatmul.mubr.f32.gmra.mxu0 %v4180
        %v4315 = vpop.f32.mrf.mxu0
        %v4316 = vadd.f32 %v4123, %v4315
        %v4317 = vpop.f32.mrf.mxu0
        %4318 = vmatprep.mubr.f32.mxu0 0.0
        %4319 = vmatmul.mubr.f32.gmra.mxu0 %v4183
        %v4320 = vpop.f32.mrf.mxu0
        %v4321 = vadd.f32 %v4128, %v4320
        %v4322 = vpop.f32.mrf.mxu0
        %4323 = vmatprep.mubr.f32.mxu0 0.0
        %4324 = vmatmul.mubr.f32.gmra.mxu0 %v4186
        %v4325 = vpop.f32.mrf.mxu0
        %v4326 = vadd.f32 %v4133, %v4325
        %v4327 = vpop.f32.mrf.mxu0
        %4328 = vmatprep.mubr.f32.mxu0 0.0
        %4329 = vmatmul.mubr.f32.gmra.mxu0 %v4189
        %v4330 = vpop.f32.mrf.mxu0
        %v4331 = vadd.f32 %v4138, %v4330
        %v4332 = vpop.f32.mrf.mxu0
        %4333 = vmatprep.mubr.f32.mxu0 0.0
        %4334 = vmatmul.mubr.f32.gmra.mxu0 %v4192
        %v4335 = vpop.f32.mrf.mxu0
        %v4336 = vadd.f32 %v4143, %v4335
        %v4337 = vpop.f32.mrf.mxu0
        %4338 = vdwg.mxu0
        %4339 = vrot.lane.b32.xlu0 %v791, 64
        %v4340 = vpop.permute.xlu0 %4339
        %4341 = vrot.lane.b32.xlu0 %v792, 64
        %v4342 = vpop.permute.xlu0 %4341
        %4343 = vrot.lane.b32.xlu0 %v554, 64
        %v4344 = vpop.permute.xlu0 %4343
        %4345 = vrot.lane.b32.xlu0 %v560, 64
        %v4346 = vpop.permute.xlu0 %4345
        %v4347 = vsel %vm807, %v4340, 0
        %v4349 = vsel %vm807, %v4342, 0
        %v4351 = vsel %vm807, %v4344, 0
        %v4353 = vsel %vm807, %v4346, 0
        %4355 = vmatprep.subr.mxu0 0.0
        %4356 = vmatpush1.xpose.msra.mxu0 0.0
        %4357 = vmatprep.subr.mxu0 0.0
        %4358 = vmatpush1.xpose.msra.mxu0 0.0
        %4359 = vmatprep.subr.mxu0 0.0
        %4360 = vmatpush1.xpose.msra.mxu0 0.0
        %4361 = vmatprep.subr.mxu0 0.0
        %4362 = vmatpush1.xpose.msra.mxu0 0.0
        %4363 = vmatprep.subr.mxu0 0.0
        %4364 = vmatpush1.xpose.msra.mxu0 0.0
        %4365 = vmatprep.subr.mxu0 0.0
        %4366 = vmatpush1.xpose.msra.mxu0 0.0
        %4367 = vmatprep.subr.mxu0 0.0
        %4368 = vmatpush1.xpose.msra.mxu0 0.0
        %4369 = vmatprep.subr.mxu0 0.0
        %4370 = vmatpush1.xpose.msra.mxu0 0.0
        %4371 = vmatprep.subr.mxu0 0.0
        %4372 = vmatpush1.xpose.msra.mxu0 0.0
        %4373 = vmatprep.subr.mxu0 0.0
        %4374 = vmatpush1.xpose.msra.mxu0 0.0
        %4375 = vmatprep.subr.mxu0 0.0
        %4376 = vmatpush1.xpose.msra.mxu0 0.0
        %4377 = vmatprep.subr.mxu0 0.0
        %4378 = vmatpush1.xpose.msra.mxu0 0.0
        %4379 = vmatprep.subr.mxu0 0.0
        %4380 = vmatpush1.xpose.msra.mxu0 0.0
        %4381 = vmatprep.subr.mxu0 0.0
        %4382 = vmatpush1.xpose.msra.mxu0 0.0
        %4383 = vmatprep.subr.mxu0 0.0
        %4384 = vmatpush1.xpose.msra.mxu0 %v4353
        %4385 = vmatprep.subr.mxu0 0.0
        %4386 = vmatpush1.xpose.msra.mxu0 %v4351
        %4387 = vmatprep.subr.mxu0 0.0
        %4388 = vmatpush2.xpose.msra.mxu0 0.0
        %4389 = vmatprep.subr.mxu0 0.0
        %4390 = vmatpush2.xpose.msra.mxu0 0.0
        %4391 = vmatprep.subr.mxu0 0.0
        %4392 = vmatpush2.xpose.msra.mxu0 0.0
        %4393 = vmatprep.subr.mxu0 0.0
        %4394 = vmatpush2.xpose.msra.mxu0 0.0
        %4395 = vmatprep.subr.mxu0 0.0
        %4396 = vmatpush2.xpose.msra.mxu0 0.0
        %4397 = vmatprep.subr.mxu0 0.0
        %4398 = vmatpush2.xpose.msra.mxu0 0.0
        %4399 = vmatprep.subr.mxu0 0.0
        %4400 = vmatpush2.xpose.msra.mxu0 0.0
        %4401 = vmatprep.subr.mxu0 0.0
        %4402 = vmatpush2.xpose.msra.mxu0 0.0
        %4403 = vmatprep.subr.mxu0 0.0
        %4404 = vmatpush2.xpose.msra.mxu0 0.0
        %4405 = vmatprep.subr.mxu0 0.0
        %4406 = vmatpush2.xpose.msra.mxu0 0.0
        %4407 = vmatprep.subr.mxu0 0.0
        %4408 = vmatpush2.xpose.msra.mxu0 0.0
        %4409 = vmatprep.subr.mxu0 0.0
        %4410 = vmatpush2.xpose.msra.mxu0 0.0
        %4411 = vmatprep.subr.mxu0 0.0
        %4412 = vmatpush2.xpose.msra.mxu0 0.0
        %4413 = vmatprep.subr.mxu0 0.0
        %4414 = vmatpush2.xpose.msra.mxu0 0.0
        %4415 = vmatprep.subr.mxu0 0.0
        %4416 = vmatpush2.xpose.msra.mxu0 0.0
        %4417 = vmatprep.subr.mxu0 0.0
        %4418 = vmatpush2.xpose.msra.mxu0 0.0
        %4419 = vmatprep.mubr.f32.mxu0 0.0
        %4420 = vmatmul.mubr.f32.gmra.mxu0 %v4347
        %v4421 = vpop.f32.mrf.mxu0
        %v4422 = vadd.f32 0.0, %v4421
        %v4423 = vpop.f32.mrf.mxu0
        %4424 = vmatprep.mubr.f32.mxu0 0.0
        %4425 = vmatmul.mubr.f32.gmra.mxu0 %v4349
        %v4426 = vpop.f32.mrf.mxu0
        %v4427 = vadd.f32 0.0, %v4426
        %v4428 = vpop.f32.mrf.mxu0
        %4429 = vdwg.mxu0
        %4430 = vrot.lane.b32.xlu0 %v793, 64
        %v4431 = vpop.permute.xlu0 %4430
        %4432 = vrot.lane.b32.xlu0 %v794, 64
        %v4433 = vpop.permute.xlu0 %4432
        %4434 = vrot.lane.b32.xlu0 %v566, 64
        %v4435 = vpop.permute.xlu0 %4434
        %4436 = vrot.lane.b32.xlu0 %v572, 64
        %v4437 = vpop.permute.xlu0 %4436
        %v4438 = vsel %vm807, %v4431, 0
        %v4440 = vsel %vm807, %v4433, 0
        %v4442 = vsel %vm807, %v4435, 0
        %v4444 = vsel %vm807, %v4437, 0
        %4446 = vmatprep.subr.mxu0 0.0
        %4447 = vmatpush1.xpose.msra.mxu0 0.0
        %4448 = vmatprep.subr.mxu0 0.0
        %4449 = vmatpush1.xpose.msra.mxu0 0.0
        %4450 = vmatprep.subr.mxu0 0.0
        %4451 = vmatpush1.xpose.msra.mxu0 0.0
        %4452 = vmatprep.subr.mxu0 0.0
        %4453 = vmatpush1.xpose.msra.mxu0 0.0
        %4454 = vmatprep.subr.mxu0 0.0
        %4455 = vmatpush1.xpose.msra.mxu0 0.0
        %4456 = vmatprep.subr.mxu0 0.0
        %4457 = vmatpush1.xpose.msra.mxu0 0.0
        %4458 = vmatprep.subr.mxu0 0.0
        %4459 = vmatpush1.xpose.msra.mxu0 0.0
        %4460 = vmatprep.subr.mxu0 0.0
        %4461 = vmatpush1.xpose.msra.mxu0 0.0
        %4462 = vmatprep.subr.mxu0 0.0
        %4463 = vmatpush1.xpose.msra.mxu0 0.0
        %4464 = vmatprep.subr.mxu0 0.0
        %4465 = vmatpush1.xpose.msra.mxu0 0.0
        %4466 = vmatprep.subr.mxu0 0.0
        %4467 = vmatpush1.xpose.msra.mxu0 0.0
        %4468 = vmatprep.subr.mxu0 0.0
        %4469 = vmatpush1.xpose.msra.mxu0 0.0
        %4470 = vmatprep.subr.mxu0 0.0
        %4471 = vmatpush1.xpose.msra.mxu0 0.0
        %4472 = vmatprep.subr.mxu0 0.0
        %4473 = vmatpush1.xpose.msra.mxu0 0.0
        %4474 = vmatprep.subr.mxu0 0.0
        %4475 = vmatpush1.xpose.msra.mxu0 %v4444
        %4476 = vmatprep.subr.mxu0 0.0
        %4477 = vmatpush1.xpose.msra.mxu0 %v4442
        %4478 = vmatprep.subr.mxu0 0.0
        %4479 = vmatpush2.xpose.msra.mxu0 0.0
        %4480 = vmatprep.subr.mxu0 0.0
        %4481 = vmatpush2.xpose.msra.mxu0 0.0
        %4482 = vmatprep.subr.mxu0 0.0
        %4483 = vmatpush2.xpose.msra.mxu0 0.0
        %4484 = vmatprep.subr.mxu0 0.0
        %4485 = vmatpush2.xpose.msra.mxu0 0.0
        %4486 = vmatprep.subr.mxu0 0.0
        %4487 = vmatpush2.xpose.msra.mxu0 0.0
        %4488 = vmatprep.subr.mxu0 0.0
        %4489 = vmatpush2.xpose.msra.mxu0 0.0
        %4490 = vmatprep.subr.mxu0 0.0
        %4491 = vmatpush2.xpose.msra.mxu0 0.0
        %4492 = vmatprep.subr.mxu0 0.0
        %4493 = vmatpush2.xpose.msra.mxu0 0.0
        %4494 = vmatprep.subr.mxu0 0.0
        %4495 = vmatpush2.xpose.msra.mxu0 0.0
        %4496 = vmatprep.subr.mxu0 0.0
        %4497 = vmatpush2.xpose.msra.mxu0 0.0
        %4498 = vmatprep.subr.mxu0 0.0
        %4499 = vmatpush2.xpose.msra.mxu0 0.0
        %4500 = vmatprep.subr.mxu0 0.0
        %4501 = vmatpush2.xpose.msra.mxu0 0.0
        %4502 = vmatprep.subr.mxu0 0.0
        %4503 = vmatpush2.xpose.msra.mxu0 0.0
        %4504 = vmatprep.subr.mxu0 0.0
        %4505 = vmatpush2.xpose.msra.mxu0 0.0
        %4506 = vmatprep.subr.mxu0 0.0
        %4507 = vmatpush2.xpose.msra.mxu0 0.0
        %4508 = vmatprep.subr.mxu0 0.0
        %4509 = vmatpush2.xpose.msra.mxu0 0.0
        %4510 = vmatprep.mubr.f32.mxu0 0.0
        %4511 = vmatmul.mubr.f32.gmra.mxu0 %v4438
        %v4512 = vpop.f32.mrf.mxu0
        %v4513 = vadd.f32 0.0, %v4512
        %v4514 = vpop.f32.mrf.mxu0
        %4515 = vmatprep.mubr.f32.mxu0 0.0
        %4516 = vmatmul.mubr.f32.gmra.mxu0 %v4440
        %v4517 = vpop.f32.mrf.mxu0
        %v4518 = vadd.f32 0.0, %v4517
        %v4519 = vpop.f32.mrf.mxu0
        %4520 = vdwg.mxu0
        %4521 = vrot.lane.b32.xlu0 %v795, 64
        %v4522 = vpop.permute.xlu0 %4521
        %4523 = vrot.lane.b32.xlu0 %v796, 64
        %v4524 = vpop.permute.xlu0 %4523
        %4525 = vrot.lane.b32.xlu0 %v578, 64
        %v4526 = vpop.permute.xlu0 %4525
        %4527 = vrot.lane.b32.xlu0 %v584, 64
        %v4528 = vpop.permute.xlu0 %4527
        %v4529 = vsel %vm807, %v4522, 0
        %v4531 = vsel %vm807, %v4524, 0
        %v4533 = vsel %vm807, %v4526, 0
        %v4535 = vsel %vm807, %v4528, 0
        %4537 = vmatprep.subr.mxu0 0.0
        %4538 = vmatpush1.xpose.msra.mxu0 0.0
        %4539 = vmatprep.subr.mxu0 0.0
        %4540 = vmatpush1.xpose.msra.mxu0 0.0
        %4541 = vmatprep.subr.mxu0 0.0
        %4542 = vmatpush1.xpose.msra.mxu0 0.0
        %4543 = vmatprep.subr.mxu0 0.0
        %4544 = vmatpush1.xpose.msra.mxu0 0.0
        %4545 = vmatprep.subr.mxu0 0.0
        %4546 = vmatpush1.xpose.msra.mxu0 0.0
        %4547 = vmatprep.subr.mxu0 0.0
        %4548 = vmatpush1.xpose.msra.mxu0 0.0
        %4549 = vmatprep.subr.mxu0 0.0
        %4550 = vmatpush1.xpose.msra.mxu0 0.0
        %4551 = vmatprep.subr.mxu0 0.0
        %4552 = vmatpush1.xpose.msra.mxu0 0.0
        %4553 = vmatprep.subr.mxu0 0.0
        %4554 = vmatpush1.xpose.msra.mxu0 0.0
        %4555 = vmatprep.subr.mxu0 0.0
        %4556 = vmatpush1.xpose.msra.mxu0 0.0
        %4557 = vmatprep.subr.mxu0 0.0
        %4558 = vmatpush1.xpose.msra.mxu0 0.0
        %4559 = vmatprep.subr.mxu0 0.0
        %4560 = vmatpush1.xpose.msra.mxu0 0.0
        %4561 = vmatprep.subr.mxu0 0.0
        %4562 = vmatpush1.xpose.msra.mxu0 0.0
        %4563 = vmatprep.subr.mxu0 0.0
        %4564 = vmatpush1.xpose.msra.mxu0 0.0
        %4565 = vmatprep.subr.mxu0 0.0
        %4566 = vmatpush1.xpose.msra.mxu0 %v4535
        %4567 = vmatprep.subr.mxu0 0.0
        %4568 = vmatpush1.xpose.msra.mxu0 %v4533
        %4569 = vmatprep.subr.mxu0 0.0
        %4570 = vmatpush2.xpose.msra.mxu0 0.0
        %4571 = vmatprep.subr.mxu0 0.0
        %4572 = vmatpush2.xpose.msra.mxu0 0.0
        %4573 = vmatprep.subr.mxu0 0.0
        %4574 = vmatpush2.xpose.msra.mxu0 0.0
        %4575 = vmatprep.subr.mxu0 0.0
        %4576 = vmatpush2.xpose.msra.mxu0 0.0
        %4577 = vmatprep.subr.mxu0 0.0
        %4578 = vmatpush2.xpose.msra.mxu0 0.0
        %4579 = vmatprep.subr.mxu0 0.0
        %4580 = vmatpush2.xpose.msra.mxu0 0.0
        %4581 = vmatprep.subr.mxu0 0.0
        %4582 = vmatpush2.xpose.msra.mxu0 0.0
        %4583 = vmatprep.subr.mxu0 0.0
        %4584 = vmatpush2.xpose.msra.mxu0 0.0
        %4585 = vmatprep.subr.mxu0 0.0
        %4586 = vmatpush2.xpose.msra.mxu0 0.0
        %4587 = vmatprep.subr.mxu0 0.0
        %4588 = vmatpush2.xpose.msra.mxu0 0.0
        %4589 = vmatprep.subr.mxu0 0.0
        %4590 = vmatpush2.xpose.msra.mxu0 0.0
        %4591 = vmatprep.subr.mxu0 0.0
        %4592 = vmatpush2.xpose.msra.mxu0 0.0
        %4593 = vmatprep.subr.mxu0 0.0
        %4594 = vmatpush2.xpose.msra.mxu0 0.0
        %4595 = vmatprep.subr.mxu0 0.0
        %4596 = vmatpush2.xpose.msra.mxu0 0.0
        %4597 = vmatprep.subr.mxu0 0.0
        %4598 = vmatpush2.xpose.msra.mxu0 0.0
        %4599 = vmatprep.subr.mxu0 0.0
        %4600 = vmatpush2.xpose.msra.mxu0 0.0
        %4601 = vmatprep.mubr.f32.mxu0 0.0
        %4602 = vmatmul.mubr.f32.gmra.mxu0 %v4529
        %v4603 = vpop.f32.mrf.mxu0
        %v4604 = vadd.f32 0.0, %v4603
        %v4605 = vpop.f32.mrf.mxu0
        %4606 = vmatprep.mubr.f32.mxu0 0.0
        %4607 = vmatmul.mubr.f32.gmra.mxu0 %v4531
        %v4608 = vpop.f32.mrf.mxu0
        %v4609 = vadd.f32 0.0, %v4608
        %v4610 = vpop.f32.mrf.mxu0
        %4611 = vdwg.mxu0
        %4612 = vrot.lane.b32.xlu0 %v797, 64
        %v4613 = vpop.permute.xlu0 %4612
        %4614 = vrot.lane.b32.xlu0 %v798, 64
        %v4615 = vpop.permute.xlu0 %4614
        %4616 = vrot.lane.b32.xlu0 %v590, 64
        %v4617 = vpop.permute.xlu0 %4616
        %4618 = vrot.lane.b32.xlu0 %v596, 64
        %v4619 = vpop.permute.xlu0 %4618
        %v4620 = vsel %vm807, %v4613, 0
        %v4622 = vsel %vm807, %v4615, 0
        %v4624 = vsel %vm807, %v4617, 0
        %v4626 = vsel %vm807, %v4619, 0
        %4628 = vmatprep.subr.mxu0 0.0
        %4629 = vmatpush1.xpose.msra.mxu0 0.0
        %4630 = vmatprep.subr.mxu0 0.0
        %4631 = vmatpush1.xpose.msra.mxu0 0.0
        %4632 = vmatprep.subr.mxu0 0.0
        %4633 = vmatpush1.xpose.msra.mxu0 0.0
        %4634 = vmatprep.subr.mxu0 0.0
        %4635 = vmatpush1.xpose.msra.mxu0 0.0
        %4636 = vmatprep.subr.mxu0 0.0
        %4637 = vmatpush1.xpose.msra.mxu0 0.0
        %4638 = vmatprep.subr.mxu0 0.0
        %4639 = vmatpush1.xpose.msra.mxu0 0.0
        %4640 = vmatprep.subr.mxu0 0.0
        %4641 = vmatpush1.xpose.msra.mxu0 0.0
        %4642 = vmatprep.subr.mxu0 0.0
        %4643 = vmatpush1.xpose.msra.mxu0 0.0
        %4644 = vmatprep.subr.mxu0 0.0
        %4645 = vmatpush1.xpose.msra.mxu0 0.0
        %4646 = vmatprep.subr.mxu0 0.0
        %4647 = vmatpush1.xpose.msra.mxu0 0.0
        %4648 = vmatprep.subr.mxu0 0.0
        %4649 = vmatpush1.xpose.msra.mxu0 0.0
        %4650 = vmatprep.subr.mxu0 0.0
        %4651 = vmatpush1.xpose.msra.mxu0 0.0
        %4652 = vmatprep.subr.mxu0 0.0
        %4653 = vmatpush1.xpose.msra.mxu0 0.0
        %4654 = vmatprep.subr.mxu0 0.0
        %4655 = vmatpush1.xpose.msra.mxu0 0.0
        %4656 = vmatprep.subr.mxu0 0.0
        %4657 = vmatpush1.xpose.msra.mxu0 %v4626
        %4658 = vmatprep.subr.mxu0 0.0
        %4659 = vmatpush1.xpose.msra.mxu0 %v4624
        %4660 = vmatprep.subr.mxu0 0.0
        %4661 = vmatpush2.xpose.msra.mxu0 0.0
        %4662 = vmatprep.subr.mxu0 0.0
        %4663 = vmatpush2.xpose.msra.mxu0 0.0
        %4664 = vmatprep.subr.mxu0 0.0
        %4665 = vmatpush2.xpose.msra.mxu0 0.0
        %4666 = vmatprep.subr.mxu0 0.0
        %4667 = vmatpush2.xpose.msra.mxu0 0.0
        %4668 = vmatprep.subr.mxu0 0.0
        %4669 = vmatpush2.xpose.msra.mxu0 0.0
        %4670 = vmatprep.subr.mxu0 0.0
        %4671 = vmatpush2.xpose.msra.mxu0 0.0
        %4672 = vmatprep.subr.mxu0 0.0
        %4673 = vmatpush2.xpose.msra.mxu0 0.0
        %4674 = vmatprep.subr.mxu0 0.0
        %4675 = vmatpush2.xpose.msra.mxu0 0.0
        %4676 = vmatprep.subr.mxu0 0.0
        %4677 = vmatpush2.xpose.msra.mxu0 0.0
        %4678 = vmatprep.subr.mxu0 0.0
        %4679 = vmatpush2.xpose.msra.mxu0 0.0
        %4680 = vmatprep.subr.mxu0 0.0
        %4681 = vmatpush2.xpose.msra.mxu0 0.0
        %4682 = vmatprep.subr.mxu0 0.0
        %4683 = vmatpush2.xpose.msra.mxu0 0.0
        %4684 = vmatprep.subr.mxu0 0.0
        %4685 = vmatpush2.xpose.msra.mxu0 0.0
        %4686 = vmatprep.subr.mxu0 0.0
        %4687 = vmatpush2.xpose.msra.mxu0 0.0
        %4688 = vmatprep.subr.mxu0 0.0
        %4689 = vmatpush2.xpose.msra.mxu0 0.0
        %4690 = vmatprep.subr.mxu0 0.0
        %4691 = vmatpush2.xpose.msra.mxu0 0.0
        %4692 = vmatprep.mubr.f32.mxu0 0.0
        %4693 = vmatmul.mubr.f32.gmra.mxu0 %v4620
        %v4694 = vpop.f32.mrf.mxu0
        %v4695 = vadd.f32 0.0, %v4694
        %v4696 = vpop.f32.mrf.mxu0
        %4697 = vmatprep.mubr.f32.mxu0 0.0
        %4698 = vmatmul.mubr.f32.gmra.mxu0 %v4622
        %v4699 = vpop.f32.mrf.mxu0
        %v4700 = vadd.f32 0.0, %v4699
        %v4701 = vpop.f32.mrf.mxu0
        %4702 = vdwg.mxu0
        %4703 = vrot.lane.b32.xlu0 %v799, 64
        %v4704 = vpop.permute.xlu0 %4703
        %4705 = vrot.lane.b32.xlu0 %v800, 64
        %v4706 = vpop.permute.xlu0 %4705
        %4707 = vrot.lane.b32.xlu0 %v602, 64
        %v4708 = vpop.permute.xlu0 %4707
        %4709 = vrot.lane.b32.xlu0 %v608, 64
        %v4710 = vpop.permute.xlu0 %4709
        %v4711 = vsel %vm807, %v4704, 0
        %v4713 = vsel %vm807, %v4706, 0
        %v4715 = vsel %vm807, %v4708, 0
        %v4717 = vsel %vm807, %v4710, 0
        %4719 = vmatprep.subr.mxu0 0.0
        %4720 = vmatpush1.xpose.msra.mxu0 0.0
        %4721 = vmatprep.subr.mxu0 0.0
        %4722 = vmatpush1.xpose.msra.mxu0 0.0
        %4723 = vmatprep.subr.mxu0 0.0
        %4724 = vmatpush1.xpose.msra.mxu0 0.0
        %4725 = vmatprep.subr.mxu0 0.0
        %4726 = vmatpush1.xpose.msra.mxu0 0.0
        %4727 = vmatprep.subr.mxu0 0.0
        %4728 = vmatpush1.xpose.msra.mxu0 0.0
        %4729 = vmatprep.subr.mxu0 0.0
        %4730 = vmatpush1.xpose.msra.mxu0 0.0
        %4731 = vmatprep.subr.mxu0 0.0
        %4732 = vmatpush1.xpose.msra.mxu0 0.0
        %4733 = vmatprep.subr.mxu0 0.0
        %4734 = vmatpush1.xpose.msra.mxu0 0.0
        %4735 = vmatprep.subr.mxu0 0.0
        %4736 = vmatpush1.xpose.msra.mxu0 0.0
        %4737 = vmatprep.subr.mxu0 0.0
        %4738 = vmatpush1.xpose.msra.mxu0 0.0
        %4739 = vmatprep.subr.mxu0 0.0
        %4740 = vmatpush1.xpose.msra.mxu0 0.0
        %4741 = vmatprep.subr.mxu0 0.0
        %4742 = vmatpush1.xpose.msra.mxu0 0.0
        %4743 = vmatprep.subr.mxu0 0.0
        %4744 = vmatpush1.xpose.msra.mxu0 0.0
        %4745 = vmatprep.subr.mxu0 0.0
        %4746 = vmatpush1.xpose.msra.mxu0 0.0
        %4747 = vmatprep.subr.mxu0 0.0
        %4748 = vmatpush1.xpose.msra.mxu0 %v4717
        %4749 = vmatprep.subr.mxu0 0.0
        %4750 = vmatpush1.xpose.msra.mxu0 %v4715
        %4751 = vmatprep.subr.mxu0 0.0
        %4752 = vmatpush2.xpose.msra.mxu0 0.0
        %4753 = vmatprep.subr.mxu0 0.0
        %4754 = vmatpush2.xpose.msra.mxu0 0.0
        %4755 = vmatprep.subr.mxu0 0.0
        %4756 = vmatpush2.xpose.msra.mxu0 0.0
        %4757 = vmatprep.subr.mxu0 0.0
        %4758 = vmatpush2.xpose.msra.mxu0 0.0
        %4759 = vmatprep.subr.mxu0 0.0
        %4760 = vmatpush2.xpose.msra.mxu0 0.0
        %4761 = vmatprep.subr.mxu0 0.0
        %4762 = vmatpush2.xpose.msra.mxu0 0.0
        %4763 = vmatprep.subr.mxu0 0.0
        %4764 = vmatpush2.xpose.msra.mxu0 0.0
        %4765 = vmatprep.subr.mxu0 0.0
        %4766 = vmatpush2.xpose.msra.mxu0 0.0
        %4767 = vmatprep.subr.mxu0 0.0
        %4768 = vmatpush2.xpose.msra.mxu0 0.0
        %4769 = vmatprep.subr.mxu0 0.0
        %4770 = vmatpush2.xpose.msra.mxu0 0.0
        %4771 = vmatprep.subr.mxu0 0.0
        %4772 = vmatpush2.xpose.msra.mxu0 0.0
        %4773 = vmatprep.subr.mxu0 0.0
        %4774 = vmatpush2.xpose.msra.mxu0 0.0
        %4775 = vmatprep.subr.mxu0 0.0
        %4776 = vmatpush2.xpose.msra.mxu0 0.0
        %4777 = vmatprep.subr.mxu0 0.0
        %4778 = vmatpush2.xpose.msra.mxu0 0.0
        %4779 = vmatprep.subr.mxu0 0.0
        %4780 = vmatpush2.xpose.msra.mxu0 0.0
        %4781 = vmatprep.subr.mxu0 0.0
        %4782 = vmatpush2.xpose.msra.mxu0 0.0
        %4783 = vmatprep.mubr.f32.mxu0 0.0
        %4784 = vmatmul.mubr.f32.gmra.mxu0 %v4711
        %v4785 = vpop.f32.mrf.mxu0
        %v4786 = vadd.f32 0.0, %v4785
        %v4787 = vpop.f32.mrf.mxu0
        %4788 = vmatprep.mubr.f32.mxu0 0.0
        %4789 = vmatmul.mubr.f32.gmra.mxu0 %v4713
        %v4790 = vpop.f32.mrf.mxu0
        %v4791 = vadd.f32 0.0, %v4790
        %v4792 = vpop.f32.mrf.mxu0
        %4793 = vdwg.mxu0
        %4794 = vrot.lane.b32.xlu0 %v801, 64
        %v4795 = vpop.permute.xlu0 %4794
        %4796 = vrot.lane.b32.xlu0 %v802, 64
        %v4797 = vpop.permute.xlu0 %4796
        %4798 = vrot.lane.b32.xlu0 %v614, 64
        %v4799 = vpop.permute.xlu0 %4798
        %4800 = vrot.lane.b32.xlu0 %v620, 64
        %v4801 = vpop.permute.xlu0 %4800
        %v4802 = vsel %vm807, %v4795, 0
        %v4804 = vsel %vm807, %v4797, 0
        %v4806 = vsel %vm807, %v4799, 0
        %v4808 = vsel %vm807, %v4801, 0
        %4810 = vmatprep.subr.mxu0 0.0
        %4811 = vmatpush1.xpose.msra.mxu0 0.0
        %4812 = vmatprep.subr.mxu0 0.0
        %4813 = vmatpush1.xpose.msra.mxu0 0.0
        %4814 = vmatprep.subr.mxu0 0.0
        %4815 = vmatpush1.xpose.msra.mxu0 0.0
        %4816 = vmatprep.subr.mxu0 0.0
        %4817 = vmatpush1.xpose.msra.mxu0 0.0
        %4818 = vmatprep.subr.mxu0 0.0
        %4819 = vmatpush1.xpose.msra.mxu0 0.0
        %4820 = vmatprep.subr.mxu0 0.0
        %4821 = vmatpush1.xpose.msra.mxu0 0.0
        %4822 = vmatprep.subr.mxu0 0.0
        %4823 = vmatpush1.xpose.msra.mxu0 0.0
        %4824 = vmatprep.subr.mxu0 0.0
        %4825 = vmatpush1.xpose.msra.mxu0 0.0
        %4826 = vmatprep.subr.mxu0 0.0
        %4827 = vmatpush1.xpose.msra.mxu0 0.0
        %4828 = vmatprep.subr.mxu0 0.0
        %4829 = vmatpush1.xpose.msra.mxu0 0.0
        %4830 = vmatprep.subr.mxu0 0.0
        %4831 = vmatpush1.xpose.msra.mxu0 0.0
        %4832 = vmatprep.subr.mxu0 0.0
        %4833 = vmatpush1.xpose.msra.mxu0 0.0
        %4834 = vmatprep.subr.mxu0 0.0
        %4835 = vmatpush1.xpose.msra.mxu0 0.0
        %4836 = vmatprep.subr.mxu0 0.0
        %4837 = vmatpush1.xpose.msra.mxu0 0.0
        %4838 = vmatprep.subr.mxu0 0.0
        %4839 = vmatpush1.xpose.msra.mxu0 %v4808
        %4840 = vmatprep.subr.mxu0 0.0
        %4841 = vmatpush1.xpose.msra.mxu0 %v4806
        %4842 = vmatprep.subr.mxu0 0.0
        %4843 = vmatpush2.xpose.msra.mxu0 0.0
        %4844 = vmatprep.subr.mxu0 0.0
        %4845 = vmatpush2.xpose.msra.mxu0 0.0
        %4846 = vmatprep.subr.mxu0 0.0
        %4847 = vmatpush2.xpose.msra.mxu0 0.0
        %4848 = vmatprep.subr.mxu0 0.0
        %4849 = vmatpush2.xpose.msra.mxu0 0.0
        %4850 = vmatprep.subr.mxu0 0.0
        %4851 = vmatpush2.xpose.msra.mxu0 0.0
        %4852 = vmatprep.subr.mxu0 0.0
        %4853 = vmatpush2.xpose.msra.mxu0 0.0
        %4854 = vmatprep.subr.mxu0 0.0
        %4855 = vmatpush2.xpose.msra.mxu0 0.0
        %4856 = vmatprep.subr.mxu0 0.0
        %4857 = vmatpush2.xpose.msra.mxu0 0.0
        %4858 = vmatprep.subr.mxu0 0.0
        %4859 = vmatpush2.xpose.msra.mxu0 0.0
        %4860 = vmatprep.subr.mxu0 0.0
        %4861 = vmatpush2.xpose.msra.mxu0 0.0
        %4862 = vmatprep.subr.mxu0 0.0
        %4863 = vmatpush2.xpose.msra.mxu0 0.0
        %4864 = vmatprep.subr.mxu0 0.0
        %4865 = vmatpush2.xpose.msra.mxu0 0.0
        %4866 = vmatprep.subr.mxu0 0.0
        %4867 = vmatpush2.xpose.msra.mxu0 0.0
        %4868 = vmatprep.subr.mxu0 0.0
        %4869 = vmatpush2.xpose.msra.mxu0 0.0
        %4870 = vmatprep.subr.mxu0 0.0
        %4871 = vmatpush2.xpose.msra.mxu0 0.0
        %4872 = vmatprep.subr.mxu0 0.0
        %4873 = vmatpush2.xpose.msra.mxu0 0.0
        %4874 = vmatprep.mubr.f32.mxu0 0.0
        %4875 = vmatmul.mubr.f32.gmra.mxu0 %v4802
        %v4876 = vpop.f32.mrf.mxu0
        %v4877 = vadd.f32 0.0, %v4876
        %v4878 = vpop.f32.mrf.mxu0
        %4879 = vmatprep.mubr.f32.mxu0 0.0
        %4880 = vmatmul.mubr.f32.gmra.mxu0 %v4804
        %v4881 = vpop.f32.mrf.mxu0
        %v4882 = vadd.f32 0.0, %v4881
        %v4883 = vpop.f32.mrf.mxu0
        %4884 = vdwg.mxu0
        %4885 = vrot.lane.b32.xlu0 %v803, 64
        %v4886 = vpop.permute.xlu0 %4885
        %4887 = vrot.lane.b32.xlu0 %v804, 64
        %v4888 = vpop.permute.xlu0 %4887
        %4889 = vrot.lane.b32.xlu0 %v626, 64
        %v4890 = vpop.permute.xlu0 %4889
        %4891 = vrot.lane.b32.xlu0 %v632, 64
        %v4892 = vpop.permute.xlu0 %4891
        %v4893 = vsel %vm807, %v4886, 0
        %v4895 = vsel %vm807, %v4888, 0
        %v4897 = vsel %vm807, %v4890, 0
        %v4899 = vsel %vm807, %v4892, 0
        %4901 = vmatprep.subr.mxu0 0.0
        %4902 = vmatpush1.xpose.msra.mxu0 0.0
        %4903 = vmatprep.subr.mxu0 0.0
        %4904 = vmatpush1.xpose.msra.mxu0 0.0
        %4905 = vmatprep.subr.mxu0 0.0
        %4906 = vmatpush1.xpose.msra.mxu0 0.0
        %4907 = vmatprep.subr.mxu0 0.0
        %4908 = vmatpush1.xpose.msra.mxu0 0.0
        %4909 = vmatprep.subr.mxu0 0.0
        %4910 = vmatpush1.xpose.msra.mxu0 0.0
        %4911 = vmatprep.subr.mxu0 0.0
        %4912 = vmatpush1.xpose.msra.mxu0 0.0
        %4913 = vmatprep.subr.mxu0 0.0
        %4914 = vmatpush1.xpose.msra.mxu0 0.0
        %4915 = vmatprep.subr.mxu0 0.0
        %4916 = vmatpush1.xpose.msra.mxu0 0.0
        %4917 = vmatprep.subr.mxu0 0.0
        %4918 = vmatpush1.xpose.msra.mxu0 0.0
        %4919 = vmatprep.subr.mxu0 0.0
        %4920 = vmatpush1.xpose.msra.mxu0 0.0
        %4921 = vmatprep.subr.mxu0 0.0
        %4922 = vmatpush1.xpose.msra.mxu0 0.0
        %4923 = vmatprep.subr.mxu0 0.0
        %4924 = vmatpush1.xpose.msra.mxu0 0.0
        %4925 = vmatprep.subr.mxu0 0.0
        %4926 = vmatpush1.xpose.msra.mxu0 0.0
        %4927 = vmatprep.subr.mxu0 0.0
        %4928 = vmatpush1.xpose.msra.mxu0 0.0
        %4929 = vmatprep.subr.mxu0 0.0
        %4930 = vmatpush1.xpose.msra.mxu0 %v4899
        %4931 = vmatprep.subr.mxu0 0.0
        %4932 = vmatpush1.xpose.msra.mxu0 %v4897
        %4933 = vmatprep.subr.mxu0 0.0
        %4934 = vmatpush2.xpose.msra.mxu0 0.0
        %4935 = vmatprep.subr.mxu0 0.0
        %4936 = vmatpush2.xpose.msra.mxu0 0.0
        %4937 = vmatprep.subr.mxu0 0.0
        %4938 = vmatpush2.xpose.msra.mxu0 0.0
        %4939 = vmatprep.subr.mxu0 0.0
        %4940 = vmatpush2.xpose.msra.mxu0 0.0
        %4941 = vmatprep.subr.mxu0 0.0
        %4942 = vmatpush2.xpose.msra.mxu0 0.0
        %4943 = vmatprep.subr.mxu0 0.0
        %4944 = vmatpush2.xpose.msra.mxu0 0.0
        %4945 = vmatprep.subr.mxu0 0.0
        %4946 = vmatpush2.xpose.msra.mxu0 0.0
        %4947 = vmatprep.subr.mxu0 0.0
        %4948 = vmatpush2.xpose.msra.mxu0 0.0
        %4949 = vmatprep.subr.mxu0 0.0
        %4950 = vmatpush2.xpose.msra.mxu0 0.0
        %4951 = vmatprep.subr.mxu0 0.0
        %4952 = vmatpush2.xpose.msra.mxu0 0.0
        %4953 = vmatprep.subr.mxu0 0.0
        %4954 = vmatpush2.xpose.msra.mxu0 0.0
        %4955 = vmatprep.subr.mxu0 0.0
        %4956 = vmatpush2.xpose.msra.mxu0 0.0
        %4957 = vmatprep.subr.mxu0 0.0
        %4958 = vmatpush2.xpose.msra.mxu0 0.0
        %4959 = vmatprep.subr.mxu0 0.0
        %4960 = vmatpush2.xpose.msra.mxu0 0.0
        %4961 = vmatprep.subr.mxu0 0.0
        %4962 = vmatpush2.xpose.msra.mxu0 0.0
        %4963 = vmatprep.subr.mxu0 0.0
        %4964 = vmatpush2.xpose.msra.mxu0 0.0
        %4965 = vmatprep.mubr.f32.mxu0 0.0
        %4966 = vmatmul.mubr.f32.gmra.mxu0 %v4893
        %v4967 = vpop.f32.mrf.mxu0
        %v4968 = vadd.f32 0.0, %v4967
        %v4969 = vpop.f32.mrf.mxu0
        %4970 = vmatprep.mubr.f32.mxu0 0.0
        %4971 = vmatmul.mubr.f32.gmra.mxu0 %v4895
        %v4972 = vpop.f32.mrf.mxu0
        %v4973 = vadd.f32 0.0, %v4972
        %v4974 = vpop.f32.mrf.mxu0
        %4975 = vdwg.mxu0
        %4976 = vrot.lane.b32.xlu0 %v805, 64
        %v4977 = vpop.permute.xlu0 %4976
        %4978 = vrot.lane.b32.xlu0 %v806, 64
        %v4979 = vpop.permute.xlu0 %4978
        %4980 = vrot.lane.b32.xlu0 %v638, 64
        %v4981 = vpop.permute.xlu0 %4980
        %4982 = vrot.lane.b32.xlu0 %v644, 64
        %v4983 = vpop.permute.xlu0 %4982
        %v4984 = vsel %vm807, %v4977, 0
        %v4986 = vsel %vm807, %v4979, 0
        %v4988 = vsel %vm807, %v4981, 0
        %v4990 = vsel %vm807, %v4983, 0
        %4992 = vmatprep.subr.mxu0 0.0
        %4993 = vmatpush1.xpose.msra.mxu0 0.0
        %4994 = vmatprep.subr.mxu0 0.0
        %4995 = vmatpush1.xpose.msra.mxu0 0.0
        %4996 = vmatprep.subr.mxu0 0.0
        %4997 = vmatpush1.xpose.msra.mxu0 0.0
        %4998 = vmatprep.subr.mxu0 0.0
        %4999 = vmatpush1.xpose.msra.mxu0 0.0
        %5000 = vmatprep.subr.mxu0 0.0
        %5001 = vmatpush1.xpose.msra.mxu0 0.0
        %5002 = vmatprep.subr.mxu0 0.0
        %5003 = vmatpush1.xpose.msra.mxu0 0.0
        %5004 = vmatprep.subr.mxu0 0.0
        %5005 = vmatpush1.xpose.msra.mxu0 0.0
        %5006 = vmatprep.subr.mxu0 0.0
        %5007 = vmatpush1.xpose.msra.mxu0 0.0
        %5008 = vmatprep.subr.mxu0 0.0
        %5009 = vmatpush1.xpose.msra.mxu0 0.0
        %5010 = vmatprep.subr.mxu0 0.0
        %5011 = vmatpush1.xpose.msra.mxu0 0.0
        %5012 = vmatprep.subr.mxu0 0.0
        %5013 = vmatpush1.xpose.msra.mxu0 0.0
        %5014 = vmatprep.subr.mxu0 0.0
        %5015 = vmatpush1.xpose.msra.mxu0 0.0
        %5016 = vmatprep.subr.mxu0 0.0
        %5017 = vmatpush1.xpose.msra.mxu0 0.0
        %5018 = vmatprep.subr.mxu0 0.0
        %5019 = vmatpush1.xpose.msra.mxu0 0.0
        %5020 = vmatprep.subr.mxu0 0.0
        %5021 = vmatpush1.xpose.msra.mxu0 %v4990
        %5022 = vmatprep.subr.mxu0 0.0
        %5023 = vmatpush1.xpose.msra.mxu0 %v4988
        %5024 = vmatprep.subr.mxu0 0.0
        %5025 = vmatpush2.xpose.msra.mxu0 0.0
        %5026 = vmatprep.subr.mxu0 0.0
        %5027 = vmatpush2.xpose.msra.mxu0 0.0
        %5028 = vmatprep.subr.mxu0 0.0
        %5029 = vmatpush2.xpose.msra.mxu0 0.0
        %5030 = vmatprep.subr.mxu0 0.0
        %5031 = vmatpush2.xpose.msra.mxu0 0.0
        %5032 = vmatprep.subr.mxu0 0.0
        %5033 = vmatpush2.xpose.msra.mxu0 0.0
        %5034 = vmatprep.subr.mxu0 0.0
        %5035 = vmatpush2.xpose.msra.mxu0 0.0
        %5036 = vmatprep.subr.mxu0 0.0
        %5037 = vmatpush2.xpose.msra.mxu0 0.0
        %5038 = vmatprep.subr.mxu0 0.0
        %5039 = vmatpush2.xpose.msra.mxu0 0.0
        %5040 = vmatprep.subr.mxu0 0.0
        %5041 = vmatpush2.xpose.msra.mxu0 0.0
        %5042 = vmatprep.subr.mxu0 0.0
        %5043 = vmatpush2.xpose.msra.mxu0 0.0
        %5044 = vmatprep.subr.mxu0 0.0
        %5045 = vmatpush2.xpose.msra.mxu0 0.0
        %5046 = vmatprep.subr.mxu0 0.0
        %5047 = vmatpush2.xpose.msra.mxu0 0.0
        %5048 = vmatprep.subr.mxu0 0.0
        %5049 = vmatpush2.xpose.msra.mxu0 0.0
        %5050 = vmatprep.subr.mxu0 0.0
        %5051 = vmatpush2.xpose.msra.mxu0 0.0
        %5052 = vmatprep.subr.mxu0 0.0
        %5053 = vmatpush2.xpose.msra.mxu0 0.0
        %5054 = vmatprep.subr.mxu0 0.0
        %5055 = vmatpush2.xpose.msra.mxu0 0.0
        %5056 = vmatprep.mubr.f32.mxu0 0.0
        %5057 = vmatmul.mubr.f32.gmra.mxu0 %v4984
        %v5058 = vpop.f32.mrf.mxu0
        %v5059 = vadd.f32 0.0, %v5058
        %v5060 = vpop.f32.mrf.mxu0
        %5061 = vmatprep.mubr.f32.mxu0 0.0
        %5062 = vmatmul.mubr.f32.gmra.mxu0 %v4986
        %v5063 = vpop.f32.mrf.mxu0
        %v5064 = vadd.f32 0.0, %v5063
        %v5065 = vpop.f32.mrf.mxu0
        %5066 = vdwg.mxu0
        %v5067 = vsel %vm1504, %v4422, -inf
        %5068 = vmax.xlane.f32.xlu0 %v5067
        %v5069 = vpop.xlane.xlu0 %5068
        %v5070 = vsel %vm1504, %v4427, -inf
        %5071 = vmax.xlane.f32.xlu0 %v5070
        %v5072 = vpop.xlane.xlu0 %5071
        %v5073 = vsel %vm1504, %v4513, -inf
        %5074 = vmax.xlane.f32.xlu0 %v5073
        %v5075 = vpop.xlane.xlu0 %5074
        %v5076 = vsel %vm1504, %v4518, -inf
        %5077 = vmax.xlane.f32.xlu0 %v5076
        %v5078 = vpop.xlane.xlu0 %5077
        %v5079 = vsel %vm1504, %v4604, -inf
        %5080 = vmax.xlane.f32.xlu0 %v5079
        %v5081 = vpop.xlane.xlu0 %5080
        %v5082 = vsel %vm1504, %v4609, -inf
        %5083 = vmax.xlane.f32.xlu0 %v5082
        %v5084 = vpop.xlane.xlu0 %5083
        %v5085 = vsel %vm1504, %v4695, -inf
        %5086 = vmax.xlane.f32.xlu0 %v5085
        %v5087 = vpop.xlane.xlu0 %5086
        %v5088 = vsel %vm1504, %v4700, -inf
        %5089 = vmax.xlane.f32.xlu0 %v5088
        %v5090 = vpop.xlane.xlu0 %5089
        %v5091 = vsel %vm1504, %v4786, -inf
        %5092 = vmax.xlane.f32.xlu0 %v5091
        %v5093 = vpop.xlane.xlu0 %5092
        %v5094 = vsel %vm1504, %v4791, -inf
        %5095 = vmax.xlane.f32.xlu0 %v5094
        %v5096 = vpop.xlane.xlu0 %5095
        %v5097 = vsel %vm1504, %v4877, -inf
        %5098 = vmax.xlane.f32.xlu0 %v5097
        %v5099 = vpop.xlane.xlu0 %5098
        %v5100 = vsel %vm1504, %v4882, -inf
        %5101 = vmax.xlane.f32.xlu0 %v5100
        %v5102 = vpop.xlane.xlu0 %5101
        %v5103 = vsel %vm1504, %v4968, -inf
        %5104 = vmax.xlane.f32.xlu0 %v5103
        %v5105 = vpop.xlane.xlu0 %5104
        %v5106 = vsel %vm1504, %v4973, -inf
        %5107 = vmax.xlane.f32.xlu0 %v5106
        %v5108 = vpop.xlane.xlu0 %5107
        %v5109 = vsel %vm1504, %v5059, -inf
        %5110 = vmax.xlane.f32.xlu0 %v5109
        %v5111 = vpop.xlane.xlu0 %5110
        %v5112 = vsel %vm1504, %v5064, -inf
        %5113 = vmax.xlane.f32.xlu0 %v5112
        %v5114 = vpop.xlane.xlu0 %5113
        %v5115 = vsub.f32 %v4422, %v5069
        %v5116 = vsub.f32 %v4427, %v5072
        %v5117 = vsub.f32 %v4513, %v5075
        %v5118 = vsub.f32 %v4518, %v5078
        %v5119 = vsub.f32 %v4604, %v5081
        %v5120 = vsub.f32 %v4609, %v5084
        %v5121 = vsub.f32 %v4695, %v5087
        %v5122 = vsub.f32 %v4700, %v5090
        %v5123 = vsub.f32 %v4786, %v5093
        %v5124 = vsub.f32 %v4791, %v5096
        %v5125 = vsub.f32 %v4877, %v5099
        %v5126 = vsub.f32 %v4882, %v5102
        %v5127 = vsub.f32 %v4968, %v5105
        %v5128 = vsub.f32 %v4973, %v5108
        %v5129 = vsub.f32 %v5059, %v5111
        %v5130 = vsub.f32 %v5064, %v5114
        %v5131 = vmul.f32 %v5115, 1.442695
        %v5132 = vpow.pop %v5131
        %v5133 = vmul.f32 %v5116, 1.442695
        %v5134 = vpow.pop %v5133
        %v5135 = vmul.f32 %v5117, 1.442695
        %v5136 = vpow.pop %v5135
        %v5137 = vmul.f32 %v5118, 1.442695
        %v5138 = vpow.pop %v5137
        %v5139 = vmul.f32 %v5119, 1.442695
        %v5140 = vpow.pop %v5139
        %v5141 = vmul.f32 %v5120, 1.442695
        %v5142 = vpow.pop %v5141
        %v5143 = vmul.f32 %v5121, 1.442695
        %v5144 = vpow.pop %v5143
        %v5145 = vmul.f32 %v5122, 1.442695
        %v5146 = vpow.pop %v5145
        %v5147 = vmul.f32 %v5123, 1.442695
        %v5148 = vpow.pop %v5147
        %v5149 = vmul.f32 %v5124, 1.442695
        %v5150 = vpow.pop %v5149
        %v5151 = vmul.f32 %v5125, 1.442695
        %v5152 = vpow.pop %v5151
        %v5153 = vmul.f32 %v5126, 1.442695
        %v5154 = vpow.pop %v5153
        %v5155 = vmul.f32 %v5127, 1.442695
        %v5156 = vpow.pop %v5155
        %v5157 = vmul.f32 %v5128, 1.442695
        %v5158 = vpow.pop %v5157
        %v5159 = vmul.f32 %v5129, 1.442695
        %v5160 = vpow.pop %v5159
        %v5161 = vmul.f32 %v5130, 1.442695
        %v5162 = vpow.pop %v5161
        %v5163 = vsel %vm1504, %v5132, 0.0
        %5164 = vadd.xlane.f32.xlu0 %v5163
        %v5165 = vpop.xlane.xlu0 %5164
        %v5166 = vsel %vm1504, %v5134, 0.0
        %5167 = vadd.xlane.f32.xlu0 %v5166
        %v5168 = vpop.xlane.xlu0 %5167
        %v5169 = vsel %vm1504, %v5136, 0.0
        %5170 = vadd.xlane.f32.xlu0 %v5169
        %v5171 = vpop.xlane.xlu0 %5170
        %v5172 = vsel %vm1504, %v5138, 0.0
        %5173 = vadd.xlane.f32.xlu0 %v5172
        %v5174 = vpop.xlane.xlu0 %5173
        %v5175 = vsel %vm1504, %v5140, 0.0
        %5176 = vadd.xlane.f32.xlu0 %v5175
        %v5177 = vpop.xlane.xlu0 %5176
        %v5178 = vsel %vm1504, %v5142, 0.0
        %5179 = vadd.xlane.f32.xlu0 %v5178
        %v5180 = vpop.xlane.xlu0 %5179
        %v5181 = vsel %vm1504, %v5144, 0.0
        %5182 = vadd.xlane.f32.xlu0 %v5181
        %v5183 = vpop.xlane.xlu0 %5182
        %v5184 = vsel %vm1504, %v5146, 0.0
        %5185 = vadd.xlane.f32.xlu0 %v5184
        %v5186 = vpop.xlane.xlu0 %5185
        %v5187 = vsel %vm1504, %v5148, 0.0
        %5188 = vadd.xlane.f32.xlu0 %v5187
        %v5189 = vpop.xlane.xlu0 %5188
        %v5190 = vsel %vm1504, %v5150, 0.0
        %5191 = vadd.xlane.f32.xlu0 %v5190
        %v5192 = vpop.xlane.xlu0 %5191
        %v5193 = vsel %vm1504, %v5152, 0.0
        %5194 = vadd.xlane.f32.xlu0 %v5193
        %v5195 = vpop.xlane.xlu0 %5194
        %v5196 = vsel %vm1504, %v5154, 0.0
        %5197 = vadd.xlane.f32.xlu0 %v5196
        %v5198 = vpop.xlane.xlu0 %5197
        %v5199 = vsel %vm1504, %v5156, 0.0
        %5200 = vadd.xlane.f32.xlu0 %v5199
        %v5201 = vpop.xlane.xlu0 %5200
        %v5202 = vsel %vm1504, %v5158, 0.0
        %5203 = vadd.xlane.f32.xlu0 %v5202
        %v5204 = vpop.xlane.xlu0 %5203
        %v5205 = vsel %vm1504, %v5160, 0.0
        %5206 = vadd.xlane.f32.xlu0 %v5205
        %v5207 = vpop.xlane.xlu0 %5206
        %v5208 = vsel %vm1504, %v5162, 0.0
        %5209 = vadd.xlane.f32.xlu0 %v5208
        %v5210 = vpop.xlane.xlu0 %5209
        %v5211 = vrcp.pop %v5165
        %v5212 = vrcp.pop %v5168
        %v5213 = vrcp.pop %v5171
        %v5214 = vrcp.pop %v5174
        %v5215 = vrcp.pop %v5177
        %v5216 = vrcp.pop %v5180
        %v5217 = vrcp.pop %v5183
        %v5218 = vrcp.pop %v5186
        %v5219 = vrcp.pop %v5189
        %v5220 = vrcp.pop %v5192
        %v5221 = vrcp.pop %v5195
        %v5222 = vrcp.pop %v5198
        %v5223 = vrcp.pop %v5201
        %v5224 = vrcp.pop %v5204
        %v5225 = vrcp.pop %v5207
        %v5226 = vrcp.pop %v5210
        %v5227 = vmul.f32 %v5132, %v5211
        %v5228 = vmul.f32 %v5134, %v5212
        %v5229 = vmul.f32 %v5136, %v5213
        %v5230 = vmul.f32 %v5138, %v5214
        %v5231 = vmul.f32 %v5140, %v5215
        %v5232 = vmul.f32 %v5142, %v5216
        %v5233 = vmul.f32 %v5144, %v5217
        %v5234 = vmul.f32 %v5146, %v5218
        %v5235 = vmul.f32 %v5148, %v5219
        %v5236 = vmul.f32 %v5150, %v5220
        %v5237 = vmul.f32 %v5152, %v5221
        %v5238 = vmul.f32 %v5154, %v5222
        %v5239 = vmul.f32 %v5156, %v5223
        %v5240 = vmul.f32 %v5158, %v5224
        %v5241 = vmul.f32 %v5160, %v5225
        %v5242 = vmul.f32 %v5162, %v5226
        %5243 = vrot.lane.b32.xlu0 %v713, 64
        %v5244 = vpop.permute.xlu0 %5243
        %5245 = vrot.lane.b32.xlu0 %v718, 64
        %v5246 = vpop.permute.xlu0 %5245
        %v5250 = vsel %vm1504, %v5227, 0
        %v5253 = vsel %vm1504, %v5228, 0
        %5255 = vmatprep.subr.mxu0 0.0
        %5256 = vmatpush1.msra.mxu0 0.0
        %5257 = vmatprep.subr.mxu0 0.0
        %5258 = vmatpush1.msra.mxu0 0.0
        %5259 = vmatprep.subr.mxu0 0.0
        %5260 = vmatpush1.msra.mxu0 0.0
        %5261 = vmatprep.subr.mxu0 0.0
        %5262 = vmatpush1.msra.mxu0 0.0
        %5263 = vmatprep.subr.mxu0 0.0
        %5264 = vmatpush1.msra.mxu0 0.0
        %5265 = vmatprep.subr.mxu0 0.0
        %5266 = vmatpush1.msra.mxu0 0.0
        %5267 = vmatprep.subr.mxu0 0.0
        %5268 = vmatpush1.msra.mxu0 0.0
        %5269 = vmatprep.subr.mxu0 0.0
        %5270 = vmatpush1.msra.mxu0 0.0
        %5271 = vmatprep.subr.mxu0 0.0
        %5272 = vmatpush1.msra.mxu0 0.0
        %5273 = vmatprep.subr.mxu0 0.0
        %5274 = vmatpush1.msra.mxu0 0.0
        %5275 = vmatprep.subr.mxu0 0.0
        %5276 = vmatpush1.msra.mxu0 0.0
        %5277 = vmatprep.subr.mxu0 0.0
        %5278 = vmatpush1.msra.mxu0 0.0
        %5279 = vmatprep.subr.mxu0 0.0
        %5280 = vmatpush1.msra.mxu0 0.0
        %5281 = vmatprep.subr.mxu0 0.0
        %5282 = vmatpush1.msra.mxu0 0.0
        %5283 = vmatprep.subr.mxu0 0.0
        %5284 = vmatpush1.msra.mxu0 %v5246
        %5285 = vmatprep.subr.mxu0 0.0
        %5286 = vmatpush1.msra.mxu0 %v5244
        %5287 = vmatprep.subr.mxu0 0.0
        %5288 = vmatpush2.msra.mxu0 0.0
        %5289 = vmatprep.subr.mxu0 0.0
        %5290 = vmatpush2.msra.mxu0 0.0
        %5291 = vmatprep.subr.mxu0 0.0
        %5292 = vmatpush2.msra.mxu0 0.0
        %5293 = vmatprep.subr.mxu0 0.0
        %5294 = vmatpush2.msra.mxu0 0.0
        %5295 = vmatprep.subr.mxu0 0.0
        %5296 = vmatpush2.msra.mxu0 0.0
        %5297 = vmatprep.subr.mxu0 0.0
        %5298 = vmatpush2.msra.mxu0 0.0
        %5299 = vmatprep.subr.mxu0 0.0
        %5300 = vmatpush2.msra.mxu0 0.0
        %5301 = vmatprep.subr.mxu0 0.0
        %5302 = vmatpush2.msra.mxu0 0.0
        %5303 = vmatprep.subr.mxu0 0.0
        %5304 = vmatpush2.msra.mxu0 0.0
        %5305 = vmatprep.subr.mxu0 0.0
        %5306 = vmatpush2.msra.mxu0 0.0
        %5307 = vmatprep.subr.mxu0 0.0
        %5308 = vmatpush2.msra.mxu0 0.0
        %5309 = vmatprep.subr.mxu0 0.0
        %5310 = vmatpush2.msra.mxu0 0.0
        %5311 = vmatprep.subr.mxu0 0.0
        %5312 = vmatpush2.msra.mxu0 0.0
        %5313 = vmatprep.subr.mxu0 0.0
        %5314 = vmatpush2.msra.mxu0 0.0
        %5315 = vmatprep.subr.mxu0 0.0
        %5316 = vmatpush2.msra.mxu0 0.0
        %5317 = vmatprep.subr.mxu0 0.0
        %5318 = vmatpush2.msra.mxu0 0.0
        %5319 = vmatprep.mubr.f32.mxu0 0.0
        %5320 = vmatmul.mubr.f32.gmra.mxu0 %v5250
        %v5321 = vpop.f32.mrf.mxu0
        %v5322 = vadd.f32 0.0, %v5321
        %v5323 = vpop.f32.mrf.mxu0
        %5324 = vmatprep.mubr.f32.mxu0 0.0
        %5325 = vmatmul.mubr.f32.gmra.mxu0 %v5253
        %v5326 = vpop.f32.mrf.mxu0
        %v5327 = vadd.f32 0.0, %v5326
        %v5328 = vpop.f32.mrf.mxu0
        %5329 = vdwg.mxu0
        %5330 = vrot.lane.b32.xlu0 %v723, 64
        %v5331 = vpop.permute.xlu0 %5330
        %5332 = vrot.lane.b32.xlu0 %v728, 64
        %v5333 = vpop.permute.xlu0 %5332
        %v5337 = vsel %vm1504, %v5229, 0
        %v5340 = vsel %vm1504, %v5230, 0
        %5342 = vmatprep.subr.mxu0 0.0
        %5343 = vmatpush1.msra.mxu0 0.0
        %5344 = vmatprep.subr.mxu0 0.0
        %5345 = vmatpush1.msra.mxu0 0.0
        %5346 = vmatprep.subr.mxu0 0.0
        %5347 = vmatpush1.msra.mxu0 0.0
        %5348 = vmatprep.subr.mxu0 0.0
        %5349 = vmatpush1.msra.mxu0 0.0
        %5350 = vmatprep.subr.mxu0 0.0
        %5351 = vmatpush1.msra.mxu0 0.0
        %5352 = vmatprep.subr.mxu0 0.0
        %5353 = vmatpush1.msra.mxu0 0.0
        %5354 = vmatprep.subr.mxu0 0.0
        %5355 = vmatpush1.msra.mxu0 0.0
        %5356 = vmatprep.subr.mxu0 0.0
        %5357 = vmatpush1.msra.mxu0 0.0
        %5358 = vmatprep.subr.mxu0 0.0
        %5359 = vmatpush1.msra.mxu0 0.0
        %5360 = vmatprep.subr.mxu0 0.0
        %5361 = vmatpush1.msra.mxu0 0.0
        %5362 = vmatprep.subr.mxu0 0.0
        %5363 = vmatpush1.msra.mxu0 0.0
        %5364 = vmatprep.subr.mxu0 0.0
        %5365 = vmatpush1.msra.mxu0 0.0
        %5366 = vmatprep.subr.mxu0 0.0
        %5367 = vmatpush1.msra.mxu0 0.0
        %5368 = vmatprep.subr.mxu0 0.0
        %5369 = vmatpush1.msra.mxu0 0.0
        %5370 = vmatprep.subr.mxu0 0.0
        %5371 = vmatpush1.msra.mxu0 %v5333
        %5372 = vmatprep.subr.mxu0 0.0
        %5373 = vmatpush1.msra.mxu0 %v5331
        %5374 = vmatprep.subr.mxu0 0.0
        %5375 = vmatpush2.msra.mxu0 0.0
        %5376 = vmatprep.subr.mxu0 0.0
        %5377 = vmatpush2.msra.mxu0 0.0
        %5378 = vmatprep.subr.mxu0 0.0
        %5379 = vmatpush2.msra.mxu0 0.0
        %5380 = vmatprep.subr.mxu0 0.0
        %5381 = vmatpush2.msra.mxu0 0.0
        %5382 = vmatprep.subr.mxu0 0.0
        %5383 = vmatpush2.msra.mxu0 0.0
        %5384 = vmatprep.subr.mxu0 0.0
        %5385 = vmatpush2.msra.mxu0 0.0
        %5386 = vmatprep.subr.mxu0 0.0
        %5387 = vmatpush2.msra.mxu0 0.0
        %5388 = vmatprep.subr.mxu0 0.0
        %5389 = vmatpush2.msra.mxu0 0.0
        %5390 = vmatprep.subr.mxu0 0.0
        %5391 = vmatpush2.msra.mxu0 0.0
        %5392 = vmatprep.subr.mxu0 0.0
        %5393 = vmatpush2.msra.mxu0 0.0
        %5394 = vmatprep.subr.mxu0 0.0
        %5395 = vmatpush2.msra.mxu0 0.0
        %5396 = vmatprep.subr.mxu0 0.0
        %5397 = vmatpush2.msra.mxu0 0.0
        %5398 = vmatprep.subr.mxu0 0.0
        %5399 = vmatpush2.msra.mxu0 0.0
        %5400 = vmatprep.subr.mxu0 0.0
        %5401 = vmatpush2.msra.mxu0 0.0
        %5402 = vmatprep.subr.mxu0 0.0
        %5403 = vmatpush2.msra.mxu0 0.0
        %5404 = vmatprep.subr.mxu0 0.0
        %5405 = vmatpush2.msra.mxu0 0.0
        %5406 = vmatprep.mubr.f32.mxu0 0.0
        %5407 = vmatmul.mubr.f32.gmra.mxu0 %v5337
        %v5408 = vpop.f32.mrf.mxu0
        %v5409 = vadd.f32 0.0, %v5408
        %v5410 = vpop.f32.mrf.mxu0
        %5411 = vmatprep.mubr.f32.mxu0 0.0
        %5412 = vmatmul.mubr.f32.gmra.mxu0 %v5340
        %v5413 = vpop.f32.mrf.mxu0
        %v5414 = vadd.f32 0.0, %v5413
        %v5415 = vpop.f32.mrf.mxu0
        %5416 = vdwg.mxu0
        %5417 = vrot.lane.b32.xlu0 %v733, 64
        %v5418 = vpop.permute.xlu0 %5417
        %5419 = vrot.lane.b32.xlu0 %v738, 64
        %v5420 = vpop.permute.xlu0 %5419
        %v5424 = vsel %vm1504, %v5231, 0
        %v5427 = vsel %vm1504, %v5232, 0
        %5429 = vmatprep.subr.mxu0 0.0
        %5430 = vmatpush1.msra.mxu0 0.0
        %5431 = vmatprep.subr.mxu0 0.0
        %5432 = vmatpush1.msra.mxu0 0.0
        %5433 = vmatprep.subr.mxu0 0.0
        %5434 = vmatpush1.msra.mxu0 0.0
        %5435 = vmatprep.subr.mxu0 0.0
        %5436 = vmatpush1.msra.mxu0 0.0
        %5437 = vmatprep.subr.mxu0 0.0
        %5438 = vmatpush1.msra.mxu0 0.0
        %5439 = vmatprep.subr.mxu0 0.0
        %5440 = vmatpush1.msra.mxu0 0.0
        %5441 = vmatprep.subr.mxu0 0.0
        %5442 = vmatpush1.msra.mxu0 0.0
        %5443 = vmatprep.subr.mxu0 0.0
        %5444 = vmatpush1.msra.mxu0 0.0
        %5445 = vmatprep.subr.mxu0 0.0
        %5446 = vmatpush1.msra.mxu0 0.0
        %5447 = vmatprep.subr.mxu0 0.0
        %5448 = vmatpush1.msra.mxu0 0.0
        %5449 = vmatprep.subr.mxu0 0.0
        %5450 = vmatpush1.msra.mxu0 0.0
        %5451 = vmatprep.subr.mxu0 0.0
        %5452 = vmatpush1.msra.mxu0 0.0
        %5453 = vmatprep.subr.mxu0 0.0
        %5454 = vmatpush1.msra.mxu0 0.0
        %5455 = vmatprep.subr.mxu0 0.0
        %5456 = vmatpush1.msra.mxu0 0.0
        %5457 = vmatprep.subr.mxu0 0.0
        %5458 = vmatpush1.msra.mxu0 %v5420
        %5459 = vmatprep.subr.mxu0 0.0
        %5460 = vmatpush1.msra.mxu0 %v5418
        %5461 = vmatprep.subr.mxu0 0.0
        %5462 = vmatpush2.msra.mxu0 0.0
        %5463 = vmatprep.subr.mxu0 0.0
        %5464 = vmatpush2.msra.mxu0 0.0
        %5465 = vmatprep.subr.mxu0 0.0
        %5466 = vmatpush2.msra.mxu0 0.0
        %5467 = vmatprep.subr.mxu0 0.0
        %5468 = vmatpush2.msra.mxu0 0.0
        %5469 = vmatprep.subr.mxu0 0.0
        %5470 = vmatpush2.msra.mxu0 0.0
        %5471 = vmatprep.subr.mxu0 0.0
        %5472 = vmatpush2.msra.mxu0 0.0
        %5473 = vmatprep.subr.mxu0 0.0
        %5474 = vmatpush2.msra.mxu0 0.0
        %5475 = vmatprep.subr.mxu0 0.0
        %5476 = vmatpush2.msra.mxu0 0.0
        %5477 = vmatprep.subr.mxu0 0.0
        %5478 = vmatpush2.msra.mxu0 0.0
        %5479 = vmatprep.subr.mxu0 0.0
        %5480 = vmatpush2.msra.mxu0 0.0
        %5481 = vmatprep.subr.mxu0 0.0
        %5482 = vmatpush2.msra.mxu0 0.0
        %5483 = vmatprep.subr.mxu0 0.0
        %5484 = vmatpush2.msra.mxu0 0.0
        %5485 = vmatprep.subr.mxu0 0.0
        %5486 = vmatpush2.msra.mxu0 0.0
        %5487 = vmatprep.subr.mxu0 0.0
        %5488 = vmatpush2.msra.mxu0 0.0
        %5489 = vmatprep.subr.mxu0 0.0
        %5490 = vmatpush2.msra.mxu0 0.0
        %5491 = vmatprep.subr.mxu0 0.0
        %5492 = vmatpush2.msra.mxu0 0.0
        %5493 = vmatprep.mubr.f32.mxu0 0.0
        %5494 = vmatmul.mubr.f32.gmra.mxu0 %v5424
        %v5495 = vpop.f32.mrf.mxu0
        %v5496 = vadd.f32 0.0, %v5495
        %v5497 = vpop.f32.mrf.mxu0
        %5498 = vmatprep.mubr.f32.mxu0 0.0
        %5499 = vmatmul.mubr.f32.gmra.mxu0 %v5427
        %v5500 = vpop.f32.mrf.mxu0
        %v5501 = vadd.f32 0.0, %v5500
        %v5502 = vpop.f32.mrf.mxu0
        %5503 = vdwg.mxu0
        %5504 = vrot.lane.b32.xlu0 %v743, 64
        %v5505 = vpop.permute.xlu0 %5504
        %5506 = vrot.lane.b32.xlu0 %v748, 64
        %v5507 = vpop.permute.xlu0 %5506
        %v5511 = vsel %vm1504, %v5233, 0
        %v5514 = vsel %vm1504, %v5234, 0
        %5516 = vmatprep.subr.mxu0 0.0
        %5517 = vmatpush1.msra.mxu0 0.0
        %5518 = vmatprep.subr.mxu0 0.0
        %5519 = vmatpush1.msra.mxu0 0.0
        %5520 = vmatprep.subr.mxu0 0.0
        %5521 = vmatpush1.msra.mxu0 0.0
        %5522 = vmatprep.subr.mxu0 0.0
        %5523 = vmatpush1.msra.mxu0 0.0
        %5524 = vmatprep.subr.mxu0 0.0
        %5525 = vmatpush1.msra.mxu0 0.0
        %5526 = vmatprep.subr.mxu0 0.0
        %5527 = vmatpush1.msra.mxu0 0.0
        %5528 = vmatprep.subr.mxu0 0.0
        %5529 = vmatpush1.msra.mxu0 0.0
        %5530 = vmatprep.subr.mxu0 0.0
        %5531 = vmatpush1.msra.mxu0 0.0
        %5532 = vmatprep.subr.mxu0 0.0
        %5533 = vmatpush1.msra.mxu0 0.0
        %5534 = vmatprep.subr.mxu0 0.0
        %5535 = vmatpush1.msra.mxu0 0.0
        %5536 = vmatprep.subr.mxu0 0.0
        %5537 = vmatpush1.msra.mxu0 0.0
        %5538 = vmatprep.subr.mxu0 0.0
        %5539 = vmatpush1.msra.mxu0 0.0
        %5540 = vmatprep.subr.mxu0 0.0
        %5541 = vmatpush1.msra.mxu0 0.0
        %5542 = vmatprep.subr.mxu0 0.0
        %5543 = vmatpush1.msra.mxu0 0.0
        %5544 = vmatprep.subr.mxu0 0.0
        %5545 = vmatpush1.msra.mxu0 %v5507
        %5546 = vmatprep.subr.mxu0 0.0
        %5547 = vmatpush1.msra.mxu0 %v5505
        %5548 = vmatprep.subr.mxu0 0.0
        %5549 = vmatpush2.msra.mxu0 0.0
        %5550 = vmatprep.subr.mxu0 0.0
        %5551 = vmatpush2.msra.mxu0 0.0
        %5552 = vmatprep.subr.mxu0 0.0
        %5553 = vmatpush2.msra.mxu0 0.0
        %5554 = vmatprep.subr.mxu0 0.0
        %5555 = vmatpush2.msra.mxu0 0.0
        %5556 = vmatprep.subr.mxu0 0.0
        %5557 = vmatpush2.msra.mxu0 0.0
        %5558 = vmatprep.subr.mxu0 0.0
        %5559 = vmatpush2.msra.mxu0 0.0
        %5560 = vmatprep.subr.mxu0 0.0
        %5561 = vmatpush2.msra.mxu0 0.0
        %5562 = vmatprep.subr.mxu0 0.0
        %5563 = vmatpush2.msra.mxu0 0.0
        %5564 = vmatprep.subr.mxu0 0.0
        %5565 = vmatpush2.msra.mxu0 0.0
        %5566 = vmatprep.subr.mxu0 0.0
        %5567 = vmatpush2.msra.mxu0 0.0
        %5568 = vmatprep.subr.mxu0 0.0
        %5569 = vmatpush2.msra.mxu0 0.0
        %5570 = vmatprep.subr.mxu0 0.0
        %5571 = vmatpush2.msra.mxu0 0.0
        %5572 = vmatprep.subr.mxu0 0.0
        %5573 = vmatpush2.msra.mxu0 0.0
        %5574 = vmatprep.subr.mxu0 0.0
        %5575 = vmatpush2.msra.mxu0 0.0
        %5576 = vmatprep.subr.mxu0 0.0
        %5577 = vmatpush2.msra.mxu0 0.0
        %5578 = vmatprep.subr.mxu0 0.0
        %5579 = vmatpush2.msra.mxu0 0.0
        %5580 = vmatprep.mubr.f32.mxu0 0.0
        %5581 = vmatmul.mubr.f32.gmra.mxu0 %v5511
        %v5582 = vpop.f32.mrf.mxu0
        %v5583 = vadd.f32 0.0, %v5582
        %v5584 = vpop.f32.mrf.mxu0
        %5585 = vmatprep.mubr.f32.mxu0 0.0
        %5586 = vmatmul.mubr.f32.gmra.mxu0 %v5514
        %v5587 = vpop.f32.mrf.mxu0
        %v5588 = vadd.f32 0.0, %v5587
        %v5589 = vpop.f32.mrf.mxu0
        %5590 = vdwg.mxu0
        %5591 = vrot.lane.b32.xlu0 %v753, 64
        %v5592 = vpop.permute.xlu0 %5591
        %5593 = vrot.lane.b32.xlu0 %v758, 64
        %v5594 = vpop.permute.xlu0 %5593
        %v5598 = vsel %vm1504, %v5235, 0
        %v5601 = vsel %vm1504, %v5236, 0
        %5603 = vmatprep.subr.mxu0 0.0
        %5604 = vmatpush1.msra.mxu0 0.0
        %5605 = vmatprep.subr.mxu0 0.0
        %5606 = vmatpush1.msra.mxu0 0.0
        %5607 = vmatprep.subr.mxu0 0.0
        %5608 = vmatpush1.msra.mxu0 0.0
        %5609 = vmatprep.subr.mxu0 0.0
        %5610 = vmatpush1.msra.mxu0 0.0
        %5611 = vmatprep.subr.mxu0 0.0
        %5612 = vmatpush1.msra.mxu0 0.0
        %5613 = vmatprep.subr.mxu0 0.0
        %5614 = vmatpush1.msra.mxu0 0.0
        %5615 = vmatprep.subr.mxu0 0.0
        %5616 = vmatpush1.msra.mxu0 0.0
        %5617 = vmatprep.subr.mxu0 0.0
        %5618 = vmatpush1.msra.mxu0 0.0
        %5619 = vmatprep.subr.mxu0 0.0
        %5620 = vmatpush1.msra.mxu0 0.0
        %5621 = vmatprep.subr.mxu0 0.0
        %5622 = vmatpush1.msra.mxu0 0.0
        %5623 = vmatprep.subr.mxu0 0.0
        %5624 = vmatpush1.msra.mxu0 0.0
        %5625 = vmatprep.subr.mxu0 0.0
        %5626 = vmatpush1.msra.mxu0 0.0
        %5627 = vmatprep.subr.mxu0 0.0
        %5628 = vmatpush1.msra.mxu0 0.0
        %5629 = vmatprep.subr.mxu0 0.0
        %5630 = vmatpush1.msra.mxu0 0.0
        %5631 = vmatprep.subr.mxu0 0.0
        %5632 = vmatpush1.msra.mxu0 %v5594
        %5633 = vmatprep.subr.mxu0 0.0
        %5634 = vmatpush1.msra.mxu0 %v5592
        %5635 = vmatprep.subr.mxu0 0.0
        %5636 = vmatpush2.msra.mxu0 0.0
        %5637 = vmatprep.subr.mxu0 0.0
        %5638 = vmatpush2.msra.mxu0 0.0
        %5639 = vmatprep.subr.mxu0 0.0
        %5640 = vmatpush2.msra.mxu0 0.0
        %5641 = vmatprep.subr.mxu0 0.0
        %5642 = vmatpush2.msra.mxu0 0.0
        %5643 = vmatprep.subr.mxu0 0.0
        %5644 = vmatpush2.msra.mxu0 0.0
        %5645 = vmatprep.subr.mxu0 0.0
        %5646 = vmatpush2.msra.mxu0 0.0
        %5647 = vmatprep.subr.mxu0 0.0
        %5648 = vmatpush2.msra.mxu0 0.0
        %5649 = vmatprep.subr.mxu0 0.0
        %5650 = vmatpush2.msra.mxu0 0.0
        %5651 = vmatprep.subr.mxu0 0.0
        %5652 = vmatpush2.msra.mxu0 0.0
        %5653 = vmatprep.subr.mxu0 0.0
        %5654 = vmatpush2.msra.mxu0 0.0
        %5655 = vmatprep.subr.mxu0 0.0
        %5656 = vmatpush2.msra.mxu0 0.0
        %5657 = vmatprep.subr.mxu0 0.0
        %5658 = vmatpush2.msra.mxu0 0.0
        %5659 = vmatprep.subr.mxu0 0.0
        %5660 = vmatpush2.msra.mxu0 0.0
        %5661 = vmatprep.subr.mxu0 0.0
        %5662 = vmatpush2.msra.mxu0 0.0
        %5663 = vmatprep.subr.mxu0 0.0
        %5664 = vmatpush2.msra.mxu0 0.0
        %5665 = vmatprep.subr.mxu0 0.0
        %5666 = vmatpush2.msra.mxu0 0.0
        %5667 = vmatprep.mubr.f32.mxu0 0.0
        %5668 = vmatmul.mubr.f32.gmra.mxu0 %v5598
        %v5669 = vpop.f32.mrf.mxu0
        %v5670 = vadd.f32 0.0, %v5669
        %v5671 = vpop.f32.mrf.mxu0
        %5672 = vmatprep.mubr.f32.mxu0 0.0
        %5673 = vmatmul.mubr.f32.gmra.mxu0 %v5601
        %v5674 = vpop.f32.mrf.mxu0
        %v5675 = vadd.f32 0.0, %v5674
        %v5676 = vpop.f32.mrf.mxu0
        %5677 = vdwg.mxu0
        %5678 = vrot.lane.b32.xlu0 %v763, 64
        %v5679 = vpop.permute.xlu0 %5678
        %5680 = vrot.lane.b32.xlu0 %v768, 64
        %v5681 = vpop.permute.xlu0 %5680
        %v5685 = vsel %vm1504, %v5237, 0
        %v5688 = vsel %vm1504, %v5238, 0
        %5690 = vmatprep.subr.mxu0 0.0
        %5691 = vmatpush1.msra.mxu0 0.0
        %5692 = vmatprep.subr.mxu0 0.0
        %5693 = vmatpush1.msra.mxu0 0.0
        %5694 = vmatprep.subr.mxu0 0.0
        %5695 = vmatpush1.msra.mxu0 0.0
        %5696 = vmatprep.subr.mxu0 0.0
        %5697 = vmatpush1.msra.mxu0 0.0
        %5698 = vmatprep.subr.mxu0 0.0
        %5699 = vmatpush1.msra.mxu0 0.0
        %5700 = vmatprep.subr.mxu0 0.0
        %5701 = vmatpush1.msra.mxu0 0.0
        %5702 = vmatprep.subr.mxu0 0.0
        %5703 = vmatpush1.msra.mxu0 0.0
        %5704 = vmatprep.subr.mxu0 0.0
        %5705 = vmatpush1.msra.mxu0 0.0
        %5706 = vmatprep.subr.mxu0 0.0
        %5707 = vmatpush1.msra.mxu0 0.0
        %5708 = vmatprep.subr.mxu0 0.0
        %5709 = vmatpush1.msra.mxu0 0.0
        %5710 = vmatprep.subr.mxu0 0.0
        %5711 = vmatpush1.msra.mxu0 0.0
        %5712 = vmatprep.subr.mxu0 0.0
        %5713 = vmatpush1.msra.mxu0 0.0
        %5714 = vmatprep.subr.mxu0 0.0
        %5715 = vmatpush1.msra.mxu0 0.0
        %5716 = vmatprep.subr.mxu0 0.0
        %5717 = vmatpush1.msra.mxu0 0.0
        %5718 = vmatprep.subr.mxu0 0.0
        %5719 = vmatpush1.msra.mxu0 %v5681
        %5720 = vmatprep.subr.mxu0 0.0
        %5721 = vmatpush1.msra.mxu0 %v5679
        %5722 = vmatprep.subr.mxu0 0.0
        %5723 = vmatpush2.msra.mxu0 0.0
        %5724 = vmatprep.subr.mxu0 0.0
        %5725 = vmatpush2.msra.mxu0 0.0
        %5726 = vmatprep.subr.mxu0 0.0
        %5727 = vmatpush2.msra.mxu0 0.0
        %5728 = vmatprep.subr.mxu0 0.0
        %5729 = vmatpush2.msra.mxu0 0.0
        %5730 = vmatprep.subr.mxu0 0.0
        %5731 = vmatpush2.msra.mxu0 0.0
        %5732 = vmatprep.subr.mxu0 0.0
        %5733 = vmatpush2.msra.mxu0 0.0
        %5734 = vmatprep.subr.mxu0 0.0
        %5735 = vmatpush2.msra.mxu0 0.0
        %5736 = vmatprep.subr.mxu0 0.0
        %5737 = vmatpush2.msra.mxu0 0.0
        %5738 = vmatprep.subr.mxu0 0.0
        %5739 = vmatpush2.msra.mxu0 0.0
        %5740 = vmatprep.subr.mxu0 0.0
        %5741 = vmatpush2.msra.mxu0 0.0
        %5742 = vmatprep.subr.mxu0 0.0
        %5743 = vmatpush2.msra.mxu0 0.0
        %5744 = vmatprep.subr.mxu0 0.0
        %5745 = vmatpush2.msra.mxu0 0.0
        %5746 = vmatprep.subr.mxu0 0.0
        %5747 = vmatpush2.msra.mxu0 0.0
        %5748 = vmatprep.subr.mxu0 0.0
        %5749 = vmatpush2.msra.mxu0 0.0
        %5750 = vmatprep.subr.mxu0 0.0
        %5751 = vmatpush2.msra.mxu0 0.0
        %5752 = vmatprep.subr.mxu0 0.0
        %5753 = vmatpush2.msra.mxu0 0.0
        %5754 = vmatprep.mubr.f32.mxu0 0.0
        %5755 = vmatmul.mubr.f32.gmra.mxu0 %v5685
        %v5756 = vpop.f32.mrf.mxu0
        %v5757 = vadd.f32 0.0, %v5756
        %v5758 = vpop.f32.mrf.mxu0
        %5759 = vmatprep.mubr.f32.mxu0 0.0
        %5760 = vmatmul.mubr.f32.gmra.mxu0 %v5688
        %v5761 = vpop.f32.mrf.mxu0
        %v5762 = vadd.f32 0.0, %v5761
        %v5763 = vpop.f32.mrf.mxu0
        %5764 = vdwg.mxu0
        %5765 = vrot.lane.b32.xlu0 %v773, 64
        %v5766 = vpop.permute.xlu0 %5765
        %5767 = vrot.lane.b32.xlu0 %v778, 64
        %v5768 = vpop.permute.xlu0 %5767
        %v5772 = vsel %vm1504, %v5239, 0
        %v5775 = vsel %vm1504, %v5240, 0
        %5777 = vmatprep.subr.mxu0 0.0
        %5778 = vmatpush1.msra.mxu0 0.0
        %5779 = vmatprep.subr.mxu0 0.0
        %5780 = vmatpush1.msra.mxu0 0.0
        %5781 = vmatprep.subr.mxu0 0.0
        %5782 = vmatpush1.msra.mxu0 0.0
        %5783 = vmatprep.subr.mxu0 0.0
        %5784 = vmatpush1.msra.mxu0 0.0
        %5785 = vmatprep.subr.mxu0 0.0
        %5786 = vmatpush1.msra.mxu0 0.0
        %5787 = vmatprep.subr.mxu0 0.0
        %5788 = vmatpush1.msra.mxu0 0.0
        %5789 = vmatprep.subr.mxu0 0.0
        %5790 = vmatpush1.msra.mxu0 0.0
        %5791 = vmatprep.subr.mxu0 0.0
        %5792 = vmatpush1.msra.mxu0 0.0
        %5793 = vmatprep.subr.mxu0 0.0
        %5794 = vmatpush1.msra.mxu0 0.0
        %5795 = vmatprep.subr.mxu0 0.0
        %5796 = vmatpush1.msra.mxu0 0.0
        %5797 = vmatprep.subr.mxu0 0.0
        %5798 = vmatpush1.msra.mxu0 0.0
        %5799 = vmatprep.subr.mxu0 0.0
        %5800 = vmatpush1.msra.mxu0 0.0
        %5801 = vmatprep.subr.mxu0 0.0
        %5802 = vmatpush1.msra.mxu0 0.0
        %5803 = vmatprep.subr.mxu0 0.0
        %5804 = vmatpush1.msra.mxu0 0.0
        %5805 = vmatprep.subr.mxu0 0.0
        %5806 = vmatpush1.msra.mxu0 %v5768
        %5807 = vmatprep.subr.mxu0 0.0
        %5808 = vmatpush1.msra.mxu0 %v5766
        %5809 = vmatprep.subr.mxu0 0.0
        %5810 = vmatpush2.msra.mxu0 0.0
        %5811 = vmatprep.subr.mxu0 0.0
        %5812 = vmatpush2.msra.mxu0 0.0
        %5813 = vmatprep.subr.mxu0 0.0
        %5814 = vmatpush2.msra.mxu0 0.0
        %5815 = vmatprep.subr.mxu0 0.0
        %5816 = vmatpush2.msra.mxu0 0.0
        %5817 = vmatprep.subr.mxu0 0.0
        %5818 = vmatpush2.msra.mxu0 0.0
        %5819 = vmatprep.subr.mxu0 0.0
        %5820 = vmatpush2.msra.mxu0 0.0
        %5821 = vmatprep.subr.mxu0 0.0
        %5822 = vmatpush2.msra.mxu0 0.0
        %5823 = vmatprep.subr.mxu0 0.0
        %5824 = vmatpush2.msra.mxu0 0.0
        %5825 = vmatprep.subr.mxu0 0.0
        %5826 = vmatpush2.msra.mxu0 0.0
        %5827 = vmatprep.subr.mxu0 0.0
        %5828 = vmatpush2.msra.mxu0 0.0
        %5829 = vmatprep.subr.mxu0 0.0
        %5830 = vmatpush2.msra.mxu0 0.0
        %5831 = vmatprep.subr.mxu0 0.0
        %5832 = vmatpush2.msra.mxu0 0.0
        %5833 = vmatprep.subr.mxu0 0.0
        %5834 = vmatpush2.msra.mxu0 0.0
        %5835 = vmatprep.subr.mxu0 0.0
        %5836 = vmatpush2.msra.mxu0 0.0
        %5837 = vmatprep.subr.mxu0 0.0
        %5838 = vmatpush2.msra.mxu0 0.0
        %5839 = vmatprep.subr.mxu0 0.0
        %5840 = vmatpush2.msra.mxu0 0.0
        %5841 = vmatprep.mubr.f32.mxu0 0.0
        %5842 = vmatmul.mubr.f32.gmra.mxu0 %v5772
        %v5843 = vpop.f32.mrf.mxu0
        %v5844 = vadd.f32 0.0, %v5843
        %v5845 = vpop.f32.mrf.mxu0
        %5846 = vmatprep.mubr.f32.mxu0 0.0
        %5847 = vmatmul.mubr.f32.gmra.mxu0 %v5775
        %v5848 = vpop.f32.mrf.mxu0
        %v5849 = vadd.f32 0.0, %v5848
        %v5850 = vpop.f32.mrf.mxu0
        %5851 = vdwg.mxu0
        %5852 = vrot.lane.b32.xlu0 %v783, 64
        %v5853 = vpop.permute.xlu0 %5852
        %5854 = vrot.lane.b32.xlu0 %v788, 64
        %v5855 = vpop.permute.xlu0 %5854
        %v5859 = vsel %vm1504, %v5241, 0
        %v5862 = vsel %vm1504, %v5242, 0
        %5864 = vmatprep.subr.mxu0 0.0
        %5865 = vmatpush1.msra.mxu0 0.0
        %5866 = vmatprep.subr.mxu0 0.0
        %5867 = vmatpush1.msra.mxu0 0.0
        %5868 = vmatprep.subr.mxu0 0.0
        %5869 = vmatpush1.msra.mxu0 0.0
        %5870 = vmatprep.subr.mxu0 0.0
        %5871 = vmatpush1.msra.mxu0 0.0
        %5872 = vmatprep.subr.mxu0 0.0
        %5873 = vmatpush1.msra.mxu0 0.0
        %5874 = vmatprep.subr.mxu0 0.0
        %5875 = vmatpush1.msra.mxu0 0.0
        %5876 = vmatprep.subr.mxu0 0.0
        %5877 = vmatpush1.msra.mxu0 0.0
        %5878 = vmatprep.subr.mxu0 0.0
        %5879 = vmatpush1.msra.mxu0 0.0
        %5880 = vmatprep.subr.mxu0 0.0
        %5881 = vmatpush1.msra.mxu0 0.0
        %5882 = vmatprep.subr.mxu0 0.0
        %5883 = vmatpush1.msra.mxu0 0.0
        %5884 = vmatprep.subr.mxu0 0.0
        %5885 = vmatpush1.msra.mxu0 0.0
        %5886 = vmatprep.subr.mxu0 0.0
        %5887 = vmatpush1.msra.mxu0 0.0
        %5888 = vmatprep.subr.mxu0 0.0
        %5889 = vmatpush1.msra.mxu0 0.0
        %5890 = vmatprep.subr.mxu0 0.0
        %5891 = vmatpush1.msra.mxu0 0.0
        %5892 = vmatprep.subr.mxu0 0.0
        %5893 = vmatpush1.msra.mxu0 %v5855
        %5894 = vmatprep.subr.mxu0 0.0
        %5895 = vmatpush1.msra.mxu0 %v5853
        %5896 = vmatprep.subr.mxu0 0.0
        %5897 = vmatpush2.msra.mxu0 0.0
        %5898 = vmatprep.subr.mxu0 0.0
        %5899 = vmatpush2.msra.mxu0 0.0
        %5900 = vmatprep.subr.mxu0 0.0
        %5901 = vmatpush2.msra.mxu0 0.0
        %5902 = vmatprep.subr.mxu0 0.0
        %5903 = vmatpush2.msra.mxu0 0.0
        %5904 = vmatprep.subr.mxu0 0.0
        %5905 = vmatpush2.msra.mxu0 0.0
        %5906 = vmatprep.subr.mxu0 0.0
        %5907 = vmatpush2.msra.mxu0 0.0
        %5908 = vmatprep.subr.mxu0 0.0
        %5909 = vmatpush2.msra.mxu0 0.0
        %5910 = vmatprep.subr.mxu0 0.0
        %5911 = vmatpush2.msra.mxu0 0.0
        %5912 = vmatprep.subr.mxu0 0.0
        %5913 = vmatpush2.msra.mxu0 0.0
        %5914 = vmatprep.subr.mxu0 0.0
        %5915 = vmatpush2.msra.mxu0 0.0
        %5916 = vmatprep.subr.mxu0 0.0
        %5917 = vmatpush2.msra.mxu0 0.0
        %5918 = vmatprep.subr.mxu0 0.0
        %5919 = vmatpush2.msra.mxu0 0.0
        %5920 = vmatprep.subr.mxu0 0.0
        %5921 = vmatpush2.msra.mxu0 0.0
        %5922 = vmatprep.subr.mxu0 0.0
        %5923 = vmatpush2.msra.mxu0 0.0
        %5924 = vmatprep.subr.mxu0 0.0
        %5925 = vmatpush2.msra.mxu0 0.0
        %5926 = vmatprep.subr.mxu0 0.0
        %5927 = vmatpush2.msra.mxu0 0.0
        %5928 = vmatprep.mubr.f32.mxu0 0.0
        %5929 = vmatmul.mubr.f32.gmra.mxu0 %v5859
        %v5930 = vpop.f32.mrf.mxu0
        %v5931 = vadd.f32 0.0, %v5930
        %v5932 = vpop.f32.mrf.mxu0
        %5933 = vmatprep.mubr.f32.mxu0 0.0
        %5934 = vmatmul.mubr.f32.gmra.mxu0 %v5862
        %v5935 = vpop.f32.mrf.mxu0
        %v5936 = vadd.f32 0.0, %v5935
        %v5937 = vpop.f32.mrf.mxu0
        %5938 = vdwg.mxu0
        %v5939 = vld [vmem:[#allocation7 + $0x40] sm:$0xff]
        %v5940 = vld [vmem:[#allocation7 + $0x48] sm:$0xff]
        %v5941 = vld [vmem:[#allocation7 + $0x50] sm:$0xff]
        %v5942 = vld [vmem:[#allocation7 + $0x58] sm:$0xff]
        %v5944 = vsel %vm807, %v5322, 0
        %v5947 = vsel %vm807, %v5327, 0
        %v5950 = vsel %vm807, %v5409, 0
        %v5953 = vsel %vm807, %v5414, 0
        %v5956 = vsel %vm807, %v5496, 0
        %v5959 = vsel %vm807, %v5501, 0
        %v5962 = vsel %vm807, %v5583, 0
        %v5965 = vsel %vm807, %v5588, 0
        %v5968 = vsel %vm807, %v5670, 0
        %v5971 = vsel %vm807, %v5675, 0
        %v5974 = vsel %vm807, %v5757, 0
        %v5977 = vsel %vm807, %v5762, 0
        %v5980 = vsel %vm807, %v5844, 0
        %v5983 = vsel %vm807, %v5849, 0
        %v5986 = vsel %vm807, %v5931, 0
        %v5989 = vsel %vm807, %v5936, 0
        %5991 = vmatprep.subr.mxu0 0.0
        %5992 = vmatpush1.msra.mxu0 0.0
        %5993 = vmatprep.subr.mxu0 0.0
        %5994 = vmatpush1.msra.mxu0 0.0
        %5995 = vmatprep.subr.mxu0 0.0
        %5996 = vmatpush1.msra.mxu0 0.0
        %5997 = vmatprep.subr.mxu0 0.0
        %5998 = vmatpush1.msra.mxu0 0.0
        %5999 = vmatprep.subr.mxu0 0.0
        %6000 = vmatpush1.msra.mxu0 0.0
        %6001 = vmatprep.subr.mxu0 0.0
        %6002 = vmatpush1.msra.mxu0 0.0
        %6003 = vmatprep.subr.mxu0 0.0
        %6004 = vmatpush1.msra.mxu0 0.0
        %6005 = vmatprep.subr.mxu0 0.0
        %6006 = vmatpush1.msra.mxu0 0.0
        %6007 = vmatprep.subr.mxu0 0.0
        %6008 = vmatpush1.msra.mxu0 0.0
        %6009 = vmatprep.subr.mxu0 0.0
        %6010 = vmatpush1.msra.mxu0 0.0
        %6011 = vmatprep.subr.mxu0 0.0
        %6012 = vmatpush1.msra.mxu0 0.0
        %6013 = vmatprep.subr.mxu0 0.0
        %6014 = vmatpush1.msra.mxu0 0.0
        %6015 = vmatprep.subr.mxu0 0.0
        %6016 = vmatpush1.msra.mxu0 %v5942
        %6017 = vmatprep.subr.mxu0 0.0
        %6018 = vmatpush1.msra.mxu0 %v5941
        %6019 = vmatprep.subr.mxu0 0.0
        %6020 = vmatpush1.msra.mxu0 %v5940
        %6021 = vmatprep.subr.mxu0 0.0
        %6022 = vmatpush1.msra.mxu0 %v5939
        %6023 = vmatprep.subr.mxu0 0.0
        %6024 = vmatpush2.msra.mxu0 0.0
        %6025 = vmatprep.subr.mxu0 0.0
        %6026 = vmatpush2.msra.mxu0 0.0
        %6027 = vmatprep.subr.mxu0 0.0
        %6028 = vmatpush2.msra.mxu0 0.0
        %6029 = vmatprep.subr.mxu0 0.0
        %6030 = vmatpush2.msra.mxu0 0.0
        %6031 = vmatprep.subr.mxu0 0.0
        %6032 = vmatpush2.msra.mxu0 0.0
        %6033 = vmatprep.subr.mxu0 0.0
        %6034 = vmatpush2.msra.mxu0 0.0
        %6035 = vmatprep.subr.mxu0 0.0
        %6036 = vmatpush2.msra.mxu0 0.0
        %6037 = vmatprep.subr.mxu0 0.0
        %6038 = vmatpush2.msra.mxu0 0.0
        %6039 = vmatprep.subr.mxu0 0.0
        %6040 = vmatpush2.msra.mxu0 0.0
        %6041 = vmatprep.subr.mxu0 0.0
        %6042 = vmatpush2.msra.mxu0 0.0
        %6043 = vmatprep.subr.mxu0 0.0
        %6044 = vmatpush2.msra.mxu0 0.0
        %6045 = vmatprep.subr.mxu0 0.0
        %6046 = vmatpush2.msra.mxu0 0.0
        %6047 = vmatprep.subr.mxu0 0.0
        %6048 = vmatpush2.msra.mxu0 0.0
        %6049 = vmatprep.subr.mxu0 0.0
        %6050 = vmatpush2.msra.mxu0 0.0
        %6051 = vmatprep.subr.mxu0 0.0
        %6052 = vmatpush2.msra.mxu0 0.0
        %6053 = vmatprep.subr.mxu0 0.0
        %6054 = vmatpush2.msra.mxu0 0.0
        %6055 = vmatprep.mubr.f32.mxu0 0.0
        %6056 = vmatmul.mubr.f32.gmra.mxu0 %v5944
        %v6057 = vpop.f32.mrf.mxu0
        %v6058 = vadd.f32 0.0, %v6057
        %v6059 = vpop.f32.mrf.mxu0
        %6060 = vmatprep.mubr.f32.mxu0 0.0
        %6061 = vmatmul.mubr.f32.gmra.mxu0 %v5947
        %v6062 = vpop.f32.mrf.mxu0
        %v6063 = vadd.f32 0.0, %v6062
        %v6064 = vpop.f32.mrf.mxu0
        %6065 = vmatprep.mubr.f32.mxu0 0.0
        %6066 = vmatmul.mubr.f32.gmra.mxu0 %v5950
        %v6067 = vpop.f32.mrf.mxu0
        %v6068 = vadd.f32 0.0, %v6067
        %v6069 = vpop.f32.mrf.mxu0
        %6070 = vmatprep.mubr.f32.mxu0 0.0
        %6071 = vmatmul.mubr.f32.gmra.mxu0 %v5953
        %v6072 = vpop.f32.mrf.mxu0
        %v6073 = vadd.f32 0.0, %v6072
        %v6074 = vpop.f32.mrf.mxu0
        %6075 = vmatprep.mubr.f32.mxu0 0.0
        %6076 = vmatmul.mubr.f32.gmra.mxu0 %v5956
        %v6077 = vpop.f32.mrf.mxu0
        %v6078 = vadd.f32 0.0, %v6077
        %v6079 = vpop.f32.mrf.mxu0
        %6080 = vmatprep.mubr.f32.mxu0 0.0
        %6081 = vmatmul.mubr.f32.gmra.mxu0 %v5959
        %v6082 = vpop.f32.mrf.mxu0
        %v6083 = vadd.f32 0.0, %v6082
        %v6084 = vpop.f32.mrf.mxu0
        %6085 = vmatprep.mubr.f32.mxu0 0.0
        %6086 = vmatmul.mubr.f32.gmra.mxu0 %v5962
        %v6087 = vpop.f32.mrf.mxu0
        %v6088 = vadd.f32 0.0, %v6087
        %v6089 = vpop.f32.mrf.mxu0
        %6090 = vmatprep.mubr.f32.mxu0 0.0
        %6091 = vmatmul.mubr.f32.gmra.mxu0 %v5965
        %v6092 = vpop.f32.mrf.mxu0
        %v6093 = vadd.f32 0.0, %v6092
        %v6094 = vpop.f32.mrf.mxu0
        %6095 = vmatprep.mubr.f32.mxu0 0.0
        %6096 = vmatmul.mubr.f32.gmra.mxu0 %v5968
        %v6097 = vpop.f32.mrf.mxu0
        %v6098 = vadd.f32 0.0, %v6097
        %v6099 = vpop.f32.mrf.mxu0
        %6100 = vmatprep.mubr.f32.mxu0 0.0
        %6101 = vmatmul.mubr.f32.gmra.mxu0 %v5971
        %v6102 = vpop.f32.mrf.mxu0
        %v6103 = vadd.f32 0.0, %v6102
        %v6104 = vpop.f32.mrf.mxu0
        %6105 = vmatprep.mubr.f32.mxu0 0.0
        %6106 = vmatmul.mubr.f32.gmra.mxu0 %v5974
        %v6107 = vpop.f32.mrf.mxu0
        %v6108 = vadd.f32 0.0, %v6107
        %v6109 = vpop.f32.mrf.mxu0
        %6110 = vmatprep.mubr.f32.mxu0 0.0
        %6111 = vmatmul.mubr.f32.gmra.mxu0 %v5977
        %v6112 = vpop.f32.mrf.mxu0
        %v6113 = vadd.f32 0.0, %v6112
        %v6114 = vpop.f32.mrf.mxu0
        %6115 = vmatprep.mubr.f32.mxu0 0.0
        %6116 = vmatmul.mubr.f32.gmra.mxu0 %v5980
        %v6117 = vpop.f32.mrf.mxu0
        %v6118 = vadd.f32 0.0, %v6117
        %v6119 = vpop.f32.mrf.mxu0
        %6120 = vmatprep.mubr.f32.mxu0 0.0
        %6121 = vmatmul.mubr.f32.gmra.mxu0 %v5983
        %v6122 = vpop.f32.mrf.mxu0
        %v6123 = vadd.f32 0.0, %v6122
        %v6124 = vpop.f32.mrf.mxu0
        %6125 = vmatprep.mubr.f32.mxu0 0.0
        %6126 = vmatmul.mubr.f32.gmra.mxu0 %v5986
        %v6127 = vpop.f32.mrf.mxu0
        %v6128 = vadd.f32 0.0, %v6127
        %v6129 = vpop.f32.mrf.mxu0
        %6130 = vmatprep.mubr.f32.mxu0 0.0
        %6131 = vmatmul.mubr.f32.gmra.mxu0 %v5989
        %v6132 = vpop.f32.mrf.mxu0
        %v6133 = vadd.f32 0.0, %v6132
        %v6134 = vpop.f32.mrf.mxu0
        %6135 = vdwg.mxu0
        %v6136 = vadd.f32 %v4261, %v6058
        %v6137 = vadd.f32 %v4266, %v6063
        %v6138 = vadd.f32 %v4271, %v6068
        %v6139 = vadd.f32 %v4276, %v6073
        %v6140 = vadd.f32 %v4281, %v6078
        %v6141 = vadd.f32 %v4286, %v6083
        %v6142 = vadd.f32 %v4291, %v6088
        %v6143 = vadd.f32 %v4296, %v6093
        %v6144 = vadd.f32 %v4301, %v6098
        %v6145 = vadd.f32 %v4306, %v6103
        %v6146 = vadd.f32 %v4311, %v6108
        %v6147 = vadd.f32 %v4316, %v6113
        %v6148 = vadd.f32 %v4321, %v6118
        %v6149 = vadd.f32 %v4326, %v6123
        %v6150 = vadd.f32 %v4331, %v6128
        %v6151 = vadd.f32 %v4336, %v6133
        %6152 = vrot.lane.b32.xlu0 %v791, 32
        %v6153 = vpop.permute.xlu0 %6152
        %6154 = vrot.lane.b32.xlu0 %v792, 32
        %v6155 = vpop.permute.xlu0 %6154
        %6156 = vrot.lane.b32.xlu0 %v554, 32
        %v6157 = vpop.permute.xlu0 %6156
        %6158 = vrot.lane.b32.xlu0 %v560, 32
        %v6159 = vpop.permute.xlu0 %6158
        %v6160 = vsel %vm807, %v6153, 0
        %v6162 = vsel %vm807, %v6155, 0
        %v6164 = vsel %vm807, %v6157, 0
        %v6166 = vsel %vm807, %v6159, 0
        %6168 = vmatprep.subr.mxu0 0.0
        %6169 = vmatpush1.xpose.msra.mxu0 0.0
        %6170 = vmatprep.subr.mxu0 0.0
        %6171 = vmatpush1.xpose.msra.mxu0 0.0
        %6172 = vmatprep.subr.mxu0 0.0
        %6173 = vmatpush1.xpose.msra.mxu0 0.0
        %6174 = vmatprep.subr.mxu0 0.0
        %6175 = vmatpush1.xpose.msra.mxu0 0.0
        %6176 = vmatprep.subr.mxu0 0.0
        %6177 = vmatpush1.xpose.msra.mxu0 0.0
        %6178 = vmatprep.subr.mxu0 0.0
        %6179 = vmatpush1.xpose.msra.mxu0 0.0
        %6180 = vmatprep.subr.mxu0 0.0
        %6181 = vmatpush1.xpose.msra.mxu0 0.0
        %6182 = vmatprep.subr.mxu0 0.0
        %6183 = vmatpush1.xpose.msra.mxu0 0.0
        %6184 = vmatprep.subr.mxu0 0.0
        %6185 = vmatpush1.xpose.msra.mxu0 0.0
        %6186 = vmatprep.subr.mxu0 0.0
        %6187 = vmatpush1.xpose.msra.mxu0 0.0
        %6188 = vmatprep.subr.mxu0 0.0
        %6189 = vmatpush1.xpose.msra.mxu0 0.0
        %6190 = vmatprep.subr.mxu0 0.0
        %6191 = vmatpush1.xpose.msra.mxu0 0.0
        %6192 = vmatprep.subr.mxu0 0.0
        %6193 = vmatpush1.xpose.msra.mxu0 0.0
        %6194 = vmatprep.subr.mxu0 0.0
        %6195 = vmatpush1.xpose.msra.mxu0 0.0
        %6196 = vmatprep.subr.mxu0 0.0
        %6197 = vmatpush1.xpose.msra.mxu0 %v6166
        %6198 = vmatprep.subr.mxu0 0.0
        %6199 = vmatpush1.xpose.msra.mxu0 %v6164
        %6200 = vmatprep.subr.mxu0 0.0
        %6201 = vmatpush2.xpose.msra.mxu0 0.0
        %6202 = vmatprep.subr.mxu0 0.0
        %6203 = vmatpush2.xpose.msra.mxu0 0.0
        %6204 = vmatprep.subr.mxu0 0.0
        %6205 = vmatpush2.xpose.msra.mxu0 0.0
        %6206 = vmatprep.subr.mxu0 0.0
        %6207 = vmatpush2.xpose.msra.mxu0 0.0
        %6208 = vmatprep.subr.mxu0 0.0
        %6209 = vmatpush2.xpose.msra.mxu0 0.0
        %6210 = vmatprep.subr.mxu0 0.0
        %6211 = vmatpush2.xpose.msra.mxu0 0.0
        %6212 = vmatprep.subr.mxu0 0.0
        %6213 = vmatpush2.xpose.msra.mxu0 0.0
        %6214 = vmatprep.subr.mxu0 0.0
        %6215 = vmatpush2.xpose.msra.mxu0 0.0
        %6216 = vmatprep.subr.mxu0 0.0
        %6217 = vmatpush2.xpose.msra.mxu0 0.0
        %6218 = vmatprep.subr.mxu0 0.0
        %6219 = vmatpush2.xpose.msra.mxu0 0.0
        %6220 = vmatprep.subr.mxu0 0.0
        %6221 = vmatpush2.xpose.msra.mxu0 0.0
        %6222 = vmatprep.subr.mxu0 0.0
        %6223 = vmatpush2.xpose.msra.mxu0 0.0
        %6224 = vmatprep.subr.mxu0 0.0
        %6225 = vmatpush2.xpose.msra.mxu0 0.0
        %6226 = vmatprep.subr.mxu0 0.0
        %6227 = vmatpush2.xpose.msra.mxu0 0.0
        %6228 = vmatprep.subr.mxu0 0.0
        %6229 = vmatpush2.xpose.msra.mxu0 0.0
        %6230 = vmatprep.subr.mxu0 0.0
        %6231 = vmatpush2.xpose.msra.mxu0 0.0
        %6232 = vmatprep.mubr.f32.mxu0 0.0
        %6233 = vmatmul.mubr.f32.gmra.mxu0 %v6160
        %v6234 = vpop.f32.mrf.mxu0
        %v6235 = vadd.f32 0.0, %v6234
        %v6236 = vpop.f32.mrf.mxu0
        %6237 = vmatprep.mubr.f32.mxu0 0.0
        %6238 = vmatmul.mubr.f32.gmra.mxu0 %v6162
        %v6239 = vpop.f32.mrf.mxu0
        %v6240 = vadd.f32 0.0, %v6239
        %v6241 = vpop.f32.mrf.mxu0
        %6242 = vdwg.mxu0
        %6243 = vrot.lane.b32.xlu0 %v793, 32
        %v6244 = vpop.permute.xlu0 %6243
        %6245 = vrot.lane.b32.xlu0 %v794, 32
        %v6246 = vpop.permute.xlu0 %6245
        %6247 = vrot.lane.b32.xlu0 %v566, 32
        %v6248 = vpop.permute.xlu0 %6247
        %6249 = vrot.lane.b32.xlu0 %v572, 32
        %v6250 = vpop.permute.xlu0 %6249
        %v6251 = vsel %vm807, %v6244, 0
        %v6253 = vsel %vm807, %v6246, 0
        %v6255 = vsel %vm807, %v6248, 0
        %v6257 = vsel %vm807, %v6250, 0
        %6259 = vmatprep.subr.mxu0 0.0
        %6260 = vmatpush1.xpose.msra.mxu0 0.0
        %6261 = vmatprep.subr.mxu0 0.0
        %6262 = vmatpush1.xpose.msra.mxu0 0.0
        %6263 = vmatprep.subr.mxu0 0.0
        %6264 = vmatpush1.xpose.msra.mxu0 0.0
        %6265 = vmatprep.subr.mxu0 0.0
        %6266 = vmatpush1.xpose.msra.mxu0 0.0
        %6267 = vmatprep.subr.mxu0 0.0
        %6268 = vmatpush1.xpose.msra.mxu0 0.0
        %6269 = vmatprep.subr.mxu0 0.0
        %6270 = vmatpush1.xpose.msra.mxu0 0.0
        %6271 = vmatprep.subr.mxu0 0.0
        %6272 = vmatpush1.xpose.msra.mxu0 0.0
        %6273 = vmatprep.subr.mxu0 0.0
        %6274 = vmatpush1.xpose.msra.mxu0 0.0
        %6275 = vmatprep.subr.mxu0 0.0
        %6276 = vmatpush1.xpose.msra.mxu0 0.0
        %6277 = vmatprep.subr.mxu0 0.0
        %6278 = vmatpush1.xpose.msra.mxu0 0.0
        %6279 = vmatprep.subr.mxu0 0.0
        %6280 = vmatpush1.xpose.msra.mxu0 0.0
        %6281 = vmatprep.subr.mxu0 0.0
        %6282 = vmatpush1.xpose.msra.mxu0 0.0
        %6283 = vmatprep.subr.mxu0 0.0
        %6284 = vmatpush1.xpose.msra.mxu0 0.0
        %6285 = vmatprep.subr.mxu0 0.0
        %6286 = vmatpush1.xpose.msra.mxu0 0.0
        %6287 = vmatprep.subr.mxu0 0.0
        %6288 = vmatpush1.xpose.msra.mxu0 %v6257
        %6289 = vmatprep.subr.mxu0 0.0
        %6290 = vmatpush1.xpose.msra.mxu0 %v6255
        %6291 = vmatprep.subr.mxu0 0.0
        %6292 = vmatpush2.xpose.msra.mxu0 0.0
        %6293 = vmatprep.subr.mxu0 0.0
        %6294 = vmatpush2.xpose.msra.mxu0 0.0
        %6295 = vmatprep.subr.mxu0 0.0
        %6296 = vmatpush2.xpose.msra.mxu0 0.0
        %6297 = vmatprep.subr.mxu0 0.0
        %6298 = vmatpush2.xpose.msra.mxu0 0.0
        %6299 = vmatprep.subr.mxu0 0.0
        %6300 = vmatpush2.xpose.msra.mxu0 0.0
        %6301 = vmatprep.subr.mxu0 0.0
        %6302 = vmatpush2.xpose.msra.mxu0 0.0
        %6303 = vmatprep.subr.mxu0 0.0
        %6304 = vmatpush2.xpose.msra.mxu0 0.0
        %6305 = vmatprep.subr.mxu0 0.0
        %6306 = vmatpush2.xpose.msra.mxu0 0.0
        %6307 = vmatprep.subr.mxu0 0.0
        %6308 = vmatpush2.xpose.msra.mxu0 0.0
        %6309 = vmatprep.subr.mxu0 0.0
        %6310 = vmatpush2.xpose.msra.mxu0 0.0
        %6311 = vmatprep.subr.mxu0 0.0
        %6312 = vmatpush2.xpose.msra.mxu0 0.0
        %6313 = vmatprep.subr.mxu0 0.0
        %6314 = vmatpush2.xpose.msra.mxu0 0.0
        %6315 = vmatprep.subr.mxu0 0.0
        %6316 = vmatpush2.xpose.msra.mxu0 0.0
        %6317 = vmatprep.subr.mxu0 0.0
        %6318 = vmatpush2.xpose.msra.mxu0 0.0
        %6319 = vmatprep.subr.mxu0 0.0
        %6320 = vmatpush2.xpose.msra.mxu0 0.0
        %6321 = vmatprep.subr.mxu0 0.0
        %6322 = vmatpush2.xpose.msra.mxu0 0.0
        %6323 = vmatprep.mubr.f32.mxu0 0.0
        %6324 = vmatmul.mubr.f32.gmra.mxu0 %v6251
        %v6325 = vpop.f32.mrf.mxu0
        %v6326 = vadd.f32 0.0, %v6325
        %v6327 = vpop.f32.mrf.mxu0
        %6328 = vmatprep.mubr.f32.mxu0 0.0
        %6329 = vmatmul.mubr.f32.gmra.mxu0 %v6253
        %v6330 = vpop.f32.mrf.mxu0
        %v6331 = vadd.f32 0.0, %v6330
        %v6332 = vpop.f32.mrf.mxu0
        %6333 = vdwg.mxu0
        %6334 = vrot.lane.b32.xlu0 %v795, 32
        %v6335 = vpop.permute.xlu0 %6334
        %6336 = vrot.lane.b32.xlu0 %v796, 32
        %v6337 = vpop.permute.xlu0 %6336
        %6338 = vrot.lane.b32.xlu0 %v578, 32
        %v6339 = vpop.permute.xlu0 %6338
        %6340 = vrot.lane.b32.xlu0 %v584, 32
        %v6341 = vpop.permute.xlu0 %6340
        %v6342 = vsel %vm807, %v6335, 0
        %v6344 = vsel %vm807, %v6337, 0
        %v6346 = vsel %vm807, %v6339, 0
        %v6348 = vsel %vm807, %v6341, 0
        %6350 = vmatprep.subr.mxu0 0.0
        %6351 = vmatpush1.xpose.msra.mxu0 0.0
        %6352 = vmatprep.subr.mxu0 0.0
        %6353 = vmatpush1.xpose.msra.mxu0 0.0
        %6354 = vmatprep.subr.mxu0 0.0
        %6355 = vmatpush1.xpose.msra.mxu0 0.0
        %6356 = vmatprep.subr.mxu0 0.0
        %6357 = vmatpush1.xpose.msra.mxu0 0.0
        %6358 = vmatprep.subr.mxu0 0.0
        %6359 = vmatpush1.xpose.msra.mxu0 0.0
        %6360 = vmatprep.subr.mxu0 0.0
        %6361 = vmatpush1.xpose.msra.mxu0 0.0
        %6362 = vmatprep.subr.mxu0 0.0
        %6363 = vmatpush1.xpose.msra.mxu0 0.0
        %6364 = vmatprep.subr.mxu0 0.0
        %6365 = vmatpush1.xpose.msra.mxu0 0.0
        %6366 = vmatprep.subr.mxu0 0.0
        %6367 = vmatpush1.xpose.msra.mxu0 0.0
        %6368 = vmatprep.subr.mxu0 0.0
        %6369 = vmatpush1.xpose.msra.mxu0 0.0
        %6370 = vmatprep.subr.mxu0 0.0
        %6371 = vmatpush1.xpose.msra.mxu0 0.0
        %6372 = vmatprep.subr.mxu0 0.0
        %6373 = vmatpush1.xpose.msra.mxu0 0.0
        %6374 = vmatprep.subr.mxu0 0.0
        %6375 = vmatpush1.xpose.msra.mxu0 0.0
        %6376 = vmatprep.subr.mxu0 0.0
        %6377 = vmatpush1.xpose.msra.mxu0 0.0
        %6378 = vmatprep.subr.mxu0 0.0
        %6379 = vmatpush1.xpose.msra.mxu0 %v6348
        %6380 = vmatprep.subr.mxu0 0.0
        %6381 = vmatpush1.xpose.msra.mxu0 %v6346
        %6382 = vmatprep.subr.mxu0 0.0
        %6383 = vmatpush2.xpose.msra.mxu0 0.0
        %6384 = vmatprep.subr.mxu0 0.0
        %6385 = vmatpush2.xpose.msra.mxu0 0.0
        %6386 = vmatprep.subr.mxu0 0.0
        %6387 = vmatpush2.xpose.msra.mxu0 0.0
        %6388 = vmatprep.subr.mxu0 0.0
        %6389 = vmatpush2.xpose.msra.mxu0 0.0
        %6390 = vmatprep.subr.mxu0 0.0
        %6391 = vmatpush2.xpose.msra.mxu0 0.0
        %6392 = vmatprep.subr.mxu0 0.0
        %6393 = vmatpush2.xpose.msra.mxu0 0.0
        %6394 = vmatprep.subr.mxu0 0.0
        %6395 = vmatpush2.xpose.msra.mxu0 0.0
        %6396 = vmatprep.subr.mxu0 0.0
        %6397 = vmatpush2.xpose.msra.mxu0 0.0
        %6398 = vmatprep.subr.mxu0 0.0
        %6399 = vmatpush2.xpose.msra.mxu0 0.0
        %6400 = vmatprep.subr.mxu0 0.0
        %6401 = vmatpush2.xpose.msra.mxu0 0.0
        %6402 = vmatprep.subr.mxu0 0.0
        %6403 = vmatpush2.xpose.msra.mxu0 0.0
        %6404 = vmatprep.subr.mxu0 0.0
        %6405 = vmatpush2.xpose.msra.mxu0 0.0
        %6406 = vmatprep.subr.mxu0 0.0
        %6407 = vmatpush2.xpose.msra.mxu0 0.0
        %6408 = vmatprep.subr.mxu0 0.0
        %6409 = vmatpush2.xpose.msra.mxu0 0.0
        %6410 = vmatprep.subr.mxu0 0.0
        %6411 = vmatpush2.xpose.msra.mxu0 0.0
        %6412 = vmatprep.subr.mxu0 0.0
        %6413 = vmatpush2.xpose.msra.mxu0 0.0
        %6414 = vmatprep.mubr.f32.mxu0 0.0
        %6415 = vmatmul.mubr.f32.gmra.mxu0 %v6342
        %v6416 = vpop.f32.mrf.mxu0
        %v6417 = vadd.f32 0.0, %v6416
        %v6418 = vpop.f32.mrf.mxu0
        %6419 = vmatprep.mubr.f32.mxu0 0.0
        %6420 = vmatmul.mubr.f32.gmra.mxu0 %v6344
        %v6421 = vpop.f32.mrf.mxu0
        %v6422 = vadd.f32 0.0, %v6421
        %v6423 = vpop.f32.mrf.mxu0
        %6424 = vdwg.mxu0
        %6425 = vrot.lane.b32.xlu0 %v797, 32
        %v6426 = vpop.permute.xlu0 %6425
        %6427 = vrot.lane.b32.xlu0 %v798, 32
        %v6428 = vpop.permute.xlu0 %6427
        %6429 = vrot.lane.b32.xlu0 %v590, 32
        %v6430 = vpop.permute.xlu0 %6429
        %6431 = vrot.lane.b32.xlu0 %v596, 32
        %v6432 = vpop.permute.xlu0 %6431
        %v6433 = vsel %vm807, %v6426, 0
        %v6435 = vsel %vm807, %v6428, 0
        %v6437 = vsel %vm807, %v6430, 0
        %v6439 = vsel %vm807, %v6432, 0
        %6441 = vmatprep.subr.mxu0 0.0
        %6442 = vmatpush1.xpose.msra.mxu0 0.0
        %6443 = vmatprep.subr.mxu0 0.0
        %6444 = vmatpush1.xpose.msra.mxu0 0.0
        %6445 = vmatprep.subr.mxu0 0.0
        %6446 = vmatpush1.xpose.msra.mxu0 0.0
        %6447 = vmatprep.subr.mxu0 0.0
        %6448 = vmatpush1.xpose.msra.mxu0 0.0
        %6449 = vmatprep.subr.mxu0 0.0
        %6450 = vmatpush1.xpose.msra.mxu0 0.0
        %6451 = vmatprep.subr.mxu0 0.0
        %6452 = vmatpush1.xpose.msra.mxu0 0.0
        %6453 = vmatprep.subr.mxu0 0.0
        %6454 = vmatpush1.xpose.msra.mxu0 0.0
        %6455 = vmatprep.subr.mxu0 0.0
        %6456 = vmatpush1.xpose.msra.mxu0 0.0
        %6457 = vmatprep.subr.mxu0 0.0
        %6458 = vmatpush1.xpose.msra.mxu0 0.0
        %6459 = vmatprep.subr.mxu0 0.0
        %6460 = vmatpush1.xpose.msra.mxu0 0.0
        %6461 = vmatprep.subr.mxu0 0.0
        %6462 = vmatpush1.xpose.msra.mxu0 0.0
        %6463 = vmatprep.subr.mxu0 0.0
        %6464 = vmatpush1.xpose.msra.mxu0 0.0
        %6465 = vmatprep.subr.mxu0 0.0
        %6466 = vmatpush1.xpose.msra.mxu0 0.0
        %6467 = vmatprep.subr.mxu0 0.0
        %6468 = vmatpush1.xpose.msra.mxu0 0.0
        %6469 = vmatprep.subr.mxu0 0.0
        %6470 = vmatpush1.xpose.msra.mxu0 %v6439
        %6471 = vmatprep.subr.mxu0 0.0
        %6472 = vmatpush1.xpose.msra.mxu0 %v6437
        %6473 = vmatprep.subr.mxu0 0.0
        %6474 = vmatpush2.xpose.msra.mxu0 0.0
        %6475 = vmatprep.subr.mxu0 0.0
        %6476 = vmatpush2.xpose.msra.mxu0 0.0
        %6477 = vmatprep.subr.mxu0 0.0
        %6478 = vmatpush2.xpose.msra.mxu0 0.0
        %6479 = vmatprep.subr.mxu0 0.0
        %6480 = vmatpush2.xpose.msra.mxu0 0.0
        %6481 = vmatprep.subr.mxu0 0.0
        %6482 = vmatpush2.xpose.msra.mxu0 0.0
        %6483 = vmatprep.subr.mxu0 0.0
        %6484 = vmatpush2.xpose.msra.mxu0 0.0
        %6485 = vmatprep.subr.mxu0 0.0
        %6486 = vmatpush2.xpose.msra.mxu0 0.0
        %6487 = vmatprep.subr.mxu0 0.0
        %6488 = vmatpush2.xpose.msra.mxu0 0.0
        %6489 = vmatprep.subr.mxu0 0.0
        %6490 = vmatpush2.xpose.msra.mxu0 0.0
        %6491 = vmatprep.subr.mxu0 0.0
        %6492 = vmatpush2.xpose.msra.mxu0 0.0
        %6493 = vmatprep.subr.mxu0 0.0
        %6494 = vmatpush2.xpose.msra.mxu0 0.0
        %6495 = vmatprep.subr.mxu0 0.0
        %6496 = vmatpush2.xpose.msra.mxu0 0.0
        %6497 = vmatprep.subr.mxu0 0.0
        %6498 = vmatpush2.xpose.msra.mxu0 0.0
        %6499 = vmatprep.subr.mxu0 0.0
        %6500 = vmatpush2.xpose.msra.mxu0 0.0
        %6501 = vmatprep.subr.mxu0 0.0
        %6502 = vmatpush2.xpose.msra.mxu0 0.0
        %6503 = vmatprep.subr.mxu0 0.0
        %6504 = vmatpush2.xpose.msra.mxu0 0.0
        %6505 = vmatprep.mubr.f32.mxu0 0.0
        %6506 = vmatmul.mubr.f32.gmra.mxu0 %v6433
        %v6507 = vpop.f32.mrf.mxu0
        %v6508 = vadd.f32 0.0, %v6507
        %v6509 = vpop.f32.mrf.mxu0
        %6510 = vmatprep.mubr.f32.mxu0 0.0
        %6511 = vmatmul.mubr.f32.gmra.mxu0 %v6435
        %v6512 = vpop.f32.mrf.mxu0
        %v6513 = vadd.f32 0.0, %v6512
        %v6514 = vpop.f32.mrf.mxu0
        %6515 = vdwg.mxu0
        %6516 = vrot.lane.b32.xlu0 %v799, 32
        %v6517 = vpop.permute.xlu0 %6516
        %6518 = vrot.lane.b32.xlu0 %v800, 32
        %v6519 = vpop.permute.xlu0 %6518
        %6520 = vrot.lane.b32.xlu0 %v602, 32
        %v6521 = vpop.permute.xlu0 %6520
        %6522 = vrot.lane.b32.xlu0 %v608, 32
        %v6523 = vpop.permute.xlu0 %6522
        %v6524 = vsel %vm807, %v6517, 0
        %v6526 = vsel %vm807, %v6519, 0
        %v6528 = vsel %vm807, %v6521, 0
        %v6530 = vsel %vm807, %v6523, 0
        %6532 = vmatprep.subr.mxu0 0.0
        %6533 = vmatpush1.xpose.msra.mxu0 0.0
        %6534 = vmatprep.subr.mxu0 0.0
        %6535 = vmatpush1.xpose.msra.mxu0 0.0
        %6536 = vmatprep.subr.mxu0 0.0
        %6537 = vmatpush1.xpose.msra.mxu0 0.0
        %6538 = vmatprep.subr.mxu0 0.0
        %6539 = vmatpush1.xpose.msra.mxu0 0.0
        %6540 = vmatprep.subr.mxu0 0.0
        %6541 = vmatpush1.xpose.msra.mxu0 0.0
        %6542 = vmatprep.subr.mxu0 0.0
        %6543 = vmatpush1.xpose.msra.mxu0 0.0
        %6544 = vmatprep.subr.mxu0 0.0
        %6545 = vmatpush1.xpose.msra.mxu0 0.0
        %6546 = vmatprep.subr.mxu0 0.0
        %6547 = vmatpush1.xpose.msra.mxu0 0.0
        %6548 = vmatprep.subr.mxu0 0.0
        %6549 = vmatpush1.xpose.msra.mxu0 0.0
        %6550 = vmatprep.subr.mxu0 0.0
        %6551 = vmatpush1.xpose.msra.mxu0 0.0
        %6552 = vmatprep.subr.mxu0 0.0
        %6553 = vmatpush1.xpose.msra.mxu0 0.0
        %6554 = vmatprep.subr.mxu0 0.0
        %6555 = vmatpush1.xpose.msra.mxu0 0.0
        %6556 = vmatprep.subr.mxu0 0.0
        %6557 = vmatpush1.xpose.msra.mxu0 0.0
        %6558 = vmatprep.subr.mxu0 0.0
        %6559 = vmatpush1.xpose.msra.mxu0 0.0
        %6560 = vmatprep.subr.mxu0 0.0
        %6561 = vmatpush1.xpose.msra.mxu0 %v6530
        %6562 = vmatprep.subr.mxu0 0.0
        %6563 = vmatpush1.xpose.msra.mxu0 %v6528
        %6564 = vmatprep.subr.mxu0 0.0
        %6565 = vmatpush2.xpose.msra.mxu0 0.0
        %6566 = vmatprep.subr.mxu0 0.0
        %6567 = vmatpush2.xpose.msra.mxu0 0.0
        %6568 = vmatprep.subr.mxu0 0.0
        %6569 = vmatpush2.xpose.msra.mxu0 0.0
        %6570 = vmatprep.subr.mxu0 0.0
        %6571 = vmatpush2.xpose.msra.mxu0 0.0
        %6572 = vmatprep.subr.mxu0 0.0
        %6573 = vmatpush2.xpose.msra.mxu0 0.0
        %6574 = vmatprep.subr.mxu0 0.0
        %6575 = vmatpush2.xpose.msra.mxu0 0.0
        %6576 = vmatprep.subr.mxu0 0.0
        %6577 = vmatpush2.xpose.msra.mxu0 0.0
        %6578 = vmatprep.subr.mxu0 0.0
        %6579 = vmatpush2.xpose.msra.mxu0 0.0
        %6580 = vmatprep.subr.mxu0 0.0
        %6581 = vmatpush2.xpose.msra.mxu0 0.0
        %6582 = vmatprep.subr.mxu0 0.0
        %6583 = vmatpush2.xpose.msra.mxu0 0.0
        %6584 = vmatprep.subr.mxu0 0.0
        %6585 = vmatpush2.xpose.msra.mxu0 0.0
        %6586 = vmatprep.subr.mxu0 0.0
        %6587 = vmatpush2.xpose.msra.mxu0 0.0
        %6588 = vmatprep.subr.mxu0 0.0
        %6589 = vmatpush2.xpose.msra.mxu0 0.0
        %6590 = vmatprep.subr.mxu0 0.0
        %6591 = vmatpush2.xpose.msra.mxu0 0.0
        %6592 = vmatprep.subr.mxu0 0.0
        %6593 = vmatpush2.xpose.msra.mxu0 0.0
        %6594 = vmatprep.subr.mxu0 0.0
        %6595 = vmatpush2.xpose.msra.mxu0 0.0
        %6596 = vmatprep.mubr.f32.mxu0 0.0
        %6597 = vmatmul.mubr.f32.gmra.mxu0 %v6524
        %v6598 = vpop.f32.mrf.mxu0
        %v6599 = vadd.f32 0.0, %v6598
        %v6600 = vpop.f32.mrf.mxu0
        %6601 = vmatprep.mubr.f32.mxu0 0.0
        %6602 = vmatmul.mubr.f32.gmra.mxu0 %v6526
        %v6603 = vpop.f32.mrf.mxu0
        %v6604 = vadd.f32 0.0, %v6603
        %v6605 = vpop.f32.mrf.mxu0
        %6606 = vdwg.mxu0
        %6607 = vrot.lane.b32.xlu0 %v801, 32
        %v6608 = vpop.permute.xlu0 %6607
        %6609 = vrot.lane.b32.xlu0 %v802, 32
        %v6610 = vpop.permute.xlu0 %6609
        %6611 = vrot.lane.b32.xlu0 %v614, 32
        %v6612 = vpop.permute.xlu0 %6611
        %6613 = vrot.lane.b32.xlu0 %v620, 32
        %v6614 = vpop.permute.xlu0 %6613
        %v6615 = vsel %vm807, %v6608, 0
        %v6617 = vsel %vm807, %v6610, 0
        %v6619 = vsel %vm807, %v6612, 0
        %v6621 = vsel %vm807, %v6614, 0
        %6623 = vmatprep.subr.mxu0 0.0
        %6624 = vmatpush1.xpose.msra.mxu0 0.0
        %6625 = vmatprep.subr.mxu0 0.0
        %6626 = vmatpush1.xpose.msra.mxu0 0.0
        %6627 = vmatprep.subr.mxu0 0.0
        %6628 = vmatpush1.xpose.msra.mxu0 0.0
        %6629 = vmatprep.subr.mxu0 0.0
        %6630 = vmatpush1.xpose.msra.mxu0 0.0
        %6631 = vmatprep.subr.mxu0 0.0
        %6632 = vmatpush1.xpose.msra.mxu0 0.0
        %6633 = vmatprep.subr.mxu0 0.0
        %6634 = vmatpush1.xpose.msra.mxu0 0.0
        %6635 = vmatprep.subr.mxu0 0.0
        %6636 = vmatpush1.xpose.msra.mxu0 0.0
        %6637 = vmatprep.subr.mxu0 0.0
        %6638 = vmatpush1.xpose.msra.mxu0 0.0
        %6639 = vmatprep.subr.mxu0 0.0
        %6640 = vmatpush1.xpose.msra.mxu0 0.0
        %6641 = vmatprep.subr.mxu0 0.0
        %6642 = vmatpush1.xpose.msra.mxu0 0.0
        %6643 = vmatprep.subr.mxu0 0.0
        %6644 = vmatpush1.xpose.msra.mxu0 0.0
        %6645 = vmatprep.subr.mxu0 0.0
        %6646 = vmatpush1.xpose.msra.mxu0 0.0
        %6647 = vmatprep.subr.mxu0 0.0
        %6648 = vmatpush1.xpose.msra.mxu0 0.0
        %6649 = vmatprep.subr.mxu0 0.0
        %6650 = vmatpush1.xpose.msra.mxu0 0.0
        %6651 = vmatprep.subr.mxu0 0.0
        %6652 = vmatpush1.xpose.msra.mxu0 %v6621
        %6653 = vmatprep.subr.mxu0 0.0
        %6654 = vmatpush1.xpose.msra.mxu0 %v6619
        %6655 = vmatprep.subr.mxu0 0.0
        %6656 = vmatpush2.xpose.msra.mxu0 0.0
        %6657 = vmatprep.subr.mxu0 0.0
        %6658 = vmatpush2.xpose.msra.mxu0 0.0
        %6659 = vmatprep.subr.mxu0 0.0
        %6660 = vmatpush2.xpose.msra.mxu0 0.0
        %6661 = vmatprep.subr.mxu0 0.0
        %6662 = vmatpush2.xpose.msra.mxu0 0.0
        %6663 = vmatprep.subr.mxu0 0.0
        %6664 = vmatpush2.xpose.msra.mxu0 0.0
        %6665 = vmatprep.subr.mxu0 0.0
        %6666 = vmatpush2.xpose.msra.mxu0 0.0
        %6667 = vmatprep.subr.mxu0 0.0
        %6668 = vmatpush2.xpose.msra.mxu0 0.0
        %6669 = vmatprep.subr.mxu0 0.0
        %6670 = vmatpush2.xpose.msra.mxu0 0.0
        %6671 = vmatprep.subr.mxu0 0.0
        %6672 = vmatpush2.xpose.msra.mxu0 0.0
        %6673 = vmatprep.subr.mxu0 0.0
        %6674 = vmatpush2.xpose.msra.mxu0 0.0
        %6675 = vmatprep.subr.mxu0 0.0
        %6676 = vmatpush2.xpose.msra.mxu0 0.0
        %6677 = vmatprep.subr.mxu0 0.0
        %6678 = vmatpush2.xpose.msra.mxu0 0.0
        %6679 = vmatprep.subr.mxu0 0.0
        %6680 = vmatpush2.xpose.msra.mxu0 0.0
        %6681 = vmatprep.subr.mxu0 0.0
        %6682 = vmatpush2.xpose.msra.mxu0 0.0
        %6683 = vmatprep.subr.mxu0 0.0
        %6684 = vmatpush2.xpose.msra.mxu0 0.0
        %6685 = vmatprep.subr.mxu0 0.0
        %6686 = vmatpush2.xpose.msra.mxu0 0.0
        %6687 = vmatprep.mubr.f32.mxu0 0.0
        %6688 = vmatmul.mubr.f32.gmra.mxu0 %v6615
        %v6689 = vpop.f32.mrf.mxu0
        %v6690 = vadd.f32 0.0, %v6689
        %v6691 = vpop.f32.mrf.mxu0
        %6692 = vmatprep.mubr.f32.mxu0 0.0
        %6693 = vmatmul.mubr.f32.gmra.mxu0 %v6617
        %v6694 = vpop.f32.mrf.mxu0
        %v6695 = vadd.f32 0.0, %v6694
        %v6696 = vpop.f32.mrf.mxu0
        %6697 = vdwg.mxu0
        %6698 = vrot.lane.b32.xlu0 %v803, 32
        %v6699 = vpop.permute.xlu0 %6698
        %6700 = vrot.lane.b32.xlu0 %v804, 32
        %v6701 = vpop.permute.xlu0 %6700
        %6702 = vrot.lane.b32.xlu0 %v626, 32
        %v6703 = vpop.permute.xlu0 %6702
        %6704 = vrot.lane.b32.xlu0 %v632, 32
        %v6705 = vpop.permute.xlu0 %6704
        %v6706 = vsel %vm807, %v6699, 0
        %v6708 = vsel %vm807, %v6701, 0
        %v6710 = vsel %vm807, %v6703, 0
        %v6712 = vsel %vm807, %v6705, 0
        %6714 = vmatprep.subr.mxu0 0.0
        %6715 = vmatpush1.xpose.msra.mxu0 0.0
        %6716 = vmatprep.subr.mxu0 0.0
        %6717 = vmatpush1.xpose.msra.mxu0 0.0
        %6718 = vmatprep.subr.mxu0 0.0
        %6719 = vmatpush1.xpose.msra.mxu0 0.0
        %6720 = vmatprep.subr.mxu0 0.0
        %6721 = vmatpush1.xpose.msra.mxu0 0.0
        %6722 = vmatprep.subr.mxu0 0.0
        %6723 = vmatpush1.xpose.msra.mxu0 0.0
        %6724 = vmatprep.subr.mxu0 0.0
        %6725 = vmatpush1.xpose.msra.mxu0 0.0
        %6726 = vmatprep.subr.mxu0 0.0
        %6727 = vmatpush1.xpose.msra.mxu0 0.0
        %6728 = vmatprep.subr.mxu0 0.0
        %6729 = vmatpush1.xpose.msra.mxu0 0.0
        %6730 = vmatprep.subr.mxu0 0.0
        %6731 = vmatpush1.xpose.msra.mxu0 0.0
        %6732 = vmatprep.subr.mxu0 0.0
        %6733 = vmatpush1.xpose.msra.mxu0 0.0
        %6734 = vmatprep.subr.mxu0 0.0
        %6735 = vmatpush1.xpose.msra.mxu0 0.0
        %6736 = vmatprep.subr.mxu0 0.0
        %6737 = vmatpush1.xpose.msra.mxu0 0.0
        %6738 = vmatprep.subr.mxu0 0.0
        %6739 = vmatpush1.xpose.msra.mxu0 0.0
        %6740 = vmatprep.subr.mxu0 0.0
        %6741 = vmatpush1.xpose.msra.mxu0 0.0
        %6742 = vmatprep.subr.mxu0 0.0
        %6743 = vmatpush1.xpose.msra.mxu0 %v6712
        %6744 = vmatprep.subr.mxu0 0.0
        %6745 = vmatpush1.xpose.msra.mxu0 %v6710
        %6746 = vmatprep.subr.mxu0 0.0
        %6747 = vmatpush2.xpose.msra.mxu0 0.0
        %6748 = vmatprep.subr.mxu0 0.0
        %6749 = vmatpush2.xpose.msra.mxu0 0.0
        %6750 = vmatprep.subr.mxu0 0.0
        %6751 = vmatpush2.xpose.msra.mxu0 0.0
        %6752 = vmatprep.subr.mxu0 0.0
        %6753 = vmatpush2.xpose.msra.mxu0 0.0
        %6754 = vmatprep.subr.mxu0 0.0
        %6755 = vmatpush2.xpose.msra.mxu0 0.0
        %6756 = vmatprep.subr.mxu0 0.0
        %6757 = vmatpush2.xpose.msra.mxu0 0.0
        %6758 = vmatprep.subr.mxu0 0.0
        %6759 = vmatpush2.xpose.msra.mxu0 0.0
        %6760 = vmatprep.subr.mxu0 0.0
        %6761 = vmatpush2.xpose.msra.mxu0 0.0
        %6762 = vmatprep.subr.mxu0 0.0
        %6763 = vmatpush2.xpose.msra.mxu0 0.0
        %6764 = vmatprep.subr.mxu0 0.0
        %6765 = vmatpush2.xpose.msra.mxu0 0.0
        %6766 = vmatprep.subr.mxu0 0.0
        %6767 = vmatpush2.xpose.msra.mxu0 0.0
        %6768 = vmatprep.subr.mxu0 0.0
        %6769 = vmatpush2.xpose.msra.mxu0 0.0
        %6770 = vmatprep.subr.mxu0 0.0
        %6771 = vmatpush2.xpose.msra.mxu0 0.0
        %6772 = vmatprep.subr.mxu0 0.0
        %6773 = vmatpush2.xpose.msra.mxu0 0.0
        %6774 = vmatprep.subr.mxu0 0.0
        %6775 = vmatpush2.xpose.msra.mxu0 0.0
        %6776 = vmatprep.subr.mxu0 0.0
        %6777 = vmatpush2.xpose.msra.mxu0 0.0
        %6778 = vmatprep.mubr.f32.mxu0 0.0
        %6779 = vmatmul.mubr.f32.gmra.mxu0 %v6706
        %v6780 = vpop.f32.mrf.mxu0
        %v6781 = vadd.f32 0.0, %v6780
        %v6782 = vpop.f32.mrf.mxu0
        %6783 = vmatprep.mubr.f32.mxu0 0.0
        %6784 = vmatmul.mubr.f32.gmra.mxu0 %v6708
        %v6785 = vpop.f32.mrf.mxu0
        %v6786 = vadd.f32 0.0, %v6785
        %v6787 = vpop.f32.mrf.mxu0
        %6788 = vdwg.mxu0
        %6789 = vrot.lane.b32.xlu0 %v805, 32
        %v6790 = vpop.permute.xlu0 %6789
        %6791 = vrot.lane.b32.xlu0 %v806, 32
        %v6792 = vpop.permute.xlu0 %6791
        %6793 = vrot.lane.b32.xlu0 %v638, 32
        %v6794 = vpop.permute.xlu0 %6793
        %6795 = vrot.lane.b32.xlu0 %v644, 32
        %v6796 = vpop.permute.xlu0 %6795
        %v6797 = vsel %vm807, %v6790, 0
        %v6799 = vsel %vm807, %v6792, 0
        %v6801 = vsel %vm807, %v6794, 0
        %v6803 = vsel %vm807, %v6796, 0
        %6805 = vmatprep.subr.mxu0 0.0
        %6806 = vmatpush1.xpose.msra.mxu0 0.0
        %6807 = vmatprep.subr.mxu0 0.0
        %6808 = vmatpush1.xpose.msra.mxu0 0.0
        %6809 = vmatprep.subr.mxu0 0.0
        %6810 = vmatpush1.xpose.msra.mxu0 0.0
        %6811 = vmatprep.subr.mxu0 0.0
        %6812 = vmatpush1.xpose.msra.mxu0 0.0
        %6813 = vmatprep.subr.mxu0 0.0
        %6814 = vmatpush1.xpose.msra.mxu0 0.0
        %6815 = vmatprep.subr.mxu0 0.0
        %6816 = vmatpush1.xpose.msra.mxu0 0.0
        %6817 = vmatprep.subr.mxu0 0.0
        %6818 = vmatpush1.xpose.msra.mxu0 0.0
        %6819 = vmatprep.subr.mxu0 0.0
        %6820 = vmatpush1.xpose.msra.mxu0 0.0
        %6821 = vmatprep.subr.mxu0 0.0
        %6822 = vmatpush1.xpose.msra.mxu0 0.0
        %6823 = vmatprep.subr.mxu0 0.0
        %6824 = vmatpush1.xpose.msra.mxu0 0.0
        %6825 = vmatprep.subr.mxu0 0.0
        %6826 = vmatpush1.xpose.msra.mxu0 0.0
        %6827 = vmatprep.subr.mxu0 0.0
        %6828 = vmatpush1.xpose.msra.mxu0 0.0
        %6829 = vmatprep.subr.mxu0 0.0
        %6830 = vmatpush1.xpose.msra.mxu0 0.0
        %6831 = vmatprep.subr.mxu0 0.0
        %6832 = vmatpush1.xpose.msra.mxu0 0.0
        %6833 = vmatprep.subr.mxu0 0.0
        %6834 = vmatpush1.xpose.msra.mxu0 %v6803
        %6835 = vmatprep.subr.mxu0 0.0
        %6836 = vmatpush1.xpose.msra.mxu0 %v6801
        %6837 = vmatprep.subr.mxu0 0.0
        %6838 = vmatpush2.xpose.msra.mxu0 0.0
        %6839 = vmatprep.subr.mxu0 0.0
        %6840 = vmatpush2.xpose.msra.mxu0 0.0
        %6841 = vmatprep.subr.mxu0 0.0
        %6842 = vmatpush2.xpose.msra.mxu0 0.0
        %6843 = vmatprep.subr.mxu0 0.0
        %6844 = vmatpush2.xpose.msra.mxu0 0.0
        %6845 = vmatprep.subr.mxu0 0.0
        %6846 = vmatpush2.xpose.msra.mxu0 0.0
        %6847 = vmatprep.subr.mxu0 0.0
        %6848 = vmatpush2.xpose.msra.mxu0 0.0
        %6849 = vmatprep.subr.mxu0 0.0
        %6850 = vmatpush2.xpose.msra.mxu0 0.0
        %6851 = vmatprep.subr.mxu0 0.0
        %6852 = vmatpush2.xpose.msra.mxu0 0.0
        %6853 = vmatprep.subr.mxu0 0.0
        %6854 = vmatpush2.xpose.msra.mxu0 0.0
        %6855 = vmatprep.subr.mxu0 0.0
        %6856 = vmatpush2.xpose.msra.mxu0 0.0
        %6857 = vmatprep.subr.mxu0 0.0
        %6858 = vmatpush2.xpose.msra.mxu0 0.0
        %6859 = vmatprep.subr.mxu0 0.0
        %6860 = vmatpush2.xpose.msra.mxu0 0.0
        %6861 = vmatprep.subr.mxu0 0.0
        %6862 = vmatpush2.xpose.msra.mxu0 0.0
        %6863 = vmatprep.subr.mxu0 0.0
        %6864 = vmatpush2.xpose.msra.mxu0 0.0
        %6865 = vmatprep.subr.mxu0 0.0
        %6866 = vmatpush2.xpose.msra.mxu0 0.0
        %6867 = vmatprep.subr.mxu0 0.0
        %6868 = vmatpush2.xpose.msra.mxu0 0.0
        %6869 = vmatprep.mubr.f32.mxu0 0.0
        %6870 = vmatmul.mubr.f32.gmra.mxu0 %v6797
        %v6871 = vpop.f32.mrf.mxu0
        %v6872 = vadd.f32 0.0, %v6871
        %v6873 = vpop.f32.mrf.mxu0
        %6874 = vmatprep.mubr.f32.mxu0 0.0
        %6875 = vmatmul.mubr.f32.gmra.mxu0 %v6799
        %v6876 = vpop.f32.mrf.mxu0
        %v6877 = vadd.f32 0.0, %v6876
        %v6878 = vpop.f32.mrf.mxu0
        %6879 = vdwg.mxu0
        %v6880 = vsel %vm1504, %v6235, -inf
        %6881 = vmax.xlane.f32.xlu0 %v6880
        %v6882 = vpop.xlane.xlu0 %6881
        %v6883 = vsel %vm1504, %v6240, -inf
        %6884 = vmax.xlane.f32.xlu0 %v6883
        %v6885 = vpop.xlane.xlu0 %6884
        %v6886 = vsel %vm1504, %v6326, -inf
        %6887 = vmax.xlane.f32.xlu0 %v6886
        %v6888 = vpop.xlane.xlu0 %6887
        %v6889 = vsel %vm1504, %v6331, -inf
        %6890 = vmax.xlane.f32.xlu0 %v6889
        %v6891 = vpop.xlane.xlu0 %6890
        %v6892 = vsel %vm1504, %v6417, -inf
        %6893 = vmax.xlane.f32.xlu0 %v6892
        %v6894 = vpop.xlane.xlu0 %6893
        %v6895 = vsel %vm1504, %v6422, -inf
        %6896 = vmax.xlane.f32.xlu0 %v6895
        %v6897 = vpop.xlane.xlu0 %6896
        %v6898 = vsel %vm1504, %v6508, -inf
        %6899 = vmax.xlane.f32.xlu0 %v6898
        %v6900 = vpop.xlane.xlu0 %6899
        %v6901 = vsel %vm1504, %v6513, -inf
        %6902 = vmax.xlane.f32.xlu0 %v6901
        %v6903 = vpop.xlane.xlu0 %6902
        %v6904 = vsel %vm1504, %v6599, -inf
        %6905 = vmax.xlane.f32.xlu0 %v6904
        %v6906 = vpop.xlane.xlu0 %6905
        %v6907 = vsel %vm1504, %v6604, -inf
        %6908 = vmax.xlane.f32.xlu0 %v6907
        %v6909 = vpop.xlane.xlu0 %6908
        %v6910 = vsel %vm1504, %v6690, -inf
        %6911 = vmax.xlane.f32.xlu0 %v6910
        %v6912 = vpop.xlane.xlu0 %6911
        %v6913 = vsel %vm1504, %v6695, -inf
        %6914 = vmax.xlane.f32.xlu0 %v6913
        %v6915 = vpop.xlane.xlu0 %6914
        %v6916 = vsel %vm1504, %v6781, -inf
        %6917 = vmax.xlane.f32.xlu0 %v6916
        %v6918 = vpop.xlane.xlu0 %6917
        %v6919 = vsel %vm1504, %v6786, -inf
        %6920 = vmax.xlane.f32.xlu0 %v6919
        %v6921 = vpop.xlane.xlu0 %6920
        %v6922 = vsel %vm1504, %v6872, -inf
        %6923 = vmax.xlane.f32.xlu0 %v6922
        %v6924 = vpop.xlane.xlu0 %6923
        %v6925 = vsel %vm1504, %v6877, -inf
        %6926 = vmax.xlane.f32.xlu0 %v6925
        %v6927 = vpop.xlane.xlu0 %6926
        %v6928 = vsub.f32 %v6235, %v6882
        %v6929 = vsub.f32 %v6240, %v6885
        %v6930 = vsub.f32 %v6326, %v6888
        %v6931 = vsub.f32 %v6331, %v6891
        %v6932 = vsub.f32 %v6417, %v6894
        %v6933 = vsub.f32 %v6422, %v6897
        %v6934 = vsub.f32 %v6508, %v6900
        %v6935 = vsub.f32 %v6513, %v6903
        %v6936 = vsub.f32 %v6599, %v6906
        %v6937 = vsub.f32 %v6604, %v6909
        %v6938 = vsub.f32 %v6690, %v6912
        %v6939 = vsub.f32 %v6695, %v6915
        %v6940 = vsub.f32 %v6781, %v6918
        %v6941 = vsub.f32 %v6786, %v6921
        %v6942 = vsub.f32 %v6872, %v6924
        %v6943 = vsub.f32 %v6877, %v6927
        %v6944 = vmul.f32 %v6928, 1.442695
        %v6945 = vpow.pop %v6944
        %v6946 = vmul.f32 %v6929, 1.442695
        %v6947 = vpow.pop %v6946
        %v6948 = vmul.f32 %v6930, 1.442695
        %v6949 = vpow.pop %v6948
        %v6950 = vmul.f32 %v6931, 1.442695
        %v6951 = vpow.pop %v6950
        %v6952 = vmul.f32 %v6932, 1.442695
        %v6953 = vpow.pop %v6952
        %v6954 = vmul.f32 %v6933, 1.442695
        %v6955 = vpow.pop %v6954
        %v6956 = vmul.f32 %v6934, 1.442695
        %v6957 = vpow.pop %v6956
        %v6958 = vmul.f32 %v6935, 1.442695
        %v6959 = vpow.pop %v6958
        %v6960 = vmul.f32 %v6936, 1.442695
        %v6961 = vpow.pop %v6960
        %v6962 = vmul.f32 %v6937, 1.442695
        %v6963 = vpow.pop %v6962
        %v6964 = vmul.f32 %v6938, 1.442695
        %v6965 = vpow.pop %v6964
        %v6966 = vmul.f32 %v6939, 1.442695
        %v6967 = vpow.pop %v6966
        %v6968 = vmul.f32 %v6940, 1.442695
        %v6969 = vpow.pop %v6968
        %v6970 = vmul.f32 %v6941, 1.442695
        %v6971 = vpow.pop %v6970
        %v6972 = vmul.f32 %v6942, 1.442695
        %v6973 = vpow.pop %v6972
        %v6974 = vmul.f32 %v6943, 1.442695
        %v6975 = vpow.pop %v6974
        %v6976 = vsel %vm1504, %v6945, 0.0
        %6977 = vadd.xlane.f32.xlu0 %v6976
        %v6978 = vpop.xlane.xlu0 %6977
        %v6979 = vsel %vm1504, %v6947, 0.0
        %6980 = vadd.xlane.f32.xlu0 %v6979
        %v6981 = vpop.xlane.xlu0 %6980
        %v6982 = vsel %vm1504, %v6949, 0.0
        %6983 = vadd.xlane.f32.xlu0 %v6982
        %v6984 = vpop.xlane.xlu0 %6983
        %v6985 = vsel %vm1504, %v6951, 0.0
        %6986 = vadd.xlane.f32.xlu0 %v6985
        %v6987 = vpop.xlane.xlu0 %6986
        %v6988 = vsel %vm1504, %v6953, 0.0
        %6989 = vadd.xlane.f32.xlu0 %v6988
        %v6990 = vpop.xlane.xlu0 %6989
        %v6991 = vsel %vm1504, %v6955, 0.0
        %6992 = vadd.xlane.f32.xlu0 %v6991
        %v6993 = vpop.xlane.xlu0 %6992
        %v6994 = vsel %vm1504, %v6957, 0.0
        %6995 = vadd.xlane.f32.xlu0 %v6994
        %v6996 = vpop.xlane.xlu0 %6995
        %v6997 = vsel %vm1504, %v6959, 0.0
        %6998 = vadd.xlane.f32.xlu0 %v6997
        %v6999 = vpop.xlane.xlu0 %6998
        %v7000 = vsel %vm1504, %v6961, 0.0
        %7001 = vadd.xlane.f32.xlu0 %v7000
        %v7002 = vpop.xlane.xlu0 %7001
        %v7003 = vsel %vm1504, %v6963, 0.0
        %7004 = vadd.xlane.f32.xlu0 %v7003
        %v7005 = vpop.xlane.xlu0 %7004
        %v7006 = vsel %vm1504, %v6965, 0.0
        %7007 = vadd.xlane.f32.xlu0 %v7006
        %v7008 = vpop.xlane.xlu0 %7007
        %v7009 = vsel %vm1504, %v6967, 0.0
        %7010 = vadd.xlane.f32.xlu0 %v7009
        %v7011 = vpop.xlane.xlu0 %7010
        %v7012 = vsel %vm1504, %v6969, 0.0
        %7013 = vadd.xlane.f32.xlu0 %v7012
        %v7014 = vpop.xlane.xlu0 %7013
        %v7015 = vsel %vm1504, %v6971, 0.0
        %7016 = vadd.xlane.f32.xlu0 %v7015
        %v7017 = vpop.xlane.xlu0 %7016
        %v7018 = vsel %vm1504, %v6973, 0.0
        %7019 = vadd.xlane.f32.xlu0 %v7018
        %v7020 = vpop.xlane.xlu0 %7019
        %v7021 = vsel %vm1504, %v6975, 0.0
        %7022 = vadd.xlane.f32.xlu0 %v7021
        %v7023 = vpop.xlane.xlu0 %7022
        %v7024 = vrcp.pop %v6978
        %v7025 = vrcp.pop %v6981
        %v7026 = vrcp.pop %v6984
        %v7027 = vrcp.pop %v6987
        %v7028 = vrcp.pop %v6990
        %v7029 = vrcp.pop %v6993
        %v7030 = vrcp.pop %v6996
        %v7031 = vrcp.pop %v6999
        %v7032 = vrcp.pop %v7002
        %v7033 = vrcp.pop %v7005
        %v7034 = vrcp.pop %v7008
        %v7035 = vrcp.pop %v7011
        %v7036 = vrcp.pop %v7014
        %v7037 = vrcp.pop %v7017
        %v7038 = vrcp.pop %v7020
        %v7039 = vrcp.pop %v7023
        %v7040 = vmul.f32 %v6945, %v7024
        %v7041 = vmul.f32 %v6947, %v7025
        %v7042 = vmul.f32 %v6949, %v7026
        %v7043 = vmul.f32 %v6951, %v7027
        %v7044 = vmul.f32 %v6953, %v7028
        %v7045 = vmul.f32 %v6955, %v7029
        %v7046 = vmul.f32 %v6957, %v7030
        %v7047 = vmul.f32 %v6959, %v7031
        %v7048 = vmul.f32 %v6961, %v7032
        %v7049 = vmul.f32 %v6963, %v7033
        %v7050 = vmul.f32 %v6965, %v7034
        %v7051 = vmul.f32 %v6967, %v7035
        %v7052 = vmul.f32 %v6969, %v7036
        %v7053 = vmul.f32 %v6971, %v7037
        %v7054 = vmul.f32 %v6973, %v7038
        %v7055 = vmul.f32 %v6975, %v7039
        %7056 = vrot.lane.b32.xlu0 %v713, 32
        %v7057 = vpop.permute.xlu0 %7056
        %7058 = vrot.lane.b32.xlu0 %v718, 32
        %v7059 = vpop.permute.xlu0 %7058
        %v7063 = vsel %vm1504, %v7040, 0
        %v7066 = vsel %vm1504, %v7041, 0
        %7068 = vmatprep.subr.mxu0 0.0
        %7069 = vmatpush1.msra.mxu0 0.0
        %7070 = vmatprep.subr.mxu0 0.0
        %7071 = vmatpush1.msra.mxu0 0.0
        %7072 = vmatprep.subr.mxu0 0.0
        %7073 = vmatpush1.msra.mxu0 0.0
        %7074 = vmatprep.subr.mxu0 0.0
        %7075 = vmatpush1.msra.mxu0 0.0
        %7076 = vmatprep.subr.mxu0 0.0
        %7077 = vmatpush1.msra.mxu0 0.0
        %7078 = vmatprep.subr.mxu0 0.0
        %7079 = vmatpush1.msra.mxu0 0.0
        %7080 = vmatprep.subr.mxu0 0.0
        %7081 = vmatpush1.msra.mxu0 0.0
        %7082 = vmatprep.subr.mxu0 0.0
        %7083 = vmatpush1.msra.mxu0 0.0
        %7084 = vmatprep.subr.mxu0 0.0
        %7085 = vmatpush1.msra.mxu0 0.0
        %7086 = vmatprep.subr.mxu0 0.0
        %7087 = vmatpush1.msra.mxu0 0.0
        %7088 = vmatprep.subr.mxu0 0.0
        %7089 = vmatpush1.msra.mxu0 0.0
        %7090 = vmatprep.subr.mxu0 0.0
        %7091 = vmatpush1.msra.mxu0 0.0
        %7092 = vmatprep.subr.mxu0 0.0
        %7093 = vmatpush1.msra.mxu0 0.0
        %7094 = vmatprep.subr.mxu0 0.0
        %7095 = vmatpush1.msra.mxu0 0.0
        %7096 = vmatprep.subr.mxu0 0.0
        %7097 = vmatpush1.msra.mxu0 %v7059
        %7098 = vmatprep.subr.mxu0 0.0
        %7099 = vmatpush1.msra.mxu0 %v7057
        %7100 = vmatprep.subr.mxu0 0.0
        %7101 = vmatpush2.msra.mxu0 0.0
        %7102 = vmatprep.subr.mxu0 0.0
        %7103 = vmatpush2.msra.mxu0 0.0
        %7104 = vmatprep.subr.mxu0 0.0
        %7105 = vmatpush2.msra.mxu0 0.0
        %7106 = vmatprep.subr.mxu0 0.0
        %7107 = vmatpush2.msra.mxu0 0.0
        %7108 = vmatprep.subr.mxu0 0.0
        %7109 = vmatpush2.msra.mxu0 0.0
        %7110 = vmatprep.subr.mxu0 0.0
        %7111 = vmatpush2.msra.mxu0 0.0
        %7112 = vmatprep.subr.mxu0 0.0
        %7113 = vmatpush2.msra.mxu0 0.0
        %7114 = vmatprep.subr.mxu0 0.0
        %7115 = vmatpush2.msra.mxu0 0.0
        %7116 = vmatprep.subr.mxu0 0.0
        %7117 = vmatpush2.msra.mxu0 0.0
        %7118 = vmatprep.subr.mxu0 0.0
        %7119 = vmatpush2.msra.mxu0 0.0
        %7120 = vmatprep.subr.mxu0 0.0
        %7121 = vmatpush2.msra.mxu0 0.0
        %7122 = vmatprep.subr.mxu0 0.0
        %7123 = vmatpush2.msra.mxu0 0.0
        %7124 = vmatprep.subr.mxu0 0.0
        %7125 = vmatpush2.msra.mxu0 0.0
        %7126 = vmatprep.subr.mxu0 0.0
        %7127 = vmatpush2.msra.mxu0 0.0
        %7128 = vmatprep.subr.mxu0 0.0
        %7129 = vmatpush2.msra.mxu0 0.0
        %7130 = vmatprep.subr.mxu0 0.0
        %7131 = vmatpush2.msra.mxu0 0.0
        %7132 = vmatprep.mubr.f32.mxu0 0.0
        %7133 = vmatmul.mubr.f32.gmra.mxu0 %v7063
        %v7134 = vpop.f32.mrf.mxu0
        %v7135 = vadd.f32 0.0, %v7134
        %v7136 = vpop.f32.mrf.mxu0
        %7137 = vmatprep.mubr.f32.mxu0 0.0
        %7138 = vmatmul.mubr.f32.gmra.mxu0 %v7066
        %v7139 = vpop.f32.mrf.mxu0
        %v7140 = vadd.f32 0.0, %v7139
        %v7141 = vpop.f32.mrf.mxu0
        %7142 = vdwg.mxu0
        %7143 = vrot.lane.b32.xlu0 %v723, 32
        %v7144 = vpop.permute.xlu0 %7143
        %7145 = vrot.lane.b32.xlu0 %v728, 32
        %v7146 = vpop.permute.xlu0 %7145
        %v7150 = vsel %vm1504, %v7042, 0
        %v7153 = vsel %vm1504, %v7043, 0
        %7155 = vmatprep.subr.mxu0 0.0
        %7156 = vmatpush1.msra.mxu0 0.0
        %7157 = vmatprep.subr.mxu0 0.0
        %7158 = vmatpush1.msra.mxu0 0.0
        %7159 = vmatprep.subr.mxu0 0.0
        %7160 = vmatpush1.msra.mxu0 0.0
        %7161 = vmatprep.subr.mxu0 0.0
        %7162 = vmatpush1.msra.mxu0 0.0
        %7163 = vmatprep.subr.mxu0 0.0
        %7164 = vmatpush1.msra.mxu0 0.0
        %7165 = vmatprep.subr.mxu0 0.0
        %7166 = vmatpush1.msra.mxu0 0.0
        %7167 = vmatprep.subr.mxu0 0.0
        %7168 = vmatpush1.msra.mxu0 0.0
        %7169 = vmatprep.subr.mxu0 0.0
        %7170 = vmatpush1.msra.mxu0 0.0
        %7171 = vmatprep.subr.mxu0 0.0
        %7172 = vmatpush1.msra.mxu0 0.0
        %7173 = vmatprep.subr.mxu0 0.0
        %7174 = vmatpush1.msra.mxu0 0.0
        %7175 = vmatprep.subr.mxu0 0.0
        %7176 = vmatpush1.msra.mxu0 0.0
        %7177 = vmatprep.subr.mxu0 0.0
        %7178 = vmatpush1.msra.mxu0 0.0
        %7179 = vmatprep.subr.mxu0 0.0
        %7180 = vmatpush1.msra.mxu0 0.0
        %7181 = vmatprep.subr.mxu0 0.0
        %7182 = vmatpush1.msra.mxu0 0.0
        %7183 = vmatprep.subr.mxu0 0.0
        %7184 = vmatpush1.msra.mxu0 %v7146
        %7185 = vmatprep.subr.mxu0 0.0
        %7186 = vmatpush1.msra.mxu0 %v7144
        %7187 = vmatprep.subr.mxu0 0.0
        %7188 = vmatpush2.msra.mxu0 0.0
        %7189 = vmatprep.subr.mxu0 0.0
        %7190 = vmatpush2.msra.mxu0 0.0
        %7191 = vmatprep.subr.mxu0 0.0
        %7192 = vmatpush2.msra.mxu0 0.0
        %7193 = vmatprep.subr.mxu0 0.0
        %7194 = vmatpush2.msra.mxu0 0.0
        %7195 = vmatprep.subr.mxu0 0.0
        %7196 = vmatpush2.msra.mxu0 0.0
        %7197 = vmatprep.subr.mxu0 0.0
        %7198 = vmatpush2.msra.mxu0 0.0
        %7199 = vmatprep.subr.mxu0 0.0
        %7200 = vmatpush2.msra.mxu0 0.0
        %7201 = vmatprep.subr.mxu0 0.0
        %7202 = vmatpush2.msra.mxu0 0.0
        %7203 = vmatprep.subr.mxu0 0.0
        %7204 = vmatpush2.msra.mxu0 0.0
        %7205 = vmatprep.subr.mxu0 0.0
        %7206 = vmatpush2.msra.mxu0 0.0
        %7207 = vmatprep.subr.mxu0 0.0
        %7208 = vmatpush2.msra.mxu0 0.0
        %7209 = vmatprep.subr.mxu0 0.0
        %7210 = vmatpush2.msra.mxu0 0.0
        %7211 = vmatprep.subr.mxu0 0.0
        %7212 = vmatpush2.msra.mxu0 0.0
        %7213 = vmatprep.subr.mxu0 0.0
        %7214 = vmatpush2.msra.mxu0 0.0
        %7215 = vmatprep.subr.mxu0 0.0
        %7216 = vmatpush2.msra.mxu0 0.0
        %7217 = vmatprep.subr.mxu0 0.0
        %7218 = vmatpush2.msra.mxu0 0.0
        %7219 = vmatprep.mubr.f32.mxu0 0.0
        %7220 = vmatmul.mubr.f32.gmra.mxu0 %v7150
        %v7221 = vpop.f32.mrf.mxu0
        %v7222 = vadd.f32 0.0, %v7221
        %v7223 = vpop.f32.mrf.mxu0
        %7224 = vmatprep.mubr.f32.mxu0 0.0
        %7225 = vmatmul.mubr.f32.gmra.mxu0 %v7153
        %v7226 = vpop.f32.mrf.mxu0
        %v7227 = vadd.f32 0.0, %v7226
        %v7228 = vpop.f32.mrf.mxu0
        %7229 = vdwg.mxu0
        %7230 = vrot.lane.b32.xlu0 %v733, 32
        %v7231 = vpop.permute.xlu0 %7230
        %7232 = vrot.lane.b32.xlu0 %v738, 32
        %v7233 = vpop.permute.xlu0 %7232
        %v7237 = vsel %vm1504, %v7044, 0
        %v7240 = vsel %vm1504, %v7045, 0
        %7242 = vmatprep.subr.mxu0 0.0
        %7243 = vmatpush1.msra.mxu0 0.0
        %7244 = vmatprep.subr.mxu0 0.0
        %7245 = vmatpush1.msra.mxu0 0.0
        %7246 = vmatprep.subr.mxu0 0.0
        %7247 = vmatpush1.msra.mxu0 0.0
        %7248 = vmatprep.subr.mxu0 0.0
        %7249 = vmatpush1.msra.mxu0 0.0
        %7250 = vmatprep.subr.mxu0 0.0
        %7251 = vmatpush1.msra.mxu0 0.0
        %7252 = vmatprep.subr.mxu0 0.0
        %7253 = vmatpush1.msra.mxu0 0.0
        %7254 = vmatprep.subr.mxu0 0.0
        %7255 = vmatpush1.msra.mxu0 0.0
        %7256 = vmatprep.subr.mxu0 0.0
        %7257 = vmatpush1.msra.mxu0 0.0
        %7258 = vmatprep.subr.mxu0 0.0
        %7259 = vmatpush1.msra.mxu0 0.0
        %7260 = vmatprep.subr.mxu0 0.0
        %7261 = vmatpush1.msra.mxu0 0.0
        %7262 = vmatprep.subr.mxu0 0.0
        %7263 = vmatpush1.msra.mxu0 0.0
        %7264 = vmatprep.subr.mxu0 0.0
        %7265 = vmatpush1.msra.mxu0 0.0
        %7266 = vmatprep.subr.mxu0 0.0
        %7267 = vmatpush1.msra.mxu0 0.0
        %7268 = vmatprep.subr.mxu0 0.0
        %7269 = vmatpush1.msra.mxu0 0.0
        %7270 = vmatprep.subr.mxu0 0.0
        %7271 = vmatpush1.msra.mxu0 %v7233
        %7272 = vmatprep.subr.mxu0 0.0
        %7273 = vmatpush1.msra.mxu0 %v7231
        %7274 = vmatprep.subr.mxu0 0.0
        %7275 = vmatpush2.msra.mxu0 0.0
        %7276 = vmatprep.subr.mxu0 0.0
        %7277 = vmatpush2.msra.mxu0 0.0
        %7278 = vmatprep.subr.mxu0 0.0
        %7279 = vmatpush2.msra.mxu0 0.0
        %7280 = vmatprep.subr.mxu0 0.0
        %7281 = vmatpush2.msra.mxu0 0.0
        %7282 = vmatprep.subr.mxu0 0.0
        %7283 = vmatpush2.msra.mxu0 0.0
        %7284 = vmatprep.subr.mxu0 0.0
        %7285 = vmatpush2.msra.mxu0 0.0
        %7286 = vmatprep.subr.mxu0 0.0
        %7287 = vmatpush2.msra.mxu0 0.0
        %7288 = vmatprep.subr.mxu0 0.0
        %7289 = vmatpush2.msra.mxu0 0.0
        %7290 = vmatprep.subr.mxu0 0.0
        %7291 = vmatpush2.msra.mxu0 0.0
        %7292 = vmatprep.subr.mxu0 0.0
        %7293 = vmatpush2.msra.mxu0 0.0
        %7294 = vmatprep.subr.mxu0 0.0
        %7295 = vmatpush2.msra.mxu0 0.0
        %7296 = vmatprep.subr.mxu0 0.0
        %7297 = vmatpush2.msra.mxu0 0.0
        %7298 = vmatprep.subr.mxu0 0.0
        %7299 = vmatpush2.msra.mxu0 0.0
        %7300 = vmatprep.subr.mxu0 0.0
        %7301 = vmatpush2.msra.mxu0 0.0
        %7302 = vmatprep.subr.mxu0 0.0
        %7303 = vmatpush2.msra.mxu0 0.0
        %7304 = vmatprep.subr.mxu0 0.0
        %7305 = vmatpush2.msra.mxu0 0.0
        %7306 = vmatprep.mubr.f32.mxu0 0.0
        %7307 = vmatmul.mubr.f32.gmra.mxu0 %v7237
        %v7308 = vpop.f32.mrf.mxu0
        %v7309 = vadd.f32 0.0, %v7308
        %v7310 = vpop.f32.mrf.mxu0
        %7311 = vmatprep.mubr.f32.mxu0 0.0
        %7312 = vmatmul.mubr.f32.gmra.mxu0 %v7240
        %v7313 = vpop.f32.mrf.mxu0
        %v7314 = vadd.f32 0.0, %v7313
        %v7315 = vpop.f32.mrf.mxu0
        %7316 = vdwg.mxu0
        %7317 = vrot.lane.b32.xlu0 %v743, 32
        %v7318 = vpop.permute.xlu0 %7317
        %7319 = vrot.lane.b32.xlu0 %v748, 32
        %v7320 = vpop.permute.xlu0 %7319
        %v7324 = vsel %vm1504, %v7046, 0
        %v7327 = vsel %vm1504, %v7047, 0
        %7329 = vmatprep.subr.mxu0 0.0
        %7330 = vmatpush1.msra.mxu0 0.0
        %7331 = vmatprep.subr.mxu0 0.0
        %7332 = vmatpush1.msra.mxu0 0.0
        %7333 = vmatprep.subr.mxu0 0.0
        %7334 = vmatpush1.msra.mxu0 0.0
        %7335 = vmatprep.subr.mxu0 0.0
        %7336 = vmatpush1.msra.mxu0 0.0
        %7337 = vmatprep.subr.mxu0 0.0
        %7338 = vmatpush1.msra.mxu0 0.0
        %7339 = vmatprep.subr.mxu0 0.0
        %7340 = vmatpush1.msra.mxu0 0.0
        %7341 = vmatprep.subr.mxu0 0.0
        %7342 = vmatpush1.msra.mxu0 0.0
        %7343 = vmatprep.subr.mxu0 0.0
        %7344 = vmatpush1.msra.mxu0 0.0
        %7345 = vmatprep.subr.mxu0 0.0
        %7346 = vmatpush1.msra.mxu0 0.0
        %7347 = vmatprep.subr.mxu0 0.0
        %7348 = vmatpush1.msra.mxu0 0.0
        %7349 = vmatprep.subr.mxu0 0.0
        %7350 = vmatpush1.msra.mxu0 0.0
        %7351 = vmatprep.subr.mxu0 0.0
        %7352 = vmatpush1.msra.mxu0 0.0
        %7353 = vmatprep.subr.mxu0 0.0
        %7354 = vmatpush1.msra.mxu0 0.0
        %7355 = vmatprep.subr.mxu0 0.0
        %7356 = vmatpush1.msra.mxu0 0.0
        %7357 = vmatprep.subr.mxu0 0.0
        %7358 = vmatpush1.msra.mxu0 %v7320
        %7359 = vmatprep.subr.mxu0 0.0
        %7360 = vmatpush1.msra.mxu0 %v7318
        %7361 = vmatprep.subr.mxu0 0.0
        %7362 = vmatpush2.msra.mxu0 0.0
        %7363 = vmatprep.subr.mxu0 0.0
        %7364 = vmatpush2.msra.mxu0 0.0
        %7365 = vmatprep.subr.mxu0 0.0
        %7366 = vmatpush2.msra.mxu0 0.0
        %7367 = vmatprep.subr.mxu0 0.0
        %7368 = vmatpush2.msra.mxu0 0.0
        %7369 = vmatprep.subr.mxu0 0.0
        %7370 = vmatpush2.msra.mxu0 0.0
        %7371 = vmatprep.subr.mxu0 0.0
        %7372 = vmatpush2.msra.mxu0 0.0
        %7373 = vmatprep.subr.mxu0 0.0
        %7374 = vmatpush2.msra.mxu0 0.0
        %7375 = vmatprep.subr.mxu0 0.0
        %7376 = vmatpush2.msra.mxu0 0.0
        %7377 = vmatprep.subr.mxu0 0.0
        %7378 = vmatpush2.msra.mxu0 0.0
        %7379 = vmatprep.subr.mxu0 0.0
        %7380 = vmatpush2.msra.mxu0 0.0
        %7381 = vmatprep.subr.mxu0 0.0
        %7382 = vmatpush2.msra.mxu0 0.0
        %7383 = vmatprep.subr.mxu0 0.0
        %7384 = vmatpush2.msra.mxu0 0.0
        %7385 = vmatprep.subr.mxu0 0.0
        %7386 = vmatpush2.msra.mxu0 0.0
        %7387 = vmatprep.subr.mxu0 0.0
        %7388 = vmatpush2.msra.mxu0 0.0
        %7389 = vmatprep.subr.mxu0 0.0
        %7390 = vmatpush2.msra.mxu0 0.0
        %7391 = vmatprep.subr.mxu0 0.0
        %7392 = vmatpush2.msra.mxu0 0.0
        %7393 = vmatprep.mubr.f32.mxu0 0.0
        %7394 = vmatmul.mubr.f32.gmra.mxu0 %v7324
        %v7395 = vpop.f32.mrf.mxu0
        %v7396 = vadd.f32 0.0, %v7395
        %v7397 = vpop.f32.mrf.mxu0
        %7398 = vmatprep.mubr.f32.mxu0 0.0
        %7399 = vmatmul.mubr.f32.gmra.mxu0 %v7327
        %v7400 = vpop.f32.mrf.mxu0
        %v7401 = vadd.f32 0.0, %v7400
        %v7402 = vpop.f32.mrf.mxu0
        %7403 = vdwg.mxu0
        %7404 = vrot.lane.b32.xlu0 %v753, 32
        %v7405 = vpop.permute.xlu0 %7404
        %7406 = vrot.lane.b32.xlu0 %v758, 32
        %v7407 = vpop.permute.xlu0 %7406
        %v7411 = vsel %vm1504, %v7048, 0
        %v7414 = vsel %vm1504, %v7049, 0
        %7416 = vmatprep.subr.mxu0 0.0
        %7417 = vmatpush1.msra.mxu0 0.0
        %7418 = vmatprep.subr.mxu0 0.0
        %7419 = vmatpush1.msra.mxu0 0.0
        %7420 = vmatprep.subr.mxu0 0.0
        %7421 = vmatpush1.msra.mxu0 0.0
        %7422 = vmatprep.subr.mxu0 0.0
        %7423 = vmatpush1.msra.mxu0 0.0
        %7424 = vmatprep.subr.mxu0 0.0
        %7425 = vmatpush1.msra.mxu0 0.0
        %7426 = vmatprep.subr.mxu0 0.0
        %7427 = vmatpush1.msra.mxu0 0.0
        %7428 = vmatprep.subr.mxu0 0.0
        %7429 = vmatpush1.msra.mxu0 0.0
        %7430 = vmatprep.subr.mxu0 0.0
        %7431 = vmatpush1.msra.mxu0 0.0
        %7432 = vmatprep.subr.mxu0 0.0
        %7433 = vmatpush1.msra.mxu0 0.0
        %7434 = vmatprep.subr.mxu0 0.0
        %7435 = vmatpush1.msra.mxu0 0.0
        %7436 = vmatprep.subr.mxu0 0.0
        %7437 = vmatpush1.msra.mxu0 0.0
        %7438 = vmatprep.subr.mxu0 0.0
        %7439 = vmatpush1.msra.mxu0 0.0
        %7440 = vmatprep.subr.mxu0 0.0
        %7441 = vmatpush1.msra.mxu0 0.0
        %7442 = vmatprep.subr.mxu0 0.0
        %7443 = vmatpush1.msra.mxu0 0.0
        %7444 = vmatprep.subr.mxu0 0.0
        %7445 = vmatpush1.msra.mxu0 %v7407
        %7446 = vmatprep.subr.mxu0 0.0
        %7447 = vmatpush1.msra.mxu0 %v7405
        %7448 = vmatprep.subr.mxu0 0.0
        %7449 = vmatpush2.msra.mxu0 0.0
        %7450 = vmatprep.subr.mxu0 0.0
        %7451 = vmatpush2.msra.mxu0 0.0
        %7452 = vmatprep.subr.mxu0 0.0
        %7453 = vmatpush2.msra.mxu0 0.0
        %7454 = vmatprep.subr.mxu0 0.0
        %7455 = vmatpush2.msra.mxu0 0.0
        %7456 = vmatprep.subr.mxu0 0.0
        %7457 = vmatpush2.msra.mxu0 0.0
        %7458 = vmatprep.subr.mxu0 0.0
        %7459 = vmatpush2.msra.mxu0 0.0
        %7460 = vmatprep.subr.mxu0 0.0
        %7461 = vmatpush2.msra.mxu0 0.0
        %7462 = vmatprep.subr.mxu0 0.0
        %7463 = vmatpush2.msra.mxu0 0.0
        %7464 = vmatprep.subr.mxu0 0.0
        %7465 = vmatpush2.msra.mxu0 0.0
        %7466 = vmatprep.subr.mxu0 0.0
        %7467 = vmatpush2.msra.mxu0 0.0
        %7468 = vmatprep.subr.mxu0 0.0
        %7469 = vmatpush2.msra.mxu0 0.0
        %7470 = vmatprep.subr.mxu0 0.0
        %7471 = vmatpush2.msra.mxu0 0.0
        %7472 = vmatprep.subr.mxu0 0.0
        %7473 = vmatpush2.msra.mxu0 0.0
        %7474 = vmatprep.subr.mxu0 0.0
        %7475 = vmatpush2.msra.mxu0 0.0
        %7476 = vmatprep.subr.mxu0 0.0
        %7477 = vmatpush2.msra.mxu0 0.0
        %7478 = vmatprep.subr.mxu0 0.0
        %7479 = vmatpush2.msra.mxu0 0.0
        %7480 = vmatprep.mubr.f32.mxu0 0.0
        %7481 = vmatmul.mubr.f32.gmra.mxu0 %v7411
        %v7482 = vpop.f32.mrf.mxu0
        %v7483 = vadd.f32 0.0, %v7482
        %v7484 = vpop.f32.mrf.mxu0
        %7485 = vmatprep.mubr.f32.mxu0 0.0
        %7486 = vmatmul.mubr.f32.gmra.mxu0 %v7414
        %v7487 = vpop.f32.mrf.mxu0
        %v7488 = vadd.f32 0.0, %v7487
        %v7489 = vpop.f32.mrf.mxu0
        %7490 = vdwg.mxu0
        %7491 = vrot.lane.b32.xlu0 %v763, 32
        %v7492 = vpop.permute.xlu0 %7491
        %7493 = vrot.lane.b32.xlu0 %v768, 32
        %v7494 = vpop.permute.xlu0 %7493
        %v7498 = vsel %vm1504, %v7050, 0
        %v7501 = vsel %vm1504, %v7051, 0
        %7503 = vmatprep.subr.mxu0 0.0
        %7504 = vmatpush1.msra.mxu0 0.0
        %7505 = vmatprep.subr.mxu0 0.0
        %7506 = vmatpush1.msra.mxu0 0.0
        %7507 = vmatprep.subr.mxu0 0.0
        %7508 = vmatpush1.msra.mxu0 0.0
        %7509 = vmatprep.subr.mxu0 0.0
        %7510 = vmatpush1.msra.mxu0 0.0
        %7511 = vmatprep.subr.mxu0 0.0
        %7512 = vmatpush1.msra.mxu0 0.0
        %7513 = vmatprep.subr.mxu0 0.0
        %7514 = vmatpush1.msra.mxu0 0.0
        %7515 = vmatprep.subr.mxu0 0.0
        %7516 = vmatpush1.msra.mxu0 0.0
        %7517 = vmatprep.subr.mxu0 0.0
        %7518 = vmatpush1.msra.mxu0 0.0
        %7519 = vmatprep.subr.mxu0 0.0
        %7520 = vmatpush1.msra.mxu0 0.0
        %7521 = vmatprep.subr.mxu0 0.0
        %7522 = vmatpush1.msra.mxu0 0.0
        %7523 = vmatprep.subr.mxu0 0.0
        %7524 = vmatpush1.msra.mxu0 0.0
        %7525 = vmatprep.subr.mxu0 0.0
        %7526 = vmatpush1.msra.mxu0 0.0
        %7527 = vmatprep.subr.mxu0 0.0
        %7528 = vmatpush1.msra.mxu0 0.0
        %7529 = vmatprep.subr.mxu0 0.0
        %7530 = vmatpush1.msra.mxu0 0.0
        %7531 = vmatprep.subr.mxu0 0.0
        %7532 = vmatpush1.msra.mxu0 %v7494
        %7533 = vmatprep.subr.mxu0 0.0
        %7534 = vmatpush1.msra.mxu0 %v7492
        %7535 = vmatprep.subr.mxu0 0.0
        %7536 = vmatpush2.msra.mxu0 0.0
        %7537 = vmatprep.subr.mxu0 0.0
        %7538 = vmatpush2.msra.mxu0 0.0
        %7539 = vmatprep.subr.mxu0 0.0
        %7540 = vmatpush2.msra.mxu0 0.0
        %7541 = vmatprep.subr.mxu0 0.0
        %7542 = vmatpush2.msra.mxu0 0.0
        %7543 = vmatprep.subr.mxu0 0.0
        %7544 = vmatpush2.msra.mxu0 0.0
        %7545 = vmatprep.subr.mxu0 0.0
        %7546 = vmatpush2.msra.mxu0 0.0
        %7547 = vmatprep.subr.mxu0 0.0
        %7548 = vmatpush2.msra.mxu0 0.0
        %7549 = vmatprep.subr.mxu0 0.0
        %7550 = vmatpush2.msra.mxu0 0.0
        %7551 = vmatprep.subr.mxu0 0.0
        %7552 = vmatpush2.msra.mxu0 0.0
        %7553 = vmatprep.subr.mxu0 0.0
        %7554 = vmatpush2.msra.mxu0 0.0
        %7555 = vmatprep.subr.mxu0 0.0
        %7556 = vmatpush2.msra.mxu0 0.0
        %7557 = vmatprep.subr.mxu0 0.0
        %7558 = vmatpush2.msra.mxu0 0.0
        %7559 = vmatprep.subr.mxu0 0.0
        %7560 = vmatpush2.msra.mxu0 0.0
        %7561 = vmatprep.subr.mxu0 0.0
        %7562 = vmatpush2.msra.mxu0 0.0
        %7563 = vmatprep.subr.mxu0 0.0
        %7564 = vmatpush2.msra.mxu0 0.0
        %7565 = vmatprep.subr.mxu0 0.0
        %7566 = vmatpush2.msra.mxu0 0.0
        %7567 = vmatprep.mubr.f32.mxu0 0.0
        %7568 = vmatmul.mubr.f32.gmra.mxu0 %v7498
        %v7569 = vpop.f32.mrf.mxu0
        %v7570 = vadd.f32 0.0, %v7569
        %v7571 = vpop.f32.mrf.mxu0
        %7572 = vmatprep.mubr.f32.mxu0 0.0
        %7573 = vmatmul.mubr.f32.gmra.mxu0 %v7501
        %v7574 = vpop.f32.mrf.mxu0
        %v7575 = vadd.f32 0.0, %v7574
        %v7576 = vpop.f32.mrf.mxu0
        %7577 = vdwg.mxu0
        %7578 = vrot.lane.b32.xlu0 %v773, 32
        %v7579 = vpop.permute.xlu0 %7578
        %7580 = vrot.lane.b32.xlu0 %v778, 32
        %v7581 = vpop.permute.xlu0 %7580
        %v7585 = vsel %vm1504, %v7052, 0
        %v7588 = vsel %vm1504, %v7053, 0
        %7590 = vmatprep.subr.mxu0 0.0
        %7591 = vmatpush1.msra.mxu0 0.0
        %7592 = vmatprep.subr.mxu0 0.0
        %7593 = vmatpush1.msra.mxu0 0.0
        %7594 = vmatprep.subr.mxu0 0.0
        %7595 = vmatpush1.msra.mxu0 0.0
        %7596 = vmatprep.subr.mxu0 0.0
        %7597 = vmatpush1.msra.mxu0 0.0
        %7598 = vmatprep.subr.mxu0 0.0
        %7599 = vmatpush1.msra.mxu0 0.0
        %7600 = vmatprep.subr.mxu0 0.0
        %7601 = vmatpush1.msra.mxu0 0.0
        %7602 = vmatprep.subr.mxu0 0.0
        %7603 = vmatpush1.msra.mxu0 0.0
        %7604 = vmatprep.subr.mxu0 0.0
        %7605 = vmatpush1.msra.mxu0 0.0
        %7606 = vmatprep.subr.mxu0 0.0
        %7607 = vmatpush1.msra.mxu0 0.0
        %7608 = vmatprep.subr.mxu0 0.0
        %7609 = vmatpush1.msra.mxu0 0.0
        %7610 = vmatprep.subr.mxu0 0.0
        %7611 = vmatpush1.msra.mxu0 0.0
        %7612 = vmatprep.subr.mxu0 0.0
        %7613 = vmatpush1.msra.mxu0 0.0
        %7614 = vmatprep.subr.mxu0 0.0
        %7615 = vmatpush1.msra.mxu0 0.0
        %7616 = vmatprep.subr.mxu0 0.0
        %7617 = vmatpush1.msra.mxu0 0.0
        %7618 = vmatprep.subr.mxu0 0.0
        %7619 = vmatpush1.msra.mxu0 %v7581
        %7620 = vmatprep.subr.mxu0 0.0
        %7621 = vmatpush1.msra.mxu0 %v7579
        %7622 = vmatprep.subr.mxu0 0.0
        %7623 = vmatpush2.msra.mxu0 0.0
        %7624 = vmatprep.subr.mxu0 0.0
        %7625 = vmatpush2.msra.mxu0 0.0
        %7626 = vmatprep.subr.mxu0 0.0
        %7627 = vmatpush2.msra.mxu0 0.0
        %7628 = vmatprep.subr.mxu0 0.0
        %7629 = vmatpush2.msra.mxu0 0.0
        %7630 = vmatprep.subr.mxu0 0.0
        %7631 = vmatpush2.msra.mxu0 0.0
        %7632 = vmatprep.subr.mxu0 0.0
        %7633 = vmatpush2.msra.mxu0 0.0
        %7634 = vmatprep.subr.mxu0 0.0
        %7635 = vmatpush2.msra.mxu0 0.0
        %7636 = vmatprep.subr.mxu0 0.0
        %7637 = vmatpush2.msra.mxu0 0.0
        %7638 = vmatprep.subr.mxu0 0.0
        %7639 = vmatpush2.msra.mxu0 0.0
        %7640 = vmatprep.subr.mxu0 0.0
        %7641 = vmatpush2.msra.mxu0 0.0
        %7642 = vmatprep.subr.mxu0 0.0
        %7643 = vmatpush2.msra.mxu0 0.0
        %7644 = vmatprep.subr.mxu0 0.0
        %7645 = vmatpush2.msra.mxu0 0.0
        %7646 = vmatprep.subr.mxu0 0.0
        %7647 = vmatpush2.msra.mxu0 0.0
        %7648 = vmatprep.subr.mxu0 0.0
        %7649 = vmatpush2.msra.mxu0 0.0
        %7650 = vmatprep.subr.mxu0 0.0
        %7651 = vmatpush2.msra.mxu0 0.0
        %7652 = vmatprep.subr.mxu0 0.0
        %7653 = vmatpush2.msra.mxu0 0.0
        %7654 = vmatprep.mubr.f32.mxu0 0.0
        %7655 = vmatmul.mubr.f32.gmra.mxu0 %v7585
        %v7656 = vpop.f32.mrf.mxu0
        %v7657 = vadd.f32 0.0, %v7656
        %v7658 = vpop.f32.mrf.mxu0
        %7659 = vmatprep.mubr.f32.mxu0 0.0
        %7660 = vmatmul.mubr.f32.gmra.mxu0 %v7588
        %v7661 = vpop.f32.mrf.mxu0
        %v7662 = vadd.f32 0.0, %v7661
        %v7663 = vpop.f32.mrf.mxu0
        %7664 = vdwg.mxu0
        %7665 = vrot.lane.b32.xlu0 %v783, 32
        %v7666 = vpop.permute.xlu0 %7665
        %7667 = vrot.lane.b32.xlu0 %v788, 32
        %v7668 = vpop.permute.xlu0 %7667
        %v7672 = vsel %vm1504, %v7054, 0
        %v7675 = vsel %vm1504, %v7055, 0
        %7677 = vmatprep.subr.mxu0 0.0
        %7678 = vmatpush1.msra.mxu0 0.0
        %7679 = vmatprep.subr.mxu0 0.0
        %7680 = vmatpush1.msra.mxu0 0.0
        %7681 = vmatprep.subr.mxu0 0.0
        %7682 = vmatpush1.msra.mxu0 0.0
        %7683 = vmatprep.subr.mxu0 0.0
        %7684 = vmatpush1.msra.mxu0 0.0
        %7685 = vmatprep.subr.mxu0 0.0
        %7686 = vmatpush1.msra.mxu0 0.0
        %7687 = vmatprep.subr.mxu0 0.0
        %7688 = vmatpush1.msra.mxu0 0.0
        %7689 = vmatprep.subr.mxu0 0.0
        %7690 = vmatpush1.msra.mxu0 0.0
        %7691 = vmatprep.subr.mxu0 0.0
        %7692 = vmatpush1.msra.mxu0 0.0
        %7693 = vmatprep.subr.mxu0 0.0
        %7694 = vmatpush1.msra.mxu0 0.0
        %7695 = vmatprep.subr.mxu0 0.0
        %7696 = vmatpush1.msra.mxu0 0.0
        %7697 = vmatprep.subr.mxu0 0.0
        %7698 = vmatpush1.msra.mxu0 0.0
        %7699 = vmatprep.subr.mxu0 0.0
        %7700 = vmatpush1.msra.mxu0 0.0
        %7701 = vmatprep.subr.mxu0 0.0
        %7702 = vmatpush1.msra.mxu0 0.0
        %7703 = vmatprep.subr.mxu0 0.0
        %7704 = vmatpush1.msra.mxu0 0.0
        %7705 = vmatprep.subr.mxu0 0.0
        %7706 = vmatpush1.msra.mxu0 %v7668
        %7707 = vmatprep.subr.mxu0 0.0
        %7708 = vmatpush1.msra.mxu0 %v7666
        %7709 = vmatprep.subr.mxu0 0.0
        %7710 = vmatpush2.msra.mxu0 0.0
        %7711 = vmatprep.subr.mxu0 0.0
        %7712 = vmatpush2.msra.mxu0 0.0
        %7713 = vmatprep.subr.mxu0 0.0
        %7714 = vmatpush2.msra.mxu0 0.0
        %7715 = vmatprep.subr.mxu0 0.0
        %7716 = vmatpush2.msra.mxu0 0.0
        %7717 = vmatprep.subr.mxu0 0.0
        %7718 = vmatpush2.msra.mxu0 0.0
        %7719 = vmatprep.subr.mxu0 0.0
        %7720 = vmatpush2.msra.mxu0 0.0
        %7721 = vmatprep.subr.mxu0 0.0
        %7722 = vmatpush2.msra.mxu0 0.0
        %7723 = vmatprep.subr.mxu0 0.0
        %7724 = vmatpush2.msra.mxu0 0.0
        %7725 = vmatprep.subr.mxu0 0.0
        %7726 = vmatpush2.msra.mxu0 0.0
        %7727 = vmatprep.subr.mxu0 0.0
        %7728 = vmatpush2.msra.mxu0 0.0
        %7729 = vmatprep.subr.mxu0 0.0
        %7730 = vmatpush2.msra.mxu0 0.0
        %7731 = vmatprep.subr.mxu0 0.0
        %7732 = vmatpush2.msra.mxu0 0.0
        %7733 = vmatprep.subr.mxu0 0.0
        %7734 = vmatpush2.msra.mxu0 0.0
        %7735 = vmatprep.subr.mxu0 0.0
        %7736 = vmatpush2.msra.mxu0 0.0
        %7737 = vmatprep.subr.mxu0 0.0
        %7738 = vmatpush2.msra.mxu0 0.0
        %7739 = vmatprep.subr.mxu0 0.0
        %7740 = vmatpush2.msra.mxu0 0.0
        %7741 = vmatprep.mubr.f32.mxu0 0.0
        %7742 = vmatmul.mubr.f32.gmra.mxu0 %v7672
        %v7743 = vpop.f32.mrf.mxu0
        %v7744 = vadd.f32 0.0, %v7743
        %v7745 = vpop.f32.mrf.mxu0
        %7746 = vmatprep.mubr.f32.mxu0 0.0
        %7747 = vmatmul.mubr.f32.gmra.mxu0 %v7675
        %v7748 = vpop.f32.mrf.mxu0
        %v7749 = vadd.f32 0.0, %v7748
        %v7750 = vpop.f32.mrf.mxu0
        %7751 = vdwg.mxu0
        %v7752 = vld [vmem:[#allocation7 + $0x60] sm:$0xff]
        %v7753 = vld [vmem:[#allocation7 + $0x68] sm:$0xff]
        %v7754 = vld [vmem:[#allocation7 + $0x70] sm:$0xff]
        %v7755 = vld [vmem:[#allocation7 + $0x78] sm:$0xff]
        %v7757 = vsel %vm807, %v7135, 0
        %v7760 = vsel %vm807, %v7140, 0
        %v7763 = vsel %vm807, %v7222, 0
        %v7766 = vsel %vm807, %v7227, 0
        %v7769 = vsel %vm807, %v7309, 0
        %v7772 = vsel %vm807, %v7314, 0
        %v7775 = vsel %vm807, %v7396, 0
        %v7778 = vsel %vm807, %v7401, 0
        %v7781 = vsel %vm807, %v7483, 0
        %v7784 = vsel %vm807, %v7488, 0
        %v7787 = vsel %vm807, %v7570, 0
        %v7790 = vsel %vm807, %v7575, 0
        %v7793 = vsel %vm807, %v7657, 0
        %v7796 = vsel %vm807, %v7662, 0
        %v7799 = vsel %vm807, %v7744, 0
        %v7802 = vsel %vm807, %v7749, 0
        %7804 = vmatprep.subr.mxu0 0.0
        %7805 = vmatpush1.msra.mxu0 0.0
        %7806 = vmatprep.subr.mxu0 0.0
        %7807 = vmatpush1.msra.mxu0 0.0
        %7808 = vmatprep.subr.mxu0 0.0
        %7809 = vmatpush1.msra.mxu0 0.0
        %7810 = vmatprep.subr.mxu0 0.0
        %7811 = vmatpush1.msra.mxu0 0.0
        %7812 = vmatprep.subr.mxu0 0.0
        %7813 = vmatpush1.msra.mxu0 0.0
        %7814 = vmatprep.subr.mxu0 0.0
        %7815 = vmatpush1.msra.mxu0 0.0
        %7816 = vmatprep.subr.mxu0 0.0
        %7817 = vmatpush1.msra.mxu0 0.0
        %7818 = vmatprep.subr.mxu0 0.0
        %7819 = vmatpush1.msra.mxu0 0.0
        %7820 = vmatprep.subr.mxu0 0.0
        %7821 = vmatpush1.msra.mxu0 0.0
        %7822 = vmatprep.subr.mxu0 0.0
        %7823 = vmatpush1.msra.mxu0 0.0
        %7824 = vmatprep.subr.mxu0 0.0
        %7825 = vmatpush1.msra.mxu0 0.0
        %7826 = vmatprep.subr.mxu0 0.0
        %7827 = vmatpush1.msra.mxu0 0.0
        %7828 = vmatprep.subr.mxu0 0.0
        %7829 = vmatpush1.msra.mxu0 %v7755
        %7830 = vmatprep.subr.mxu0 0.0
        %7831 = vmatpush1.msra.mxu0 %v7754
        %7832 = vmatprep.subr.mxu0 0.0
        %7833 = vmatpush1.msra.mxu0 %v7753
        %7834 = vmatprep.subr.mxu0 0.0
        %7835 = vmatpush1.msra.mxu0 %v7752
        %7836 = vmatprep.subr.mxu0 0.0
        %7837 = vmatpush2.msra.mxu0 0.0
        %7838 = vmatprep.subr.mxu0 0.0
        %7839 = vmatpush2.msra.mxu0 0.0
        %7840 = vmatprep.subr.mxu0 0.0
        %7841 = vmatpush2.msra.mxu0 0.0
        %7842 = vmatprep.subr.mxu0 0.0
        %7843 = vmatpush2.msra.mxu0 0.0
        %7844 = vmatprep.subr.mxu0 0.0
        %7845 = vmatpush2.msra.mxu0 0.0
        %7846 = vmatprep.subr.mxu0 0.0
        %7847 = vmatpush2.msra.mxu0 0.0
        %7848 = vmatprep.subr.mxu0 0.0
        %7849 = vmatpush2.msra.mxu0 0.0
        %7850 = vmatprep.subr.mxu0 0.0
        %7851 = vmatpush2.msra.mxu0 0.0
        %7852 = vmatprep.subr.mxu0 0.0
        %7853 = vmatpush2.msra.mxu0 0.0
        %7854 = vmatprep.subr.mxu0 0.0
        %7855 = vmatpush2.msra.mxu0 0.0
        %7856 = vmatprep.subr.mxu0 0.0
        %7857 = vmatpush2.msra.mxu0 0.0
        %7858 = vmatprep.subr.mxu0 0.0
        %7859 = vmatpush2.msra.mxu0 0.0
        %7860 = vmatprep.subr.mxu0 0.0
        %7861 = vmatpush2.msra.mxu0 0.0
        %7862 = vmatprep.subr.mxu0 0.0
        %7863 = vmatpush2.msra.mxu0 0.0
        %7864 = vmatprep.subr.mxu0 0.0
        %7865 = vmatpush2.msra.mxu0 0.0
        %7866 = vmatprep.subr.mxu0 0.0
        %7867 = vmatpush2.msra.mxu0 0.0
        %7868 = vmatprep.mubr.f32.mxu0 0.0
        %7869 = vmatmul.mubr.f32.gmra.mxu0 %v7757
        %v7870 = vpop.f32.mrf.mxu0
        %v7871 = vadd.f32 0.0, %v7870
        %v7872 = vpop.f32.mrf.mxu0
        %7873 = vmatprep.mubr.f32.mxu0 0.0
        %7874 = vmatmul.mubr.f32.gmra.mxu0 %v7760
        %v7875 = vpop.f32.mrf.mxu0
        %v7876 = vadd.f32 0.0, %v7875
        %v7877 = vpop.f32.mrf.mxu0
        %7878 = vmatprep.mubr.f32.mxu0 0.0
        %7879 = vmatmul.mubr.f32.gmra.mxu0 %v7763
        %v7880 = vpop.f32.mrf.mxu0
        %v7881 = vadd.f32 0.0, %v7880
        %v7882 = vpop.f32.mrf.mxu0
        %7883 = vmatprep.mubr.f32.mxu0 0.0
        %7884 = vmatmul.mubr.f32.gmra.mxu0 %v7766
        %v7885 = vpop.f32.mrf.mxu0
        %v7886 = vadd.f32 0.0, %v7885
        %v7887 = vpop.f32.mrf.mxu0
        %7888 = vmatprep.mubr.f32.mxu0 0.0
        %7889 = vmatmul.mubr.f32.gmra.mxu0 %v7769
        %v7890 = vpop.f32.mrf.mxu0
        %v7891 = vadd.f32 0.0, %v7890
        %v7892 = vpop.f32.mrf.mxu0
        %7893 = vmatprep.mubr.f32.mxu0 0.0
        %7894 = vmatmul.mubr.f32.gmra.mxu0 %v7772
        %v7895 = vpop.f32.mrf.mxu0
        %v7896 = vadd.f32 0.0, %v7895
        %v7897 = vpop.f32.mrf.mxu0
        %7898 = vmatprep.mubr.f32.mxu0 0.0
        %7899 = vmatmul.mubr.f32.gmra.mxu0 %v7775
        %v7900 = vpop.f32.mrf.mxu0
        %v7901 = vadd.f32 0.0, %v7900
        %v7902 = vpop.f32.mrf.mxu0
        %7903 = vmatprep.mubr.f32.mxu0 0.0
        %7904 = vmatmul.mubr.f32.gmra.mxu0 %v7778
        %v7905 = vpop.f32.mrf.mxu0
        %v7906 = vadd.f32 0.0, %v7905
        %v7907 = vpop.f32.mrf.mxu0
        %7908 = vmatprep.mubr.f32.mxu0 0.0
        %7909 = vmatmul.mubr.f32.gmra.mxu0 %v7781
        %v7910 = vpop.f32.mrf.mxu0
        %v7911 = vadd.f32 0.0, %v7910
        %v7912 = vpop.f32.mrf.mxu0
        %7913 = vmatprep.mubr.f32.mxu0 0.0
        %7914 = vmatmul.mubr.f32.gmra.mxu0 %v7784
        %v7915 = vpop.f32.mrf.mxu0
        %v7916 = vadd.f32 0.0, %v7915
        %v7917 = vpop.f32.mrf.mxu0
        %7918 = vmatprep.mubr.f32.mxu0 0.0
        %7919 = vmatmul.mubr.f32.gmra.mxu0 %v7787
        %v7920 = vpop.f32.mrf.mxu0
        %v7921 = vadd.f32 0.0, %v7920
        %v7922 = vpop.f32.mrf.mxu0
        %7923 = vmatprep.mubr.f32.mxu0 0.0
        %7924 = vmatmul.mubr.f32.gmra.mxu0 %v7790
        %v7925 = vpop.f32.mrf.mxu0
        %v7926 = vadd.f32 0.0, %v7925
        %v7927 = vpop.f32.mrf.mxu0
        %7928 = vmatprep.mubr.f32.mxu0 0.0
        %7929 = vmatmul.mubr.f32.gmra.mxu0 %v7793
        %v7930 = vpop.f32.mrf.mxu0
        %v7931 = vadd.f32 0.0, %v7930
        %v7932 = vpop.f32.mrf.mxu0
        %7933 = vmatprep.mubr.f32.mxu0 0.0
        %7934 = vmatmul.mubr.f32.gmra.mxu0 %v7796
        %v7935 = vpop.f32.mrf.mxu0
        %v7936 = vadd.f32 0.0, %v7935
        %v7937 = vpop.f32.mrf.mxu0
        %7938 = vmatprep.mubr.f32.mxu0 0.0
        %7939 = vmatmul.mubr.f32.gmra.mxu0 %v7799
        %v7940 = vpop.f32.mrf.mxu0
        %v7941 = vadd.f32 0.0, %v7940
        %v7942 = vpop.f32.mrf.mxu0
        %7943 = vmatprep.mubr.f32.mxu0 0.0
        %7944 = vmatmul.mubr.f32.gmra.mxu0 %v7802
        %v7945 = vpop.f32.mrf.mxu0
        %v7946 = vadd.f32 0.0, %v7945
        %v7947 = vpop.f32.mrf.mxu0
        %7948 = vdwg.mxu0
        %v7949 = vadd.f32 %v6136, %v7871
        %v7950 = vadd.f32 %v6137, %v7876
        %v7951 = vadd.f32 %v6138, %v7881
        %v7952 = vadd.f32 %v6139, %v7886
        %v7953 = vadd.f32 %v6140, %v7891
        %v7954 = vadd.f32 %v6141, %v7896
        %v7955 = vadd.f32 %v6142, %v7901
        %v7956 = vadd.f32 %v6143, %v7906
        %v7957 = vadd.f32 %v6144, %v7911
        %v7958 = vadd.f32 %v6145, %v7916
        %v7959 = vadd.f32 %v6146, %v7921
        %v7960 = vadd.f32 %v6147, %v7926
        %v7961 = vadd.f32 %v6148, %v7931
        %v7962 = vadd.f32 %v6149, %v7936
        %v7963 = vadd.f32 %v6150, %v7941
        %v7964 = vadd.f32 %v6151, %v7946
        %v7965 = vlaneseq
        %v7966 = vshrl.u32 %v7965, 7
        %v7967 = vsub.s32 0, %v7966
        %v7968 = vrot.slane %v398, %v7967
        %v7969 = vadd.f32 %v7949, %v7968
        %v7970 = vadd.f32 %v7950, %v7968
        %v7971 = vadd.f32 %v7951, %v7968
        %v7972 = vadd.f32 %v7952, %v7968
        %v7973 = vadd.f32 %v7953, %v7968
        %v7974 = vadd.f32 %v7954, %v7968
        %v7975 = vadd.f32 %v7955, %v7968
        %v7976 = vadd.f32 %v7956, %v7968
        %v7977 = vadd.f32 %v7957, %v7968
        %v7978 = vadd.f32 %v7958, %v7968
        %v7979 = vadd.f32 %v7959, %v7968
        %v7980 = vadd.f32 %v7960, %v7968
        %v7981 = vadd.f32 %v7961, %v7968
        %v7982 = vadd.f32 %v7962, %v7968
        %v7983 = vadd.f32 %v7963, %v7968
        %v7984 = vadd.f32 %v7964, %v7968
        %v7985 = vadd.f32 %v404, %v7969
        %v7986 = vadd.f32 %v405, %v7970
        %v7987 = vadd.f32 %v406, %v7971
        %v7988 = vadd.f32 %v407, %v7972
        %v7989 = vadd.f32 %v408, %v7973
        %v7990 = vadd.f32 %v409, %v7974
        %v7991 = vadd.f32 %v410, %v7975
        %v7992 = vadd.f32 %v411, %v7976
        %v7993 = vadd.f32 %v412, %v7977
        %v7994 = vadd.f32 %v413, %v7978
        %v7995 = vadd.f32 %v414, %v7979
        %v7996 = vadd.f32 %v415, %v7980
        %v7997 = vadd.f32 %v416, %v7981
        %v7998 = vadd.f32 %v417, %v7982
        %v7999 = vadd.f32 %v418, %v7983
        %v8000 = vadd.f32 %v419, %v7984
        %8001 = vadd.xlane.f32.xlu0 %v7985
        %v8002 = vpop.xlane.xlu0 %8001
        %8003 = vadd.xlane.f32.xlu0 %v7986
        %v8004 = vpop.xlane.xlu0 %8003
        %8005 = vadd.xlane.f32.xlu0 %v7987
        %v8006 = vpop.xlane.xlu0 %8005
        %8007 = vadd.xlane.f32.xlu0 %v7988
        %v8008 = vpop.xlane.xlu0 %8007
        %8009 = vadd.xlane.f32.xlu0 %v7989
        %v8010 = vpop.xlane.xlu0 %8009
        %8011 = vadd.xlane.f32.xlu0 %v7990
        %v8012 = vpop.xlane.xlu0 %8011
        %8013 = vadd.xlane.f32.xlu0 %v7991
        %v8014 = vpop.xlane.xlu0 %8013
        %8015 = vadd.xlane.f32.xlu0 %v7992
        %v8016 = vpop.xlane.xlu0 %8015
        %8017 = vadd.xlane.f32.xlu0 %v7993
        %v8018 = vpop.xlane.xlu0 %8017
        %8019 = vadd.xlane.f32.xlu0 %v7994
        %v8020 = vpop.xlane.xlu0 %8019
        %8021 = vadd.xlane.f32.xlu0 %v7995
        %v8022 = vpop.xlane.xlu0 %8021
        %8023 = vadd.xlane.f32.xlu0 %v7996
        %v8024 = vpop.xlane.xlu0 %8023
        %8025 = vadd.xlane.f32.xlu0 %v7997
        %v8026 = vpop.xlane.xlu0 %8025
        %8027 = vadd.xlane.f32.xlu0 %v7998
        %v8028 = vpop.xlane.xlu0 %8027
        %8029 = vadd.xlane.f32.xlu0 %v7999
        %v8030 = vpop.xlane.xlu0 %8029
        %8031 = vadd.xlane.f32.xlu0 %v8000
        %v8032 = vpop.xlane.xlu0 %8031
        %v8033 = vrcp.pop 128.0
        %v8034 = vmul.f32 %v8002, %v8033
        %v8035 = vmul.f32 %v8004, %v8033
        %v8036 = vmul.f32 %v8006, %v8033
        %v8037 = vmul.f32 %v8008, %v8033
        %v8038 = vmul.f32 %v8010, %v8033
        %v8039 = vmul.f32 %v8012, %v8033
        %v8040 = vmul.f32 %v8014, %v8033
        %v8041 = vmul.f32 %v8016, %v8033
        %v8042 = vmul.f32 %v8018, %v8033
        %v8043 = vmul.f32 %v8020, %v8033
        %v8044 = vmul.f32 %v8022, %v8033
        %v8045 = vmul.f32 %v8024, %v8033
        %v8046 = vmul.f32 %v8026, %v8033
        %v8047 = vmul.f32 %v8028, %v8033
        %v8048 = vmul.f32 %v8030, %v8033
        %v8049 = vmul.f32 %v8032, %v8033
        %v8050 = vsub.f32 %v7985, %v8034
        %v8051 = vsub.f32 %v7986, %v8035
        %v8052 = vsub.f32 %v7987, %v8036
        %v8053 = vsub.f32 %v7988, %v8037
        %v8054 = vsub.f32 %v7989, %v8038
        %v8055 = vsub.f32 %v7990, %v8039
        %v8056 = vsub.f32 %v7991, %v8040
        %v8057 = vsub.f32 %v7992, %v8041
        %v8058 = vsub.f32 %v7993, %v8042
        %v8059 = vsub.f32 %v7994, %v8043
        %v8060 = vsub.f32 %v7995, %v8044
        %v8061 = vsub.f32 %v7996, %v8045
        %v8062 = vsub.f32 %v7997, %v8046
        %v8063 = vsub.f32 %v7998, %v8047
        %v8064 = vsub.f32 %v7999, %v8048
        %v8065 = vsub.f32 %v8000, %v8049
        %v8066 = vmul.f32 %v8050, %v8050
        %v8067 = vmul.f32 %v8051, %v8051
        %v8068 = vmul.f32 %v8052, %v8052
        %v8069 = vmul.f32 %v8053, %v8053
        %v8070 = vmul.f32 %v8054, %v8054
        %v8071 = vmul.f32 %v8055, %v8055
        %v8072 = vmul.f32 %v8056, %v8056
        %v8073 = vmul.f32 %v8057, %v8057
        %v8074 = vmul.f32 %v8058, %v8058
        %v8075 = vmul.f32 %v8059, %v8059
        %v8076 = vmul.f32 %v8060, %v8060
        %v8077 = vmul.f32 %v8061, %v8061
        %v8078 = vmul.f32 %v8062, %v8062
        %v8079 = vmul.f32 %v8063, %v8063
        %v8080 = vmul.f32 %v8064, %v8064
        %v8081 = vmul.f32 %v8065, %v8065
        %8082 = vadd.xlane.f32.xlu0 %v8066
        %v8083 = vpop.xlane.xlu0 %8082
        %8084 = vadd.xlane.f32.xlu0 %v8067
        %v8085 = vpop.xlane.xlu0 %8084
        %8086 = vadd.xlane.f32.xlu0 %v8068
        %v8087 = vpop.xlane.xlu0 %8086
        %8088 = vadd.xlane.f32.xlu0 %v8069
        %v8089 = vpop.xlane.xlu0 %8088
        %8090 = vadd.xlane.f32.xlu0 %v8070
        %v8091 = vpop.xlane.xlu0 %8090
        %8092 = vadd.xlane.f32.xlu0 %v8071
        %v8093 = vpop.xlane.xlu0 %8092
        %8094 = vadd.xlane.f32.xlu0 %v8072
        %v8095 = vpop.xlane.xlu0 %8094
        %8096 = vadd.xlane.f32.xlu0 %v8073
        %v8097 = vpop.xlane.xlu0 %8096
        %8098 = vadd.xlane.f32.xlu0 %v8074
        %v8099 = vpop.xlane.xlu0 %8098
        %8100 = vadd.xlane.f32.xlu0 %v8075
        %v8101 = vpop.xlane.xlu0 %8100
        %8102 = vadd.xlane.f32.xlu0 %v8076
        %v8103 = vpop.xlane.xlu0 %8102
        %8104 = vadd.xlane.f32.xlu0 %v8077
        %v8105 = vpop.xlane.xlu0 %8104
        %8106 = vadd.xlane.f32.xlu0 %v8078
        %v8107 = vpop.xlane.xlu0 %8106
        %8108 = vadd.xlane.f32.xlu0 %v8079
        %v8109 = vpop.xlane.xlu0 %8108
        %8110 = vadd.xlane.f32.xlu0 %v8080
        %v8111 = vpop.xlane.xlu0 %8110
        %8112 = vadd.xlane.f32.xlu0 %v8081
        %v8113 = vpop.xlane.xlu0 %8112
        %v8114 = vmul.f32 %v8083, %v8033
        %v8115 = vmul.f32 %v8085, %v8033
        %v8116 = vmul.f32 %v8087, %v8033
        %v8117 = vmul.f32 %v8089, %v8033
        %v8118 = vmul.f32 %v8091, %v8033
        %v8119 = vmul.f32 %v8093, %v8033
        %v8120 = vmul.f32 %v8095, %v8033
        %v8121 = vmul.f32 %v8097, %v8033
        %v8122 = vmul.f32 %v8099, %v8033
        %v8123 = vmul.f32 %v8101, %v8033
        %v8124 = vmul.f32 %v8103, %v8033
        %v8125 = vmul.f32 %v8105, %v8033
        %v8126 = vmul.f32 %v8107, %v8033
        %v8127 = vmul.f32 %v8109, %v8033
        %v8128 = vmul.f32 %v8111, %v8033
        %v8129 = vmul.f32 %v8113, %v8033
        %v8130 = vadd.f32 %v8114, 1e-05
        %v8131 = vadd.f32 %v8115, 1e-05
        %v8132 = vadd.f32 %v8116, 1e-05
        %v8133 = vadd.f32 %v8117, 1e-05
        %v8134 = vadd.f32 %v8118, 1e-05
        %v8135 = vadd.f32 %v8119, 1e-05
        %v8136 = vadd.f32 %v8120, 1e-05
        %v8137 = vadd.f32 %v8121, 1e-05
        %v8138 = vadd.f32 %v8122, 1e-05
        %v8139 = vadd.f32 %v8123, 1e-05
        %v8140 = vadd.f32 %v8124, 1e-05
        %v8141 = vadd.f32 %v8125, 1e-05
        %v8142 = vadd.f32 %v8126, 1e-05
        %v8143 = vadd.f32 %v8127, 1e-05
        %v8144 = vadd.f32 %v8128, 1e-05
        %v8145 = vadd.f32 %v8129, 1e-05
        %v8146 = vrsqrt.pop %v8130
        %v8147 = vrsqrt.pop %v8131
        %v8148 = vrsqrt.pop %v8132
        %v8149 = vrsqrt.pop %v8133
        %v8150 = vrsqrt.pop %v8134
        %v8151 = vrsqrt.pop %v8135
        %v8152 = vrsqrt.pop %v8136
        %v8153 = vrsqrt.pop %v8137
        %v8154 = vrsqrt.pop %v8138
        %v8155 = vrsqrt.pop %v8139
        %v8156 = vrsqrt.pop %v8140
        %v8157 = vrsqrt.pop %v8141
        %v8158 = vrsqrt.pop %v8142
        %v8159 = vrsqrt.pop %v8143
        %v8160 = vrsqrt.pop %v8144
        %v8161 = vrsqrt.pop %v8145
        %v8162 = vmul.f32 %v8050, %v8146
        %v8163 = vmul.f32 %v8051, %v8147
        %v8164 = vmul.f32 %v8052, %v8148
        %v8165 = vmul.f32 %v8053, %v8149
        %v8166 = vmul.f32 %v8054, %v8150
        %v8167 = vmul.f32 %v8055, %v8151
        %v8168 = vmul.f32 %v8056, %v8152
        %v8169 = vmul.f32 %v8057, %v8153
        %v8170 = vmul.f32 %v8058, %v8154
        %v8171 = vmul.f32 %v8059, %v8155
        %v8172 = vmul.f32 %v8060, %v8156
        %v8173 = vmul.f32 %v8061, %v8157
        %v8174 = vmul.f32 %v8062, %v8158
        %v8175 = vmul.f32 %v8063, %v8159
        %v8176 = vmul.f32 %v8064, %v8160
        %v8177 = vmul.f32 %v8065, %v8161
        %v8178 = vlaneseq
        %v8179 = vshrl.u32 %v8178, 7
        %v8180 = vsub.s32 0, %v8179
        %v8181 = vrot.slane %v399, %v8180
        %v8182 = vmul.f32 %v8162, %v8181
        %v8183 = vmul.f32 %v8163, %v8181
        %v8184 = vmul.f32 %v8164, %v8181
        %v8185 = vmul.f32 %v8165, %v8181
        %v8186 = vmul.f32 %v8166, %v8181
        %v8187 = vmul.f32 %v8167, %v8181
        %v8188 = vmul.f32 %v8168, %v8181
        %v8189 = vmul.f32 %v8169, %v8181
        %v8190 = vmul.f32 %v8170, %v8181
        %v8191 = vmul.f32 %v8171, %v8181
        %v8192 = vmul.f32 %v8172, %v8181
        %v8193 = vmul.f32 %v8173, %v8181
        %v8194 = vmul.f32 %v8174, %v8181
        %v8195 = vmul.f32 %v8175, %v8181
        %v8196 = vmul.f32 %v8176, %v8181
        %v8197 = vmul.f32 %v8177, %v8181
        %v8198 = vlaneseq
        %v8199 = vshrl.u32 %v8198, 7
        %v8200 = vsub.s32 0, %v8199
        %v8201 = vrot.slane %v400, %v8200
        %v8202 = vadd.f32 %v8182, %v8201
        %v8203 = vadd.f32 %v8183, %v8201
        %v8204 = vadd.f32 %v8184, %v8201
        %v8205 = vadd.f32 %v8185, %v8201
        %v8206 = vadd.f32 %v8186, %v8201
        %v8207 = vadd.f32 %v8187, %v8201
        %v8208 = vadd.f32 %v8188, %v8201
        %v8209 = vadd.f32 %v8189, %v8201
        %v8210 = vadd.f32 %v8190, %v8201
        %v8211 = vadd.f32 %v8191, %v8201
        %v8212 = vadd.f32 %v8192, %v8201
        %v8213 = vadd.f32 %v8193, %v8201
        %v8214 = vadd.f32 %v8194, %v8201
        %v8215 = vadd.f32 %v8195, %v8201
        %v8216 = vadd.f32 %v8196, %v8201
        %v8217 = vadd.f32 %v8197, %v8201
        %v8218 = vld [vmem:[#allocation8] sm:$0xff]
        %v8219 = vld [vmem:[#allocation8 + $0x8] sm:$0xff]
        %v8220 = vld [vmem:[#allocation8 + $0x10] sm:$0xff]
        %v8221 = vld [vmem:[#allocation8 + $0x18] sm:$0xff]
        %v8222 = vld [vmem:[#allocation8 + $0x20] sm:$0xff]
        %v8223 = vld [vmem:[#allocation8 + $0x28] sm:$0xff]
        %v8224 = vld [vmem:[#allocation8 + $0x30] sm:$0xff]
        %v8225 = vld [vmem:[#allocation8 + $0x38] sm:$0xff]
        %v8226 = vld [vmem:[#allocation8 + $0x40] sm:$0xff]
        %v8227 = vld [vmem:[#allocation8 + $0x48] sm:$0xff]
        %v8228 = vld [vmem:[#allocation8 + $0x50] sm:$0xff]
        %v8229 = vld [vmem:[#allocation8 + $0x58] sm:$0xff]
        %v8230 = vld [vmem:[#allocation8 + $0x60] sm:$0xff]
        %v8231 = vld [vmem:[#allocation8 + $0x68] sm:$0xff]
        %v8232 = vld [vmem:[#allocation8 + $0x70] sm:$0xff]
        %v8233 = vld [vmem:[#allocation8 + $0x78] sm:$0xff]
        %v8234 = vld [vmem:[#allocation8 + $0x80] sm:$0xff]
        %v8235 = vld [vmem:[#allocation8 + $0x88] sm:$0xff]
        %v8236 = vld [vmem:[#allocation8 + $0x90] sm:$0xff]
        %v8237 = vld [vmem:[#allocation8 + $0x98] sm:$0xff]
        %v8238 = vld [vmem:[#allocation8 + $0xa0] sm:$0xff]
        %v8239 = vld [vmem:[#allocation8 + $0xa8] sm:$0xff]
        %v8240 = vld [vmem:[#allocation8 + $0xb0] sm:$0xff]
        %v8241 = vld [vmem:[#allocation8 + $0xb8] sm:$0xff]
        %v8242 = vld [vmem:[#allocation8 + $0xc0] sm:$0xff]
        %v8243 = vld [vmem:[#allocation8 + $0xc8] sm:$0xff]
        %v8244 = vld [vmem:[#allocation8 + $0xd0] sm:$0xff]
        %v8245 = vld [vmem:[#allocation8 + $0xd8] sm:$0xff]
        %v8246 = vld [vmem:[#allocation8 + $0xe0] sm:$0xff]
        %v8247 = vld [vmem:[#allocation8 + $0xe8] sm:$0xff]
        %v8248 = vld [vmem:[#allocation8 + $0xf0] sm:$0xff]
        %v8249 = vld [vmem:[#allocation8 + $0xf8] sm:$0xff]
        %v8250 = vld [vmem:[%s7] sm:$0x3]
        %v8252 = vlaneseq
        %v8253 = vshrl.u32 %v8252, 7
        %v8254 = vsub.s32 0, %v8253
        %v8255 = vrot.slane %v8250, %v8254
        %v8256 = vlaneseq
        %v8257 = vshrl.u32 %v8256, 7
        %v8258 = vsub.s32 1, %v8257
        %v8259 = vrot.slane %v8250, %v8258
        %8262 = vmatprep.subr.mxu0 %v8249
        %8263 = vmatpush1.msra.mxu0 %v8248
        %8264 = vmatprep.subr.mxu0 %v8247
        %8265 = vmatpush1.msra.mxu0 %v8246
        %8266 = vmatprep.subr.mxu0 %v8245
        %8267 = vmatpush1.msra.mxu0 %v8244
        %8268 = vmatprep.subr.mxu0 %v8243
        %8269 = vmatpush1.msra.mxu0 %v8242
        %8270 = vmatprep.subr.mxu0 %v8241
        %8271 = vmatpush1.msra.mxu0 %v8240
        %8272 = vmatprep.subr.mxu0 %v8239
        %8273 = vmatpush1.msra.mxu0 %v8238
        %8274 = vmatprep.subr.mxu0 %v8237
        %8275 = vmatpush1.msra.mxu0 %v8236
        %8276 = vmatprep.subr.mxu0 %v8235
        %8277 = vmatpush1.msra.mxu0 %v8234
        %8278 = vmatprep.subr.mxu0 %v8233
        %8279 = vmatpush1.msra.mxu0 %v8232
        %8280 = vmatprep.subr.mxu0 %v8231
        %8281 = vmatpush1.msra.mxu0 %v8230
        %8282 = vmatprep.subr.mxu0 %v8229
        %8283 = vmatpush1.msra.mxu0 %v8228
        %8284 = vmatprep.subr.mxu0 %v8227
        %8285 = vmatpush1.msra.mxu0 %v8226
        %8286 = vmatprep.subr.mxu0 %v8225
        %8287 = vmatpush1.msra.mxu0 %v8224
        %8288 = vmatprep.subr.mxu0 %v8223
        %8289 = vmatpush1.msra.mxu0 %v8222
        %8290 = vmatprep.subr.mxu0 %v8221
        %8291 = vmatpush1.msra.mxu0 %v8220
        %8292 = vmatprep.subr.mxu0 %v8219
        %8293 = vmatpush1.msra.mxu0 %v8218
        %8294 = vmatprep.subr.mxu0 0.0
        %8295 = vmatpush2.msra.mxu0 0.0
        %8296 = vmatprep.subr.mxu0 0.0
        %8297 = vmatpush2.msra.mxu0 0.0
        %8298 = vmatprep.subr.mxu0 0.0
        %8299 = vmatpush2.msra.mxu0 0.0
        %8300 = vmatprep.subr.mxu0 0.0
        %8301 = vmatpush2.msra.mxu0 0.0
        %8302 = vmatprep.subr.mxu0 0.0
        %8303 = vmatpush2.msra.mxu0 0.0
        %8304 = vmatprep.subr.mxu0 0.0
        %8305 = vmatpush2.msra.mxu0 0.0
        %8306 = vmatprep.subr.mxu0 0.0
        %8307 = vmatpush2.msra.mxu0 0.0
        %8308 = vmatprep.subr.mxu0 0.0
        %8309 = vmatpush2.msra.mxu0 0.0
        %8310 = vmatprep.subr.mxu0 0.0
        %8311 = vmatpush2.msra.mxu0 0.0
        %8312 = vmatprep.subr.mxu0 0.0
        %8313 = vmatpush2.msra.mxu0 0.0
        %8314 = vmatprep.subr.mxu0 0.0
        %8315 = vmatpush2.msra.mxu0 0.0
        %8316 = vmatprep.subr.mxu0 0.0
        %8317 = vmatpush2.msra.mxu0 0.0
        %8318 = vmatprep.subr.mxu0 0.0
        %8319 = vmatpush2.msra.mxu0 0.0
        %8320 = vmatprep.subr.mxu0 0.0
        %8321 = vmatpush2.msra.mxu0 0.0
        %8322 = vmatprep.subr.mxu0 0.0
        %8323 = vmatpush2.msra.mxu0 0.0
        %8324 = vmatprep.subr.mxu0 0.0
        %8325 = vmatpush2.msra.mxu0 0.0
        %8326 = vmatprep.mubr.f32.mxu0 0.0
        %8327 = vmatmul.mubr.f32.gmra.mxu0 %v8202
        %v8328 = vpop.f32.mrf.mxu0
        %v8329 = vadd.f32 %v8255, %v8328
        %v8330 = vpop.f32.mrf.mxu0
        %v8331 = vadd.f32 %v8259, %v8330
        %8332 = vmatprep.mubr.f32.mxu0 0.0
        %8333 = vmatmul.mubr.f32.gmra.mxu0 %v8203
        %v8334 = vpop.f32.mrf.mxu0
        %v8335 = vadd.f32 %v8255, %v8334
        %v8336 = vpop.f32.mrf.mxu0
        %v8337 = vadd.f32 %v8259, %v8336
        %8338 = vmatprep.mubr.f32.mxu0 0.0
        %8339 = vmatmul.mubr.f32.gmra.mxu0 %v8204
        %v8340 = vpop.f32.mrf.mxu0
        %v8341 = vadd.f32 %v8255, %v8340
        %v8342 = vpop.f32.mrf.mxu0
        %v8343 = vadd.f32 %v8259, %v8342
        %8344 = vmatprep.mubr.f32.mxu0 0.0
        %8345 = vmatmul.mubr.f32.gmra.mxu0 %v8205
        %v8346 = vpop.f32.mrf.mxu0
        %v8347 = vadd.f32 %v8255, %v8346
        %v8348 = vpop.f32.mrf.mxu0
        %v8349 = vadd.f32 %v8259, %v8348
        %8350 = vmatprep.mubr.f32.mxu0 0.0
        %8351 = vmatmul.mubr.f32.gmra.mxu0 %v8206
        %v8352 = vpop.f32.mrf.mxu0
        %v8353 = vadd.f32 %v8255, %v8352
        %v8354 = vpop.f32.mrf.mxu0
        %v8355 = vadd.f32 %v8259, %v8354
        %8356 = vmatprep.mubr.f32.mxu0 0.0
        %8357 = vmatmul.mubr.f32.gmra.mxu0 %v8207
        %v8358 = vpop.f32.mrf.mxu0
        %v8359 = vadd.f32 %v8255, %v8358
        %v8360 = vpop.f32.mrf.mxu0
        %v8361 = vadd.f32 %v8259, %v8360
        %8362 = vmatprep.mubr.f32.mxu0 0.0
        %8363 = vmatmul.mubr.f32.gmra.mxu0 %v8208
        %v8364 = vpop.f32.mrf.mxu0
        %v8365 = vadd.f32 %v8255, %v8364
        %v8366 = vpop.f32.mrf.mxu0
        %v8367 = vadd.f32 %v8259, %v8366
        %8368 = vmatprep.mubr.f32.mxu0 0.0
        %8369 = vmatmul.mubr.f32.gmra.mxu0 %v8209
        %v8370 = vpop.f32.mrf.mxu0
        %v8371 = vadd.f32 %v8255, %v8370
        %v8372 = vpop.f32.mrf.mxu0
        %v8373 = vadd.f32 %v8259, %v8372
        %8374 = vmatprep.mubr.f32.mxu0 0.0
        %8375 = vmatmul.mubr.f32.gmra.mxu0 %v8210
        %v8376 = vpop.f32.mrf.mxu0
        %v8377 = vadd.f32 %v8255, %v8376
        %v8378 = vpop.f32.mrf.mxu0
        %v8379 = vadd.f32 %v8259, %v8378
        %8380 = vmatprep.mubr.f32.mxu0 0.0
        %8381 = vmatmul.mubr.f32.gmra.mxu0 %v8211
        %v8382 = vpop.f32.mrf.mxu0
        %v8383 = vadd.f32 %v8255, %v8382
        %v8384 = vpop.f32.mrf.mxu0
        %v8385 = vadd.f32 %v8259, %v8384
        %8386 = vmatprep.mubr.f32.mxu0 0.0
        %8387 = vmatmul.mubr.f32.gmra.mxu0 %v8212
        %v8388 = vpop.f32.mrf.mxu0
        %v8389 = vadd.f32 %v8255, %v8388
        %v8390 = vpop.f32.mrf.mxu0
        %v8391 = vadd.f32 %v8259, %v8390
        %8392 = vmatprep.mubr.f32.mxu0 0.0
        %8393 = vmatmul.mubr.f32.gmra.mxu0 %v8213
        %v8394 = vpop.f32.mrf.mxu0
        %v8395 = vadd.f32 %v8255, %v8394
        %v8396 = vpop.f32.mrf.mxu0
        %v8397 = vadd.f32 %v8259, %v8396
        %8398 = vmatprep.mubr.f32.mxu0 0.0
        %8399 = vmatmul.mubr.f32.gmra.mxu0 %v8214
        %v8400 = vpop.f32.mrf.mxu0
        %v8401 = vadd.f32 %v8255, %v8400
        %v8402 = vpop.f32.mrf.mxu0
        %v8403 = vadd.f32 %v8259, %v8402
        %8404 = vmatprep.mubr.f32.mxu0 0.0
        %8405 = vmatmul.mubr.f32.gmra.mxu0 %v8215
        %v8406 = vpop.f32.mrf.mxu0
        %v8407 = vadd.f32 %v8255, %v8406
        %v8408 = vpop.f32.mrf.mxu0
        %v8409 = vadd.f32 %v8259, %v8408
        %8410 = vmatprep.mubr.f32.mxu0 0.0
        %8411 = vmatmul.mubr.f32.gmra.mxu0 %v8216
        %v8412 = vpop.f32.mrf.mxu0
        %v8413 = vadd.f32 %v8255, %v8412
        %v8414 = vpop.f32.mrf.mxu0
        %v8415 = vadd.f32 %v8259, %v8414
        %8416 = vmatprep.mubr.f32.mxu0 0.0
        %8417 = vmatmul.mubr.f32.gmra.mxu0 %v8217
        %v8418 = vpop.f32.mrf.mxu0
        %v8419 = vadd.f32 %v8255, %v8418
        %v8420 = vpop.f32.mrf.mxu0
        %v8421 = vadd.f32 %v8259, %v8420
        %8422 = vdwg.mxu0
        %v8423 = vmax.f32 %v8329, 0.0
        %v8424 = vmax.f32 %v8331, 0.0
        %v8425 = vmax.f32 %v8335, 0.0
        %v8426 = vmax.f32 %v8337, 0.0
        %v8427 = vmax.f32 %v8341, 0.0
        %v8428 = vmax.f32 %v8343, 0.0
        %v8429 = vmax.f32 %v8347, 0.0
        %v8430 = vmax.f32 %v8349, 0.0
        %v8431 = vmax.f32 %v8353, 0.0
        %v8432 = vmax.f32 %v8355, 0.0
        %v8433 = vmax.f32 %v8359, 0.0
        %v8434 = vmax.f32 %v8361, 0.0
        %v8435 = vmax.f32 %v8365, 0.0
        %v8436 = vmax.f32 %v8367, 0.0
        %v8437 = vmax.f32 %v8371, 0.0
        %v8438 = vmax.f32 %v8373, 0.0
        %v8439 = vmax.f32 %v8377, 0.0
        %v8440 = vmax.f32 %v8379, 0.0
        %v8441 = vmax.f32 %v8383, 0.0
        %v8442 = vmax.f32 %v8385, 0.0
        %v8443 = vmax.f32 %v8389, 0.0
        %v8444 = vmax.f32 %v8391, 0.0
        %v8445 = vmax.f32 %v8395, 0.0
        %v8446 = vmax.f32 %v8397, 0.0
        %v8447 = vmax.f32 %v8401, 0.0
        %v8448 = vmax.f32 %v8403, 0.0
        %v8449 = vmax.f32 %v8407, 0.0
        %v8450 = vmax.f32 %v8409, 0.0
        %v8451 = vmax.f32 %v8413, 0.0
        %v8452 = vmax.f32 %v8415, 0.0
        %v8453 = vmax.f32 %v8419, 0.0
        %v8454 = vmax.f32 %v8421, 0.0
        %v8455 = vld [vmem:[#allocation10] sm:$0xff]
        %v8456 = vld [vmem:[#allocation10 + $0x8] sm:$0xff]
        %v8457 = vld [vmem:[#allocation10 + $0x10] sm:$0xff]
        %v8458 = vld [vmem:[#allocation10 + $0x18] sm:$0xff]
        %v8459 = vld [vmem:[#allocation10 + $0x20] sm:$0xff]
        %v8460 = vld [vmem:[#allocation10 + $0x28] sm:$0xff]
        %v8461 = vld [vmem:[#allocation10 + $0x30] sm:$0xff]
        %v8462 = vld [vmem:[#allocation10 + $0x38] sm:$0xff]
        %v8463 = vld [vmem:[#allocation10 + $0x40] sm:$0xff]
        %v8464 = vld [vmem:[#allocation10 + $0x48] sm:$0xff]
        %v8465 = vld [vmem:[#allocation10 + $0x50] sm:$0xff]
        %v8466 = vld [vmem:[#allocation10 + $0x58] sm:$0xff]
        %v8467 = vld [vmem:[#allocation10 + $0x60] sm:$0xff]
        %v8468 = vld [vmem:[#allocation10 + $0x68] sm:$0xff]
        %v8469 = vld [vmem:[#allocation10 + $0x70] sm:$0xff]
        %v8470 = vld [vmem:[#allocation10 + $0x78] sm:$0xff]
        %v8471 = vld [vmem:[#allocation10 + $0x80] sm:$0xff]
        %v8472 = vld [vmem:[#allocation10 + $0x88] sm:$0xff]
        %v8473 = vld [vmem:[#allocation10 + $0x90] sm:$0xff]
        %v8474 = vld [vmem:[#allocation10 + $0x98] sm:$0xff]
        %v8475 = vld [vmem:[#allocation10 + $0xa0] sm:$0xff]
        %v8476 = vld [vmem:[#allocation10 + $0xa8] sm:$0xff]
        %v8477 = vld [vmem:[#allocation10 + $0xb0] sm:$0xff]
        %v8478 = vld [vmem:[#allocation10 + $0xb8] sm:$0xff]
        %v8479 = vld [vmem:[#allocation10 + $0xc0] sm:$0xff]
        %v8480 = vld [vmem:[#allocation10 + $0xc8] sm:$0xff]
        %v8481 = vld [vmem:[#allocation10 + $0xd0] sm:$0xff]
        %v8482 = vld [vmem:[#allocation10 + $0xd8] sm:$0xff]
        %v8483 = vld [vmem:[#allocation10 + $0xe0] sm:$0xff]
        %v8484 = vld [vmem:[#allocation10 + $0xe8] sm:$0xff]
        %v8485 = vld [vmem:[#allocation10 + $0xf0] sm:$0xff]
        %v8486 = vld [vmem:[#allocation10 + $0xf8] sm:$0xff]
        %v8487 = vlaneseq
        %v8488 = vshrl.u32 %v8487, 7
        %v8489 = vsub.s32 0, %v8488
        %v8490 = vrot.slane %v401, %v8489
        %8491 = vmatprep.subr.mxu0 0.0
        %8492 = vmatpush1.msra.mxu0 %v8470
        %8493 = vmatprep.subr.mxu0 0.0
        %8494 = vmatpush1.msra.mxu0 %v8469
        %8495 = vmatprep.subr.mxu0 0.0
        %8496 = vmatpush1.msra.mxu0 %v8468
        %8497 = vmatprep.subr.mxu0 0.0
        %8498 = vmatpush1.msra.mxu0 %v8467
        %8499 = vmatprep.subr.mxu0 0.0
        %8500 = vmatpush1.msra.mxu0 %v8466
        %8501 = vmatprep.subr.mxu0 0.0
        %8502 = vmatpush1.msra.mxu0 %v8465
        %8503 = vmatprep.subr.mxu0 0.0
        %8504 = vmatpush1.msra.mxu0 %v8464
        %8505 = vmatprep.subr.mxu0 0.0
        %8506 = vmatpush1.msra.mxu0 %v8463
        %8507 = vmatprep.subr.mxu0 0.0
        %8508 = vmatpush1.msra.mxu0 %v8462
        %8509 = vmatprep.subr.mxu0 0.0
        %8510 = vmatpush1.msra.mxu0 %v8461
        %8511 = vmatprep.subr.mxu0 0.0
        %8512 = vmatpush1.msra.mxu0 %v8460
        %8513 = vmatprep.subr.mxu0 0.0
        %8514 = vmatpush1.msra.mxu0 %v8459
        %8515 = vmatprep.subr.mxu0 0.0
        %8516 = vmatpush1.msra.mxu0 %v8458
        %8517 = vmatprep.subr.mxu0 0.0
        %8518 = vmatpush1.msra.mxu0 %v8457
        %8519 = vmatprep.subr.mxu0 0.0
        %8520 = vmatpush1.msra.mxu0 %v8456
        %8521 = vmatprep.subr.mxu0 0.0
        %8522 = vmatpush1.msra.mxu0 %v8455
        %8523 = vmatprep.subr.mxu0 0.0
        %8524 = vmatpush2.msra.mxu0 %v8486
        %8525 = vmatprep.subr.mxu0 0.0
        %8526 = vmatpush2.msra.mxu0 %v8485
        %8527 = vmatprep.subr.mxu0 0.0
        %8528 = vmatpush2.msra.mxu0 %v8484
        %8529 = vmatprep.subr.mxu0 0.0
        %8530 = vmatpush2.msra.mxu0 %v8483
        %8531 = vmatprep.subr.mxu0 0.0
        %8532 = vmatpush2.msra.mxu0 %v8482
        %8533 = vmatprep.subr.mxu0 0.0
        %8534 = vmatpush2.msra.mxu0 %v8481
        %8535 = vmatprep.subr.mxu0 0.0
        %8536 = vmatpush2.msra.mxu0 %v8480
        %8537 = vmatprep.subr.mxu0 0.0
        %8538 = vmatpush2.msra.mxu0 %v8479
        %8539 = vmatprep.subr.mxu0 0.0
        %8540 = vmatpush2.msra.mxu0 %v8478
        %8541 = vmatprep.subr.mxu0 0.0
        %8542 = vmatpush2.msra.mxu0 %v8477
        %8543 = vmatprep.subr.mxu0 0.0
        %8544 = vmatpush2.msra.mxu0 %v8476
        %8545 = vmatprep.subr.mxu0 0.0
        %8546 = vmatpush2.msra.mxu0 %v8475
        %8547 = vmatprep.subr.mxu0 0.0
        %8548 = vmatpush2.msra.mxu0 %v8474
        %8549 = vmatprep.subr.mxu0 0.0
        %8550 = vmatpush2.msra.mxu0 %v8473
        %8551 = vmatprep.subr.mxu0 0.0
        %8552 = vmatpush2.msra.mxu0 %v8472
        %8553 = vmatprep.subr.mxu0 0.0
        %8554 = vmatpush2.msra.mxu0 %v8471
        %8555 = vmatprep.mubr.f32.mxu0 %v8424
        %8556 = vmatmul.mubr.f32.gmra.mxu0 %v8423
        %v8557 = vpop.f32.mrf.mxu0
        %v8558 = vadd.f32 %v8490, %v8557
        %v8559 = vpop.f32.mrf.mxu0
        %8560 = vmatprep.mubr.f32.mxu0 %v8426
        %8561 = vmatmul.mubr.f32.gmra.mxu0 %v8425
        %v8562 = vpop.f32.mrf.mxu0
        %v8563 = vadd.f32 %v8490, %v8562
        %v8564 = vpop.f32.mrf.mxu0
        %8565 = vmatprep.mubr.f32.mxu0 %v8428
        %8566 = vmatmul.mubr.f32.gmra.mxu0 %v8427
        %v8567 = vpop.f32.mrf.mxu0
        %v8568 = vadd.f32 %v8490, %v8567
        %v8569 = vpop.f32.mrf.mxu0
        %8570 = vmatprep.mubr.f32.mxu0 %v8430
        %8571 = vmatmul.mubr.f32.gmra.mxu0 %v8429
        %v8572 = vpop.f32.mrf.mxu0
        %v8573 = vadd.f32 %v8490, %v8572
        %v8574 = vpop.f32.mrf.mxu0
        %8575 = vmatprep.mubr.f32.mxu0 %v8432
        %8576 = vmatmul.mubr.f32.gmra.mxu0 %v8431
        %v8577 = vpop.f32.mrf.mxu0
        %v8578 = vadd.f32 %v8490, %v8577
        %v8579 = vpop.f32.mrf.mxu0
        %8580 = vmatprep.mubr.f32.mxu0 %v8434
        %8581 = vmatmul.mubr.f32.gmra.mxu0 %v8433
        %v8582 = vpop.f32.mrf.mxu0
        %v8583 = vadd.f32 %v8490, %v8582
        %v8584 = vpop.f32.mrf.mxu0
        %8585 = vmatprep.mubr.f32.mxu0 %v8436
        %8586 = vmatmul.mubr.f32.gmra.mxu0 %v8435
        %v8587 = vpop.f32.mrf.mxu0
        %v8588 = vadd.f32 %v8490, %v8587
        %v8589 = vpop.f32.mrf.mxu0
        %8590 = vmatprep.mubr.f32.mxu0 %v8438
        %8591 = vmatmul.mubr.f32.gmra.mxu0 %v8437
        %v8592 = vpop.f32.mrf.mxu0
        %v8593 = vadd.f32 %v8490, %v8592
        %v8594 = vpop.f32.mrf.mxu0
        %8595 = vmatprep.mubr.f32.mxu0 %v8440
        %8596 = vmatmul.mubr.f32.gmra.mxu0 %v8439
        %v8597 = vpop.f32.mrf.mxu0
        %v8598 = vadd.f32 %v8490, %v8597
        %v8599 = vpop.f32.mrf.mxu0
        %8600 = vmatprep.mubr.f32.mxu0 %v8442
        %8601 = vmatmul.mubr.f32.gmra.mxu0 %v8441
        %v8602 = vpop.f32.mrf.mxu0
        %v8603 = vadd.f32 %v8490, %v8602
        %v8604 = vpop.f32.mrf.mxu0
        %8605 = vmatprep.mubr.f32.mxu0 %v8444
        %8606 = vmatmul.mubr.f32.gmra.mxu0 %v8443
        %v8607 = vpop.f32.mrf.mxu0
        %v8608 = vadd.f32 %v8490, %v8607
        %v8609 = vpop.f32.mrf.mxu0
        %8610 = vmatprep.mubr.f32.mxu0 %v8446
        %8611 = vmatmul.mubr.f32.gmra.mxu0 %v8445
        %v8612 = vpop.f32.mrf.mxu0
        %v8613 = vadd.f32 %v8490, %v8612
        %v8614 = vpop.f32.mrf.mxu0
        %8615 = vmatprep.mubr.f32.mxu0 %v8448
        %8616 = vmatmul.mubr.f32.gmra.mxu0 %v8447
        %v8617 = vpop.f32.mrf.mxu0
        %v8618 = vadd.f32 %v8490, %v8617
        %v8619 = vpop.f32.mrf.mxu0
        %8620 = vmatprep.mubr.f32.mxu0 %v8450
        %8621 = vmatmul.mubr.f32.gmra.mxu0 %v8449
        %v8622 = vpop.f32.mrf.mxu0
        %v8623 = vadd.f32 %v8490, %v8622
        %v8624 = vpop.f32.mrf.mxu0
        %8625 = vmatprep.mubr.f32.mxu0 %v8452
        %8626 = vmatmul.mubr.f32.gmra.mxu0 %v8451
        %v8627 = vpop.f32.mrf.mxu0
        %v8628 = vadd.f32 %v8490, %v8627
        %v8629 = vpop.f32.mrf.mxu0
        %8630 = vmatprep.mubr.f32.mxu0 %v8454
        %8631 = vmatmul.mubr.f32.gmra.mxu0 %v8453
        %v8632 = vpop.f32.mrf.mxu0
        %v8633 = vadd.f32 %v8490, %v8632
        %v8634 = vpop.f32.mrf.mxu0
        %8635 = vdwg.mxu0
        %v8636 = vadd.f32 %v8202, %v8558
        %v8637 = vadd.f32 %v8203, %v8563
        %v8638 = vadd.f32 %v8204, %v8568
        %v8639 = vadd.f32 %v8205, %v8573
        %v8640 = vadd.f32 %v8206, %v8578
        %v8641 = vadd.f32 %v8207, %v8583
        %v8642 = vadd.f32 %v8208, %v8588
        %v8643 = vadd.f32 %v8209, %v8593
        %v8644 = vadd.f32 %v8210, %v8598
        %v8645 = vadd.f32 %v8211, %v8603
        %v8646 = vadd.f32 %v8212, %v8608
        %v8647 = vadd.f32 %v8213, %v8613
        %v8648 = vadd.f32 %v8214, %v8618
        %v8649 = vadd.f32 %v8215, %v8623
        %v8650 = vadd.f32 %v8216, %v8628
        %v8651 = vadd.f32 %v8217, %v8633
        %8652 = vadd.xlane.f32.xlu0 %v8636
        %v8653 = vpop.xlane.xlu0 %8652
        %8654 = vadd.xlane.f32.xlu0 %v8637
        %v8655 = vpop.xlane.xlu0 %8654
        %8656 = vadd.xlane.f32.xlu0 %v8638
        %v8657 = vpop.xlane.xlu0 %8656
        %8658 = vadd.xlane.f32.xlu0 %v8639
        %v8659 = vpop.xlane.xlu0 %8658
        %8660 = vadd.xlane.f32.xlu0 %v8640
        %v8661 = vpop.xlane.xlu0 %8660
        %8662 = vadd.xlane.f32.xlu0 %v8641
        %v8663 = vpop.xlane.xlu0 %8662
        %8664 = vadd.xlane.f32.xlu0 %v8642
        %v8665 = vpop.xlane.xlu0 %8664
        %8666 = vadd.xlane.f32.xlu0 %v8643
        %v8667 = vpop.xlane.xlu0 %8666
        %8668 = vadd.xlane.f32.xlu0 %v8644
        %v8669 = vpop.xlane.xlu0 %8668
        %8670 = vadd.xlane.f32.xlu0 %v8645
        %v8671 = vpop.xlane.xlu0 %8670
        %8672 = vadd.xlane.f32.xlu0 %v8646
        %v8673 = vpop.xlane.xlu0 %8672
        %8674 = vadd.xlane.f32.xlu0 %v8647
        %v8675 = vpop.xlane.xlu0 %8674
        %8676 = vadd.xlane.f32.xlu0 %v8648
        %v8677 = vpop.xlane.xlu0 %8676
        %8678 = vadd.xlane.f32.xlu0 %v8649
        %v8679 = vpop.xlane.xlu0 %8678
        %8680 = vadd.xlane.f32.xlu0 %v8650
        %v8681 = vpop.xlane.xlu0 %8680
        %8682 = vadd.xlane.f32.xlu0 %v8651
        %v8683 = vpop.xlane.xlu0 %8682
        %v8684 = vmul.f32 %v8653, %v8033
        %v8685 = vmul.f32 %v8655, %v8033
        %v8686 = vmul.f32 %v8657, %v8033
        %v8687 = vmul.f32 %v8659, %v8033
        %v8688 = vmul.f32 %v8661, %v8033
        %v8689 = vmul.f32 %v8663, %v8033
        %v8690 = vmul.f32 %v8665, %v8033
        %v8691 = vmul.f32 %v8667, %v8033
        %v8692 = vmul.f32 %v8669, %v8033
        %v8693 = vmul.f32 %v8671, %v8033
        %v8694 = vmul.f32 %v8673, %v8033
        %v8695 = vmul.f32 %v8675, %v8033
        %v8696 = vmul.f32 %v8677, %v8033
        %v8697 = vmul.f32 %v8679, %v8033
        %v8698 = vmul.f32 %v8681, %v8033
        %v8699 = vmul.f32 %v8683, %v8033
        %v8700 = vsub.f32 %v8636, %v8684
        %v8701 = vsub.f32 %v8637, %v8685
        %v8702 = vsub.f32 %v8638, %v8686
        %v8703 = vsub.f32 %v8639, %v8687
        %v8704 = vsub.f32 %v8640, %v8688
        %v8705 = vsub.f32 %v8641, %v8689
        %v8706 = vsub.f32 %v8642, %v8690
        %v8707 = vsub.f32 %v8643, %v8691
        %v8708 = vsub.f32 %v8644, %v8692
        %v8709 = vsub.f32 %v8645, %v8693
        %v8710 = vsub.f32 %v8646, %v8694
        %v8711 = vsub.f32 %v8647, %v8695
        %v8712 = vsub.f32 %v8648, %v8696
        %v8713 = vsub.f32 %v8649, %v8697
        %v8714 = vsub.f32 %v8650, %v8698
        %v8715 = vsub.f32 %v8651, %v8699
        %v8716 = vmul.f32 %v8700, %v8700
        %v8717 = vmul.f32 %v8701, %v8701
        %v8718 = vmul.f32 %v8702, %v8702
        %v8719 = vmul.f32 %v8703, %v8703
        %v8720 = vmul.f32 %v8704, %v8704
        %v8721 = vmul.f32 %v8705, %v8705
        %v8722 = vmul.f32 %v8706, %v8706
        %v8723 = vmul.f32 %v8707, %v8707
        %v8724 = vmul.f32 %v8708, %v8708
        %v8725 = vmul.f32 %v8709, %v8709
        %v8726 = vmul.f32 %v8710, %v8710
        %v8727 = vmul.f32 %v8711, %v8711
        %v8728 = vmul.f32 %v8712, %v8712
        %v8729 = vmul.f32 %v8713, %v8713
        %v8730 = vmul.f32 %v8714, %v8714
        %v8731 = vmul.f32 %v8715, %v8715
        %8732 = vadd.xlane.f32.xlu0 %v8716
        %v8733 = vpop.xlane.xlu0 %8732
        %8734 = vadd.xlane.f32.xlu0 %v8717
        %v8735 = vpop.xlane.xlu0 %8734
        %8736 = vadd.xlane.f32.xlu0 %v8718
        %v8737 = vpop.xlane.xlu0 %8736
        %8738 = vadd.xlane.f32.xlu0 %v8719
        %v8739 = vpop.xlane.xlu0 %8738
        %8740 = vadd.xlane.f32.xlu0 %v8720
        %v8741 = vpop.xlane.xlu0 %8740
        %8742 = vadd.xlane.f32.xlu0 %v8721
        %v8743 = vpop.xlane.xlu0 %8742
        %8744 = vadd.xlane.f32.xlu0 %v8722
        %v8745 = vpop.xlane.xlu0 %8744
        %8746 = vadd.xlane.f32.xlu0 %v8723
        %v8747 = vpop.xlane.xlu0 %8746
        %8748 = vadd.xlane.f32.xlu0 %v8724
        %v8749 = vpop.xlane.xlu0 %8748
        %8750 = vadd.xlane.f32.xlu0 %v8725
        %v8751 = vpop.xlane.xlu0 %8750
        %8752 = vadd.xlane.f32.xlu0 %v8726
        %v8753 = vpop.xlane.xlu0 %8752
        %8754 = vadd.xlane.f32.xlu0 %v8727
        %v8755 = vpop.xlane.xlu0 %8754
        %8756 = vadd.xlane.f32.xlu0 %v8728
        %v8757 = vpop.xlane.xlu0 %8756
        %8758 = vadd.xlane.f32.xlu0 %v8729
        %v8759 = vpop.xlane.xlu0 %8758
        %8760 = vadd.xlane.f32.xlu0 %v8730
        %v8761 = vpop.xlane.xlu0 %8760
        %8762 = vadd.xlane.f32.xlu0 %v8731
        %v8763 = vpop.xlane.xlu0 %8762
        %v8764 = vmul.f32 %v8733, %v8033
        %v8765 = vmul.f32 %v8735, %v8033
        %v8766 = vmul.f32 %v8737, %v8033
        %v8767 = vmul.f32 %v8739, %v8033
        %v8768 = vmul.f32 %v8741, %v8033
        %v8769 = vmul.f32 %v8743, %v8033
        %v8770 = vmul.f32 %v8745, %v8033
        %v8771 = vmul.f32 %v8747, %v8033
        %v8772 = vmul.f32 %v8749, %v8033
        %v8773 = vmul.f32 %v8751, %v8033
        %v8774 = vmul.f32 %v8753, %v8033
        %v8775 = vmul.f32 %v8755, %v8033
        %v8776 = vmul.f32 %v8757, %v8033
        %v8777 = vmul.f32 %v8759, %v8033
        %v8778 = vmul.f32 %v8761, %v8033
        %v8779 = vmul.f32 %v8763, %v8033
        %v8780 = vadd.f32 %v8764, 1e-05
        %v8781 = vadd.f32 %v8765, 1e-05
        %v8782 = vadd.f32 %v8766, 1e-05
        %v8783 = vadd.f32 %v8767, 1e-05
        %v8784 = vadd.f32 %v8768, 1e-05
        %v8785 = vadd.f32 %v8769, 1e-05
        %v8786 = vadd.f32 %v8770, 1e-05
        %v8787 = vadd.f32 %v8771, 1e-05
        %v8788 = vadd.f32 %v8772, 1e-05
        %v8789 = vadd.f32 %v8773, 1e-05
        %v8790 = vadd.f32 %v8774, 1e-05
        %v8791 = vadd.f32 %v8775, 1e-05
        %v8792 = vadd.f32 %v8776, 1e-05
        %v8793 = vadd.f32 %v8777, 1e-05
        %v8794 = vadd.f32 %v8778, 1e-05
        %v8795 = vadd.f32 %v8779, 1e-05
        %v8796 = vrsqrt.pop %v8780
        %v8797 = vrsqrt.pop %v8781
        %v8798 = vrsqrt.pop %v8782
        %v8799 = vrsqrt.pop %v8783
        %v8800 = vrsqrt.pop %v8784
        %v8801 = vrsqrt.pop %v8785
        %v8802 = vrsqrt.pop %v8786
        %v8803 = vrsqrt.pop %v8787
        %v8804 = vrsqrt.pop %v8788
        %v8805 = vrsqrt.pop %v8789
        %v8806 = vrsqrt.pop %v8790
        %v8807 = vrsqrt.pop %v8791
        %v8808 = vrsqrt.pop %v8792
        %v8809 = vrsqrt.pop %v8793
        %v8810 = vrsqrt.pop %v8794
        %v8811 = vrsqrt.pop %v8795
        %v8812 = vmul.f32 %v8700, %v8796
        %v8813 = vmul.f32 %v8701, %v8797
        %v8814 = vmul.f32 %v8702, %v8798
        %v8815 = vmul.f32 %v8703, %v8799
        %v8816 = vmul.f32 %v8704, %v8800
        %v8817 = vmul.f32 %v8705, %v8801
        %v8818 = vmul.f32 %v8706, %v8802
        %v8819 = vmul.f32 %v8707, %v8803
        %v8820 = vmul.f32 %v8708, %v8804
        %v8821 = vmul.f32 %v8709, %v8805
        %v8822 = vmul.f32 %v8710, %v8806
        %v8823 = vmul.f32 %v8711, %v8807
        %v8824 = vmul.f32 %v8712, %v8808
        %v8825 = vmul.f32 %v8713, %v8809
        %v8826 = vmul.f32 %v8714, %v8810
        %v8827 = vmul.f32 %v8715, %v8811
        %v8828 = vlaneseq
        %v8829 = vshrl.u32 %v8828, 7
        %v8830 = vsub.s32 0, %v8829
        %v8831 = vrot.slane %v402, %v8830
        %v8832 = vmul.f32 %v8812, %v8831
        %v8833 = vmul.f32 %v8813, %v8831
        %v8834 = vmul.f32 %v8814, %v8831
        %v8835 = vmul.f32 %v8815, %v8831
        %v8836 = vmul.f32 %v8816, %v8831
        %v8837 = vmul.f32 %v8817, %v8831
        %v8838 = vmul.f32 %v8818, %v8831
        %v8839 = vmul.f32 %v8819, %v8831
        %v8840 = vmul.f32 %v8820, %v8831
        %v8841 = vmul.f32 %v8821, %v8831
        %v8842 = vmul.f32 %v8822, %v8831
        %v8843 = vmul.f32 %v8823, %v8831
        %v8844 = vmul.f32 %v8824, %v8831
        %v8845 = vmul.f32 %v8825, %v8831
        %v8846 = vmul.f32 %v8826, %v8831
        %v8847 = vmul.f32 %v8827, %v8831
        %v8848 = vlaneseq
        %v8849 = vshrl.u32 %v8848, 7
        %v8850 = vsub.s32 0, %v8849
        %v8851 = vrot.slane %v403, %v8850
        %v8852 = vadd.f32 %v8832, %v8851
        %v8853 = vadd.f32 %v8833, %v8851
        %v8854 = vadd.f32 %v8834, %v8851
        %v8855 = vadd.f32 %v8835, %v8851
        %v8856 = vadd.f32 %v8836, %v8851
        %v8857 = vadd.f32 %v8837, %v8851
        %v8858 = vadd.f32 %v8838, %v8851
        %v8859 = vadd.f32 %v8839, %v8851
        %v8860 = vadd.f32 %v8840, %v8851
        %v8861 = vadd.f32 %v8841, %v8851
        %v8862 = vadd.f32 %v8842, %v8851
        %v8863 = vadd.f32 %v8843, %v8851
        %v8864 = vadd.f32 %v8844, %v8851
        %v8865 = vadd.f32 %v8845, %v8851
        %v8866 = vadd.f32 %v8846, %v8851
        %v8867 = vadd.f32 %v8847, %v8851
        %8868 = vst [vmem:[%s395] sm:$0xff] %v8852
        %8869 = vst [vmem:[%s395 + $0x8] sm:$0xff] %v8853
        %8870 = vst [vmem:[%s395 + $0x10] sm:$0xff] %v8854
        %8871 = vst [vmem:[%s395 + $0x18] sm:$0xff] %v8855
        %8872 = vst [vmem:[%s395 + $0x20] sm:$0xff] %v8856
        %8873 = vst [vmem:[%s395 + $0x28] sm:$0xff] %v8857
        %8874 = vst [vmem:[%s395 + $0x30] sm:$0xff] %v8858
        %8875 = vst [vmem:[%s395 + $0x38] sm:$0xff] %v8859
        %8876 = vst [vmem:[%s395 + $0x40] sm:$0xff] %v8860
        %8877 = vst [vmem:[%s395 + $0x48] sm:$0xff] %v8861
        %8878 = vst [vmem:[%s395 + $0x50] sm:$0xff] %v8862
        %8879 = vst [vmem:[%s395 + $0x58] sm:$0xff] %v8863
        %8880 = vst [vmem:[%s395 + $0x60] sm:$0xff] %v8864
        %8881 = vst [vmem:[%s395 + $0x68] sm:$0xff] %v8865
        %8882 = vst [vmem:[%s395 + $0x70] sm:$0xff] %v8866
        %8883 = vst [vmem:[%s395 + $0x78] sm:$0xff] %v8867
        %s8884 = sand.u32 %s209, 1
        %s8885 = scalar_lea.sflag [#allocation4], %s8884
        %s8886 = sand.u32 %s209, 1
        %s8887 = smul.addr %s8886, 128
        %s8888 = scalar_lea.vmem [#allocation13], %s8887
        // Predicated region
        $region77: #{tpu_custom_call.1} parent=51 // pred_check
          %p8889 = pneg %p219
        $region78: #{tpu_custom_call.1} parent=51 // pred_check_branch
          %8891 = sbr.rel (%p8889) target = $region80
        $region79: #{tpu_custom_call.1} parent=51 // pred_region
          %s8892 = smul.u32 8, %s28
          %s8894 = ssub.s32 2048, 2048
          %8895 = vsyncadd %s8885, %s8894
          %s8896 = smul.addr %s8892, 2
          %s8897 = smul.addr %s8896, 128
          %s8898 = scalar_lea.hbm %s8, %s8897
          %s8899 = sshll.u32 %s8888, 4
          %s8900 = int_to_ptr.vmem [resolvable:$true] %s8899
          %8905 = dma.vmem_to_hbm [thread:$0]  %s8900, 2048, %s8898, %s8885, 128, 128, 8
        $region80: #{tpu_custom_call.1} parent=51 // pred_fallthru
          _
      $region52: #{tpu_custom_call.1} parent=5 // pred_fallthru
        _
      %p8906 = scmp.le.s32.totalorder 2, %s23
      // Predicated region
      $region81: #{tpu_custom_call.1} parent=5 // pred_check
        %p8907 = pneg %p8906
      $region82: #{tpu_custom_call.1} parent=5 // pred_check_branch
        %8909 = sbr.rel (%p8907) target = $region84
      $region83: #{tpu_custom_call.1} parent=5 // pred_region
        %s8910 = ssub.s32 %s23, 2
        // Predicated region
        $region85: #{tpu_custom_call.1} parent=83 // pred_check
          %p8911 = pneg %p225
        $region86: #{tpu_custom_call.1} parent=83 // pred_check_branch
          %8913 = sbr.rel (%p8911) target = $region88
        $region87: #{tpu_custom_call.1} parent=83 // pred_region
          %s8914 = sand.u32 %s210, 1
          %s8915 = scalar_lea.sflag [#allocation4], %s8914
          %s8916 = sand.u32 %s210, 1
          %s8917 = smul.addr %s8916, 128
          %s8918 = scalar_lea.vmem [#allocation13], %s8917
          %8919 = dma.done %s8915, 2048
        $region88: #{tpu_custom_call.1} parent=83 // pred_fallthru
          _
      $region84: #{tpu_custom_call.1} parent=5 // pred_fallthru
        _
    $region6: #{tpu_custom_call.1} parent=1 // loop_footer
      %s27 = sadd.s32 1, %s23
    $region7: #{tpu_custom_call.1} parent=1 // loop_footer_branch
      %22 = sbr.rel target = $region3
    $region8: #{tpu_custom_call.1} parent=1 // loop_exit
      _
    %8920 = vsyncpa [#allocation3], 1
    %s8921 = scalar_lea.sflag [#allocation3], 1
    %8922 = vsyncpa %s8921, 1
    %8923 = vsyncpa [#allocation6], 1
    %8924 = vsyncpa [#allocation9], 1
    %8925 = vsyncpa [#allocation12], 1
    %8926 = vsyncpa [#allocation4], 1
    %s8927 = scalar_lea.sflag [#allocation4], 1
    %8928 = vsyncpa %s8927, 1

</llo_original>
